<compile_context>
chip_gen: v6e
topology: v6e:2x2x1
jax: 0.10.0
libtpu: 0.0.40
codegen_flags: <defaults>
</compile_context>

<pallas_src>
import functools

import jax
import jax.numpy as jnp
from jax.experimental import pallas as pl
from jax.experimental.pallas import tpu as pltpu

LANE = 128


def _round_up(n, m):
    return ((n + m - 1) // m) * m


def _autoencoder_kernel(x_ref, *refs, n_layers):
    """Fused forward pass on one batch tile.

    refs = (w1, b1, ..., w8, b8, out_ref); weights bf16 (lane-padded),
    biases f32 (1, out), f32 accumulation, ReLU on all but the last layer.
    """
    out_ref = refs[-1]
    params = refs[:-1]
    h = x_ref[...]                                     # (TB, F0_pad) f32
    for i in range(n_layers):
        w = params[2 * i][...]                         # (Fi_pad, Fo_pad) bf16
        b = params[2 * i + 1][...]                     # (1, Fo_pad) f32
        h = jnp.dot(h.astype(w.dtype), w,
                    preferred_element_type=jnp.float32) + b
        if i != n_layers - 1:                          # no ReLU on final layer
            h = jnp.maximum(h, 0.0)
    out_ref[...] = h.astype(out_ref.dtype)


def prepare_params(params, weight_dtype=jnp.bfloat16):
    """Zero-pad every Linear's (in, out) dims to multiples of 128 and cast the
    weights to bf16. Padded rows/cols (and padded bias lanes) are exactly zero,
    so padded lanes never leak into real outputs."""
    prepared = []
    for i in range(0, len(params), 2):
        w, b = params[i], params[i + 1]
        fi, fo = w.shape
        fip, fop = _round_up(fi, LANE), _round_up(fo, LANE)
        w_p = jnp.zeros((fip, fop), weight_dtype).at[:fi, :fo].set(
            w.astype(weight_dtype))
        b_p = jnp.zeros((1, fop), jnp.float32).at[:, :fo].set(
            b.astype(jnp.float32))
        prepared += [w_p, b_p]
    return prepared


def autoencoder_forward(x, prepared_params, out_features, *, batch_tile=256):
    """x: (batch, in_features) f32. prepared_params: output of prepare_params."""
    n_layers = len(prepared_params) // 2
    batch, in_features = x.shape
    in_pad = prepared_params[0].shape[0]
    out_pad = prepared_params[-2].shape[1]

    tb = min(batch_tile, _round_up(batch, 8))          # (8,128) tile constraint
    batch_pad = _round_up(batch, tb)

    x_p = jnp.zeros((batch_pad, in_pad), jnp.float32)
    x_p = x_p.at[:batch, :in_features].set(x.astype(jnp.float32))

    grid = (batch_pad // tb,)
    in_specs = [pl.BlockSpec((tb, in_pad), lambda b: (b, 0))]
    for p in prepared_params:
        # Full-array blocks, constant index -> weights stay resident in VMEM.
        in_specs.append(pl.BlockSpec(p.shape, lambda b: (0, 0)))
    out_specs = pl.BlockSpec((tb, out_pad), lambda b: (b, 0))

    flops = 2 * batch_pad * sum(
        prepared_params[2 * i].shape[0] * prepared_params[2 * i].shape[1]
        for i in range(n_layers))
    bytes_accessed = (
        sum(int(p.size) * p.dtype.itemsize for p in prepared_params)
        + int(x_p.size) * 4 + batch_pad * out_pad * 4)

    kernel = functools.partial(_autoencoder_kernel, n_layers=n_layers)
    out_p = pl.pallas_call(
        kernel,
        out_shape=jax.ShapeDtypeStruct((batch_pad, out_pad), jnp.float32),
        grid_spec=pltpu.PrefetchScalarGridSpec(
            num_scalar_prefetch=0,
            grid=grid,
            in_specs=in_specs,
            out_specs=out_specs,
        ),
        compiler_params=pltpu.CompilerParams(
            dimension_semantics=("parallel",),
            vmem_limit_bytes=32 * 1024 * 1024,
        ),
        cost_estimate=pl.CostEstimate(
            flops=flops, transcendentals=0, bytes_accessed=bytes_accessed),
    )(x_p, *prepared_params)

    return out_p[:batch, :out_features]


def init_params(key, input_features, hidden_features=125):
    """Deterministic init mimicking nn.Linear default (uniform +-1/sqrt(fan_in)).
    Weights stored as (in, out) = transpose of PyTorch's (out, in)."""
    sizes = [input_features, 1000, 500, 250, hidden_features,
             250, 500, 1000, input_features]
    params = []
    for i in range(len(sizes) - 1):
        fan_in, fan_out = sizes[i], sizes[i + 1]
        key, kw, kb = jax.random.split(key, 3)
        bound = 1.0 / jnp.sqrt(jnp.float32(fan_in))
        w = jax.random.uniform(kw, (fan_in, fan_out), jnp.float32, -bound, bound)
        b = jax.random.uniform(kb, (1, fan_out), jnp.float32, -bound, bound)
        params += [w, b]
    return params


def reference_forward(x, params, compute_dtype=jnp.float32):
    """Plain-JAX reference of the PyTorch forward. compute_dtype=bf16 emulates
    the kernel's mixed-precision matmul inputs (f32 accumulation either way)."""
    n_layers = len(params) // 2
    h = x.astype(jnp.float32)
    for i in range(n_layers):
        w = params[2 * i].astype(compute_dtype)
        b = params[2 * i + 1]
        h = jnp.dot(h.astype(compute_dtype), w,
                    preferred_element_type=jnp.float32) + b
        if i != n_layers - 1:
            h = jnp.maximum(h, 0.0)
    return h


if __name__ == "__main__":
    key = jax.random.PRNGKey(0)
    key, kx = jax.random.split(key)

    batch = 64
    input_features = 64
    hidden_features = 125

    params = init_params(key, input_features, hidden_features)
    prepared = prepare_params(params)
    x = jax.random.normal(kx, (batch, input_features), jnp.float32)

    # batch_tile=32 exercises a multi-step "parallel" batch grid even at small batch.
    out = autoencoder_forward(x, prepared, input_features, batch_tile=32)
    out = jax.block_until_ready(out)
    assert out.shape == (batch, input_features), out.shape

    # Tight check vs a plain-JAX reference with the same bf16 matmul inputs.
    ref_bf16 = reference_forward(x, params, compute_dtype=jnp.bfloat16)
    assert jnp.allclose(out, ref_bf16, atol=2e-3, rtol=2e-3), "mismatch vs bf16 reference"

    # Loose check vs the full-f32 (PyTorch-semantics) reference.
    ref_f32 = reference_forward(x, params, compute_dtype=jnp.float32)
    assert jnp.allclose(out, ref_f32, atol=5e-2, rtol=5e-2), "mismatch vs f32 reference"

    print("KERNEL_OK")
</pallas_src>

<mosaic_0001>
module attributes {stable_mosaic.version = 11 : i64} {
  func.func @_autoencoder_kernel(%arg0: i32, %arg1: memref<32x128xf32, #tpu.memory_space<vmem>>, %arg2: memref<128x1024xbf16, #tpu.memory_space<vmem>>, %arg3: memref<1x1024xf32, #tpu.memory_space<vmem>>, %arg4: memref<1024x512xbf16, #tpu.memory_space<vmem>>, %arg5: memref<1x512xf32, #tpu.memory_space<vmem>>, %arg6: memref<512x256xbf16, #tpu.memory_space<vmem>>, %arg7: memref<1x256xf32, #tpu.memory_space<vmem>>, %arg8: memref<256x128xbf16, #tpu.memory_space<vmem>>, %arg9: memref<1x128xf32, #tpu.memory_space<vmem>>, %arg10: memref<128x256xbf16, #tpu.memory_space<vmem>>, %arg11: memref<1x256xf32, #tpu.memory_space<vmem>>, %arg12: memref<256x512xbf16, #tpu.memory_space<vmem>>, %arg13: memref<1x512xf32, #tpu.memory_space<vmem>>, %arg14: memref<512x1024xbf16, #tpu.memory_space<vmem>>, %arg15: memref<1x1024xf32, #tpu.memory_space<vmem>>, %arg16: memref<1024x128xbf16, #tpu.memory_space<vmem>>, %arg17: memref<1x128xf32, #tpu.memory_space<vmem>>, %arg18: memref<32x128xf32, #tpu.memory_space<vmem>>) attributes {dimension_semantics = [#tpu.dimension_semantics<parallel>], iteration_bounds = array<i64: 2>, scalar_prefetch = 0 : i64, scratch_operands = 0 : i64, tpu.core_type = #tpu.core_type<tc>, window_params = [{transform_indices = @transform_0, window_bounds = array<i64: 32, 128>}, {pipeline_mode = #tpu.pipeline_mode<synchronous>, transform_indices = @transform_1, window_bounds = array<i64: 128, 1024>}, {pipeline_mode = #tpu.pipeline_mode<synchronous>, transform_indices = @transform_2, window_bounds = array<i64: 1, 1024>}, {pipeline_mode = #tpu.pipeline_mode<synchronous>, transform_indices = @transform_3, window_bounds = array<i64: 1024, 512>}, {pipeline_mode = #tpu.pipeline_mode<synchronous>, transform_indices = @transform_4, window_bounds = array<i64: 1, 512>}, {pipeline_mode = #tpu.pipeline_mode<synchronous>, transform_indices = @transform_5, window_bounds = array<i64: 512, 256>}, {pipeline_mode = #tpu.pipeline_mode<synchronous>, transform_indices = @transform_6, window_bounds = array<i64: 1, 256>}, {pipeline_mode = #tpu.pipeline_mode<synchronous>, transform_indices = @transform_7, window_bounds = array<i64: 256, 128>}, {pipeline_mode = #tpu.pipeline_mode<synchronous>, transform_indices = @transform_8, window_bounds = array<i64: 1, 128>}, {pipeline_mode = #tpu.pipeline_mode<synchronous>, transform_indices = @transform_9, window_bounds = array<i64: 128, 256>}, {pipeline_mode = #tpu.pipeline_mode<synchronous>, transform_indices = @transform_10, window_bounds = array<i64: 1, 256>}, {pipeline_mode = #tpu.pipeline_mode<synchronous>, transform_indices = @transform_11, window_bounds = array<i64: 256, 512>}, {pipeline_mode = #tpu.pipeline_mode<synchronous>, transform_indices = @transform_12, window_bounds = array<i64: 1, 512>}, {pipeline_mode = #tpu.pipeline_mode<synchronous>, transform_indices = @transform_13, window_bounds = array<i64: 512, 1024>}, {pipeline_mode = #tpu.pipeline_mode<synchronous>, transform_indices = @transform_14, window_bounds = array<i64: 1, 1024>}, {pipeline_mode = #tpu.pipeline_mode<synchronous>, transform_indices = @transform_15, window_bounds = array<i64: 1024, 128>}, {pipeline_mode = #tpu.pipeline_mode<synchronous>, transform_indices = @transform_16, window_bounds = array<i64: 1, 128>}, {transform_indices = @transform_17, window_bounds = array<i64: 32, 128>}]} {
    %c0 = arith.constant 0 : index
    %c0_0 = arith.constant 0 : index
    %0 = vector.load %arg1[%c0, %c0_0] : memref<32x128xf32, #tpu.memory_space<vmem>>, vector<32x128xf32>
    %c0_1 = arith.constant 0 : index
    %c0_2 = arith.constant 0 : index
    %1 = vector.load %arg2[%c0_1, %c0_2] : memref<128x1024xbf16, #tpu.memory_space<vmem>>, vector<128x1024xbf16>
    %c0_3 = arith.constant 0 : index
    %c0_4 = arith.constant 0 : index
    %2 = vector.load %arg3[%c0_3, %c0_4] : memref<1x1024xf32, #tpu.memory_space<vmem>>, vector<1x1024xf32>
    %3 = arith.truncf %0 : vector<32x128xf32> to vector<32x128xbf16>
    %cst = arith.constant dense<0.000000e+00> : vector<32x1024xf32>
    %4 = tpu.matmul %3, %1, %cst {dimension_numbers = #tpu.dot_dimension_numbers<[1], [0], [0], [1], [0, 0, 1, 1], [], []>} : vector<32x128xbf16>, vector<128x1024xbf16>, vector<32x1024xf32> -> vector<32x1024xf32>
    %5 = vector.broadcast %2 : vector<1x1024xf32> to vector<32x1024xf32>
    %6 = arith.addf %4, %5 : vector<32x1024xf32>
    %cst_5 = arith.constant 0.000000e+00 : f32
    %7 = vector.broadcast %cst_5 : f32 to vector<32x1024xf32>
    %8 = arith.maximumf %6, %7 : vector<32x1024xf32>
    %c0_6 = arith.constant 0 : index
    %c0_7 = arith.constant 0 : index
    %9 = vector.load %arg4[%c0_6, %c0_7] : memref<1024x512xbf16, #tpu.memory_space<vmem>>, vector<1024x512xbf16>
    %c0_8 = arith.constant 0 : index
    %c0_9 = arith.constant 0 : index
    %10 = vector.load %arg5[%c0_8, %c0_9] : memref<1x512xf32, #tpu.memory_space<vmem>>, vector<1x512xf32>
    %11 = arith.truncf %8 : vector<32x1024xf32> to vector<32x1024xbf16>
    %cst_10 = arith.constant dense<0.000000e+00> : vector<32x512xf32>
    %12 = tpu.matmul %11, %9, %cst_10 {dimension_numbers = #tpu.dot_dimension_numbers<[1], [0], [0], [1], [0, 0, 1, 1], [], []>} : vector<32x1024xbf16>, vector<1024x512xbf16>, vector<32x512xf32> -> vector<32x512xf32>
    %13 = vector.broadcast %10 : vector<1x512xf32> to vector<32x512xf32>
    %14 = arith.addf %12, %13 : vector<32x512xf32>
    %cst_11 = arith.constant 0.000000e+00 : f32
    %15 = vector.broadcast %cst_11 : f32 to vector<32x512xf32>
    %16 = arith.maximumf %14, %15 : vector<32x512xf32>
    %c0_12 = arith.constant 0 : index
    %c0_13 = arith.constant 0 : index
    %17 = vector.load %arg6[%c0_12, %c0_13] : memref<512x256xbf16, #tpu.memory_space<vmem>>, vector<512x256xbf16>
    %c0_14 = arith.constant 0 : index
    %c0_15 = arith.constant 0 : index
    %18 = vector.load %arg7[%c0_14, %c0_15] : memref<1x256xf32, #tpu.memory_space<vmem>>, vector<1x256xf32>
    %19 = arith.truncf %16 : vector<32x512xf32> to vector<32x512xbf16>
    %cst_16 = arith.constant dense<0.000000e+00> : vector<32x256xf32>
    %20 = tpu.matmul %19, %17, %cst_16 {dimension_numbers = #tpu.dot_dimension_numbers<[1], [0], [0], [1], [0, 0, 1, 1], [], []>} : vector<32x512xbf16>, vector<512x256xbf16>, vector<32x256xf32> -> vector<32x256xf32>
    %21 = vector.broadcast %18 : vector<1x256xf32> to vector<32x256xf32>
    %22 = arith.addf %20, %21 : vector<32x256xf32>
    %cst_17 = arith.constant 0.000000e+00 : f32
    %23 = vector.broadcast %cst_17 : f32 to vector<32x256xf32>
    %24 = arith.maximumf %22, %23 : vector<32x256xf32>
    %c0_18 = arith.constant 0 : index
    %c0_19 = arith.constant 0 : index
    %25 = vector.load %arg8[%c0_18, %c0_19] : memref<256x128xbf16, #tpu.memory_space<vmem>>, vector<256x128xbf16>
    %c0_20 = arith.constant 0 : index
    %c0_21 = arith.constant 0 : index
    %26 = vector.load %arg9[%c0_20, %c0_21] : memref<1x128xf32, #tpu.memory_space<vmem>>, vector<1x128xf32>
    %27 = arith.truncf %24 : vector<32x256xf32> to vector<32x256xbf16>
    %cst_22 = arith.constant dense<0.000000e+00> : vector<32x128xf32>
    %28 = tpu.matmul %27, %25, %cst_22 {dimension_numbers = #tpu.dot_dimension_numbers<[1], [0], [0], [1], [0, 0, 1, 1], [], []>} : vector<32x256xbf16>, vector<256x128xbf16>, vector<32x128xf32> -> vector<32x128xf32>
    %29 = vector.broadcast %26 : vector<1x128xf32> to vector<32x128xf32>
    %30 = arith.addf %28, %29 : vector<32x128xf32>
    %cst_23 = arith.constant 0.000000e+00 : f32
    %31 = vector.broadcast %cst_23 : f32 to vector<32x128xf32>
    %32 = arith.maximumf %30, %31 : vector<32x128xf32>
    %c0_24 = arith.constant 0 : index
    %c0_25 = arith.constant 0 : index
    %33 = vector.load %arg10[%c0_24, %c0_25] : memref<128x256xbf16, #tpu.memory_space<vmem>>, vector<128x256xbf16>
    %c0_26 = arith.constant 0 : index
    %c0_27 = arith.constant 0 : index
    %34 = vector.load %arg11[%c0_26, %c0_27] : memref<1x256xf32, #tpu.memory_space<vmem>>, vector<1x256xf32>
    %35 = arith.truncf %32 : vector<32x128xf32> to vector<32x128xbf16>
    %cst_28 = arith.constant dense<0.000000e+00> : vector<32x256xf32>
    %36 = tpu.matmul %35, %33, %cst_28 {dimension_numbers = #tpu.dot_dimension_numbers<[1], [0], [0], [1], [0, 0, 1, 1], [], []>} : vector<32x128xbf16>, vector<128x256xbf16>, vector<32x256xf32> -> vector<32x256xf32>
    %37 = vector.broadcast %34 : vector<1x256xf32> to vector<32x256xf32>
    %38 = arith.addf %36, %37 : vector<32x256xf32>
    %cst_29 = arith.constant 0.000000e+00 : f32
    %39 = vector.broadcast %cst_29 : f32 to vector<32x256xf32>
    %40 = arith.maximumf %38, %39 : vector<32x256xf32>
    %c0_30 = arith.constant 0 : index
    %c0_31 = arith.constant 0 : index
    %41 = vector.load %arg12[%c0_30, %c0_31] : memref<256x512xbf16, #tpu.memory_space<vmem>>, vector<256x512xbf16>
    %c0_32 = arith.constant 0 : index
    %c0_33 = arith.constant 0 : index
    %42 = vector.load %arg13[%c0_32, %c0_33] : memref<1x512xf32, #tpu.memory_space<vmem>>, vector<1x512xf32>
    %43 = arith.truncf %40 : vector<32x256xf32> to vector<32x256xbf16>
    %cst_34 = arith.constant dense<0.000000e+00> : vector<32x512xf32>
    %44 = tpu.matmul %43, %41, %cst_34 {dimension_numbers = #tpu.dot_dimension_numbers<[1], [0], [0], [1], [0, 0, 1, 1], [], []>} : vector<32x256xbf16>, vector<256x512xbf16>, vector<32x512xf32> -> vector<32x512xf32>
    %45 = vector.broadcast %42 : vector<1x512xf32> to vector<32x512xf32>
    %46 = arith.addf %44, %45 : vector<32x512xf32>
    %cst_35 = arith.constant 0.000000e+00 : f32
    %47 = vector.broadcast %cst_35 : f32 to vector<32x512xf32>
    %48 = arith.maximumf %46, %47 : vector<32x512xf32>
    %c0_36 = arith.constant 0 : index
    %c0_37 = arith.constant 0 : index
    %49 = vector.load %arg14[%c0_36, %c0_37] : memref<512x1024xbf16, #tpu.memory_space<vmem>>, vector<512x1024xbf16>
    %c0_38 = arith.constant 0 : index
    %c0_39 = arith.constant 0 : index
    %50 = vector.load %arg15[%c0_38, %c0_39] : memref<1x1024xf32, #tpu.memory_space<vmem>>, vector<1x1024xf32>
    %51 = arith.truncf %48 : vector<32x512xf32> to vector<32x512xbf16>
    %cst_40 = arith.constant dense<0.000000e+00> : vector<32x1024xf32>
    %52 = tpu.matmul %51, %49, %cst_40 {dimension_numbers = #tpu.dot_dimension_numbers<[1], [0], [0], [1], [0, 0, 1, 1], [], []>} : vector<32x512xbf16>, vector<512x1024xbf16>, vector<32x1024xf32> -> vector<32x1024xf32>
    %53 = vector.broadcast %50 : vector<1x1024xf32> to vector<32x1024xf32>
    %54 = arith.addf %52, %53 : vector<32x1024xf32>
    %cst_41 = arith.constant 0.000000e+00 : f32
    %55 = vector.broadcast %cst_41 : f32 to vector<32x1024xf32>
    %56 = arith.maximumf %54, %55 : vector<32x1024xf32>
    %c0_42 = arith.constant 0 : index
    %c0_43 = arith.constant 0 : index
    %57 = vector.load %arg16[%c0_42, %c0_43] : memref<1024x128xbf16, #tpu.memory_space<vmem>>, vector<1024x128xbf16>
    %c0_44 = arith.constant 0 : index
    %c0_45 = arith.constant 0 : index
    %58 = vector.load %arg17[%c0_44, %c0_45] : memref<1x128xf32, #tpu.memory_space<vmem>>, vector<1x128xf32>
    %59 = arith.truncf %56 : vector<32x1024xf32> to vector<32x1024xbf16>
    %cst_46 = arith.constant dense<0.000000e+00> : vector<32x128xf32>
    %60 = tpu.matmul %59, %57, %cst_46 {dimension_numbers = #tpu.dot_dimension_numbers<[1], [0], [0], [1], [0, 0, 1, 1], [], []>} : vector<32x1024xbf16>, vector<1024x128xbf16>, vector<32x128xf32> -> vector<32x128xf32>
    %61 = vector.broadcast %58 : vector<1x128xf32> to vector<32x128xf32>
    %62 = arith.addf %60, %61 : vector<32x128xf32>
    %c0_47 = arith.constant 0 : index
    %c0_48 = arith.constant 0 : index
    %63 = vector.load %arg18[%c0_47, %c0_48] : memref<32x128xf32, #tpu.memory_space<vmem>>, vector<32x128xf32>
    tpu.vector_store %arg18[%c0_47, %c0_48], %62 {strides = array<i32>} : memref<32x128xf32, #tpu.memory_space<vmem>>, vector<32x128xf32>,
    return
  }
  func.func @transform_0(%arg0: i32) -> (i32, i32) {
    %c0_i32 = arith.constant 0 : i32
    %c0_i32_0 = arith.constant 0 : i32
    return %arg0, %c0_i32 : i32, i32
  }
  func.func @transform_1(%arg0: i32) -> (i32, i32) {
    %c0_i32 = arith.constant 0 : i32
    %c0_i32_0 = arith.constant 0 : i32
    %c0_i32_1 = arith.constant 0 : i32
    return %c0_i32, %c0_i32_0 : i32, i32
  }
  func.func @transform_2(%arg0: i32) -> (i32, i32) {
    %c0_i32 = arith.constant 0 : i32
    %c0_i32_0 = arith.constant 0 : i32
    %c0_i32_1 = arith.constant 0 : i32
    return %c0_i32, %c0_i32_0 : i32, i32
  }
  func.func @transform_3(%arg0: i32) -> (i32, i32) {
    %c0_i32 = arith.constant 0 : i32
    %c0_i32_0 = arith.constant 0 : i32
    %c0_i32_1 = arith.constant 0 : i32
    return %c0_i32, %c0_i32_0 : i32, i32
  }
  func.func @transform_4(%arg0: i32) -> (i32, i32) {
    %c0_i32 = arith.constant 0 : i32
    %c0_i32_0 = arith.constant 0 : i32
    %c0_i32_1 = arith.constant 0 : i32
    return %c0_i32, %c0_i32_0 : i32, i32
  }
  func.func @transform_5(%arg0: i32) -> (i32, i32) {
    %c0_i32 = arith.constant 0 : i32
    %c0_i32_0 = arith.constant 0 : i32
    %c0_i32_1 = arith.constant 0 : i32
    return %c0_i32, %c0_i32_0 : i32, i32
  }
  func.func @transform_6(%arg0: i32) -> (i32, i32) {
    %c0_i32 = arith.constant 0 : i32
    %c0_i32_0 = arith.constant 0 : i32
    %c0_i32_1 = arith.constant 0 : i32
    return %c0_i32, %c0_i32_0 : i32, i32
  }
  func.func @transform_7(%arg0: i32) -> (i32, i32) {
    %c0_i32 = arith.constant 0 : i32
    %c0_i32_0 = arith.constant 0 : i32
    %c0_i32_1 = arith.constant 0 : i32
    return %c0_i32, %c0_i32_0 : i32, i32
  }
  func.func @transform_8(%arg0: i32) -> (i32, i32) {
    %c0_i32 = arith.constant 0 : i32
    %c0_i32_0 = arith.constant 0 : i32
    %c0_i32_1 = arith.constant 0 : i32
    return %c0_i32, %c0_i32_0 : i32, i32
  }
  func.func @transform_9(%arg0: i32) -> (i32, i32) {
    %c0_i32 = arith.constant 0 : i32
    %c0_i32_0 = arith.constant 0 : i32
    %c0_i32_1 = arith.constant 0 : i32
    return %c0_i32, %c0_i32_0 : i32, i32
  }
  func.func @transform_10(%arg0: i32) -> (i32, i32) {
    %c0_i32 = arith.constant 0 : i32
    %c0_i32_0 = arith.constant 0 : i32
    %c0_i32_1 = arith.constant 0 : i32
    return %c0_i32, %c0_i32_0 : i32, i32
  }
  func.func @transform_11(%arg0: i32) -> (i32, i32) {
    %c0_i32 = arith.constant 0 : i32
    %c0_i32_0 = arith.constant 0 : i32
    %c0_i32_1 = arith.constant 0 : i32
    return %c0_i32, %c0_i32_0 : i32, i32
  }
  func.func @transform_12(%arg0: i32) -> (i32, i32) {
    %c0_i32 = arith.constant 0 : i32
    %c0_i32_0 = arith.constant 0 : i32
    %c0_i32_1 = arith.constant 0 : i32
    return %c0_i32, %c0_i32_0 : i32, i32
  }
  func.func @transform_13(%arg0: i32) -> (i32, i32) {
    %c0_i32 = arith.constant 0 : i32
    %c0_i32_0 = arith.constant 0 : i32
    %c0_i32_1 = arith.constant 0 : i32
    return %c0_i32, %c0_i32_0 : i32, i32
  }
  func.func @transform_14(%arg0: i32) -> (i32, i32) {
    %c0_i32 = arith.constant 0 : i32
    %c0_i32_0 = arith.constant 0 : i32
    %c0_i32_1 = arith.constant 0 : i32
    return %c0_i32, %c0_i32_0 : i32, i32
  }
  func.func @transform_15(%arg0: i32) -> (i32, i32) {
    %c0_i32 = arith.constant 0 : i32
    %c0_i32_0 = arith.constant 0 : i32
    %c0_i32_1 = arith.constant 0 : i32
    return %c0_i32, %c0_i32_0 : i32, i32
  }
  func.func @transform_16(%arg0: i32) -> (i32, i32) {
    %c0_i32 = arith.constant 0 : i32
    %c0_i32_0 = arith.constant 0 : i32
    %c0_i32_1 = arith.constant 0 : i32
    return %c0_i32, %c0_i32_0 : i32, i32
  }
  func.func @transform_17(%arg0: i32) -> (i32, i32) {
    %c0_i32 = arith.constant 0 : i32
    %c0_i32_0 = arith.constant 0 : i32
    return %arg0, %c0_i32 : i32, i32
  }
}

</mosaic_0001>

<llo_original>
// kernel: tpu_custom_call.1
$region0: #{tpu_custom_call.1}
  #allocation0 [shape = 'u32[]', space=smem, size = 0x4, offset = 0x4, fixed_abs, tag = 'smem constant byte address 0x4 - core index']
  #allocation1 [shape = 'u32[144,128]{1,0:T(1,128)}', space=vmem, size = 0x12000, scoped, tag = 'internal scratch']
  %s0 = inlined_call_operand.hbm [shape: f32[64,128], index: 0, kind: input, shape index: {}]
  %s1 = inlined_call_operand.hbm [shape: bf16[128,1024], index: 1, kind: input, shape index: {}]
  %s2 = inlined_call_operand.hbm [shape: f32[1,1024], index: 2, kind: input, shape index: {}]
  %s3 = inlined_call_operand.hbm [shape: bf16[1024,512], index: 3, kind: input, shape index: {}]
  %s4 = inlined_call_operand.vmem [shape: f32[1,512], index: 4, kind: input, shape index: {}]
  %s5 = inlined_call_operand.hbm [shape: bf16[512,256], index: 5, kind: input, shape index: {}]
  %s6 = inlined_call_operand.hbm [shape: f32[1,256], index: 6, kind: input, shape index: {}]
  %s7 = inlined_call_operand.hbm [shape: bf16[256,128], index: 7, kind: input, shape index: {}]
  %s8 = inlined_call_operand.hbm [shape: f32[1,128], index: 8, kind: input, shape index: {}]
  %s9 = inlined_call_operand.hbm [shape: bf16[128,256], index: 9, kind: input, shape index: {}]
  %s10 = inlined_call_operand.vmem [shape: f32[1,256], index: 10, kind: input, shape index: {}]
  %s11 = inlined_call_operand.hbm [shape: bf16[256,512], index: 11, kind: input, shape index: {}]
  %s12 = inlined_call_operand.vmem [shape: f32[1,512], index: 12, kind: input, shape index: {}]
  %s13 = inlined_call_operand.hbm [shape: bf16[512,1024], index: 13, kind: input, shape index: {}]
  %s14 = inlined_call_operand.vmem [shape: f32[1,1024], index: 14, kind: input, shape index: {}]
  %s15 = inlined_call_operand.hbm [shape: bf16[1024,128], index: 15, kind: input, shape index: {}]
  %s16 = inlined_call_operand.vmem [shape: f32[1,128], index: 16, kind: input, shape index: {}]
  %s17 = inlined_call_operand.hbm [shape: f32[64,128], index: 17, kind: output, shape index: {}]
  %s18 = sld [smem:[#allocation0]]
  $region149: #{tpu_custom_call.1} parent=0
    _
  %s20 = ssub.s32 1, %s18
  %s21 = scalar_select 0, %s20, %s18
  $region1: #{tpu_custom_call.1} parent=0
    #allocation2 [shape = 'u8[32768]{0}', space=vmem, size = 0x8000, scoped, tag = 'input window, operand 0']
    #allocation3 [shape = 's32[2]{0}', space=sflag, size = 0x8, scoped, tag = 'scoped memory for tpu_custom_call.1']
    #allocation4 [shape = 's32[2]{0}', space=sflag, size = 0x8, scoped, tag = 'scoped memory for tpu_custom_call.1']
    #allocation5 [shape = 'u8[262144]{0}', space=vmem, size = 0x40000, scoped, tag = 'input window, operand 1, single buffered']
    #allocation6 [shape = 's32[1]{0}', space=sflag, size = 0x4, scoped, tag = 'scoped memory for tpu_custom_call.1']
    #allocation7 [shape = 'u8[4096]{0}', space=vmem, size = 0x1000, scoped, tag = 'input window, operand 2, single buffered']
    #allocation8 [shape = 'u8[1048576]{0}', space=vmem, size = 0x100000, scoped, tag = 'input window, operand 3, single buffered']
    #allocation9 [shape = 's32[1]{0}', space=sflag, size = 0x4, scoped, tag = 'scoped memory for tpu_custom_call.1']
    #allocation10 [shape = 'u8[262144]{0}', space=vmem, size = 0x40000, scoped, tag = 'input window, operand 5, single buffered']
    #allocation11 [shape = 'u8[1024]{0}', space=vmem, size = 0x400, scoped, tag = 'input window, operand 6, single buffered']
    #allocation12 [shape = 's32[1]{0}', space=sflag, size = 0x4, scoped, tag = 'scoped memory for tpu_custom_call.1']
    #allocation13 [shape = 'u8[65536]{0}', space=vmem, size = 0x10000, scoped, tag = 'input window, operand 7, single buffered']
    #allocation14 [shape = 'u8[512]{0}', space=vmem, size = 0x400, scoped, tag = 'input window, operand 8, single buffered']
    #allocation15 [shape = 's32[1]{0}', space=sflag, size = 0x4, scoped, tag = 'scoped memory for tpu_custom_call.1']
    #allocation16 [shape = 'u8[65536]{0}', space=vmem, size = 0x10000, scoped, tag = 'input window, operand 9, single buffered']
    #allocation17 [shape = 'u8[262144]{0}', space=vmem, size = 0x40000, scoped, tag = 'input window, operand 11, single buffered']
    #allocation18 [shape = 's32[1]{0}', space=sflag, size = 0x4, scoped, tag = 'scoped memory for tpu_custom_call.1']
    #allocation19 [shape = 'u8[1048576]{0}', space=vmem, size = 0x100000, scoped, tag = 'input window, operand 13, single buffered']
    #allocation20 [shape = 'u8[262144]{0}', space=vmem, size = 0x40000, scoped, tag = 'input window, operand 15, single buffered']
    #allocation21 [shape = 's32[1]{0}', space=sflag, size = 0x4, scoped, tag = 'scoped memory for tpu_custom_call.1']
    #allocation22 [shape = 'u8[32768]{0}', space=vmem, size = 0x8000, scoped, tag = 'output window, operand 0']
    %22 = vsyncpa [#allocation3], 0
    %s23 = scalar_lea.sflag [#allocation3], 1
    %24 = vsyncpa %s23, 0
    %25 = vsyncpa [#allocation6], 0
    %26 = vsyncpa [#allocation9], 0
    %27 = vsyncpa [#allocation12], 0
    %28 = vsyncpa [#allocation15], 0
    %29 = vsyncpa [#allocation18], 0
    %30 = vsyncpa [#allocation21], 0
    %31 = vsyncpa [#allocation4], 0
    %s32 = scalar_lea.sflag [#allocation4], 1
    %33 = vsyncpa %s32, 0
    loop: start=0, step=1, limit=4
    $region2: #{tpu_custom_call.1} parent=1 // loop_pre_header
      _
    $region3: #{tpu_custom_call.1} parent=1 // loop_header
      %s35 = sphi 0, %s39
      %p36 = scmp.ge.s32.totalorder %s35, 4
      %s45 = sphi 0, %s47
      %s48 = sphi 0, %s45
      %s49 = sphi 0, %s48
      %s65 = sphi 0, %s49
      %s69 = sphi 0, %s69
      %s71 = sphi 0, %s69
      %s72 = sphi 0, %s71
      %s86 = sphi 0, %s72
      %s90 = sphi 0, %s90
      %s92 = sphi 0, %s90
      %s93 = sphi 0, %s92
      %s107 = sphi 0, %s93
      %s111 = sphi 0, %s111
      %s113 = sphi 0, %s111
      %s114 = sphi 0, %s113
      %s128 = sphi 0, %s114
      %s132 = sphi 0, %s132
      %s134 = sphi 0, %s132
      %s135 = sphi 0, %s134
      %s149 = sphi 0, %s135
      %s153 = sphi 0, %s153
      %s155 = sphi 0, %s153
      %s156 = sphi 0, %s155
      %s170 = sphi 0, %s156
      %s174 = sphi 0, %s174
      %s176 = sphi 0, %s174
      %s177 = sphi 0, %s176
      %s191 = sphi 0, %s177
      %s195 = sphi 0, %s195
      %s197 = sphi 0, %s195
      %s198 = sphi 0, %s197
      %s212 = sphi 0, %s198
      %s216 = sphi 0, %s216
      %s218 = sphi 0, %s216
      %s219 = sphi 0, %s218
      %s233 = sphi 0, %s219
      %s237 = sphi 0, %s237
      %s239 = sphi 0, %s237
      %s240 = sphi 0, %s239
      %s254 = sphi 0, %s240
      %s258 = sphi 0, %s258
      %s260 = sphi 0, %s258
      %s261 = sphi 0, %s260
      %s275 = sphi 0, %s261
      %s279 = sphi 0, %s279
      %s281 = sphi 0, %s279
      %s282 = sphi 0, %s281
      %s296 = sphi 0, %s282
      %s300 = sphi 0, %s300
      %s302 = sphi 0, %s300
      %s303 = sphi 0, %s302
      %s317 = sphi 0, %s303
      %s321 = sphi 0, %s321
      %s323 = sphi 0, %s321
      %s324 = sphi 0, %s323
      %s338 = sphi 0, %s324
      %s342 = sphi 0, %s342
      %s344 = sphi 0, %s342
      %s345 = sphi 0, %s344
      %s359 = sphi 0, %s345
      %s363 = sphi 0, %s363
      %s365 = sphi 0, %s363
      %s366 = sphi 0, %s365
      %s380 = sphi 0, %s366
      %s384 = sphi 0, %s384
      %s386 = sphi 0, %s384
      %s387 = sphi 0, %s386
      %s401 = sphi 0, %s387
      %s407 = sphi 0, %s409
      %s410 = sphi 0, %s407
      %s411 = sphi 0, %s410
      %s427 = sphi 0, %s411
    $region4: #{tpu_custom_call.1} parent=1 // loop_header_branch
      %38 = sbr.rel (%p36) target = $region8
    $region5: #{tpu_custom_call.1} parent=1 // loop_body
      %s40 = ssub.s32 %s35, 1
      %s41 = ssub.s32 %s35, 2
      %s42 = sadd.s32 %s35, 1
      %s43 = ssub.s32 %s35, %s42
      %p44 = scmp.eq.s32.totalorder %s43, 0
      %s46 = sadd.s32 %s45, 1
      %s47 = scalar_select %p44, %s45, %s46
      %p50 = pneg %p44
      %p51 = scmp.eq.s32.totalorder %s35, 1
      %p52 = por %p50, %p51
      %p53 = scmp.ne.s32.totalorder %s45, %s48
      %p54 = scmp.eq.s32.totalorder %s35, 0
      %p55 = por %p53, %p54
      %p56 = scmp.ne.s32.totalorder %s45, %s48
      %p57 = scmp.eq.s32.totalorder %s40, 1
      %p58 = por %p56, %p57
      %p59 = scmp.ne.s32.totalorder %s48, %s49
      %p60 = scmp.eq.s32.totalorder %s40, 0
      %p61 = por %p59, %p60
      %p62 = scmp.ne.s32.totalorder %s48, %s49
      %p63 = scmp.eq.s32.totalorder %s41, 1
      %p64 = por %p62, %p63
      %p66 = scmp.ne.s32.totalorder %s49, %s65
      %p67 = scmp.eq.s32.totalorder %s41, 0
      %p68 = por %p66, %p67
      %s70 = sadd.s32 %s69, 1
      %p73 = scmp.eq.s32.totalorder %s35, 1
      %p74 = scmp.ne.s32.totalorder %s69, %s71
      %p75 = scmp.eq.s32.totalorder %s35, 0
      %p76 = por %p74, %p75
      %p77 = scmp.ne.s32.totalorder %s69, %s71
      %p78 = scmp.eq.s32.totalorder %s40, 1
      %p79 = por %p77, %p78
      %p80 = scmp.ne.s32.totalorder %s71, %s72
      %p81 = scmp.eq.s32.totalorder %s40, 0
      %p82 = por %p80, %p81
      %p83 = scmp.ne.s32.totalorder %s71, %s72
      %p84 = scmp.eq.s32.totalorder %s41, 1
      %p85 = por %p83, %p84
      %p87 = scmp.ne.s32.totalorder %s72, %s86
      %p88 = scmp.eq.s32.totalorder %s41, 0
      %p89 = por %p87, %p88
      %s91 = sadd.s32 %s90, 1
      %p94 = scmp.eq.s32.totalorder %s35, 1
      %p95 = scmp.ne.s32.totalorder %s90, %s92
      %p96 = scmp.eq.s32.totalorder %s35, 0
      %p97 = por %p95, %p96
      %p98 = scmp.ne.s32.totalorder %s90, %s92
      %p99 = scmp.eq.s32.totalorder %s40, 1
      %p100 = por %p98, %p99
      %p101 = scmp.ne.s32.totalorder %s92, %s93
      %p102 = scmp.eq.s32.totalorder %s40, 0
      %p103 = por %p101, %p102
      %p104 = scmp.ne.s32.totalorder %s92, %s93
      %p105 = scmp.eq.s32.totalorder %s41, 1
      %p106 = por %p104, %p105
      %p108 = scmp.ne.s32.totalorder %s93, %s107
      %p109 = scmp.eq.s32.totalorder %s41, 0
      %p110 = por %p108, %p109
      %s112 = sadd.s32 %s111, 1
      %p115 = scmp.eq.s32.totalorder %s35, 1
      %p116 = scmp.ne.s32.totalorder %s111, %s113
      %p117 = scmp.eq.s32.totalorder %s35, 0
      %p118 = por %p116, %p117
      %p119 = scmp.ne.s32.totalorder %s111, %s113
      %p120 = scmp.eq.s32.totalorder %s40, 1
      %p121 = por %p119, %p120
      %p122 = scmp.ne.s32.totalorder %s113, %s114
      %p123 = scmp.eq.s32.totalorder %s40, 0
      %p124 = por %p122, %p123
      %p125 = scmp.ne.s32.totalorder %s113, %s114
      %p126 = scmp.eq.s32.totalorder %s41, 1
      %p127 = por %p125, %p126
      %p129 = scmp.ne.s32.totalorder %s114, %s128
      %p130 = scmp.eq.s32.totalorder %s41, 0
      %p131 = por %p129, %p130
      %s133 = sadd.s32 %s132, 1
      %p136 = scmp.eq.s32.totalorder %s35, 1
      %p137 = scmp.ne.s32.totalorder %s132, %s134
      %p138 = scmp.eq.s32.totalorder %s35, 0
      %p139 = por %p137, %p138
      %p140 = scmp.ne.s32.totalorder %s132, %s134
      %p141 = scmp.eq.s32.totalorder %s40, 1
      %p142 = por %p140, %p141
      %p143 = scmp.ne.s32.totalorder %s134, %s135
      %p144 = scmp.eq.s32.totalorder %s40, 0
      %p145 = por %p143, %p144
      %p146 = scmp.ne.s32.totalorder %s134, %s135
      %p147 = scmp.eq.s32.totalorder %s41, 1
      %p148 = por %p146, %p147
      %p150 = scmp.ne.s32.totalorder %s135, %s149
      %p151 = scmp.eq.s32.totalorder %s41, 0
      %p152 = por %p150, %p151
      %s154 = sadd.s32 %s153, 1
      %p157 = scmp.eq.s32.totalorder %s35, 1
      %p158 = scmp.ne.s32.totalorder %s153, %s155
      %p159 = scmp.eq.s32.totalorder %s35, 0
      %p160 = por %p158, %p159
      %p161 = scmp.ne.s32.totalorder %s153, %s155
      %p162 = scmp.eq.s32.totalorder %s40, 1
      %p163 = por %p161, %p162
      %p164 = scmp.ne.s32.totalorder %s155, %s156
      %p165 = scmp.eq.s32.totalorder %s40, 0
      %p166 = por %p164, %p165
      %p167 = scmp.ne.s32.totalorder %s155, %s156
      %p168 = scmp.eq.s32.totalorder %s41, 1
      %p169 = por %p167, %p168
      %p171 = scmp.ne.s32.totalorder %s156, %s170
      %p172 = scmp.eq.s32.totalorder %s41, 0
      %p173 = por %p171, %p172
      %s175 = sadd.s32 %s174, 1
      %p178 = scmp.eq.s32.totalorder %s35, 1
      %p179 = scmp.ne.s32.totalorder %s174, %s176
      %p180 = scmp.eq.s32.totalorder %s35, 0
      %p181 = por %p179, %p180
      %p182 = scmp.ne.s32.totalorder %s174, %s176
      %p183 = scmp.eq.s32.totalorder %s40, 1
      %p184 = por %p182, %p183
      %p185 = scmp.ne.s32.totalorder %s176, %s177
      %p186 = scmp.eq.s32.totalorder %s40, 0
      %p187 = por %p185, %p186
      %p188 = scmp.ne.s32.totalorder %s176, %s177
      %p189 = scmp.eq.s32.totalorder %s41, 1
      %p190 = por %p188, %p189
      %p192 = scmp.ne.s32.totalorder %s177, %s191
      %p193 = scmp.eq.s32.totalorder %s41, 0
      %p194 = por %p192, %p193
      %s196 = sadd.s32 %s195, 1
      %p199 = scmp.eq.s32.totalorder %s35, 1
      %p200 = scmp.ne.s32.totalorder %s195, %s197
      %p201 = scmp.eq.s32.totalorder %s35, 0
      %p202 = por %p200, %p201
      %p203 = scmp.ne.s32.totalorder %s195, %s197
      %p204 = scmp.eq.s32.totalorder %s40, 1
      %p205 = por %p203, %p204
      %p206 = scmp.ne.s32.totalorder %s197, %s198
      %p207 = scmp.eq.s32.totalorder %s40, 0
      %p208 = por %p206, %p207
      %p209 = scmp.ne.s32.totalorder %s197, %s198
      %p210 = scmp.eq.s32.totalorder %s41, 1
      %p211 = por %p209, %p210
      %p213 = scmp.ne.s32.totalorder %s198, %s212
      %p214 = scmp.eq.s32.totalorder %s41, 0
      %p215 = por %p213, %p214
      %s217 = sadd.s32 %s216, 1
      %p220 = scmp.eq.s32.totalorder %s35, 1
      %p221 = scmp.ne.s32.totalorder %s216, %s218
      %p222 = scmp.eq.s32.totalorder %s35, 0
      %p223 = por %p221, %p222
      %p224 = scmp.ne.s32.totalorder %s216, %s218
      %p225 = scmp.eq.s32.totalorder %s40, 1
      %p226 = por %p224, %p225
      %p227 = scmp.ne.s32.totalorder %s218, %s219
      %p228 = scmp.eq.s32.totalorder %s40, 0
      %p229 = por %p227, %p228
      %p230 = scmp.ne.s32.totalorder %s218, %s219
      %p231 = scmp.eq.s32.totalorder %s41, 1
      %p232 = por %p230, %p231
      %p234 = scmp.ne.s32.totalorder %s219, %s233
      %p235 = scmp.eq.s32.totalorder %s41, 0
      %p236 = por %p234, %p235
      %s238 = sadd.s32 %s237, 1
      %p241 = scmp.eq.s32.totalorder %s35, 1
      %p242 = scmp.ne.s32.totalorder %s237, %s239
      %p243 = scmp.eq.s32.totalorder %s35, 0
      %p244 = por %p242, %p243
      %p245 = scmp.ne.s32.totalorder %s237, %s239
      %p246 = scmp.eq.s32.totalorder %s40, 1
      %p247 = por %p245, %p246
      %p248 = scmp.ne.s32.totalorder %s239, %s240
      %p249 = scmp.eq.s32.totalorder %s40, 0
      %p250 = por %p248, %p249
      %p251 = scmp.ne.s32.totalorder %s239, %s240
      %p252 = scmp.eq.s32.totalorder %s41, 1
      %p253 = por %p251, %p252
      %p255 = scmp.ne.s32.totalorder %s240, %s254
      %p256 = scmp.eq.s32.totalorder %s41, 0
      %p257 = por %p255, %p256
      %s259 = sadd.s32 %s258, 1
      %p262 = scmp.eq.s32.totalorder %s35, 1
      %p263 = scmp.ne.s32.totalorder %s258, %s260
      %p264 = scmp.eq.s32.totalorder %s35, 0
      %p265 = por %p263, %p264
      %p266 = scmp.ne.s32.totalorder %s258, %s260
      %p267 = scmp.eq.s32.totalorder %s40, 1
      %p268 = por %p266, %p267
      %p269 = scmp.ne.s32.totalorder %s260, %s261
      %p270 = scmp.eq.s32.totalorder %s40, 0
      %p271 = por %p269, %p270
      %p272 = scmp.ne.s32.totalorder %s260, %s261
      %p273 = scmp.eq.s32.totalorder %s41, 1
      %p274 = por %p272, %p273
      %p276 = scmp.ne.s32.totalorder %s261, %s275
      %p277 = scmp.eq.s32.totalorder %s41, 0
      %p278 = por %p276, %p277
      %s280 = sadd.s32 %s279, 1
      %p283 = scmp.eq.s32.totalorder %s35, 1
      %p284 = scmp.ne.s32.totalorder %s279, %s281
      %p285 = scmp.eq.s32.totalorder %s35, 0
      %p286 = por %p284, %p285
      %p287 = scmp.ne.s32.totalorder %s279, %s281
      %p288 = scmp.eq.s32.totalorder %s40, 1
      %p289 = por %p287, %p288
      %p290 = scmp.ne.s32.totalorder %s281, %s282
      %p291 = scmp.eq.s32.totalorder %s40, 0
      %p292 = por %p290, %p291
      %p293 = scmp.ne.s32.totalorder %s281, %s282
      %p294 = scmp.eq.s32.totalorder %s41, 1
      %p295 = por %p293, %p294
      %p297 = scmp.ne.s32.totalorder %s282, %s296
      %p298 = scmp.eq.s32.totalorder %s41, 0
      %p299 = por %p297, %p298
      %s301 = sadd.s32 %s300, 1
      %p304 = scmp.eq.s32.totalorder %s35, 1
      %p305 = scmp.ne.s32.totalorder %s300, %s302
      %p306 = scmp.eq.s32.totalorder %s35, 0
      %p307 = por %p305, %p306
      %p308 = scmp.ne.s32.totalorder %s300, %s302
      %p309 = scmp.eq.s32.totalorder %s40, 1
      %p310 = por %p308, %p309
      %p311 = scmp.ne.s32.totalorder %s302, %s303
      %p312 = scmp.eq.s32.totalorder %s40, 0
      %p313 = por %p311, %p312
      %p314 = scmp.ne.s32.totalorder %s302, %s303
      %p315 = scmp.eq.s32.totalorder %s41, 1
      %p316 = por %p314, %p315
      %p318 = scmp.ne.s32.totalorder %s303, %s317
      %p319 = scmp.eq.s32.totalorder %s41, 0
      %p320 = por %p318, %p319
      %s322 = sadd.s32 %s321, 1
      %p325 = scmp.eq.s32.totalorder %s35, 1
      %p326 = scmp.ne.s32.totalorder %s321, %s323
      %p327 = scmp.eq.s32.totalorder %s35, 0
      %p328 = por %p326, %p327
      %p329 = scmp.ne.s32.totalorder %s321, %s323
      %p330 = scmp.eq.s32.totalorder %s40, 1
      %p331 = por %p329, %p330
      %p332 = scmp.ne.s32.totalorder %s323, %s324
      %p333 = scmp.eq.s32.totalorder %s40, 0
      %p334 = por %p332, %p333
      %p335 = scmp.ne.s32.totalorder %s323, %s324
      %p336 = scmp.eq.s32.totalorder %s41, 1
      %p337 = por %p335, %p336
      %p339 = scmp.ne.s32.totalorder %s324, %s338
      %p340 = scmp.eq.s32.totalorder %s41, 0
      %p341 = por %p339, %p340
      %s343 = sadd.s32 %s342, 1
      %p346 = scmp.eq.s32.totalorder %s35, 1
      %p347 = scmp.ne.s32.totalorder %s342, %s344
      %p348 = scmp.eq.s32.totalorder %s35, 0
      %p349 = por %p347, %p348
      %p350 = scmp.ne.s32.totalorder %s342, %s344
      %p351 = scmp.eq.s32.totalorder %s40, 1
      %p352 = por %p350, %p351
      %p353 = scmp.ne.s32.totalorder %s344, %s345
      %p354 = scmp.eq.s32.totalorder %s40, 0
      %p355 = por %p353, %p354
      %p356 = scmp.ne.s32.totalorder %s344, %s345
      %p357 = scmp.eq.s32.totalorder %s41, 1
      %p358 = por %p356, %p357
      %p360 = scmp.ne.s32.totalorder %s345, %s359
      %p361 = scmp.eq.s32.totalorder %s41, 0
      %p362 = por %p360, %p361
      %s364 = sadd.s32 %s363, 1
      %p367 = scmp.eq.s32.totalorder %s35, 1
      %p368 = scmp.ne.s32.totalorder %s363, %s365
      %p369 = scmp.eq.s32.totalorder %s35, 0
      %p370 = por %p368, %p369
      %p371 = scmp.ne.s32.totalorder %s363, %s365
      %p372 = scmp.eq.s32.totalorder %s40, 1
      %p373 = por %p371, %p372
      %p374 = scmp.ne.s32.totalorder %s365, %s366
      %p375 = scmp.eq.s32.totalorder %s40, 0
      %p376 = por %p374, %p375
      %p377 = scmp.ne.s32.totalorder %s365, %s366
      %p378 = scmp.eq.s32.totalorder %s41, 1
      %p379 = por %p377, %p378
      %p381 = scmp.ne.s32.totalorder %s366, %s380
      %p382 = scmp.eq.s32.totalorder %s41, 0
      %p383 = por %p381, %p382
      %s385 = sadd.s32 %s384, 1
      %p388 = scmp.eq.s32.totalorder %s35, 1
      %p389 = scmp.ne.s32.totalorder %s384, %s386
      %p390 = scmp.eq.s32.totalorder %s35, 0
      %p391 = por %p389, %p390
      %p392 = scmp.ne.s32.totalorder %s384, %s386
      %p393 = scmp.eq.s32.totalorder %s40, 1
      %p394 = por %p392, %p393
      %p395 = scmp.ne.s32.totalorder %s386, %s387
      %p396 = scmp.eq.s32.totalorder %s40, 0
      %p397 = por %p395, %p396
      %p398 = scmp.ne.s32.totalorder %s386, %s387
      %p399 = scmp.eq.s32.totalorder %s41, 1
      %p400 = por %p398, %p399
      %p402 = scmp.ne.s32.totalorder %s387, %s401
      %p403 = scmp.eq.s32.totalorder %s41, 0
      %p404 = por %p402, %p403
      %s405 = ssub.s32 %s35, %s42
      %p406 = scmp.eq.s32.totalorder %s405, 0
      %s408 = sadd.s32 %s407, 1
      %s409 = scalar_select %p406, %s407, %s408
      %p412 = pneg %p406
      %p413 = scmp.eq.s32.totalorder %s35, 1
      %p414 = por %p412, %p413
      %p415 = scmp.ne.s32.totalorder %s407, %s410
      %p416 = scmp.eq.s32.totalorder %s35, 0
      %p417 = por %p415, %p416
      %p418 = scmp.ne.s32.totalorder %s407, %s410
      %p419 = scmp.eq.s32.totalorder %s40, 1
      %p420 = por %p418, %p419
      %p421 = scmp.ne.s32.totalorder %s410, %s411
      %p422 = scmp.eq.s32.totalorder %s40, 0
      %p423 = por %p421, %p422
      %p424 = scmp.ne.s32.totalorder %s410, %s411
      %p425 = scmp.eq.s32.totalorder %s41, 1
      %p426 = por %p424, %p425
      %p428 = scmp.ne.s32.totalorder %s411, %s427
      %p429 = scmp.eq.s32.totalorder %s41, 0
      %p430 = por %p428, %p429
      %p431 = scmp.le.s32.totalorder 1, %s35
      %p432 = scmp.lt.s32.totalorder %s35, 3
      %p433 = pnand %p431, %p432
      %p434 = pneg %p433
      // Predicated region
      $region9: #{tpu_custom_call.1} parent=5 // pred_check
        _
      $region10: #{tpu_custom_call.1} parent=5 // pred_check_branch
        %436 = sbr.rel (%p433) target = $region12
      $region11: #{tpu_custom_call.1} parent=5 // pred_region
        %s437 = ssub.s32 %s35, 1
        // Predicated region
        $region13: #{tpu_custom_call.1} parent=11 // pred_check
          %p438 = pneg %p82
        $region14: #{tpu_custom_call.1} parent=11 // pred_check_branch
          %440 = sbr.rel (%p438) target = $region16
        $region15: #{tpu_custom_call.1} parent=11 // pred_region
          %s442 = ssub.s32 8192, 8192
          %443 = vsyncadd [#allocation6], %s442
          %s444 = sshll.u32 [#allocation5], 4
          %s445 = int_to_ptr.vmem [resolvable:$true] %s444
          %450 = dma.hbm_to_vmem [thread:$0]  %s1, 8192, %s445, [#allocation6], 512, 512, 32
        $region16: #{tpu_custom_call.1} parent=11 // pred_fallthru
          _
        // Predicated region
        $region17: #{tpu_custom_call.1} parent=11 // pred_check
          %p451 = pneg %p103
        $region18: #{tpu_custom_call.1} parent=11 // pred_check_branch
          %453 = sbr.rel (%p451) target = $region20
        $region19: #{tpu_custom_call.1} parent=11 // pred_region
          %s455 = ssub.s32 128, 128
          %456 = vsyncadd [#allocation6], %s455
          %s458 = sshll.u32 [#allocation7], 4
          %s459 = int_to_ptr.vmem [resolvable:$true] %s458
          %461 = dma.hbm_to_vmem [thread:$0]  %s2, 128, %s459, [#allocation6]
        $region20: #{tpu_custom_call.1} parent=11 // pred_fallthru
          _
        // Predicated region
        $region21: #{tpu_custom_call.1} parent=11 // pred_check
          %p462 = pneg %p124
        $region22: #{tpu_custom_call.1} parent=11 // pred_check_branch
          %464 = sbr.rel (%p462) target = $region24
        $region23: #{tpu_custom_call.1} parent=11 // pred_region
          %s466 = ssub.s32 32768, 32768
          %467 = vsyncadd [#allocation9], %s466
          %s468 = sshll.u32 [#allocation8], 4
          %s469 = int_to_ptr.vmem [resolvable:$true] %s468
          %474 = dma.hbm_to_vmem [thread:$0]  %s3, 32768, %s469, [#allocation9], 256, 256, 16
        $region24: #{tpu_custom_call.1} parent=11 // pred_fallthru
          _
        // Predicated region
        $region25: #{tpu_custom_call.1} parent=11 // pred_check
          %p475 = pneg %p145
        $region26: #{tpu_custom_call.1} parent=11 // pred_check_branch
          %477 = sbr.rel (%p475) target = $region28
        $region27: #{tpu_custom_call.1} parent=11 // pred_region
          _
        $region28: #{tpu_custom_call.1} parent=11 // pred_fallthru
          _
        // Predicated region
        $region29: #{tpu_custom_call.1} parent=11 // pred_check
          %p478 = pneg %p166
        $region30: #{tpu_custom_call.1} parent=11 // pred_check_branch
          %480 = sbr.rel (%p478) target = $region32
        $region31: #{tpu_custom_call.1} parent=11 // pred_region
          %s482 = ssub.s32 8192, 8192
          %483 = vsyncadd [#allocation9], %s482
          %s484 = sshll.u32 [#allocation10], 4
          %s485 = int_to_ptr.vmem [resolvable:$true] %s484
          %490 = dma.hbm_to_vmem [thread:$0]  %s5, 8192, %s485, [#allocation9], 128, 128, 8
        $region32: #{tpu_custom_call.1} parent=11 // pred_fallthru
          _
        // Predicated region
        $region33: #{tpu_custom_call.1} parent=11 // pred_check
          %p491 = pneg %p187
        $region34: #{tpu_custom_call.1} parent=11 // pred_check_branch
          %493 = sbr.rel (%p491) target = $region36
        $region35: #{tpu_custom_call.1} parent=11 // pred_region
          %s495 = ssub.s32 32, 32
          %496 = vsyncadd [#allocation12], %s495
          %s498 = sshll.u32 [#allocation11], 4
          %s499 = int_to_ptr.vmem [resolvable:$true] %s498
          %501 = dma.hbm_to_vmem [thread:$0]  %s6, 32, %s499, [#allocation12]
        $region36: #{tpu_custom_call.1} parent=11 // pred_fallthru
          _
        // Predicated region
        $region37: #{tpu_custom_call.1} parent=11 // pred_check
          %p502 = pneg %p208
        $region38: #{tpu_custom_call.1} parent=11 // pred_check_branch
          %504 = sbr.rel (%p502) target = $region40
        $region39: #{tpu_custom_call.1} parent=11 // pred_region
          %s506 = ssub.s32 2048, 2048
          %507 = vsyncadd [#allocation12], %s506
          %s508 = sshll.u32 [#allocation13], 4
          %s509 = int_to_ptr.vmem [resolvable:$true] %s508
          %514 = dma.hbm_to_vmem [thread:$0]  %s7, 2048, %s509, [#allocation12], 64, 64, 4
        $region40: #{tpu_custom_call.1} parent=11 // pred_fallthru
          _
        // Predicated region
        $region41: #{tpu_custom_call.1} parent=11 // pred_check
          %p515 = pneg %p229
        $region42: #{tpu_custom_call.1} parent=11 // pred_check_branch
          %517 = sbr.rel (%p515) target = $region44
        $region43: #{tpu_custom_call.1} parent=11 // pred_region
          %s519 = ssub.s32 16, 16
          %520 = vsyncadd [#allocation15], %s519
          %s522 = sshll.u32 [#allocation14], 4
          %s523 = int_to_ptr.vmem [resolvable:$true] %s522
          %525 = dma.hbm_to_vmem [thread:$0]  %s8, 16, %s523, [#allocation15]
        $region44: #{tpu_custom_call.1} parent=11 // pred_fallthru
          _
        // Predicated region
        $region45: #{tpu_custom_call.1} parent=11 // pred_check
          %p526 = pneg %p250
        $region46: #{tpu_custom_call.1} parent=11 // pred_check_branch
          %528 = sbr.rel (%p526) target = $region48
        $region47: #{tpu_custom_call.1} parent=11 // pred_region
          %s530 = ssub.s32 2048, 2048
          %531 = vsyncadd [#allocation15], %s530
          %s532 = sshll.u32 [#allocation16], 4
          %s533 = int_to_ptr.vmem [resolvable:$true] %s532
          %538 = dma.hbm_to_vmem [thread:$0]  %s9, 2048, %s533, [#allocation15], 128, 128, 8
        $region48: #{tpu_custom_call.1} parent=11 // pred_fallthru
          _
        // Predicated region
        $region49: #{tpu_custom_call.1} parent=11 // pred_check
          %p539 = pneg %p271
        $region50: #{tpu_custom_call.1} parent=11 // pred_check_branch
          %541 = sbr.rel (%p539) target = $region52
        $region51: #{tpu_custom_call.1} parent=11 // pred_region
          _
        $region52: #{tpu_custom_call.1} parent=11 // pred_fallthru
          _
        // Predicated region
        $region53: #{tpu_custom_call.1} parent=11 // pred_check
          %p542 = pneg %p292
        $region54: #{tpu_custom_call.1} parent=11 // pred_check_branch
          %544 = sbr.rel (%p542) target = $region56
        $region55: #{tpu_custom_call.1} parent=11 // pred_region
          %s546 = ssub.s32 8192, 8192
          %547 = vsyncadd [#allocation18], %s546
          %s548 = sshll.u32 [#allocation17], 4
          %s549 = int_to_ptr.vmem [resolvable:$true] %s548
          %554 = dma.hbm_to_vmem [thread:$0]  %s11, 8192, %s549, [#allocation18], 256, 256, 16
        $region56: #{tpu_custom_call.1} parent=11 // pred_fallthru
          _
        // Predicated region
        $region57: #{tpu_custom_call.1} parent=11 // pred_check
          %p555 = pneg %p313
        $region58: #{tpu_custom_call.1} parent=11 // pred_check_branch
          %557 = sbr.rel (%p555) target = $region60
        $region59: #{tpu_custom_call.1} parent=11 // pred_region
          _
        $region60: #{tpu_custom_call.1} parent=11 // pred_fallthru
          _
        // Predicated region
        $region61: #{tpu_custom_call.1} parent=11 // pred_check
          %p558 = pneg %p334
        $region62: #{tpu_custom_call.1} parent=11 // pred_check_branch
          %560 = sbr.rel (%p558) target = $region64
        $region63: #{tpu_custom_call.1} parent=11 // pred_region
          %s562 = ssub.s32 32768, 32768
          %563 = vsyncadd [#allocation18], %s562
          %s564 = sshll.u32 [#allocation19], 4
          %s565 = int_to_ptr.vmem [resolvable:$true] %s564
          %570 = dma.hbm_to_vmem [thread:$0]  %s13, 32768, %s565, [#allocation18], 512, 512, 32
        $region64: #{tpu_custom_call.1} parent=11 // pred_fallthru
          _
        // Predicated region
        $region65: #{tpu_custom_call.1} parent=11 // pred_check
          %p571 = pneg %p355
        $region66: #{tpu_custom_call.1} parent=11 // pred_check_branch
          %573 = sbr.rel (%p571) target = $region68
        $region67: #{tpu_custom_call.1} parent=11 // pred_region
          _
        $region68: #{tpu_custom_call.1} parent=11 // pred_fallthru
          _
        // Predicated region
        $region69: #{tpu_custom_call.1} parent=11 // pred_check
          %p574 = pneg %p376
        $region70: #{tpu_custom_call.1} parent=11 // pred_check_branch
          %576 = sbr.rel (%p574) target = $region72
        $region71: #{tpu_custom_call.1} parent=11 // pred_region
          %s578 = ssub.s32 8192, 8192
          %579 = vsyncadd [#allocation21], %s578
          %s580 = sshll.u32 [#allocation20], 4
          %s581 = int_to_ptr.vmem [resolvable:$true] %s580
          %586 = dma.hbm_to_vmem [thread:$0]  %s15, 8192, %s581, [#allocation21], 64, 64, 4
        $region72: #{tpu_custom_call.1} parent=11 // pred_fallthru
          _
        // Predicated region
        $region73: #{tpu_custom_call.1} parent=11 // pred_check
          %p587 = pneg %p397
        $region74: #{tpu_custom_call.1} parent=11 // pred_check_branch
          %589 = sbr.rel (%p587) target = $region76
        $region75: #{tpu_custom_call.1} parent=11 // pred_region
          _
        $region76: #{tpu_custom_call.1} parent=11 // pred_fallthru
          _
      $region12: #{tpu_custom_call.1} parent=5 // pred_fallthru
        _
      %p590 = scmp.lt.s32.totalorder %s35, 2
      // Predicated region
      $region77: #{tpu_custom_call.1} parent=5 // pred_check
        %p591 = pneg %p590
      $region78: #{tpu_custom_call.1} parent=5 // pred_check_branch
        %593 = sbr.rel (%p591) target = $region80
      $region79: #{tpu_custom_call.1} parent=5 // pred_region
        // Predicated region
        $region81: #{tpu_custom_call.1} parent=79 // pred_check
          %p594 = pneg %p55
        $region82: #{tpu_custom_call.1} parent=79 // pred_check_branch
          %596 = sbr.rel (%p594) target = $region84
        $region83: #{tpu_custom_call.1} parent=79 // pred_region
          %s597 = sand.u32 %s45, 1
          %s598 = scalar_lea.sflag [#allocation3], %s597
          %s599 = sand.u32 %s45, 1
          %s600 = smul.addr %s599, 32
          %s601 = scalar_lea.vmem [#allocation2], %s600
          %s602 = smul.u32 4, %s35
          %s604 = ssub.s32 512, 512
          %605 = vsyncadd %s598, %s604
          %s606 = smul.addr %s602, 128
          %s607 = scalar_lea.hbm %s0, %s606
          %s608 = sshll.u32 %s601, 4
          %s609 = int_to_ptr.vmem [resolvable:$true] %s608
          %614 = dma.hbm_to_vmem [thread:$0]  %s607, 512, %s609, %s598, 128, 128, 8
        $region84: #{tpu_custom_call.1} parent=79 // pred_fallthru
          _
      $region80: #{tpu_custom_call.1} parent=5 // pred_fallthru
        _
      %p615 = scmp.le.s32.totalorder 1, %s35
      %p616 = scmp.lt.s32.totalorder %s35, 3
      %p617 = pnand %p615, %p616
      %p618 = pneg %p617
      // Predicated region
      $region85: #{tpu_custom_call.1} parent=5 // pred_check
        _
      $region86: #{tpu_custom_call.1} parent=5 // pred_check_branch
        %620 = sbr.rel (%p617) target = $region88
      $region87: #{tpu_custom_call.1} parent=5 // pred_region
        %s621 = ssub.s32 %s35, 1
        %s622 = sand.u32 %s48, 1
        %s623 = scalar_lea.sflag [#allocation3], %s622
        %s624 = sand.u32 %s48, 1
        %s625 = smul.addr %s624, 32
        %s626 = scalar_lea.vmem [#allocation2], %s625
        // Predicated region
        $region89: #{tpu_custom_call.1} parent=87 // pred_check
          %p627 = pneg %p61
        $region90: #{tpu_custom_call.1} parent=87 // pred_check_branch
          %629 = sbr.rel (%p627) target = $region92
        $region91: #{tpu_custom_call.1} parent=87 // pred_region
          %630 = dma.done %s623, 512
        $region92: #{tpu_custom_call.1} parent=87 // pred_fallthru
          _
        // Predicated region
        $region93: #{tpu_custom_call.1} parent=87 // pred_check
          %p631 = pneg %p82
        $region94: #{tpu_custom_call.1} parent=87 // pred_check_branch
          %633 = sbr.rel (%p631) target = $region96
        $region95: #{tpu_custom_call.1} parent=87 // pred_region
          %634 = dma.done [#allocation6], 8192
        $region96: #{tpu_custom_call.1} parent=87 // pred_fallthru
          _
        // Predicated region
        $region97: #{tpu_custom_call.1} parent=87 // pred_check
          %p635 = pneg %p103
        $region98: #{tpu_custom_call.1} parent=87 // pred_check_branch
          %637 = sbr.rel (%p635) target = $region100
        $region99: #{tpu_custom_call.1} parent=87 // pred_region
          %638 = dma.done [#allocation6], 128
        $region100: #{tpu_custom_call.1} parent=87 // pred_fallthru
          _
        // Predicated region
        $region101: #{tpu_custom_call.1} parent=87 // pred_check
          %p639 = pneg %p124
        $region102: #{tpu_custom_call.1} parent=87 // pred_check_branch
          %641 = sbr.rel (%p639) target = $region104
        $region103: #{tpu_custom_call.1} parent=87 // pred_region
          %642 = dma.done [#allocation9], 32768
        $region104: #{tpu_custom_call.1} parent=87 // pred_fallthru
          _
        // Predicated region
        $region105: #{tpu_custom_call.1} parent=87 // pred_check
          %p643 = pneg %p166
        $region106: #{tpu_custom_call.1} parent=87 // pred_check_branch
          %645 = sbr.rel (%p643) target = $region108
        $region107: #{tpu_custom_call.1} parent=87 // pred_region
          %646 = dma.done [#allocation9], 8192
        $region108: #{tpu_custom_call.1} parent=87 // pred_fallthru
          _
        // Predicated region
        $region109: #{tpu_custom_call.1} parent=87 // pred_check
          %p647 = pneg %p187
        $region110: #{tpu_custom_call.1} parent=87 // pred_check_branch
          %649 = sbr.rel (%p647) target = $region112
        $region111: #{tpu_custom_call.1} parent=87 // pred_region
          %650 = dma.done [#allocation12], 32
        $region112: #{tpu_custom_call.1} parent=87 // pred_fallthru
          _
        // Predicated region
        $region113: #{tpu_custom_call.1} parent=87 // pred_check
          %p651 = pneg %p208
        $region114: #{tpu_custom_call.1} parent=87 // pred_check_branch
          %653 = sbr.rel (%p651) target = $region116
        $region115: #{tpu_custom_call.1} parent=87 // pred_region
          %654 = dma.done [#allocation12], 2048
        $region116: #{tpu_custom_call.1} parent=87 // pred_fallthru
          _
        // Predicated region
        $region117: #{tpu_custom_call.1} parent=87 // pred_check
          %p655 = pneg %p229
        $region118: #{tpu_custom_call.1} parent=87 // pred_check_branch
          %657 = sbr.rel (%p655) target = $region120
        $region119: #{tpu_custom_call.1} parent=87 // pred_region
          %658 = dma.done [#allocation15], 16
        $region120: #{tpu_custom_call.1} parent=87 // pred_fallthru
          _
        // Predicated region
        $region121: #{tpu_custom_call.1} parent=87 // pred_check
          %p659 = pneg %p250
        $region122: #{tpu_custom_call.1} parent=87 // pred_check_branch
          %661 = sbr.rel (%p659) target = $region124
        $region123: #{tpu_custom_call.1} parent=87 // pred_region
          %662 = dma.done [#allocation15], 2048
        $region124: #{tpu_custom_call.1} parent=87 // pred_fallthru
          _
        // Predicated region
        $region125: #{tpu_custom_call.1} parent=87 // pred_check
          %p663 = pneg %p292
        $region126: #{tpu_custom_call.1} parent=87 // pred_check_branch
          %665 = sbr.rel (%p663) target = $region128
        $region127: #{tpu_custom_call.1} parent=87 // pred_region
          %666 = dma.done [#allocation18], 8192
        $region128: #{tpu_custom_call.1} parent=87 // pred_fallthru
          _
        // Predicated region
        $region129: #{tpu_custom_call.1} parent=87 // pred_check
          %p667 = pneg %p334
        $region130: #{tpu_custom_call.1} parent=87 // pred_check_branch
          %669 = sbr.rel (%p667) target = $region132
        $region131: #{tpu_custom_call.1} parent=87 // pred_region
          %670 = dma.done [#allocation18], 32768
        $region132: #{tpu_custom_call.1} parent=87 // pred_fallthru
          _
        // Predicated region
        $region133: #{tpu_custom_call.1} parent=87 // pred_check
          %p671 = pneg %p376
        $region134: #{tpu_custom_call.1} parent=87 // pred_check_branch
          %673 = sbr.rel (%p671) target = $region136
        $region135: #{tpu_custom_call.1} parent=87 // pred_region
          %674 = dma.done [#allocation21], 8192
        $region136: #{tpu_custom_call.1} parent=87 // pred_fallthru
          _
        %s675 = sand.u32 %s48, 1
        %s676 = scalar_lea.sflag [#allocation3], %s675
        %s677 = sand.u32 %s48, 1
        %s678 = smul.addr %s677, 32
        %s679 = scalar_lea.vmem [#allocation2], %s678
        %p680 = pneg %p61
        %p681 = pneg %p58
        %p682 = pneg %p82
        %p683 = pneg %p79
        %p684 = pneg %p103
        %p685 = pneg %p100
        %p686 = pneg %p124
        %p687 = pneg %p121
        %p688 = pneg %p145
        %p689 = pneg %p142
        %p690 = pneg %p166
        %p691 = pneg %p163
        %p692 = pneg %p187
        %p693 = pneg %p184
        %p694 = pneg %p208
        %p695 = pneg %p205
        %p696 = pneg %p229
        %p697 = pneg %p226
        %p698 = pneg %p250
        %p699 = pneg %p247
        %p700 = pneg %p271
        %p701 = pneg %p268
        %p702 = pneg %p292
        %p703 = pneg %p289
        %p704 = pneg %p313
        %p705 = pneg %p310
        %p706 = pneg %p334
        %p707 = pneg %p331
        %p708 = pneg %p355
        %p709 = pneg %p352
        %p710 = pneg %p376
        %p711 = pneg %p373
        %p712 = pneg %p397
        %p713 = pneg %p394
        %p714 = pneg %p423
        %p715 = pneg %p420
        %s716 = sand.u32 %s410, 1
        %s717 = scalar_lea.sflag [#allocation4], %s716
        %s718 = sand.u32 %s410, 1
        %s719 = smul.addr %s718, 32
        %s720 = scalar_lea.vmem [#allocation22], %s719
        %s721 = smul.u32 4, %s40
        %s722 = smul.u32 4, %s40
        %v724 = vld [vmem:[%s626] sm:$0xff]
        %v725 = vld [vmem:[%s626 + $0x8] sm:$0xff]
        %v726 = vld [vmem:[%s626 + $0x10] sm:$0xff]
        %v727 = vld [vmem:[%s626 + $0x18] sm:$0xff]
        %v728 = vld [vmem:[#allocation5] sm:$0xff]
        %v729 = vld [vmem:[#allocation5 + $0x8] sm:$0xff]
        %v730 = vld [vmem:[#allocation5 + $0x10] sm:$0xff]
        %v731 = vld [vmem:[#allocation5 + $0x18] sm:$0xff]
        %v732 = vld [vmem:[#allocation5 + $0x20] sm:$0xff]
        %v733 = vld [vmem:[#allocation5 + $0x28] sm:$0xff]
        %v734 = vld [vmem:[#allocation5 + $0x30] sm:$0xff]
        %v735 = vld [vmem:[#allocation5 + $0x38] sm:$0xff]
        %v736 = vld [vmem:[#allocation5 + $0x40] sm:$0xff]
        %v737 = vld [vmem:[#allocation5 + $0x48] sm:$0xff]
        %v738 = vld [vmem:[#allocation5 + $0x50] sm:$0xff]
        %v739 = vld [vmem:[#allocation5 + $0x58] sm:$0xff]
        %v740 = vld [vmem:[#allocation5 + $0x60] sm:$0xff]
        %v741 = vld [vmem:[#allocation5 + $0x68] sm:$0xff]
        %v742 = vld [vmem:[#allocation5 + $0x70] sm:$0xff]
        %v743 = vld [vmem:[#allocation5 + $0x78] sm:$0xff]
        %v744 = vld [vmem:[#allocation5 + $0x80] sm:$0xff]
        %v745 = vld [vmem:[#allocation5 + $0x88] sm:$0xff]
        %v746 = vld [vmem:[#allocation5 + $0x90] sm:$0xff]
        %v747 = vld [vmem:[#allocation5 + $0x98] sm:$0xff]
        %v748 = vld [vmem:[#allocation5 + $0xa0] sm:$0xff]
        %v749 = vld [vmem:[#allocation5 + $0xa8] sm:$0xff]
        %v750 = vld [vmem:[#allocation5 + $0xb0] sm:$0xff]
        %v751 = vld [vmem:[#allocation5 + $0xb8] sm:$0xff]
        %v752 = vld [vmem:[#allocation5 + $0xc0] sm:$0xff]
        %v753 = vld [vmem:[#allocation5 + $0xc8] sm:$0xff]
        %v754 = vld [vmem:[#allocation5 + $0xd0] sm:$0xff]
        %v755 = vld [vmem:[#allocation5 + $0xd8] sm:$0xff]
        %v756 = vld [vmem:[#allocation5 + $0xe0] sm:$0xff]
        %v757 = vld [vmem:[#allocation5 + $0xe8] sm:$0xff]
        %v758 = vld [vmem:[#allocation5 + $0xf0] sm:$0xff]
        %v759 = vld [vmem:[#allocation5 + $0xf8] sm:$0xff]
        %v760 = vld [vmem:[#allocation5 + $0x100] sm:$0xff]
        %v761 = vld [vmem:[#allocation5 + $0x108] sm:$0xff]
        %v762 = vld [vmem:[#allocation5 + $0x110] sm:$0xff]
        %v763 = vld [vmem:[#allocation5 + $0x118] sm:$0xff]
        %v764 = vld [vmem:[#allocation5 + $0x120] sm:$0xff]
        %v765 = vld [vmem:[#allocation5 + $0x128] sm:$0xff]
        %v766 = vld [vmem:[#allocation5 + $0x130] sm:$0xff]
        %v767 = vld [vmem:[#allocation5 + $0x138] sm:$0xff]
        %v768 = vld [vmem:[#allocation5 + $0x140] sm:$0xff]
        %v769 = vld [vmem:[#allocation5 + $0x148] sm:$0xff]
        %v770 = vld [vmem:[#allocation5 + $0x150] sm:$0xff]
        %v771 = vld [vmem:[#allocation5 + $0x158] sm:$0xff]
        %v772 = vld [vmem:[#allocation5 + $0x160] sm:$0xff]
        %v773 = vld [vmem:[#allocation5 + $0x168] sm:$0xff]
        %v774 = vld [vmem:[#allocation5 + $0x170] sm:$0xff]
        %v775 = vld [vmem:[#allocation5 + $0x178] sm:$0xff]
        %v776 = vld [vmem:[#allocation5 + $0x180] sm:$0xff]
        %v777 = vld [vmem:[#allocation5 + $0x188] sm:$0xff]
        %v778 = vld [vmem:[#allocation5 + $0x190] sm:$0xff]
        %v779 = vld [vmem:[#allocation5 + $0x198] sm:$0xff]
        %v780 = vld [vmem:[#allocation5 + $0x1a0] sm:$0xff]
        %v781 = vld [vmem:[#allocation5 + $0x1a8] sm:$0xff]
        %v782 = vld [vmem:[#allocation5 + $0x1b0] sm:$0xff]
        %v783 = vld [vmem:[#allocation5 + $0x1b8] sm:$0xff]
        %v784 = vld [vmem:[#allocation5 + $0x1c0] sm:$0xff]
        %v785 = vld [vmem:[#allocation5 + $0x1c8] sm:$0xff]
        %v786 = vld [vmem:[#allocation5 + $0x1d0] sm:$0xff]
        %v787 = vld [vmem:[#allocation5 + $0x1d8] sm:$0xff]
        %v788 = vld [vmem:[#allocation5 + $0x1e0] sm:$0xff]
        %v789 = vld [vmem:[#allocation5 + $0x1e8] sm:$0xff]
        %v790 = vld [vmem:[#allocation5 + $0x1f0] sm:$0xff]
        %v791 = vld [vmem:[#allocation5 + $0x1f8] sm:$0xff]
        %v792 = vld [vmem:[#allocation7] sm:$0xff]
        %v793 = vpack.c.bf16 %v725, %v724
        %v794 = vpack.c.bf16 %v727, %v726
        %v796 = vlaneseq
        %v797 = vshrl.u32 %v796, 7
        %v798 = vsub.s32 0, %v797
        %v799 = vrot.slane %v792, %v798
        %v800 = vlaneseq
        %v801 = vshrl.u32 %v800, 7
        %v802 = vsub.s32 1, %v801
        %v803 = vrot.slane %v792, %v802
        %v804 = vlaneseq
        %v805 = vshrl.u32 %v804, 7
        %v806 = vsub.s32 2, %v805
        %v807 = vrot.slane %v792, %v806
        %v808 = vlaneseq
        %v809 = vshrl.u32 %v808, 7
        %v810 = vsub.s32 3, %v809
        %v811 = vrot.slane %v792, %v810
        %v812 = vlaneseq
        %v813 = vshrl.u32 %v812, 7
        %v814 = vsub.s32 4, %v813
        %v815 = vrot.slane %v792, %v814
        %v816 = vlaneseq
        %v817 = vshrl.u32 %v816, 7
        %v818 = vsub.s32 5, %v817
        %v819 = vrot.slane %v792, %v818
        %v820 = vlaneseq
        %v821 = vshrl.u32 %v820, 7
        %v822 = vsub.s32 6, %v821
        %v823 = vrot.slane %v792, %v822
        %v824 = vlaneseq
        %v825 = vshrl.u32 %v824, 7
        %v826 = vsub.s32 7, %v825
        %v827 = vrot.slane %v792, %v826
        %v900 = vunpack.c.l.b16 %v728
        %v901 = vunpack.c.h.b16 %v728
        %v902 = vunpack.c.l.b16 %v729
        %v903 = vunpack.c.h.b16 %v729
        %v904 = vunpack.c.l.b16 %v730
        %v905 = vunpack.c.h.b16 %v730
        %v906 = vunpack.c.l.b16 %v731
        %v907 = vunpack.c.h.b16 %v731
        %v908 = vunpack.c.l.b16 %v732
        %v909 = vunpack.c.h.b16 %v732
        %v910 = vunpack.c.l.b16 %v733
        %v911 = vunpack.c.h.b16 %v733
        %v912 = vunpack.c.l.b16 %v734
        %v913 = vunpack.c.h.b16 %v734
        %v914 = vunpack.c.l.b16 %v735
        %v915 = vunpack.c.h.b16 %v735
        %v916 = vunpack.c.l.b16 %v736
        %v917 = vunpack.c.h.b16 %v736
        %v918 = vunpack.c.l.b16 %v737
        %v919 = vunpack.c.h.b16 %v737
        %v920 = vunpack.c.l.b16 %v738
        %v921 = vunpack.c.h.b16 %v738
        %v922 = vunpack.c.l.b16 %v739
        %v923 = vunpack.c.h.b16 %v739
        %v924 = vunpack.c.l.b16 %v740
        %v925 = vunpack.c.h.b16 %v740
        %v926 = vunpack.c.l.b16 %v741
        %v927 = vunpack.c.h.b16 %v741
        %v928 = vunpack.c.l.b16 %v742
        %v929 = vunpack.c.h.b16 %v742
        %v930 = vunpack.c.l.b16 %v743
        %v931 = vunpack.c.h.b16 %v743
        %v932 = vunpack.c.l.b16 %v744
        %v933 = vunpack.c.h.b16 %v744
        %v934 = vunpack.c.l.b16 %v745
        %v935 = vunpack.c.h.b16 %v745
        %v936 = vunpack.c.l.b16 %v746
        %v937 = vunpack.c.h.b16 %v746
        %v938 = vunpack.c.l.b16 %v747
        %v939 = vunpack.c.h.b16 %v747
        %v940 = vunpack.c.l.b16 %v748
        %v941 = vunpack.c.h.b16 %v748
        %v942 = vunpack.c.l.b16 %v749
        %v943 = vunpack.c.h.b16 %v749
        %v944 = vunpack.c.l.b16 %v750
        %v945 = vunpack.c.h.b16 %v750
        %v946 = vunpack.c.l.b16 %v751
        %v947 = vunpack.c.h.b16 %v751
        %v948 = vunpack.c.l.b16 %v752
        %v949 = vunpack.c.h.b16 %v752
        %v950 = vunpack.c.l.b16 %v753
        %v951 = vunpack.c.h.b16 %v753
        %v952 = vunpack.c.l.b16 %v754
        %v953 = vunpack.c.h.b16 %v754
        %v954 = vunpack.c.l.b16 %v755
        %v955 = vunpack.c.h.b16 %v755
        %v956 = vunpack.c.l.b16 %v756
        %v957 = vunpack.c.h.b16 %v756
        %v958 = vunpack.c.l.b16 %v757
        %v959 = vunpack.c.h.b16 %v757
        %v960 = vunpack.c.l.b16 %v758
        %v961 = vunpack.c.h.b16 %v758
        %v962 = vunpack.c.l.b16 %v759
        %v963 = vunpack.c.h.b16 %v759
        %v964 = vunpack.c.l.b16 %v760
        %v965 = vunpack.c.h.b16 %v760
        %v966 = vunpack.c.l.b16 %v761
        %v967 = vunpack.c.h.b16 %v761
        %v968 = vunpack.c.l.b16 %v762
        %v969 = vunpack.c.h.b16 %v762
        %v970 = vunpack.c.l.b16 %v763
        %v971 = vunpack.c.h.b16 %v763
        %v972 = vunpack.c.l.b16 %v764
        %v973 = vunpack.c.h.b16 %v764
        %v974 = vunpack.c.l.b16 %v765
        %v975 = vunpack.c.h.b16 %v765
        %v976 = vunpack.c.l.b16 %v766
        %v977 = vunpack.c.h.b16 %v766
        %v978 = vunpack.c.l.b16 %v767
        %v979 = vunpack.c.h.b16 %v767
        %v980 = vunpack.c.l.b16 %v768
        %v981 = vunpack.c.h.b16 %v768
        %v982 = vunpack.c.l.b16 %v769
        %v983 = vunpack.c.h.b16 %v769
        %v984 = vunpack.c.l.b16 %v770
        %v985 = vunpack.c.h.b16 %v770
        %v986 = vunpack.c.l.b16 %v771
        %v987 = vunpack.c.h.b16 %v771
        %v988 = vunpack.c.l.b16 %v772
        %v989 = vunpack.c.h.b16 %v772
        %v990 = vunpack.c.l.b16 %v773
        %v991 = vunpack.c.h.b16 %v773
        %v992 = vunpack.c.l.b16 %v774
        %v993 = vunpack.c.h.b16 %v774
        %v994 = vunpack.c.l.b16 %v775
        %v995 = vunpack.c.h.b16 %v775
        %v996 = vunpack.c.l.b16 %v776
        %v997 = vunpack.c.h.b16 %v776
        %v998 = vunpack.c.l.b16 %v777
        %v999 = vunpack.c.h.b16 %v777
        %v1000 = vunpack.c.l.b16 %v778
        %v1001 = vunpack.c.h.b16 %v778
        %v1002 = vunpack.c.l.b16 %v779
        %v1003 = vunpack.c.h.b16 %v779
        %v1004 = vunpack.c.l.b16 %v780
        %v1005 = vunpack.c.h.b16 %v780
        %v1006 = vunpack.c.l.b16 %v781
        %v1007 = vunpack.c.h.b16 %v781
        %v1008 = vunpack.c.l.b16 %v782
        %v1009 = vunpack.c.h.b16 %v782
        %v1010 = vunpack.c.l.b16 %v783
        %v1011 = vunpack.c.h.b16 %v783
        %v1012 = vunpack.c.l.b16 %v784
        %v1013 = vunpack.c.h.b16 %v784
        %v1014 = vunpack.c.l.b16 %v785
        %v1015 = vunpack.c.h.b16 %v785
        %v1016 = vunpack.c.l.b16 %v786
        %v1017 = vunpack.c.h.b16 %v786
        %v1018 = vunpack.c.l.b16 %v787
        %v1019 = vunpack.c.h.b16 %v787
        %v1020 = vunpack.c.l.b16 %v788
        %v1021 = vunpack.c.h.b16 %v788
        %v1022 = vunpack.c.l.b16 %v789
        %v1023 = vunpack.c.h.b16 %v789
        %v1024 = vunpack.c.l.b16 %v790
        %v1025 = vunpack.c.h.b16 %v790
        %v1026 = vunpack.c.l.b16 %v791
        %v1027 = vunpack.c.h.b16 %v791
        %v1028 = vpack.c.b16 %v908, %v900
        %v1029 = vpack.c.b16 %v909, %v901
        %v1030 = vpack.c.b16 %v910, %v902
        %v1031 = vpack.c.b16 %v911, %v903
        %v1032 = vpack.c.b16 %v912, %v904
        %v1033 = vpack.c.b16 %v913, %v905
        %v1034 = vpack.c.b16 %v914, %v906
        %v1035 = vpack.c.b16 %v915, %v907
        %v1036 = vpack.c.b16 %v924, %v916
        %v1037 = vpack.c.b16 %v925, %v917
        %v1038 = vpack.c.b16 %v926, %v918
        %v1039 = vpack.c.b16 %v927, %v919
        %v1040 = vpack.c.b16 %v928, %v920
        %v1041 = vpack.c.b16 %v929, %v921
        %v1042 = vpack.c.b16 %v930, %v922
        %v1043 = vpack.c.b16 %v931, %v923
        %v1044 = vpack.c.b16 %v940, %v932
        %v1045 = vpack.c.b16 %v941, %v933
        %v1046 = vpack.c.b16 %v942, %v934
        %v1047 = vpack.c.b16 %v943, %v935
        %v1048 = vpack.c.b16 %v944, %v936
        %v1049 = vpack.c.b16 %v945, %v937
        %v1050 = vpack.c.b16 %v946, %v938
        %v1051 = vpack.c.b16 %v947, %v939
        %v1052 = vpack.c.b16 %v956, %v948
        %v1053 = vpack.c.b16 %v957, %v949
        %v1054 = vpack.c.b16 %v958, %v950
        %v1055 = vpack.c.b16 %v959, %v951
        %v1056 = vpack.c.b16 %v960, %v952
        %v1057 = vpack.c.b16 %v961, %v953
        %v1058 = vpack.c.b16 %v962, %v954
        %v1059 = vpack.c.b16 %v963, %v955
        %v1060 = vpack.c.b16 %v972, %v964
        %v1061 = vpack.c.b16 %v973, %v965
        %v1062 = vpack.c.b16 %v974, %v966
        %v1063 = vpack.c.b16 %v975, %v967
        %v1064 = vpack.c.b16 %v976, %v968
        %v1065 = vpack.c.b16 %v977, %v969
        %v1066 = vpack.c.b16 %v978, %v970
        %v1067 = vpack.c.b16 %v979, %v971
        %v1068 = vpack.c.b16 %v988, %v980
        %v1069 = vpack.c.b16 %v989, %v981
        %v1070 = vpack.c.b16 %v990, %v982
        %v1071 = vpack.c.b16 %v991, %v983
        %v1072 = vpack.c.b16 %v992, %v984
        %v1073 = vpack.c.b16 %v993, %v985
        %v1074 = vpack.c.b16 %v994, %v986
        %v1075 = vpack.c.b16 %v995, %v987
        %v1076 = vpack.c.b16 %v1004, %v996
        %v1077 = vpack.c.b16 %v1005, %v997
        %v1078 = vpack.c.b16 %v1006, %v998
        %v1079 = vpack.c.b16 %v1007, %v999
        %v1080 = vpack.c.b16 %v1008, %v1000
        %v1081 = vpack.c.b16 %v1009, %v1001
        %v1082 = vpack.c.b16 %v1010, %v1002
        %v1083 = vpack.c.b16 %v1011, %v1003
        %v1084 = vpack.c.b16 %v1020, %v1012
        %v1085 = vpack.c.b16 %v1021, %v1013
        %v1086 = vpack.c.b16 %v1022, %v1014
        %v1087 = vpack.c.b16 %v1023, %v1015
        %v1088 = vpack.c.b16 %v1024, %v1016
        %v1089 = vpack.c.b16 %v1025, %v1017
        %v1090 = vpack.c.b16 %v1026, %v1018
        %v1091 = vpack.c.b16 %v1027, %v1019
        %1156 = vmatprep.subr.bf16.mxu0 %v1085
        %1157 = vmatpush1.bf16.msra.mxu0 %v1084
        %1158 = vmatprep.subr.bf16.mxu0 %v1077
        %1159 = vmatpush1.bf16.msra.mxu0 %v1076
        %1160 = vmatprep.subr.bf16.mxu0 %v1069
        %1161 = vmatpush1.bf16.msra.mxu0 %v1068
        %1162 = vmatprep.subr.bf16.mxu0 %v1061
        %1163 = vmatpush1.bf16.msra.mxu0 %v1060
        %1164 = vmatprep.subr.bf16.mxu0 %v1053
        %1165 = vmatpush1.bf16.msra.mxu0 %v1052
        %1166 = vmatprep.subr.bf16.mxu0 %v1045
        %1167 = vmatpush1.bf16.msra.mxu0 %v1044
        %1168 = vmatprep.subr.bf16.mxu0 %v1037
        %1169 = vmatpush1.bf16.msra.mxu0 %v1036
        %1170 = vmatprep.subr.bf16.mxu0 %v1029
        %1171 = vmatpush1.bf16.msra.mxu0 %v1028
        %1172 = vmatprep.subr.bf16.mxu0 0
        %1173 = vmatpush2.bf16.msra.mxu0 0
        %1174 = vmatprep.subr.bf16.mxu0 0
        %1175 = vmatpush2.bf16.msra.mxu0 0
        %1176 = vmatprep.subr.bf16.mxu0 0
        %1177 = vmatpush2.bf16.msra.mxu0 0
        %1178 = vmatprep.subr.bf16.mxu0 0
        %1179 = vmatpush2.bf16.msra.mxu0 0
        %1180 = vmatprep.subr.bf16.mxu0 0
        %1181 = vmatpush2.bf16.msra.mxu0 0
        %1182 = vmatprep.subr.bf16.mxu0 0
        %1183 = vmatpush2.bf16.msra.mxu0 0
        %1184 = vmatprep.subr.bf16.mxu0 0
        %1185 = vmatpush2.bf16.msra.mxu0 0
        %1186 = vmatprep.subr.bf16.mxu0 0
        %1187 = vmatpush2.bf16.msra.mxu0 0
        %1188 = vmatprep.mubr.bf16.mxu0 0
        %1189 = vmatmul.mubr.bf16.gmra.mxu0 %v793
        %v1190 = vpop.f32.mrf.mxu0
        %v1191 = vadd.f32 %v799, %v1190
        %v1192 = vpop.f32.mrf.mxu0
        %v1193 = vadd.f32 %v803, %v1192
        %v1194 = vpop.f32.mrf.mxu0
        %v1195 = vadd.f32 %v799, %v1194
        %v1196 = vpop.f32.mrf.mxu0
        %v1197 = vadd.f32 %v803, %v1196
        %1198 = vmatprep.mubr.bf16.mxu0 0
        %1199 = vmatmul.mubr.bf16.gmra.mxu0 %v794
        %v1200 = vpop.f32.mrf.mxu0
        %v1201 = vadd.f32 %v799, %v1200
        %v1202 = vpop.f32.mrf.mxu0
        %v1203 = vadd.f32 %v803, %v1202
        %v1204 = vpop.f32.mrf.mxu0
        %v1205 = vadd.f32 %v799, %v1204
        %v1206 = vpop.f32.mrf.mxu0
        %v1207 = vadd.f32 %v803, %v1206
        %1208 = vdwg.mxu0
        %1209 = vmatprep.subr.bf16.mxu0 %v1087
        %1210 = vmatpush1.bf16.msra.mxu0 %v1086
        %1211 = vmatprep.subr.bf16.mxu0 %v1079
        %1212 = vmatpush1.bf16.msra.mxu0 %v1078
        %1213 = vmatprep.subr.bf16.mxu0 %v1071
        %1214 = vmatpush1.bf16.msra.mxu0 %v1070
        %1215 = vmatprep.subr.bf16.mxu0 %v1063
        %1216 = vmatpush1.bf16.msra.mxu0 %v1062
        %1217 = vmatprep.subr.bf16.mxu0 %v1055
        %1218 = vmatpush1.bf16.msra.mxu0 %v1054
        %1219 = vmatprep.subr.bf16.mxu0 %v1047
        %1220 = vmatpush1.bf16.msra.mxu0 %v1046
        %1221 = vmatprep.subr.bf16.mxu0 %v1039
        %1222 = vmatpush1.bf16.msra.mxu0 %v1038
        %1223 = vmatprep.subr.bf16.mxu0 %v1031
        %1224 = vmatpush1.bf16.msra.mxu0 %v1030
        %1225 = vmatprep.subr.bf16.mxu0 0
        %1226 = vmatpush2.bf16.msra.mxu0 0
        %1227 = vmatprep.subr.bf16.mxu0 0
        %1228 = vmatpush2.bf16.msra.mxu0 0
        %1229 = vmatprep.subr.bf16.mxu0 0
        %1230 = vmatpush2.bf16.msra.mxu0 0
        %1231 = vmatprep.subr.bf16.mxu0 0
        %1232 = vmatpush2.bf16.msra.mxu0 0
        %1233 = vmatprep.subr.bf16.mxu0 0
        %1234 = vmatpush2.bf16.msra.mxu0 0
        %1235 = vmatprep.subr.bf16.mxu0 0
        %1236 = vmatpush2.bf16.msra.mxu0 0
        %1237 = vmatprep.subr.bf16.mxu0 0
        %1238 = vmatpush2.bf16.msra.mxu0 0
        %1239 = vmatprep.subr.bf16.mxu0 0
        %1240 = vmatpush2.bf16.msra.mxu0 0
        %1241 = vmatprep.mubr.bf16.mxu0 0
        %1242 = vmatmul.mubr.bf16.gmra.mxu0 %v793
        %v1243 = vpop.f32.mrf.mxu0
        %v1244 = vadd.f32 %v807, %v1243
        %v1245 = vpop.f32.mrf.mxu0
        %v1246 = vadd.f32 %v811, %v1245
        %v1247 = vpop.f32.mrf.mxu0
        %v1248 = vadd.f32 %v807, %v1247
        %v1249 = vpop.f32.mrf.mxu0
        %v1250 = vadd.f32 %v811, %v1249
        %1251 = vmatprep.mubr.bf16.mxu0 0
        %1252 = vmatmul.mubr.bf16.gmra.mxu0 %v794
        %v1253 = vpop.f32.mrf.mxu0
        %v1254 = vadd.f32 %v807, %v1253
        %v1255 = vpop.f32.mrf.mxu0
        %v1256 = vadd.f32 %v811, %v1255
        %v1257 = vpop.f32.mrf.mxu0
        %v1258 = vadd.f32 %v807, %v1257
        %v1259 = vpop.f32.mrf.mxu0
        %v1260 = vadd.f32 %v811, %v1259
        %1261 = vdwg.mxu0
        %1262 = vmatprep.subr.bf16.mxu0 %v1089
        %1263 = vmatpush1.bf16.msra.mxu0 %v1088
        %1264 = vmatprep.subr.bf16.mxu0 %v1081
        %1265 = vmatpush1.bf16.msra.mxu0 %v1080
        %1266 = vmatprep.subr.bf16.mxu0 %v1073
        %1267 = vmatpush1.bf16.msra.mxu0 %v1072
        %1268 = vmatprep.subr.bf16.mxu0 %v1065
        %1269 = vmatpush1.bf16.msra.mxu0 %v1064
        %1270 = vmatprep.subr.bf16.mxu0 %v1057
        %1271 = vmatpush1.bf16.msra.mxu0 %v1056
        %1272 = vmatprep.subr.bf16.mxu0 %v1049
        %1273 = vmatpush1.bf16.msra.mxu0 %v1048
        %1274 = vmatprep.subr.bf16.mxu0 %v1041
        %1275 = vmatpush1.bf16.msra.mxu0 %v1040
        %1276 = vmatprep.subr.bf16.mxu0 %v1033
        %1277 = vmatpush1.bf16.msra.mxu0 %v1032
        %1278 = vmatprep.subr.bf16.mxu0 0
        %1279 = vmatpush2.bf16.msra.mxu0 0
        %1280 = vmatprep.subr.bf16.mxu0 0
        %1281 = vmatpush2.bf16.msra.mxu0 0
        %1282 = vmatprep.subr.bf16.mxu0 0
        %1283 = vmatpush2.bf16.msra.mxu0 0
        %1284 = vmatprep.subr.bf16.mxu0 0
        %1285 = vmatpush2.bf16.msra.mxu0 0
        %1286 = vmatprep.subr.bf16.mxu0 0
        %1287 = vmatpush2.bf16.msra.mxu0 0
        %1288 = vmatprep.subr.bf16.mxu0 0
        %1289 = vmatpush2.bf16.msra.mxu0 0
        %1290 = vmatprep.subr.bf16.mxu0 0
        %1291 = vmatpush2.bf16.msra.mxu0 0
        %1292 = vmatprep.subr.bf16.mxu0 0
        %1293 = vmatpush2.bf16.msra.mxu0 0
        %1294 = vmatprep.mubr.bf16.mxu0 0
        %1295 = vmatmul.mubr.bf16.gmra.mxu0 %v793
        %v1296 = vpop.f32.mrf.mxu0
        %v1297 = vadd.f32 %v815, %v1296
        %v1298 = vpop.f32.mrf.mxu0
        %v1299 = vadd.f32 %v819, %v1298
        %v1300 = vpop.f32.mrf.mxu0
        %v1301 = vadd.f32 %v815, %v1300
        %v1302 = vpop.f32.mrf.mxu0
        %v1303 = vadd.f32 %v819, %v1302
        %1304 = vmatprep.mubr.bf16.mxu0 0
        %1305 = vmatmul.mubr.bf16.gmra.mxu0 %v794
        %v1306 = vpop.f32.mrf.mxu0
        %v1307 = vadd.f32 %v815, %v1306
        %v1308 = vpop.f32.mrf.mxu0
        %v1309 = vadd.f32 %v819, %v1308
        %v1310 = vpop.f32.mrf.mxu0
        %v1311 = vadd.f32 %v815, %v1310
        %v1312 = vpop.f32.mrf.mxu0
        %v1313 = vadd.f32 %v819, %v1312
        %1314 = vdwg.mxu0
        %1315 = vmatprep.subr.bf16.mxu0 %v1091
        %1316 = vmatpush1.bf16.msra.mxu0 %v1090
        %1317 = vmatprep.subr.bf16.mxu0 %v1083
        %1318 = vmatpush1.bf16.msra.mxu0 %v1082
        %1319 = vmatprep.subr.bf16.mxu0 %v1075
        %1320 = vmatpush1.bf16.msra.mxu0 %v1074
        %1321 = vmatprep.subr.bf16.mxu0 %v1067
        %1322 = vmatpush1.bf16.msra.mxu0 %v1066
        %1323 = vmatprep.subr.bf16.mxu0 %v1059
        %1324 = vmatpush1.bf16.msra.mxu0 %v1058
        %1325 = vmatprep.subr.bf16.mxu0 %v1051
        %1326 = vmatpush1.bf16.msra.mxu0 %v1050
        %1327 = vmatprep.subr.bf16.mxu0 %v1043
        %1328 = vmatpush1.bf16.msra.mxu0 %v1042
        %1329 = vmatprep.subr.bf16.mxu0 %v1035
        %1330 = vmatpush1.bf16.msra.mxu0 %v1034
        %1331 = vmatprep.subr.bf16.mxu0 0
        %1332 = vmatpush2.bf16.msra.mxu0 0
        %1333 = vmatprep.subr.bf16.mxu0 0
        %1334 = vmatpush2.bf16.msra.mxu0 0
        %1335 = vmatprep.subr.bf16.mxu0 0
        %1336 = vmatpush2.bf16.msra.mxu0 0
        %1337 = vmatprep.subr.bf16.mxu0 0
        %1338 = vmatpush2.bf16.msra.mxu0 0
        %1339 = vmatprep.subr.bf16.mxu0 0
        %1340 = vmatpush2.bf16.msra.mxu0 0
        %1341 = vmatprep.subr.bf16.mxu0 0
        %1342 = vmatpush2.bf16.msra.mxu0 0
        %1343 = vmatprep.subr.bf16.mxu0 0
        %1344 = vmatpush2.bf16.msra.mxu0 0
        %1345 = vmatprep.subr.bf16.mxu0 0
        %1346 = vmatpush2.bf16.msra.mxu0 0
        %1347 = vmatprep.mubr.bf16.mxu0 0
        %1348 = vmatmul.mubr.bf16.gmra.mxu0 %v793
        %v1349 = vpop.f32.mrf.mxu0
        %v1350 = vadd.f32 %v823, %v1349
        %v1351 = vpop.f32.mrf.mxu0
        %v1352 = vadd.f32 %v827, %v1351
        %v1353 = vpop.f32.mrf.mxu0
        %v1354 = vadd.f32 %v823, %v1353
        %v1355 = vpop.f32.mrf.mxu0
        %v1356 = vadd.f32 %v827, %v1355
        %1357 = vmatprep.mubr.bf16.mxu0 0
        %1358 = vmatmul.mubr.bf16.gmra.mxu0 %v794
        %v1359 = vpop.f32.mrf.mxu0
        %v1360 = vadd.f32 %v823, %v1359
        %v1361 = vpop.f32.mrf.mxu0
        %v1362 = vadd.f32 %v827, %v1361
        %v1363 = vpop.f32.mrf.mxu0
        %v1364 = vadd.f32 %v823, %v1363
        %v1365 = vpop.f32.mrf.mxu0
        %v1366 = vadd.f32 %v827, %v1365
        %1367 = vdwg.mxu0
        %v1368 = vmax.f32 %v1191, 0.0
        %v1369 = vmax.f32 %v1193, 0.0
        %v1370 = vmax.f32 %v1244, 0.0
        %v1371 = vmax.f32 %v1246, 0.0
        %v1372 = vmax.f32 %v1297, 0.0
        %v1373 = vmax.f32 %v1299, 0.0
        %v1374 = vmax.f32 %v1350, 0.0
        %v1375 = vmax.f32 %v1352, 0.0
        %v1376 = vmax.f32 %v1195, 0.0
        %v1377 = vmax.f32 %v1197, 0.0
        %v1378 = vmax.f32 %v1248, 0.0
        %v1379 = vmax.f32 %v1250, 0.0
        %v1380 = vmax.f32 %v1301, 0.0
        %v1381 = vmax.f32 %v1303, 0.0
        %v1382 = vmax.f32 %v1354, 0.0
        %v1383 = vmax.f32 %v1356, 0.0
        %v1384 = vmax.f32 %v1201, 0.0
        %v1385 = vmax.f32 %v1203, 0.0
        %v1386 = vmax.f32 %v1254, 0.0
        %v1387 = vmax.f32 %v1256, 0.0
        %v1388 = vmax.f32 %v1307, 0.0
        %v1389 = vmax.f32 %v1309, 0.0
        %v1390 = vmax.f32 %v1360, 0.0
        %v1391 = vmax.f32 %v1362, 0.0
        %v1392 = vmax.f32 %v1205, 0.0
        %v1393 = vmax.f32 %v1207, 0.0
        %v1394 = vmax.f32 %v1258, 0.0
        %v1395 = vmax.f32 %v1260, 0.0
        %v1396 = vmax.f32 %v1311, 0.0
        %v1397 = vmax.f32 %v1313, 0.0
        %v1398 = vmax.f32 %v1364, 0.0
        %v1399 = vmax.f32 %v1366, 0.0
        %v1400 = vld [vmem:[#allocation8] sm:$0xff]
        %v1401 = vld [vmem:[#allocation8 + $0x8] sm:$0xff]
        %v1402 = vld [vmem:[#allocation8 + $0x10] sm:$0xff]
        %v1403 = vld [vmem:[#allocation8 + $0x18] sm:$0xff]
        %v1404 = vld [vmem:[#allocation8 + $0x20] sm:$0xff]
        %v1405 = vld [vmem:[#allocation8 + $0x28] sm:$0xff]
        %v1406 = vld [vmem:[#allocation8 + $0x30] sm:$0xff]
        %v1407 = vld [vmem:[#allocation8 + $0x38] sm:$0xff]
        %v1408 = vld [vmem:[#allocation8 + $0x40] sm:$0xff]
        %v1409 = vld [vmem:[#allocation8 + $0x48] sm:$0xff]
        %v1410 = vld [vmem:[#allocation8 + $0x50] sm:$0xff]
        %v1411 = vld [vmem:[#allocation8 + $0x58] sm:$0xff]
        %v1412 = vld [vmem:[#allocation8 + $0x60] sm:$0xff]
        %v1413 = vld [vmem:[#allocation8 + $0x68] sm:$0xff]
        %v1414 = vld [vmem:[#allocation8 + $0x70] sm:$0xff]
        %v1415 = vld [vmem:[#allocation8 + $0x78] sm:$0xff]
        %v1416 = vld [vmem:[#allocation8 + $0x80] sm:$0xff]
        %v1417 = vld [vmem:[#allocation8 + $0x88] sm:$0xff]
        %v1418 = vld [vmem:[#allocation8 + $0x90] sm:$0xff]
        %v1419 = vld [vmem:[#allocation8 + $0x98] sm:$0xff]
        %v1420 = vld [vmem:[#allocation8 + $0xa0] sm:$0xff]
        %v1421 = vld [vmem:[#allocation8 + $0xa8] sm:$0xff]
        %v1422 = vld [vmem:[#allocation8 + $0xb0] sm:$0xff]
        %v1423 = vld [vmem:[#allocation8 + $0xb8] sm:$0xff]
        %v1424 = vld [vmem:[#allocation8 + $0xc0] sm:$0xff]
        %v1425 = vld [vmem:[#allocation8 + $0xc8] sm:$0xff]
        %v1426 = vld [vmem:[#allocation8 + $0xd0] sm:$0xff]
        %v1427 = vld [vmem:[#allocation8 + $0xd8] sm:$0xff]
        %v1428 = vld [vmem:[#allocation8 + $0xe0] sm:$0xff]
        %v1429 = vld [vmem:[#allocation8 + $0xe8] sm:$0xff]
        %v1430 = vld [vmem:[#allocation8 + $0xf0] sm:$0xff]
        %v1431 = vld [vmem:[#allocation8 + $0xf8] sm:$0xff]
        %v1432 = vld [vmem:[#allocation8 + $0x100] sm:$0xff]
        %v1433 = vld [vmem:[#allocation8 + $0x108] sm:$0xff]
        %v1434 = vld [vmem:[#allocation8 + $0x110] sm:$0xff]
        %v1435 = vld [vmem:[#allocation8 + $0x118] sm:$0xff]
        %v1436 = vld [vmem:[#allocation8 + $0x120] sm:$0xff]
        %v1437 = vld [vmem:[#allocation8 + $0x128] sm:$0xff]
        %v1438 = vld [vmem:[#allocation8 + $0x130] sm:$0xff]
        %v1439 = vld [vmem:[#allocation8 + $0x138] sm:$0xff]
        %v1440 = vld [vmem:[#allocation8 + $0x140] sm:$0xff]
        %v1441 = vld [vmem:[#allocation8 + $0x148] sm:$0xff]
        %v1442 = vld [vmem:[#allocation8 + $0x150] sm:$0xff]
        %v1443 = vld [vmem:[#allocation8 + $0x158] sm:$0xff]
        %v1444 = vld [vmem:[#allocation8 + $0x160] sm:$0xff]
        %v1445 = vld [vmem:[#allocation8 + $0x168] sm:$0xff]
        %v1446 = vld [vmem:[#allocation8 + $0x170] sm:$0xff]
        %v1447 = vld [vmem:[#allocation8 + $0x178] sm:$0xff]
        %v1448 = vld [vmem:[#allocation8 + $0x180] sm:$0xff]
        %v1449 = vld [vmem:[#allocation8 + $0x188] sm:$0xff]
        %v1450 = vld [vmem:[#allocation8 + $0x190] sm:$0xff]
        %v1451 = vld [vmem:[#allocation8 + $0x198] sm:$0xff]
        %v1452 = vld [vmem:[#allocation8 + $0x1a0] sm:$0xff]
        %v1453 = vld [vmem:[#allocation8 + $0x1a8] sm:$0xff]
        %v1454 = vld [vmem:[#allocation8 + $0x1b0] sm:$0xff]
        %v1455 = vld [vmem:[#allocation8 + $0x1b8] sm:$0xff]
        %v1456 = vld [vmem:[#allocation8 + $0x1c0] sm:$0xff]
        %v1457 = vld [vmem:[#allocation8 + $0x1c8] sm:$0xff]
        %v1458 = vld [vmem:[#allocation8 + $0x1d0] sm:$0xff]
        %v1459 = vld [vmem:[#allocation8 + $0x1d8] sm:$0xff]
        %v1460 = vld [vmem:[#allocation8 + $0x1e0] sm:$0xff]
        %v1461 = vld [vmem:[#allocation8 + $0x1e8] sm:$0xff]
        %v1462 = vld [vmem:[#allocation8 + $0x1f0] sm:$0xff]
        %v1463 = vld [vmem:[#allocation8 + $0x1f8] sm:$0xff]
        %v1464 = vld [vmem:[#allocation8 + $0x200] sm:$0xff]
        %v1465 = vld [vmem:[#allocation8 + $0x208] sm:$0xff]
        %v1466 = vld [vmem:[#allocation8 + $0x210] sm:$0xff]
        %v1467 = vld [vmem:[#allocation8 + $0x218] sm:$0xff]
        %v1468 = vld [vmem:[#allocation8 + $0x220] sm:$0xff]
        %v1469 = vld [vmem:[#allocation8 + $0x228] sm:$0xff]
        %v1470 = vld [vmem:[#allocation8 + $0x230] sm:$0xff]
        %v1471 = vld [vmem:[#allocation8 + $0x238] sm:$0xff]
        %v1472 = vld [vmem:[#allocation8 + $0x240] sm:$0xff]
        %v1473 = vld [vmem:[#allocation8 + $0x248] sm:$0xff]
        %v1474 = vld [vmem:[#allocation8 + $0x250] sm:$0xff]
        %v1475 = vld [vmem:[#allocation8 + $0x258] sm:$0xff]
        %v1476 = vld [vmem:[#allocation8 + $0x260] sm:$0xff]
        %v1477 = vld [vmem:[#allocation8 + $0x268] sm:$0xff]
        %v1478 = vld [vmem:[#allocation8 + $0x270] sm:$0xff]
        %v1479 = vld [vmem:[#allocation8 + $0x278] sm:$0xff]
        %v1480 = vld [vmem:[#allocation8 + $0x280] sm:$0xff]
        %v1481 = vld [vmem:[#allocation8 + $0x288] sm:$0xff]
        %v1482 = vld [vmem:[#allocation8 + $0x290] sm:$0xff]
        %v1483 = vld [vmem:[#allocation8 + $0x298] sm:$0xff]
        %v1484 = vld [vmem:[#allocation8 + $0x2a0] sm:$0xff]
        %v1485 = vld [vmem:[#allocation8 + $0x2a8] sm:$0xff]
        %v1486 = vld [vmem:[#allocation8 + $0x2b0] sm:$0xff]
        %v1487 = vld [vmem:[#allocation8 + $0x2b8] sm:$0xff]
        %v1488 = vld [vmem:[#allocation8 + $0x2c0] sm:$0xff]
        %v1489 = vld [vmem:[#allocation8 + $0x2c8] sm:$0xff]
        %v1490 = vld [vmem:[#allocation8 + $0x2d0] sm:$0xff]
        %v1491 = vld [vmem:[#allocation8 + $0x2d8] sm:$0xff]
        %v1492 = vld [vmem:[#allocation8 + $0x2e0] sm:$0xff]
        %v1493 = vld [vmem:[#allocation8 + $0x2e8] sm:$0xff]
        %v1494 = vld [vmem:[#allocation8 + $0x2f0] sm:$0xff]
        %v1495 = vld [vmem:[#allocation8 + $0x2f8] sm:$0xff]
        %v1496 = vld [vmem:[#allocation8 + $0x300] sm:$0xff]
        %v1497 = vld [vmem:[#allocation8 + $0x308] sm:$0xff]
        %v1498 = vld [vmem:[#allocation8 + $0x310] sm:$0xff]
        %v1499 = vld [vmem:[#allocation8 + $0x318] sm:$0xff]
        %v1500 = vld [vmem:[#allocation8 + $0x320] sm:$0xff]
        %v1501 = vld [vmem:[#allocation8 + $0x328] sm:$0xff]
        %v1502 = vld [vmem:[#allocation8 + $0x330] sm:$0xff]
        %v1503 = vld [vmem:[#allocation8 + $0x338] sm:$0xff]
        %v1504 = vld [vmem:[#allocation8 + $0x340] sm:$0xff]
        %v1505 = vld [vmem:[#allocation8 + $0x348] sm:$0xff]
        %v1506 = vld [vmem:[#allocation8 + $0x350] sm:$0xff]
        %v1507 = vld [vmem:[#allocation8 + $0x358] sm:$0xff]
        %v1508 = vld [vmem:[#allocation8 + $0x360] sm:$0xff]
        %v1509 = vld [vmem:[#allocation8 + $0x368] sm:$0xff]
        %v1510 = vld [vmem:[#allocation8 + $0x370] sm:$0xff]
        %v1511 = vld [vmem:[#allocation8 + $0x378] sm:$0xff]
        %v1512 = vld [vmem:[#allocation8 + $0x380] sm:$0xff]
        %v1513 = vld [vmem:[#allocation8 + $0x388] sm:$0xff]
        %v1514 = vld [vmem:[#allocation8 + $0x390] sm:$0xff]
        %v1515 = vld [vmem:[#allocation8 + $0x398] sm:$0xff]
        %v1516 = vld [vmem:[#allocation8 + $0x3a0] sm:$0xff]
        %v1517 = vld [vmem:[#allocation8 + $0x3a8] sm:$0xff]
        %v1518 = vld [vmem:[#allocation8 + $0x3b0] sm:$0xff]
        %v1519 = vld [vmem:[#allocation8 + $0x3b8] sm:$0xff]
        %v1520 = vld [vmem:[#allocation8 + $0x3c0] sm:$0xff]
        %v1521 = vld [vmem:[#allocation8 + $0x3c8] sm:$0xff]
        %v1522 = vld [vmem:[#allocation8 + $0x3d0] sm:$0xff]
        %v1523 = vld [vmem:[#allocation8 + $0x3d8] sm:$0xff]
        %v1524 = vld [vmem:[#allocation8 + $0x3e0] sm:$0xff]
        %v1525 = vld [vmem:[#allocation8 + $0x3e8] sm:$0xff]
        %v1526 = vld [vmem:[#allocation8 + $0x3f0] sm:$0xff]
        %v1527 = vld [vmem:[#allocation8 + $0x3f8] sm:$0xff]
        %v1528 = vld [vmem:[#allocation8 + $0x400] sm:$0xff]
        %v1529 = vld [vmem:[#allocation8 + $0x408] sm:$0xff]
        %v1530 = vld [vmem:[#allocation8 + $0x410] sm:$0xff]
        %v1531 = vld [vmem:[#allocation8 + $0x418] sm:$0xff]
        %v1532 = vld [vmem:[#allocation8 + $0x420] sm:$0xff]
        %v1533 = vld [vmem:[#allocation8 + $0x428] sm:$0xff]
        %v1534 = vld [vmem:[#allocation8 + $0x430] sm:$0xff]
        %v1535 = vld [vmem:[#allocation8 + $0x438] sm:$0xff]
        %v1536 = vld [vmem:[#allocation8 + $0x440] sm:$0xff]
        %v1537 = vld [vmem:[#allocation8 + $0x448] sm:$0xff]
        %v1538 = vld [vmem:[#allocation8 + $0x450] sm:$0xff]
        %v1539 = vld [vmem:[#allocation8 + $0x458] sm:$0xff]
        %v1540 = vld [vmem:[#allocation8 + $0x460] sm:$0xff]
        %v1541 = vld [vmem:[#allocation8 + $0x468] sm:$0xff]
        %v1542 = vld [vmem:[#allocation8 + $0x470] sm:$0xff]
        %v1543 = vld [vmem:[#allocation8 + $0x478] sm:$0xff]
        %v1544 = vld [vmem:[#allocation8 + $0x480] sm:$0xff]
        %v1545 = vld [vmem:[#allocation8 + $0x488] sm:$0xff]
        %v1546 = vld [vmem:[#allocation8 + $0x490] sm:$0xff]
        %v1547 = vld [vmem:[#allocation8 + $0x498] sm:$0xff]
        %v1548 = vld [vmem:[#allocation8 + $0x4a0] sm:$0xff]
        %v1549 = vld [vmem:[#allocation8 + $0x4a8] sm:$0xff]
        %v1550 = vld [vmem:[#allocation8 + $0x4b0] sm:$0xff]
        %v1551 = vld [vmem:[#allocation8 + $0x4b8] sm:$0xff]
        %v1552 = vld [vmem:[#allocation8 + $0x4c0] sm:$0xff]
        %v1553 = vld [vmem:[#allocation8 + $0x4c8] sm:$0xff]
        %v1554 = vld [vmem:[#allocation8 + $0x4d0] sm:$0xff]
        %v1555 = vld [vmem:[#allocation8 + $0x4d8] sm:$0xff]
        %v1556 = vld [vmem:[#allocation8 + $0x4e0] sm:$0xff]
        %v1557 = vld [vmem:[#allocation8 + $0x4e8] sm:$0xff]
        %v1558 = vld [vmem:[#allocation8 + $0x4f0] sm:$0xff]
        %v1559 = vld [vmem:[#allocation8 + $0x4f8] sm:$0xff]
        %v1560 = vld [vmem:[#allocation8 + $0x500] sm:$0xff]
        %v1561 = vld [vmem:[#allocation8 + $0x508] sm:$0xff]
        %v1562 = vld [vmem:[#allocation8 + $0x510] sm:$0xff]
        %v1563 = vld [vmem:[#allocation8 + $0x518] sm:$0xff]
        %v1564 = vld [vmem:[#allocation8 + $0x520] sm:$0xff]
        %v1565 = vld [vmem:[#allocation8 + $0x528] sm:$0xff]
        %v1566 = vld [vmem:[#allocation8 + $0x530] sm:$0xff]
        %v1567 = vld [vmem:[#allocation8 + $0x538] sm:$0xff]
        %v1568 = vld [vmem:[#allocation8 + $0x540] sm:$0xff]
        %v1569 = vld [vmem:[#allocation8 + $0x548] sm:$0xff]
        %v1570 = vld [vmem:[#allocation8 + $0x550] sm:$0xff]
        %v1571 = vld [vmem:[#allocation8 + $0x558] sm:$0xff]
        %v1572 = vld [vmem:[#allocation8 + $0x560] sm:$0xff]
        %v1573 = vld [vmem:[#allocation8 + $0x568] sm:$0xff]
        %v1574 = vld [vmem:[#allocation8 + $0x570] sm:$0xff]
        %v1575 = vld [vmem:[#allocation8 + $0x578] sm:$0xff]
        %v1576 = vld [vmem:[#allocation8 + $0x580] sm:$0xff]
        %v1577 = vld [vmem:[#allocation8 + $0x588] sm:$0xff]
        %v1578 = vld [vmem:[#allocation8 + $0x590] sm:$0xff]
        %v1579 = vld [vmem:[#allocation8 + $0x598] sm:$0xff]
        %v1580 = vld [vmem:[#allocation8 + $0x5a0] sm:$0xff]
        %v1581 = vld [vmem:[#allocation8 + $0x5a8] sm:$0xff]
        %v1582 = vld [vmem:[#allocation8 + $0x5b0] sm:$0xff]
        %v1583 = vld [vmem:[#allocation8 + $0x5b8] sm:$0xff]
        %v1584 = vld [vmem:[#allocation8 + $0x5c0] sm:$0xff]
        %v1585 = vld [vmem:[#allocation8 + $0x5c8] sm:$0xff]
        %v1586 = vld [vmem:[#allocation8 + $0x5d0] sm:$0xff]
        %v1587 = vld [vmem:[#allocation8 + $0x5d8] sm:$0xff]
        %v1588 = vld [vmem:[#allocation8 + $0x5e0] sm:$0xff]
        %v1589 = vld [vmem:[#allocation8 + $0x5e8] sm:$0xff]
        %v1590 = vld [vmem:[#allocation8 + $0x5f0] sm:$0xff]
        %v1591 = vld [vmem:[#allocation8 + $0x5f8] sm:$0xff]
        %v1592 = vld [vmem:[#allocation8 + $0x600] sm:$0xff]
        %v1593 = vld [vmem:[#allocation8 + $0x608] sm:$0xff]
        %v1594 = vld [vmem:[#allocation8 + $0x610] sm:$0xff]
        %v1595 = vld [vmem:[#allocation8 + $0x618] sm:$0xff]
        %v1596 = vld [vmem:[#allocation8 + $0x620] sm:$0xff]
        %v1597 = vld [vmem:[#allocation8 + $0x628] sm:$0xff]
        %v1598 = vld [vmem:[#allocation8 + $0x630] sm:$0xff]
        %v1599 = vld [vmem:[#allocation8 + $0x638] sm:$0xff]
        %v1600 = vld [vmem:[#allocation8 + $0x640] sm:$0xff]
        %v1601 = vld [vmem:[#allocation8 + $0x648] sm:$0xff]
        %v1602 = vld [vmem:[#allocation8 + $0x650] sm:$0xff]
        %v1603 = vld [vmem:[#allocation8 + $0x658] sm:$0xff]
        %v1604 = vld [vmem:[#allocation8 + $0x660] sm:$0xff]
        %v1605 = vld [vmem:[#allocation8 + $0x668] sm:$0xff]
        %v1606 = vld [vmem:[#allocation8 + $0x670] sm:$0xff]
        %v1607 = vld [vmem:[#allocation8 + $0x678] sm:$0xff]
        %v1608 = vld [vmem:[#allocation8 + $0x680] sm:$0xff]
        %v1609 = vld [vmem:[#allocation8 + $0x688] sm:$0xff]
        %v1610 = vld [vmem:[#allocation8 + $0x690] sm:$0xff]
        %v1611 = vld [vmem:[#allocation8 + $0x698] sm:$0xff]
        %v1612 = vld [vmem:[#allocation8 + $0x6a0] sm:$0xff]
        %v1613 = vld [vmem:[#allocation8 + $0x6a8] sm:$0xff]
        %v1614 = vld [vmem:[#allocation8 + $0x6b0] sm:$0xff]
        %v1615 = vld [vmem:[#allocation8 + $0x6b8] sm:$0xff]
        %v1616 = vld [vmem:[#allocation8 + $0x6c0] sm:$0xff]
        %v1617 = vld [vmem:[#allocation8 + $0x6c8] sm:$0xff]
        %v1618 = vld [vmem:[#allocation8 + $0x6d0] sm:$0xff]
        %v1619 = vld [vmem:[#allocation8 + $0x6d8] sm:$0xff]
        %v1620 = vld [vmem:[#allocation8 + $0x6e0] sm:$0xff]
        %v1621 = vld [vmem:[#allocation8 + $0x6e8] sm:$0xff]
        %v1622 = vld [vmem:[#allocation8 + $0x6f0] sm:$0xff]
        %v1623 = vld [vmem:[#allocation8 + $0x6f8] sm:$0xff]
        %v1624 = vld [vmem:[#allocation8 + $0x700] sm:$0xff]
        %v1625 = vld [vmem:[#allocation8 + $0x708] sm:$0xff]
        %v1626 = vld [vmem:[#allocation8 + $0x710] sm:$0xff]
        %v1627 = vld [vmem:[#allocation8 + $0x718] sm:$0xff]
        %v1628 = vld [vmem:[#allocation8 + $0x720] sm:$0xff]
        %v1629 = vld [vmem:[#allocation8 + $0x728] sm:$0xff]
        %v1630 = vld [vmem:[#allocation8 + $0x730] sm:$0xff]
        %v1631 = vld [vmem:[#allocation8 + $0x738] sm:$0xff]
        %v1632 = vld [vmem:[#allocation8 + $0x740] sm:$0xff]
        %v1633 = vld [vmem:[#allocation8 + $0x748] sm:$0xff]
        %v1634 = vld [vmem:[#allocation8 + $0x750] sm:$0xff]
        %v1635 = vld [vmem:[#allocation8 + $0x758] sm:$0xff]
        %v1636 = vld [vmem:[#allocation8 + $0x760] sm:$0xff]
        %v1637 = vld [vmem:[#allocation8 + $0x768] sm:$0xff]
        %v1638 = vld [vmem:[#allocation8 + $0x770] sm:$0xff]
        %v1639 = vld [vmem:[#allocation8 + $0x778] sm:$0xff]
        %v1640 = vld [vmem:[#allocation8 + $0x780] sm:$0xff]
        %v1641 = vld [vmem:[#allocation8 + $0x788] sm:$0xff]
        %v1642 = vld [vmem:[#allocation8 + $0x790] sm:$0xff]
        %v1643 = vld [vmem:[#allocation8 + $0x798] sm:$0xff]
        %v1644 = vld [vmem:[#allocation8 + $0x7a0] sm:$0xff]
        %v1645 = vld [vmem:[#allocation8 + $0x7a8] sm:$0xff]
        %v1646 = vld [vmem:[#allocation8 + $0x7b0] sm:$0xff]
        %v1647 = vld [vmem:[#allocation8 + $0x7b8] sm:$0xff]
        %v1648 = vld [vmem:[#allocation8 + $0x7c0] sm:$0xff]
        %v1649 = vld [vmem:[#allocation8 + $0x7c8] sm:$0xff]
        %v1650 = vld [vmem:[#allocation8 + $0x7d0] sm:$0xff]
        %v1651 = vld [vmem:[#allocation8 + $0x7d8] sm:$0xff]
        %v1652 = vld [vmem:[#allocation8 + $0x7e0] sm:$0xff]
        %v1653 = vld [vmem:[#allocation8 + $0x7e8] sm:$0xff]
        %v1654 = vld [vmem:[#allocation8 + $0x7f0] sm:$0xff]
        %v1655 = vld [vmem:[#allocation8 + $0x7f8] sm:$0xff]
        %v1656 = vld [vmem:[%s4] sm:$0xf]
        %v1657 = vpack.c.bf16 %v1376, %v1368
        %v1658 = vpack.c.bf16 %v1377, %v1369
        %v1659 = vpack.c.bf16 %v1378, %v1370
        %v1660 = vpack.c.bf16 %v1379, %v1371
        %v1661 = vpack.c.bf16 %v1380, %v1372
        %v1662 = vpack.c.bf16 %v1381, %v1373
        %v1663 = vpack.c.bf16 %v1382, %v1374
        %v1664 = vpack.c.bf16 %v1383, %v1375
        %v1665 = vpack.c.bf16 %v1392, %v1384
        %v1666 = vpack.c.bf16 %v1393, %v1385
        %v1667 = vpack.c.bf16 %v1394, %v1386
        %v1668 = vpack.c.bf16 %v1395, %v1387
        %v1669 = vpack.c.bf16 %v1396, %v1388
        %v1670 = vpack.c.bf16 %v1397, %v1389
        %v1671 = vpack.c.bf16 %v1398, %v1390
        %v1672 = vpack.c.bf16 %v1399, %v1391
        %v1674 = vlaneseq
        %v1675 = vshrl.u32 %v1674, 7
        %v1676 = vsub.s32 0, %v1675
        %v1677 = vrot.slane %v1656, %v1676
        %v1678 = vlaneseq
        %v1679 = vshrl.u32 %v1678, 7
        %v1680 = vsub.s32 1, %v1679
        %v1681 = vrot.slane %v1656, %v1680
        %v1682 = vlaneseq
        %v1683 = vshrl.u32 %v1682, 7
        %v1684 = vsub.s32 2, %v1683
        %v1685 = vrot.slane %v1656, %v1684
        %v1686 = vlaneseq
        %v1687 = vshrl.u32 %v1686, 7
        %v1688 = vsub.s32 3, %v1687
        %v1689 = vrot.slane %v1656, %v1688
        %v1950 = vunpack.c.l.b16 %v1400
        %v1951 = vunpack.c.h.b16 %v1400
        %v1952 = vunpack.c.l.b16 %v1401
        %v1953 = vunpack.c.h.b16 %v1401
        %v1954 = vunpack.c.l.b16 %v1402
        %v1955 = vunpack.c.h.b16 %v1402
        %v1956 = vunpack.c.l.b16 %v1403
        %v1957 = vunpack.c.h.b16 %v1403
        %v1958 = vunpack.c.l.b16 %v1404
        %v1959 = vunpack.c.h.b16 %v1404
        %v1960 = vunpack.c.l.b16 %v1405
        %v1961 = vunpack.c.h.b16 %v1405
        %v1962 = vunpack.c.l.b16 %v1406
        %v1963 = vunpack.c.h.b16 %v1406
        %v1964 = vunpack.c.l.b16 %v1407
        %v1965 = vunpack.c.h.b16 %v1407
        %v1966 = vunpack.c.l.b16 %v1408
        %v1967 = vunpack.c.h.b16 %v1408
        %v1968 = vunpack.c.l.b16 %v1409
        %v1969 = vunpack.c.h.b16 %v1409
        %v1970 = vunpack.c.l.b16 %v1410
        %v1971 = vunpack.c.h.b16 %v1410
        %v1972 = vunpack.c.l.b16 %v1411
        %v1973 = vunpack.c.h.b16 %v1411
        %v1974 = vunpack.c.l.b16 %v1412
        %v1975 = vunpack.c.h.b16 %v1412
        %v1976 = vunpack.c.l.b16 %v1413
        %v1977 = vunpack.c.h.b16 %v1413
        %v1978 = vunpack.c.l.b16 %v1414
        %v1979 = vunpack.c.h.b16 %v1414
        %v1980 = vunpack.c.l.b16 %v1415
        %v1981 = vunpack.c.h.b16 %v1415
        %v1982 = vunpack.c.l.b16 %v1416
        %v1983 = vunpack.c.h.b16 %v1416
        %v1984 = vunpack.c.l.b16 %v1417
        %v1985 = vunpack.c.h.b16 %v1417
        %v1986 = vunpack.c.l.b16 %v1418
        %v1987 = vunpack.c.h.b16 %v1418
        %v1988 = vunpack.c.l.b16 %v1419
        %v1989 = vunpack.c.h.b16 %v1419
        %v1990 = vunpack.c.l.b16 %v1420
        %v1991 = vunpack.c.h.b16 %v1420
        %v1992 = vunpack.c.l.b16 %v1421
        %v1993 = vunpack.c.h.b16 %v1421
        %v1994 = vunpack.c.l.b16 %v1422
        %v1995 = vunpack.c.h.b16 %v1422
        %v1996 = vunpack.c.l.b16 %v1423
        %v1997 = vunpack.c.h.b16 %v1423
        %v1998 = vunpack.c.l.b16 %v1424
        %v1999 = vunpack.c.h.b16 %v1424
        %v2000 = vunpack.c.l.b16 %v1425
        %v2001 = vunpack.c.h.b16 %v1425
        %v2002 = vunpack.c.l.b16 %v1426
        %v2003 = vunpack.c.h.b16 %v1426
        %v2004 = vunpack.c.l.b16 %v1427
        %v2005 = vunpack.c.h.b16 %v1427
        %v2006 = vunpack.c.l.b16 %v1428
        %v2007 = vunpack.c.h.b16 %v1428
        %v2008 = vunpack.c.l.b16 %v1429
        %v2009 = vunpack.c.h.b16 %v1429
        %v2010 = vunpack.c.l.b16 %v1430
        %v2011 = vunpack.c.h.b16 %v1430
        %v2012 = vunpack.c.l.b16 %v1431
        %v2013 = vunpack.c.h.b16 %v1431
        %v2014 = vunpack.c.l.b16 %v1432
        %v2015 = vunpack.c.h.b16 %v1432
        %v2016 = vunpack.c.l.b16 %v1433
        %v2017 = vunpack.c.h.b16 %v1433
        %v2018 = vunpack.c.l.b16 %v1434
        %v2019 = vunpack.c.h.b16 %v1434
        %v2020 = vunpack.c.l.b16 %v1435
        %v2021 = vunpack.c.h.b16 %v1435
        %v2022 = vunpack.c.l.b16 %v1436
        %v2023 = vunpack.c.h.b16 %v1436
        %v2024 = vunpack.c.l.b16 %v1437
        %v2025 = vunpack.c.h.b16 %v1437
        %v2026 = vunpack.c.l.b16 %v1438
        %v2027 = vunpack.c.h.b16 %v1438
        %v2028 = vunpack.c.l.b16 %v1439
        %v2029 = vunpack.c.h.b16 %v1439
        %v2030 = vunpack.c.l.b16 %v1440
        %v2031 = vunpack.c.h.b16 %v1440
        %v2032 = vunpack.c.l.b16 %v1441
        %v2033 = vunpack.c.h.b16 %v1441
        %v2034 = vunpack.c.l.b16 %v1442
        %v2035 = vunpack.c.h.b16 %v1442
        %v2036 = vunpack.c.l.b16 %v1443
        %v2037 = vunpack.c.h.b16 %v1443
        %v2038 = vunpack.c.l.b16 %v1444
        %v2039 = vunpack.c.h.b16 %v1444
        %v2040 = vunpack.c.l.b16 %v1445
        %v2041 = vunpack.c.h.b16 %v1445
        %v2042 = vunpack.c.l.b16 %v1446
        %v2043 = vunpack.c.h.b16 %v1446
        %v2044 = vunpack.c.l.b16 %v1447
        %v2045 = vunpack.c.h.b16 %v1447
        %v2046 = vunpack.c.l.b16 %v1448
        %v2047 = vunpack.c.h.b16 %v1448
        %v2048 = vunpack.c.l.b16 %v1449
        %v2049 = vunpack.c.h.b16 %v1449
        %v2050 = vunpack.c.l.b16 %v1450
        %v2051 = vunpack.c.h.b16 %v1450
        %v2052 = vunpack.c.l.b16 %v1451
        %v2053 = vunpack.c.h.b16 %v1451
        %v2054 = vunpack.c.l.b16 %v1452
        %v2055 = vunpack.c.h.b16 %v1452
        %v2056 = vunpack.c.l.b16 %v1453
        %v2057 = vunpack.c.h.b16 %v1453
        %v2058 = vunpack.c.l.b16 %v1454
        %v2059 = vunpack.c.h.b16 %v1454
        %v2060 = vunpack.c.l.b16 %v1455
        %v2061 = vunpack.c.h.b16 %v1455
        %v2062 = vunpack.c.l.b16 %v1456
        %v2063 = vunpack.c.h.b16 %v1456
        %v2064 = vunpack.c.l.b16 %v1457
        %v2065 = vunpack.c.h.b16 %v1457
        %v2066 = vunpack.c.l.b16 %v1458
        %v2067 = vunpack.c.h.b16 %v1458
        %v2068 = vunpack.c.l.b16 %v1459
        %v2069 = vunpack.c.h.b16 %v1459
        %v2070 = vunpack.c.l.b16 %v1460
        %v2071 = vunpack.c.h.b16 %v1460
        %v2072 = vunpack.c.l.b16 %v1461
        %v2073 = vunpack.c.h.b16 %v1461
        %v2074 = vunpack.c.l.b16 %v1462
        %v2075 = vunpack.c.h.b16 %v1462
        %v2076 = vunpack.c.l.b16 %v1463
        %v2077 = vunpack.c.h.b16 %v1463
        %v2078 = vunpack.c.l.b16 %v1464
        %v2079 = vunpack.c.h.b16 %v1464
        %v2080 = vunpack.c.l.b16 %v1465
        %v2081 = vunpack.c.h.b16 %v1465
        %v2082 = vunpack.c.l.b16 %v1466
        %v2083 = vunpack.c.h.b16 %v1466
        %v2084 = vunpack.c.l.b16 %v1467
        %v2085 = vunpack.c.h.b16 %v1467
        %v2086 = vunpack.c.l.b16 %v1468
        %v2087 = vunpack.c.h.b16 %v1468
        %v2088 = vunpack.c.l.b16 %v1469
        %v2089 = vunpack.c.h.b16 %v1469
        %v2090 = vunpack.c.l.b16 %v1470
        %v2091 = vunpack.c.h.b16 %v1470
        %v2092 = vunpack.c.l.b16 %v1471
        %v2093 = vunpack.c.h.b16 %v1471
        %v2094 = vunpack.c.l.b16 %v1472
        %v2095 = vunpack.c.h.b16 %v1472
        %v2096 = vunpack.c.l.b16 %v1473
        %v2097 = vunpack.c.h.b16 %v1473
        %v2098 = vunpack.c.l.b16 %v1474
        %v2099 = vunpack.c.h.b16 %v1474
        %v2100 = vunpack.c.l.b16 %v1475
        %v2101 = vunpack.c.h.b16 %v1475
        %v2102 = vunpack.c.l.b16 %v1476
        %v2103 = vunpack.c.h.b16 %v1476
        %v2104 = vunpack.c.l.b16 %v1477
        %v2105 = vunpack.c.h.b16 %v1477
        %v2106 = vunpack.c.l.b16 %v1478
        %v2107 = vunpack.c.h.b16 %v1478
        %v2108 = vunpack.c.l.b16 %v1479
        %v2109 = vunpack.c.h.b16 %v1479
        %v2110 = vunpack.c.l.b16 %v1480
        %v2111 = vunpack.c.h.b16 %v1480
        %v2112 = vunpack.c.l.b16 %v1481
        %v2113 = vunpack.c.h.b16 %v1481
        %v2114 = vunpack.c.l.b16 %v1482
        %v2115 = vunpack.c.h.b16 %v1482
        %v2116 = vunpack.c.l.b16 %v1483
        %v2117 = vunpack.c.h.b16 %v1483
        %v2118 = vunpack.c.l.b16 %v1484
        %v2119 = vunpack.c.h.b16 %v1484
        %v2120 = vunpack.c.l.b16 %v1485
        %v2121 = vunpack.c.h.b16 %v1485
        %v2122 = vunpack.c.l.b16 %v1486
        %v2123 = vunpack.c.h.b16 %v1486
        %v2124 = vunpack.c.l.b16 %v1487
        %v2125 = vunpack.c.h.b16 %v1487
        %v2126 = vunpack.c.l.b16 %v1488
        %v2127 = vunpack.c.h.b16 %v1488
        %v2128 = vunpack.c.l.b16 %v1489
        %v2129 = vunpack.c.h.b16 %v1489
        %v2130 = vunpack.c.l.b16 %v1490
        %v2131 = vunpack.c.h.b16 %v1490
        %v2132 = vunpack.c.l.b16 %v1491
        %v2133 = vunpack.c.h.b16 %v1491
        %v2134 = vunpack.c.l.b16 %v1492
        %v2135 = vunpack.c.h.b16 %v1492
        %v2136 = vunpack.c.l.b16 %v1493
        %v2137 = vunpack.c.h.b16 %v1493
        %v2138 = vunpack.c.l.b16 %v1494
        %v2139 = vunpack.c.h.b16 %v1494
        %v2140 = vunpack.c.l.b16 %v1495
        %v2141 = vunpack.c.h.b16 %v1495
        %v2142 = vunpack.c.l.b16 %v1496
        %v2143 = vunpack.c.h.b16 %v1496
        %v2144 = vunpack.c.l.b16 %v1497
        %v2145 = vunpack.c.h.b16 %v1497
        %v2146 = vunpack.c.l.b16 %v1498
        %v2147 = vunpack.c.h.b16 %v1498
        %v2148 = vunpack.c.l.b16 %v1499
        %v2149 = vunpack.c.h.b16 %v1499
        %v2150 = vunpack.c.l.b16 %v1500
        %v2151 = vunpack.c.h.b16 %v1500
        %v2152 = vunpack.c.l.b16 %v1501
        %v2153 = vunpack.c.h.b16 %v1501
        %v2154 = vunpack.c.l.b16 %v1502
        %v2155 = vunpack.c.h.b16 %v1502
        %v2156 = vunpack.c.l.b16 %v1503
        %v2157 = vunpack.c.h.b16 %v1503
        %v2158 = vunpack.c.l.b16 %v1504
        %v2159 = vunpack.c.h.b16 %v1504
        %v2160 = vunpack.c.l.b16 %v1505
        %v2161 = vunpack.c.h.b16 %v1505
        %v2162 = vunpack.c.l.b16 %v1506
        %v2163 = vunpack.c.h.b16 %v1506
        %v2164 = vunpack.c.l.b16 %v1507
        %v2165 = vunpack.c.h.b16 %v1507
        %v2166 = vunpack.c.l.b16 %v1508
        %v2167 = vunpack.c.h.b16 %v1508
        %v2168 = vunpack.c.l.b16 %v1509
        %v2169 = vunpack.c.h.b16 %v1509
        %v2170 = vunpack.c.l.b16 %v1510
        %v2171 = vunpack.c.h.b16 %v1510
        %v2172 = vunpack.c.l.b16 %v1511
        %v2173 = vunpack.c.h.b16 %v1511
        %v2174 = vunpack.c.l.b16 %v1512
        %v2175 = vunpack.c.h.b16 %v1512
        %v2176 = vunpack.c.l.b16 %v1513
        %v2177 = vunpack.c.h.b16 %v1513
        %v2178 = vunpack.c.l.b16 %v1514
        %v2179 = vunpack.c.h.b16 %v1514
        %v2180 = vunpack.c.l.b16 %v1515
        %v2181 = vunpack.c.h.b16 %v1515
        %v2182 = vunpack.c.l.b16 %v1516
        %v2183 = vunpack.c.h.b16 %v1516
        %v2184 = vunpack.c.l.b16 %v1517
        %v2185 = vunpack.c.h.b16 %v1517
        %v2186 = vunpack.c.l.b16 %v1518
        %v2187 = vunpack.c.h.b16 %v1518
        %v2188 = vunpack.c.l.b16 %v1519
        %v2189 = vunpack.c.h.b16 %v1519
        %v2190 = vunpack.c.l.b16 %v1520
        %v2191 = vunpack.c.h.b16 %v1520
        %v2192 = vunpack.c.l.b16 %v1521
        %v2193 = vunpack.c.h.b16 %v1521
        %v2194 = vunpack.c.l.b16 %v1522
        %v2195 = vunpack.c.h.b16 %v1522
        %v2196 = vunpack.c.l.b16 %v1523
        %v2197 = vunpack.c.h.b16 %v1523
        %v2198 = vunpack.c.l.b16 %v1524
        %v2199 = vunpack.c.h.b16 %v1524
        %v2200 = vunpack.c.l.b16 %v1525
        %v2201 = vunpack.c.h.b16 %v1525
        %v2202 = vunpack.c.l.b16 %v1526
        %v2203 = vunpack.c.h.b16 %v1526
        %v2204 = vunpack.c.l.b16 %v1527
        %v2205 = vunpack.c.h.b16 %v1527
        %v2206 = vunpack.c.l.b16 %v1528
        %v2207 = vunpack.c.h.b16 %v1528
        %v2208 = vunpack.c.l.b16 %v1529
        %v2209 = vunpack.c.h.b16 %v1529
        %v2210 = vunpack.c.l.b16 %v1530
        %v2211 = vunpack.c.h.b16 %v1530
        %v2212 = vunpack.c.l.b16 %v1531
        %v2213 = vunpack.c.h.b16 %v1531
        %v2214 = vunpack.c.l.b16 %v1532
        %v2215 = vunpack.c.h.b16 %v1532
        %v2216 = vunpack.c.l.b16 %v1533
        %v2217 = vunpack.c.h.b16 %v1533
        %v2218 = vunpack.c.l.b16 %v1534
        %v2219 = vunpack.c.h.b16 %v1534
        %v2220 = vunpack.c.l.b16 %v1535
        %v2221 = vunpack.c.h.b16 %v1535
        %v2222 = vunpack.c.l.b16 %v1536
        %v2223 = vunpack.c.h.b16 %v1536
        %v2224 = vunpack.c.l.b16 %v1537
        %v2225 = vunpack.c.h.b16 %v1537
        %v2226 = vunpack.c.l.b16 %v1538
        %v2227 = vunpack.c.h.b16 %v1538
        %v2228 = vunpack.c.l.b16 %v1539
        %v2229 = vunpack.c.h.b16 %v1539
        %v2230 = vunpack.c.l.b16 %v1540
        %v2231 = vunpack.c.h.b16 %v1540
        %v2232 = vunpack.c.l.b16 %v1541
        %v2233 = vunpack.c.h.b16 %v1541
        %v2234 = vunpack.c.l.b16 %v1542
        %v2235 = vunpack.c.h.b16 %v1542
        %v2236 = vunpack.c.l.b16 %v1543
        %v2237 = vunpack.c.h.b16 %v1543
        %v2238 = vunpack.c.l.b16 %v1544
        %v2239 = vunpack.c.h.b16 %v1544
        %v2240 = vunpack.c.l.b16 %v1545
        %v2241 = vunpack.c.h.b16 %v1545
        %v2242 = vunpack.c.l.b16 %v1546
        %v2243 = vunpack.c.h.b16 %v1546
        %v2244 = vunpack.c.l.b16 %v1547
        %v2245 = vunpack.c.h.b16 %v1547
        %v2246 = vunpack.c.l.b16 %v1548
        %v2247 = vunpack.c.h.b16 %v1548
        %v2248 = vunpack.c.l.b16 %v1549
        %v2249 = vunpack.c.h.b16 %v1549
        %v2250 = vunpack.c.l.b16 %v1550
        %v2251 = vunpack.c.h.b16 %v1550
        %v2252 = vunpack.c.l.b16 %v1551
        %v2253 = vunpack.c.h.b16 %v1551
        %v2254 = vunpack.c.l.b16 %v1552
        %v2255 = vunpack.c.h.b16 %v1552
        %v2256 = vunpack.c.l.b16 %v1553
        %v2257 = vunpack.c.h.b16 %v1553
        %v2258 = vunpack.c.l.b16 %v1554
        %v2259 = vunpack.c.h.b16 %v1554
        %v2260 = vunpack.c.l.b16 %v1555
        %v2261 = vunpack.c.h.b16 %v1555
        %v2262 = vunpack.c.l.b16 %v1556
        %v2263 = vunpack.c.h.b16 %v1556
        %v2264 = vunpack.c.l.b16 %v1557
        %v2265 = vunpack.c.h.b16 %v1557
        %v2266 = vunpack.c.l.b16 %v1558
        %v2267 = vunpack.c.h.b16 %v1558
        %v2268 = vunpack.c.l.b16 %v1559
        %v2269 = vunpack.c.h.b16 %v1559
        %v2270 = vunpack.c.l.b16 %v1560
        %v2271 = vunpack.c.h.b16 %v1560
        %v2272 = vunpack.c.l.b16 %v1561
        %v2273 = vunpack.c.h.b16 %v1561
        %v2274 = vunpack.c.l.b16 %v1562
        %v2275 = vunpack.c.h.b16 %v1562
        %v2276 = vunpack.c.l.b16 %v1563
        %v2277 = vunpack.c.h.b16 %v1563
        %v2278 = vunpack.c.l.b16 %v1564
        %v2279 = vunpack.c.h.b16 %v1564
        %v2280 = vunpack.c.l.b16 %v1565
        %v2281 = vunpack.c.h.b16 %v1565
        %v2282 = vunpack.c.l.b16 %v1566
        %v2283 = vunpack.c.h.b16 %v1566
        %v2284 = vunpack.c.l.b16 %v1567
        %v2285 = vunpack.c.h.b16 %v1567
        %v2286 = vunpack.c.l.b16 %v1568
        %v2287 = vunpack.c.h.b16 %v1568
        %v2288 = vunpack.c.l.b16 %v1569
        %v2289 = vunpack.c.h.b16 %v1569
        %v2290 = vunpack.c.l.b16 %v1570
        %v2291 = vunpack.c.h.b16 %v1570
        %v2292 = vunpack.c.l.b16 %v1571
        %v2293 = vunpack.c.h.b16 %v1571
        %v2294 = vunpack.c.l.b16 %v1572
        %v2295 = vunpack.c.h.b16 %v1572
        %v2296 = vunpack.c.l.b16 %v1573
        %v2297 = vunpack.c.h.b16 %v1573
        %v2298 = vunpack.c.l.b16 %v1574
        %v2299 = vunpack.c.h.b16 %v1574
        %v2300 = vunpack.c.l.b16 %v1575
        %v2301 = vunpack.c.h.b16 %v1575
        %v2302 = vunpack.c.l.b16 %v1576
        %v2303 = vunpack.c.h.b16 %v1576
        %v2304 = vunpack.c.l.b16 %v1577
        %v2305 = vunpack.c.h.b16 %v1577
        %v2306 = vunpack.c.l.b16 %v1578
        %v2307 = vunpack.c.h.b16 %v1578
        %v2308 = vunpack.c.l.b16 %v1579
        %v2309 = vunpack.c.h.b16 %v1579
        %v2310 = vunpack.c.l.b16 %v1580
        %v2311 = vunpack.c.h.b16 %v1580
        %v2312 = vunpack.c.l.b16 %v1581
        %v2313 = vunpack.c.h.b16 %v1581
        %v2314 = vunpack.c.l.b16 %v1582
        %v2315 = vunpack.c.h.b16 %v1582
        %v2316 = vunpack.c.l.b16 %v1583
        %v2317 = vunpack.c.h.b16 %v1583
        %v2318 = vunpack.c.l.b16 %v1584
        %v2319 = vunpack.c.h.b16 %v1584
        %v2320 = vunpack.c.l.b16 %v1585
        %v2321 = vunpack.c.h.b16 %v1585
        %v2322 = vunpack.c.l.b16 %v1586
        %v2323 = vunpack.c.h.b16 %v1586
        %v2324 = vunpack.c.l.b16 %v1587
        %v2325 = vunpack.c.h.b16 %v1587
        %v2326 = vunpack.c.l.b16 %v1588
        %v2327 = vunpack.c.h.b16 %v1588
        %v2328 = vunpack.c.l.b16 %v1589
        %v2329 = vunpack.c.h.b16 %v1589
        %v2330 = vunpack.c.l.b16 %v1590
        %v2331 = vunpack.c.h.b16 %v1590
        %v2332 = vunpack.c.l.b16 %v1591
        %v2333 = vunpack.c.h.b16 %v1591
        %v2334 = vunpack.c.l.b16 %v1592
        %v2335 = vunpack.c.h.b16 %v1592
        %v2336 = vunpack.c.l.b16 %v1593
        %v2337 = vunpack.c.h.b16 %v1593
        %v2338 = vunpack.c.l.b16 %v1594
        %v2339 = vunpack.c.h.b16 %v1594
        %v2340 = vunpack.c.l.b16 %v1595
        %v2341 = vunpack.c.h.b16 %v1595
        %v2342 = vunpack.c.l.b16 %v1596
        %v2343 = vunpack.c.h.b16 %v1596
        %v2344 = vunpack.c.l.b16 %v1597
        %v2345 = vunpack.c.h.b16 %v1597
        %v2346 = vunpack.c.l.b16 %v1598
        %v2347 = vunpack.c.h.b16 %v1598
        %v2348 = vunpack.c.l.b16 %v1599
        %v2349 = vunpack.c.h.b16 %v1599
        %v2350 = vunpack.c.l.b16 %v1600
        %v2351 = vunpack.c.h.b16 %v1600
        %v2352 = vunpack.c.l.b16 %v1601
        %v2353 = vunpack.c.h.b16 %v1601
        %v2354 = vunpack.c.l.b16 %v1602
        %v2355 = vunpack.c.h.b16 %v1602
        %v2356 = vunpack.c.l.b16 %v1603
        %v2357 = vunpack.c.h.b16 %v1603
        %v2358 = vunpack.c.l.b16 %v1604
        %v2359 = vunpack.c.h.b16 %v1604
        %v2360 = vunpack.c.l.b16 %v1605
        %v2361 = vunpack.c.h.b16 %v1605
        %v2362 = vunpack.c.l.b16 %v1606
        %v2363 = vunpack.c.h.b16 %v1606
        %v2364 = vunpack.c.l.b16 %v1607
        %v2365 = vunpack.c.h.b16 %v1607
        %v2366 = vunpack.c.l.b16 %v1608
        %v2367 = vunpack.c.h.b16 %v1608
        %v2368 = vunpack.c.l.b16 %v1609
        %v2369 = vunpack.c.h.b16 %v1609
        %v2370 = vunpack.c.l.b16 %v1610
        %v2371 = vunpack.c.h.b16 %v1610
        %v2372 = vunpack.c.l.b16 %v1611
        %v2373 = vunpack.c.h.b16 %v1611
        %v2374 = vunpack.c.l.b16 %v1612
        %v2375 = vunpack.c.h.b16 %v1612
        %v2376 = vunpack.c.l.b16 %v1613
        %v2377 = vunpack.c.h.b16 %v1613
        %v2378 = vunpack.c.l.b16 %v1614
        %v2379 = vunpack.c.h.b16 %v1614
        %v2380 = vunpack.c.l.b16 %v1615
        %v2381 = vunpack.c.h.b16 %v1615
        %v2382 = vunpack.c.l.b16 %v1616
        %v2383 = vunpack.c.h.b16 %v1616
        %v2384 = vunpack.c.l.b16 %v1617
        %v2385 = vunpack.c.h.b16 %v1617
        %v2386 = vunpack.c.l.b16 %v1618
        %v2387 = vunpack.c.h.b16 %v1618
        %v2388 = vunpack.c.l.b16 %v1619
        %v2389 = vunpack.c.h.b16 %v1619
        %v2390 = vunpack.c.l.b16 %v1620
        %v2391 = vunpack.c.h.b16 %v1620
        %v2392 = vunpack.c.l.b16 %v1621
        %v2393 = vunpack.c.h.b16 %v1621
        %v2394 = vunpack.c.l.b16 %v1622
        %v2395 = vunpack.c.h.b16 %v1622
        %v2396 = vunpack.c.l.b16 %v1623
        %v2397 = vunpack.c.h.b16 %v1623
        %v2398 = vunpack.c.l.b16 %v1624
        %v2399 = vunpack.c.h.b16 %v1624
        %v2400 = vunpack.c.l.b16 %v1625
        %v2401 = vunpack.c.h.b16 %v1625
        %v2402 = vunpack.c.l.b16 %v1626
        %v2403 = vunpack.c.h.b16 %v1626
        %v2404 = vunpack.c.l.b16 %v1627
        %v2405 = vunpack.c.h.b16 %v1627
        %v2406 = vunpack.c.l.b16 %v1628
        %v2407 = vunpack.c.h.b16 %v1628
        %v2408 = vunpack.c.l.b16 %v1629
        %v2409 = vunpack.c.h.b16 %v1629
        %v2410 = vunpack.c.l.b16 %v1630
        %v2411 = vunpack.c.h.b16 %v1630
        %v2412 = vunpack.c.l.b16 %v1631
        %v2413 = vunpack.c.h.b16 %v1631
        %v2414 = vunpack.c.l.b16 %v1632
        %v2415 = vunpack.c.h.b16 %v1632
        %v2416 = vunpack.c.l.b16 %v1633
        %v2417 = vunpack.c.h.b16 %v1633
        %v2418 = vunpack.c.l.b16 %v1634
        %v2419 = vunpack.c.h.b16 %v1634
        %v2420 = vunpack.c.l.b16 %v1635
        %v2421 = vunpack.c.h.b16 %v1635
        %v2422 = vunpack.c.l.b16 %v1636
        %v2423 = vunpack.c.h.b16 %v1636
        %v2424 = vunpack.c.l.b16 %v1637
        %v2425 = vunpack.c.h.b16 %v1637
        %v2426 = vunpack.c.l.b16 %v1638
        %v2427 = vunpack.c.h.b16 %v1638
        %v2428 = vunpack.c.l.b16 %v1639
        %v2429 = vunpack.c.h.b16 %v1639
        %v2430 = vunpack.c.l.b16 %v1640
        %v2431 = vunpack.c.h.b16 %v1640
        %v2432 = vunpack.c.l.b16 %v1641
        %v2433 = vunpack.c.h.b16 %v1641
        %v2434 = vunpack.c.l.b16 %v1642
        %v2435 = vunpack.c.h.b16 %v1642
        %v2436 = vunpack.c.l.b16 %v1643
        %v2437 = vunpack.c.h.b16 %v1643
        %v2438 = vunpack.c.l.b16 %v1644
        %v2439 = vunpack.c.h.b16 %v1644
        %v2440 = vunpack.c.l.b16 %v1645
        %v2441 = vunpack.c.h.b16 %v1645
        %v2442 = vunpack.c.l.b16 %v1646
        %v2443 = vunpack.c.h.b16 %v1646
        %v2444 = vunpack.c.l.b16 %v1647
        %v2445 = vunpack.c.h.b16 %v1647
        %v2446 = vunpack.c.l.b16 %v1648
        %v2447 = vunpack.c.h.b16 %v1648
        %v2448 = vunpack.c.l.b16 %v1649
        %v2449 = vunpack.c.h.b16 %v1649
        %v2450 = vunpack.c.l.b16 %v1650
        %v2451 = vunpack.c.h.b16 %v1650
        %v2452 = vunpack.c.l.b16 %v1651
        %v2453 = vunpack.c.h.b16 %v1651
        %v2454 = vunpack.c.l.b16 %v1652
        %v2455 = vunpack.c.h.b16 %v1652
        %v2456 = vunpack.c.l.b16 %v1653
        %v2457 = vunpack.c.h.b16 %v1653
        %v2458 = vunpack.c.l.b16 %v1654
        %v2459 = vunpack.c.h.b16 %v1654
        %v2460 = vunpack.c.l.b16 %v1655
        %v2461 = vunpack.c.h.b16 %v1655
        %v2462 = vpack.c.b16 %v1954, %v1950
        %v2463 = vpack.c.b16 %v1955, %v1951
        %v2464 = vpack.c.b16 %v1956, %v1952
        %v2465 = vpack.c.b16 %v1957, %v1953
        %v2466 = vpack.c.b16 %v1962, %v1958
        %v2467 = vpack.c.b16 %v1963, %v1959
        %v2468 = vpack.c.b16 %v1964, %v1960
        %v2469 = vpack.c.b16 %v1965, %v1961
        %v2470 = vpack.c.b16 %v1970, %v1966
        %v2471 = vpack.c.b16 %v1971, %v1967
        %v2472 = vpack.c.b16 %v1972, %v1968
        %v2473 = vpack.c.b16 %v1973, %v1969
        %v2474 = vpack.c.b16 %v1978, %v1974
        %v2475 = vpack.c.b16 %v1979, %v1975
        %v2476 = vpack.c.b16 %v1980, %v1976
        %v2477 = vpack.c.b16 %v1981, %v1977
        %v2478 = vpack.c.b16 %v1986, %v1982
        %v2479 = vpack.c.b16 %v1987, %v1983
        %v2480 = vpack.c.b16 %v1988, %v1984
        %v2481 = vpack.c.b16 %v1989, %v1985
        %v2482 = vpack.c.b16 %v1994, %v1990
        %v2483 = vpack.c.b16 %v1995, %v1991
        %v2484 = vpack.c.b16 %v1996, %v1992
        %v2485 = vpack.c.b16 %v1997, %v1993
        %v2486 = vpack.c.b16 %v2002, %v1998
        %v2487 = vpack.c.b16 %v2003, %v1999
        %v2488 = vpack.c.b16 %v2004, %v2000
        %v2489 = vpack.c.b16 %v2005, %v2001
        %v2490 = vpack.c.b16 %v2010, %v2006
        %v2491 = vpack.c.b16 %v2011, %v2007
        %v2492 = vpack.c.b16 %v2012, %v2008
        %v2493 = vpack.c.b16 %v2013, %v2009
        %v2494 = vpack.c.b16 %v2018, %v2014
        %v2495 = vpack.c.b16 %v2019, %v2015
        %v2496 = vpack.c.b16 %v2020, %v2016
        %v2497 = vpack.c.b16 %v2021, %v2017
        %v2498 = vpack.c.b16 %v2026, %v2022
        %v2499 = vpack.c.b16 %v2027, %v2023
        %v2500 = vpack.c.b16 %v2028, %v2024
        %v2501 = vpack.c.b16 %v2029, %v2025
        %v2502 = vpack.c.b16 %v2034, %v2030
        %v2503 = vpack.c.b16 %v2035, %v2031
        %v2504 = vpack.c.b16 %v2036, %v2032
        %v2505 = vpack.c.b16 %v2037, %v2033
        %v2506 = vpack.c.b16 %v2042, %v2038
        %v2507 = vpack.c.b16 %v2043, %v2039
        %v2508 = vpack.c.b16 %v2044, %v2040
        %v2509 = vpack.c.b16 %v2045, %v2041
        %v2510 = vpack.c.b16 %v2050, %v2046
        %v2511 = vpack.c.b16 %v2051, %v2047
        %v2512 = vpack.c.b16 %v2052, %v2048
        %v2513 = vpack.c.b16 %v2053, %v2049
        %v2514 = vpack.c.b16 %v2058, %v2054
        %v2515 = vpack.c.b16 %v2059, %v2055
        %v2516 = vpack.c.b16 %v2060, %v2056
        %v2517 = vpack.c.b16 %v2061, %v2057
        %v2518 = vpack.c.b16 %v2066, %v2062
        %v2519 = vpack.c.b16 %v2067, %v2063
        %v2520 = vpack.c.b16 %v2068, %v2064
        %v2521 = vpack.c.b16 %v2069, %v2065
        %v2522 = vpack.c.b16 %v2074, %v2070
        %v2523 = vpack.c.b16 %v2075, %v2071
        %v2524 = vpack.c.b16 %v2076, %v2072
        %v2525 = vpack.c.b16 %v2077, %v2073
        %v2526 = vpack.c.b16 %v2082, %v2078
        %v2527 = vpack.c.b16 %v2083, %v2079
        %v2528 = vpack.c.b16 %v2084, %v2080
        %v2529 = vpack.c.b16 %v2085, %v2081
        %v2530 = vpack.c.b16 %v2090, %v2086
        %v2531 = vpack.c.b16 %v2091, %v2087
        %v2532 = vpack.c.b16 %v2092, %v2088
        %v2533 = vpack.c.b16 %v2093, %v2089
        %v2534 = vpack.c.b16 %v2098, %v2094
        %v2535 = vpack.c.b16 %v2099, %v2095
        %v2536 = vpack.c.b16 %v2100, %v2096
        %v2537 = vpack.c.b16 %v2101, %v2097
        %v2538 = vpack.c.b16 %v2106, %v2102
        %v2539 = vpack.c.b16 %v2107, %v2103
        %v2540 = vpack.c.b16 %v2108, %v2104
        %v2541 = vpack.c.b16 %v2109, %v2105
        %v2542 = vpack.c.b16 %v2114, %v2110
        %v2543 = vpack.c.b16 %v2115, %v2111
        %v2544 = vpack.c.b16 %v2116, %v2112
        %v2545 = vpack.c.b16 %v2117, %v2113
        %v2546 = vpack.c.b16 %v2122, %v2118
        %v2547 = vpack.c.b16 %v2123, %v2119
        %v2548 = vpack.c.b16 %v2124, %v2120
        %v2549 = vpack.c.b16 %v2125, %v2121
        %v2550 = vpack.c.b16 %v2130, %v2126
        %v2551 = vpack.c.b16 %v2131, %v2127
        %v2552 = vpack.c.b16 %v2132, %v2128
        %v2553 = vpack.c.b16 %v2133, %v2129
        %v2554 = vpack.c.b16 %v2138, %v2134
        %v2555 = vpack.c.b16 %v2139, %v2135
        %v2556 = vpack.c.b16 %v2140, %v2136
        %v2557 = vpack.c.b16 %v2141, %v2137
        %v2558 = vpack.c.b16 %v2146, %v2142
        %v2559 = vpack.c.b16 %v2147, %v2143
        %v2560 = vpack.c.b16 %v2148, %v2144
        %v2561 = vpack.c.b16 %v2149, %v2145
        %v2562 = vpack.c.b16 %v2154, %v2150
        %v2563 = vpack.c.b16 %v2155, %v2151
        %v2564 = vpack.c.b16 %v2156, %v2152
        %v2565 = vpack.c.b16 %v2157, %v2153
        %v2566 = vpack.c.b16 %v2162, %v2158
        %v2567 = vpack.c.b16 %v2163, %v2159
        %v2568 = vpack.c.b16 %v2164, %v2160
        %v2569 = vpack.c.b16 %v2165, %v2161
        %v2570 = vpack.c.b16 %v2170, %v2166
        %v2571 = vpack.c.b16 %v2171, %v2167
        %v2572 = vpack.c.b16 %v2172, %v2168
        %v2573 = vpack.c.b16 %v2173, %v2169
        %v2574 = vpack.c.b16 %v2178, %v2174
        %v2575 = vpack.c.b16 %v2179, %v2175
        %v2576 = vpack.c.b16 %v2180, %v2176
        %v2577 = vpack.c.b16 %v2181, %v2177
        %v2578 = vpack.c.b16 %v2186, %v2182
        %v2579 = vpack.c.b16 %v2187, %v2183
        %v2580 = vpack.c.b16 %v2188, %v2184
        %v2581 = vpack.c.b16 %v2189, %v2185
        %v2582 = vpack.c.b16 %v2194, %v2190
        %v2583 = vpack.c.b16 %v2195, %v2191
        %v2584 = vpack.c.b16 %v2196, %v2192
        %v2585 = vpack.c.b16 %v2197, %v2193
        %v2586 = vpack.c.b16 %v2202, %v2198
        %v2587 = vpack.c.b16 %v2203, %v2199
        %v2588 = vpack.c.b16 %v2204, %v2200
        %v2589 = vpack.c.b16 %v2205, %v2201
        %v2590 = vpack.c.b16 %v2210, %v2206
        %v2591 = vpack.c.b16 %v2211, %v2207
        %v2592 = vpack.c.b16 %v2212, %v2208
        %v2593 = vpack.c.b16 %v2213, %v2209
        %v2594 = vpack.c.b16 %v2218, %v2214
        %v2595 = vpack.c.b16 %v2219, %v2215
        %v2596 = vpack.c.b16 %v2220, %v2216
        %v2597 = vpack.c.b16 %v2221, %v2217
        %v2598 = vpack.c.b16 %v2226, %v2222
        %v2599 = vpack.c.b16 %v2227, %v2223
        %v2600 = vpack.c.b16 %v2228, %v2224
        %v2601 = vpack.c.b16 %v2229, %v2225
        %v2602 = vpack.c.b16 %v2234, %v2230
        %v2603 = vpack.c.b16 %v2235, %v2231
        %v2604 = vpack.c.b16 %v2236, %v2232
        %v2605 = vpack.c.b16 %v2237, %v2233
        %v2606 = vpack.c.b16 %v2242, %v2238
        %v2607 = vpack.c.b16 %v2243, %v2239
        %v2608 = vpack.c.b16 %v2244, %v2240
        %v2609 = vpack.c.b16 %v2245, %v2241
        %v2610 = vpack.c.b16 %v2250, %v2246
        %v2611 = vpack.c.b16 %v2251, %v2247
        %v2612 = vpack.c.b16 %v2252, %v2248
        %v2613 = vpack.c.b16 %v2253, %v2249
        %v2614 = vpack.c.b16 %v2258, %v2254
        %v2615 = vpack.c.b16 %v2259, %v2255
        %v2616 = vpack.c.b16 %v2260, %v2256
        %v2617 = vpack.c.b16 %v2261, %v2257
        %v2618 = vpack.c.b16 %v2266, %v2262
        %v2619 = vpack.c.b16 %v2267, %v2263
        %v2620 = vpack.c.b16 %v2268, %v2264
        %v2621 = vpack.c.b16 %v2269, %v2265
        %v2622 = vpack.c.b16 %v2274, %v2270
        %v2623 = vpack.c.b16 %v2275, %v2271
        %v2624 = vpack.c.b16 %v2276, %v2272
        %v2625 = vpack.c.b16 %v2277, %v2273
        %v2626 = vpack.c.b16 %v2282, %v2278
        %v2627 = vpack.c.b16 %v2283, %v2279
        %v2628 = vpack.c.b16 %v2284, %v2280
        %v2629 = vpack.c.b16 %v2285, %v2281
        %v2630 = vpack.c.b16 %v2290, %v2286
        %v2631 = vpack.c.b16 %v2291, %v2287
        %v2632 = vpack.c.b16 %v2292, %v2288
        %v2633 = vpack.c.b16 %v2293, %v2289
        %v2634 = vpack.c.b16 %v2298, %v2294
        %v2635 = vpack.c.b16 %v2299, %v2295
        %v2636 = vpack.c.b16 %v2300, %v2296
        %v2637 = vpack.c.b16 %v2301, %v2297
        %v2638 = vpack.c.b16 %v2306, %v2302
        %v2639 = vpack.c.b16 %v2307, %v2303
        %v2640 = vpack.c.b16 %v2308, %v2304
        %v2641 = vpack.c.b16 %v2309, %v2305
        %v2642 = vpack.c.b16 %v2314, %v2310
        %v2643 = vpack.c.b16 %v2315, %v2311
        %v2644 = vpack.c.b16 %v2316, %v2312
        %v2645 = vpack.c.b16 %v2317, %v2313
        %v2646 = vpack.c.b16 %v2322, %v2318
        %v2647 = vpack.c.b16 %v2323, %v2319
        %v2648 = vpack.c.b16 %v2324, %v2320
        %v2649 = vpack.c.b16 %v2325, %v2321
        %v2650 = vpack.c.b16 %v2330, %v2326
        %v2651 = vpack.c.b16 %v2331, %v2327
        %v2652 = vpack.c.b16 %v2332, %v2328
        %v2653 = vpack.c.b16 %v2333, %v2329
        %v2654 = vpack.c.b16 %v2338, %v2334
        %v2655 = vpack.c.b16 %v2339, %v2335
        %v2656 = vpack.c.b16 %v2340, %v2336
        %v2657 = vpack.c.b16 %v2341, %v2337
        %v2658 = vpack.c.b16 %v2346, %v2342
        %v2659 = vpack.c.b16 %v2347, %v2343
        %v2660 = vpack.c.b16 %v2348, %v2344
        %v2661 = vpack.c.b16 %v2349, %v2345
        %v2662 = vpack.c.b16 %v2354, %v2350
        %v2663 = vpack.c.b16 %v2355, %v2351
        %v2664 = vpack.c.b16 %v2356, %v2352
        %v2665 = vpack.c.b16 %v2357, %v2353
        %v2666 = vpack.c.b16 %v2362, %v2358
        %v2667 = vpack.c.b16 %v2363, %v2359
        %v2668 = vpack.c.b16 %v2364, %v2360
        %v2669 = vpack.c.b16 %v2365, %v2361
        %v2670 = vpack.c.b16 %v2370, %v2366
        %v2671 = vpack.c.b16 %v2371, %v2367
        %v2672 = vpack.c.b16 %v2372, %v2368
        %v2673 = vpack.c.b16 %v2373, %v2369
        %v2674 = vpack.c.b16 %v2378, %v2374
        %v2675 = vpack.c.b16 %v2379, %v2375
        %v2676 = vpack.c.b16 %v2380, %v2376
        %v2677 = vpack.c.b16 %v2381, %v2377
        %v2678 = vpack.c.b16 %v2386, %v2382
        %v2679 = vpack.c.b16 %v2387, %v2383
        %v2680 = vpack.c.b16 %v2388, %v2384
        %v2681 = vpack.c.b16 %v2389, %v2385
        %v2682 = vpack.c.b16 %v2394, %v2390
        %v2683 = vpack.c.b16 %v2395, %v2391
        %v2684 = vpack.c.b16 %v2396, %v2392
        %v2685 = vpack.c.b16 %v2397, %v2393
        %v2686 = vpack.c.b16 %v2402, %v2398
        %v2687 = vpack.c.b16 %v2403, %v2399
        %v2688 = vpack.c.b16 %v2404, %v2400
        %v2689 = vpack.c.b16 %v2405, %v2401
        %v2690 = vpack.c.b16 %v2410, %v2406
        %v2691 = vpack.c.b16 %v2411, %v2407
        %v2692 = vpack.c.b16 %v2412, %v2408
        %v2693 = vpack.c.b16 %v2413, %v2409
        %v2694 = vpack.c.b16 %v2418, %v2414
        %v2695 = vpack.c.b16 %v2419, %v2415
        %v2696 = vpack.c.b16 %v2420, %v2416
        %v2697 = vpack.c.b16 %v2421, %v2417
        %v2698 = vpack.c.b16 %v2426, %v2422
        %v2699 = vpack.c.b16 %v2427, %v2423
        %v2700 = vpack.c.b16 %v2428, %v2424
        %v2701 = vpack.c.b16 %v2429, %v2425
        %v2702 = vpack.c.b16 %v2434, %v2430
        %v2703 = vpack.c.b16 %v2435, %v2431
        %v2704 = vpack.c.b16 %v2436, %v2432
        %v2705 = vpack.c.b16 %v2437, %v2433
        %v2706 = vpack.c.b16 %v2442, %v2438
        %v2707 = vpack.c.b16 %v2443, %v2439
        %v2708 = vpack.c.b16 %v2444, %v2440
        %v2709 = vpack.c.b16 %v2445, %v2441
        %v2710 = vpack.c.b16 %v2450, %v2446
        %v2711 = vpack.c.b16 %v2451, %v2447
        %v2712 = vpack.c.b16 %v2452, %v2448
        %v2713 = vpack.c.b16 %v2453, %v2449
        %v2714 = vpack.c.b16 %v2458, %v2454
        %v2715 = vpack.c.b16 %v2459, %v2455
        %v2716 = vpack.c.b16 %v2460, %v2456
        %v2717 = vpack.c.b16 %v2461, %v2457
        %2974 = vmatprep.subr.bf16.mxu0 %v2491
        %2975 = vmatpush1.bf16.msra.mxu0 %v2490
        %2976 = vmatprep.subr.bf16.mxu0 %v2487
        %2977 = vmatpush1.bf16.msra.mxu0 %v2486
        %2978 = vmatprep.subr.bf16.mxu0 %v2483
        %2979 = vmatpush1.bf16.msra.mxu0 %v2482
        %2980 = vmatprep.subr.bf16.mxu0 %v2479
        %2981 = vmatpush1.bf16.msra.mxu0 %v2478
        %2982 = vmatprep.subr.bf16.mxu0 %v2475
        %2983 = vmatpush1.bf16.msra.mxu0 %v2474
        %2984 = vmatprep.subr.bf16.mxu0 %v2471
        %2985 = vmatpush1.bf16.msra.mxu0 %v2470
        %2986 = vmatprep.subr.bf16.mxu0 %v2467
        %2987 = vmatpush1.bf16.msra.mxu0 %v2466
        %2988 = vmatprep.subr.bf16.mxu0 %v2463
        %2989 = vmatpush1.bf16.msra.mxu0 %v2462
        %2990 = vmatprep.subr.bf16.mxu0 %v2523
        %2991 = vmatpush2.bf16.msra.mxu0 %v2522
        %2992 = vmatprep.subr.bf16.mxu0 %v2519
        %2993 = vmatpush2.bf16.msra.mxu0 %v2518
        %2994 = vmatprep.subr.bf16.mxu0 %v2515
        %2995 = vmatpush2.bf16.msra.mxu0 %v2514
        %2996 = vmatprep.subr.bf16.mxu0 %v2511
        %2997 = vmatpush2.bf16.msra.mxu0 %v2510
        %2998 = vmatprep.subr.bf16.mxu0 %v2507
        %2999 = vmatpush2.bf16.msra.mxu0 %v2506
        %3000 = vmatprep.subr.bf16.mxu0 %v2503
        %3001 = vmatpush2.bf16.msra.mxu0 %v2502
        %3002 = vmatprep.subr.bf16.mxu0 %v2499
        %3003 = vmatpush2.bf16.msra.mxu0 %v2498
        %3004 = vmatprep.subr.bf16.mxu0 %v2495
        %3005 = vmatpush2.bf16.msra.mxu0 %v2494
        %3006 = vmatprep.mubr.bf16.mxu0 %v1658
        %3007 = vmatmul.mubr.bf16.gmra.mxu0 %v1657
        %v3008 = vpop.f32.mrf.mxu0
        %v3009 = vadd.f32 %v1677, %v3008
        %v3010 = vpop.f32.mrf.mxu0
        %v3011 = vadd.f32 %v1681, %v3010
        %v3012 = vpop.f32.mrf.mxu0
        %v3013 = vadd.f32 %v1677, %v3012
        %v3014 = vpop.f32.mrf.mxu0
        %v3015 = vadd.f32 %v1681, %v3014
        %3016 = vmatprep.mubr.bf16.mxu0 %v1666
        %3017 = vmatmul.mubr.bf16.gmra.mxu0 %v1665
        %v3018 = vpop.f32.mrf.mxu0
        %v3019 = vadd.f32 %v1677, %v3018
        %v3020 = vpop.f32.mrf.mxu0
        %v3021 = vadd.f32 %v1681, %v3020
        %v3022 = vpop.f32.mrf.mxu0
        %v3023 = vadd.f32 %v1677, %v3022
        %v3024 = vpop.f32.mrf.mxu0
        %v3025 = vadd.f32 %v1681, %v3024
        %3026 = vdwg.mxu0
        %3027 = vmatprep.subr.bf16.mxu0 %v2555
        %3028 = vmatpush1.bf16.msra.mxu0 %v2554
        %3029 = vmatprep.subr.bf16.mxu0 %v2551
        %3030 = vmatpush1.bf16.msra.mxu0 %v2550
        %3031 = vmatprep.subr.bf16.mxu0 %v2547
        %3032 = vmatpush1.bf16.msra.mxu0 %v2546
        %3033 = vmatprep.subr.bf16.mxu0 %v2543
        %3034 = vmatpush1.bf16.msra.mxu0 %v2542
        %3035 = vmatprep.subr.bf16.mxu0 %v2539
        %3036 = vmatpush1.bf16.msra.mxu0 %v2538
        %3037 = vmatprep.subr.bf16.mxu0 %v2535
        %3038 = vmatpush1.bf16.msra.mxu0 %v2534
        %3039 = vmatprep.subr.bf16.mxu0 %v2531
        %3040 = vmatpush1.bf16.msra.mxu0 %v2530
        %3041 = vmatprep.subr.bf16.mxu0 %v2527
        %3042 = vmatpush1.bf16.msra.mxu0 %v2526
        %3043 = vmatprep.subr.bf16.mxu0 %v2587
        %3044 = vmatpush2.bf16.msra.mxu0 %v2586
        %3045 = vmatprep.subr.bf16.mxu0 %v2583
        %3046 = vmatpush2.bf16.msra.mxu0 %v2582
        %3047 = vmatprep.subr.bf16.mxu0 %v2579
        %3048 = vmatpush2.bf16.msra.mxu0 %v2578
        %3049 = vmatprep.subr.bf16.mxu0 %v2575
        %3050 = vmatpush2.bf16.msra.mxu0 %v2574
        %3051 = vmatprep.subr.bf16.mxu0 %v2571
        %3052 = vmatpush2.bf16.msra.mxu0 %v2570
        %3053 = vmatprep.subr.bf16.mxu0 %v2567
        %3054 = vmatpush2.bf16.msra.mxu0 %v2566
        %3055 = vmatprep.subr.bf16.mxu0 %v2563
        %3056 = vmatpush2.bf16.msra.mxu0 %v2562
        %3057 = vmatprep.subr.bf16.mxu0 %v2559
        %3058 = vmatpush2.bf16.msra.mxu0 %v2558
        %3059 = vmatprep.mubr.bf16.mxu0 %v1660
        %3060 = vmatmul.mubr.bf16.gmra.mxu0 %v1659
        %v3061 = vpop.f32.mrf.mxu0
        %v3062 = vadd.f32 %v3009, %v3061
        %v3063 = vpop.f32.mrf.mxu0
        %v3064 = vadd.f32 %v3011, %v3063
        %v3065 = vpop.f32.mrf.mxu0
        %v3066 = vadd.f32 %v3013, %v3065
        %v3067 = vpop.f32.mrf.mxu0
        %v3068 = vadd.f32 %v3015, %v3067
        %3069 = vmatprep.mubr.bf16.mxu0 %v1668
        %3070 = vmatmul.mubr.bf16.gmra.mxu0 %v1667
        %v3071 = vpop.f32.mrf.mxu0
        %v3072 = vadd.f32 %v3019, %v3071
        %v3073 = vpop.f32.mrf.mxu0
        %v3074 = vadd.f32 %v3021, %v3073
        %v3075 = vpop.f32.mrf.mxu0
        %v3076 = vadd.f32 %v3023, %v3075
        %v3077 = vpop.f32.mrf.mxu0
        %v3078 = vadd.f32 %v3025, %v3077
        %3079 = vdwg.mxu0
        %3080 = vmatprep.subr.bf16.mxu0 %v2619
        %3081 = vmatpush1.bf16.msra.mxu0 %v2618
        %3082 = vmatprep.subr.bf16.mxu0 %v2615
        %3083 = vmatpush1.bf16.msra.mxu0 %v2614
        %3084 = vmatprep.subr.bf16.mxu0 %v2611
        %3085 = vmatpush1.bf16.msra.mxu0 %v2610
        %3086 = vmatprep.subr.bf16.mxu0 %v2607
        %3087 = vmatpush1.bf16.msra.mxu0 %v2606
        %3088 = vmatprep.subr.bf16.mxu0 %v2603
        %3089 = vmatpush1.bf16.msra.mxu0 %v2602
        %3090 = vmatprep.subr.bf16.mxu0 %v2599
        %3091 = vmatpush1.bf16.msra.mxu0 %v2598
        %3092 = vmatprep.subr.bf16.mxu0 %v2595
        %3093 = vmatpush1.bf16.msra.mxu0 %v2594
        %3094 = vmatprep.subr.bf16.mxu0 %v2591
        %3095 = vmatpush1.bf16.msra.mxu0 %v2590
        %3096 = vmatprep.subr.bf16.mxu0 %v2651
        %3097 = vmatpush2.bf16.msra.mxu0 %v2650
        %3098 = vmatprep.subr.bf16.mxu0 %v2647
        %3099 = vmatpush2.bf16.msra.mxu0 %v2646
        %3100 = vmatprep.subr.bf16.mxu0 %v2643
        %3101 = vmatpush2.bf16.msra.mxu0 %v2642
        %3102 = vmatprep.subr.bf16.mxu0 %v2639
        %3103 = vmatpush2.bf16.msra.mxu0 %v2638
        %3104 = vmatprep.subr.bf16.mxu0 %v2635
        %3105 = vmatpush2.bf16.msra.mxu0 %v2634
        %3106 = vmatprep.subr.bf16.mxu0 %v2631
        %3107 = vmatpush2.bf16.msra.mxu0 %v2630
        %3108 = vmatprep.subr.bf16.mxu0 %v2627
        %3109 = vmatpush2.bf16.msra.mxu0 %v2626
        %3110 = vmatprep.subr.bf16.mxu0 %v2623
        %3111 = vmatpush2.bf16.msra.mxu0 %v2622
        %3112 = vmatprep.mubr.bf16.mxu0 %v1662
        %3113 = vmatmul.mubr.bf16.gmra.mxu0 %v1661
        %v3114 = vpop.f32.mrf.mxu0
        %v3115 = vadd.f32 %v3062, %v3114
        %v3116 = vpop.f32.mrf.mxu0
        %v3117 = vadd.f32 %v3064, %v3116
        %v3118 = vpop.f32.mrf.mxu0
        %v3119 = vadd.f32 %v3066, %v3118
        %v3120 = vpop.f32.mrf.mxu0
        %v3121 = vadd.f32 %v3068, %v3120
        %3122 = vmatprep.mubr.bf16.mxu0 %v1670
        %3123 = vmatmul.mubr.bf16.gmra.mxu0 %v1669
        %v3124 = vpop.f32.mrf.mxu0
        %v3125 = vadd.f32 %v3072, %v3124
        %v3126 = vpop.f32.mrf.mxu0
        %v3127 = vadd.f32 %v3074, %v3126
        %v3128 = vpop.f32.mrf.mxu0
        %v3129 = vadd.f32 %v3076, %v3128
        %v3130 = vpop.f32.mrf.mxu0
        %v3131 = vadd.f32 %v3078, %v3130
        %3132 = vdwg.mxu0
        %3133 = vmatprep.subr.bf16.mxu0 %v2683
        %3134 = vmatpush1.bf16.msra.mxu0 %v2682
        %3135 = vmatprep.subr.bf16.mxu0 %v2679
        %3136 = vmatpush1.bf16.msra.mxu0 %v2678
        %3137 = vmatprep.subr.bf16.mxu0 %v2675
        %3138 = vmatpush1.bf16.msra.mxu0 %v2674
        %3139 = vmatprep.subr.bf16.mxu0 %v2671
        %3140 = vmatpush1.bf16.msra.mxu0 %v2670
        %3141 = vmatprep.subr.bf16.mxu0 %v2667
        %3142 = vmatpush1.bf16.msra.mxu0 %v2666
        %3143 = vmatprep.subr.bf16.mxu0 %v2663
        %3144 = vmatpush1.bf16.msra.mxu0 %v2662
        %3145 = vmatprep.subr.bf16.mxu0 %v2659
        %3146 = vmatpush1.bf16.msra.mxu0 %v2658
        %3147 = vmatprep.subr.bf16.mxu0 %v2655
        %3148 = vmatpush1.bf16.msra.mxu0 %v2654
        %3149 = vmatprep.subr.bf16.mxu0 %v2715
        %3150 = vmatpush2.bf16.msra.mxu0 %v2714
        %3151 = vmatprep.subr.bf16.mxu0 %v2711
        %3152 = vmatpush2.bf16.msra.mxu0 %v2710
        %3153 = vmatprep.subr.bf16.mxu0 %v2707
        %3154 = vmatpush2.bf16.msra.mxu0 %v2706
        %3155 = vmatprep.subr.bf16.mxu0 %v2703
        %3156 = vmatpush2.bf16.msra.mxu0 %v2702
        %3157 = vmatprep.subr.bf16.mxu0 %v2699
        %3158 = vmatpush2.bf16.msra.mxu0 %v2698
        %3159 = vmatprep.subr.bf16.mxu0 %v2695
        %3160 = vmatpush2.bf16.msra.mxu0 %v2694
        %3161 = vmatprep.subr.bf16.mxu0 %v2691
        %3162 = vmatpush2.bf16.msra.mxu0 %v2690
        %3163 = vmatprep.subr.bf16.mxu0 %v2687
        %3164 = vmatpush2.bf16.msra.mxu0 %v2686
        %3165 = vmatprep.mubr.bf16.mxu0 %v1664
        %3166 = vmatmul.mubr.bf16.gmra.mxu0 %v1663
        %v3167 = vpop.f32.mrf.mxu0
        %v3168 = vadd.f32 %v3115, %v3167
        %v3169 = vpop.f32.mrf.mxu0
        %v3170 = vadd.f32 %v3117, %v3169
        %v3171 = vpop.f32.mrf.mxu0
        %v3172 = vadd.f32 %v3119, %v3171
        %v3173 = vpop.f32.mrf.mxu0
        %v3174 = vadd.f32 %v3121, %v3173
        %3175 = vmatprep.mubr.bf16.mxu0 %v1672
        %3176 = vmatmul.mubr.bf16.gmra.mxu0 %v1671
        %v3177 = vpop.f32.mrf.mxu0
        %v3178 = vadd.f32 %v3125, %v3177
        %v3179 = vpop.f32.mrf.mxu0
        %v3180 = vadd.f32 %v3127, %v3179
        %v3181 = vpop.f32.mrf.mxu0
        %v3182 = vadd.f32 %v3129, %v3181
        %v3183 = vpop.f32.mrf.mxu0
        %v3184 = vadd.f32 %v3131, %v3183
        %3185 = vdwg.mxu0
        %3186 = vmatprep.subr.bf16.mxu0 %v2493
        %3187 = vmatpush1.bf16.msra.mxu0 %v2492
        %3188 = vmatprep.subr.bf16.mxu0 %v2489
        %3189 = vmatpush1.bf16.msra.mxu0 %v2488
        %3190 = vmatprep.subr.bf16.mxu0 %v2485
        %3191 = vmatpush1.bf16.msra.mxu0 %v2484
        %3192 = vmatprep.subr.bf16.mxu0 %v2481
        %3193 = vmatpush1.bf16.msra.mxu0 %v2480
        %3194 = vmatprep.subr.bf16.mxu0 %v2477
        %3195 = vmatpush1.bf16.msra.mxu0 %v2476
        %3196 = vmatprep.subr.bf16.mxu0 %v2473
        %3197 = vmatpush1.bf16.msra.mxu0 %v2472
        %3198 = vmatprep.subr.bf16.mxu0 %v2469
        %3199 = vmatpush1.bf16.msra.mxu0 %v2468
        %3200 = vmatprep.subr.bf16.mxu0 %v2465
        %3201 = vmatpush1.bf16.msra.mxu0 %v2464
        %3202 = vmatprep.subr.bf16.mxu0 %v2525
        %3203 = vmatpush2.bf16.msra.mxu0 %v2524
        %3204 = vmatprep.subr.bf16.mxu0 %v2521
        %3205 = vmatpush2.bf16.msra.mxu0 %v2520
        %3206 = vmatprep.subr.bf16.mxu0 %v2517
        %3207 = vmatpush2.bf16.msra.mxu0 %v2516
        %3208 = vmatprep.subr.bf16.mxu0 %v2513
        %3209 = vmatpush2.bf16.msra.mxu0 %v2512
        %3210 = vmatprep.subr.bf16.mxu0 %v2509
        %3211 = vmatpush2.bf16.msra.mxu0 %v2508
        %3212 = vmatprep.subr.bf16.mxu0 %v2505
        %3213 = vmatpush2.bf16.msra.mxu0 %v2504
        %3214 = vmatprep.subr.bf16.mxu0 %v2501
        %3215 = vmatpush2.bf16.msra.mxu0 %v2500
        %3216 = vmatprep.subr.bf16.mxu0 %v2497
        %3217 = vmatpush2.bf16.msra.mxu0 %v2496
        %3218 = vmatprep.mubr.bf16.mxu0 %v1658
        %3219 = vmatmul.mubr.bf16.gmra.mxu0 %v1657
        %v3220 = vpop.f32.mrf.mxu0
        %v3221 = vadd.f32 %v1685, %v3220
        %v3222 = vpop.f32.mrf.mxu0
        %v3223 = vadd.f32 %v1689, %v3222
        %v3224 = vpop.f32.mrf.mxu0
        %v3225 = vadd.f32 %v1685, %v3224
        %v3226 = vpop.f32.mrf.mxu0
        %v3227 = vadd.f32 %v1689, %v3226
        %3228 = vmatprep.mubr.bf16.mxu0 %v1666
        %3229 = vmatmul.mubr.bf16.gmra.mxu0 %v1665
        %v3230 = vpop.f32.mrf.mxu0
        %v3231 = vadd.f32 %v1685, %v3230
        %v3232 = vpop.f32.mrf.mxu0
        %v3233 = vadd.f32 %v1689, %v3232
        %v3234 = vpop.f32.mrf.mxu0
        %v3235 = vadd.f32 %v1685, %v3234
        %v3236 = vpop.f32.mrf.mxu0
        %v3237 = vadd.f32 %v1689, %v3236
        %3238 = vdwg.mxu0
        %3239 = vmatprep.subr.bf16.mxu0 %v2557
        %3240 = vmatpush1.bf16.msra.mxu0 %v2556
        %3241 = vmatprep.subr.bf16.mxu0 %v2553
        %3242 = vmatpush1.bf16.msra.mxu0 %v2552
        %3243 = vmatprep.subr.bf16.mxu0 %v2549
        %3244 = vmatpush1.bf16.msra.mxu0 %v2548
        %3245 = vmatprep.subr.bf16.mxu0 %v2545
        %3246 = vmatpush1.bf16.msra.mxu0 %v2544
        %3247 = vmatprep.subr.bf16.mxu0 %v2541
        %3248 = vmatpush1.bf16.msra.mxu0 %v2540
        %3249 = vmatprep.subr.bf16.mxu0 %v2537
        %3250 = vmatpush1.bf16.msra.mxu0 %v2536
        %3251 = vmatprep.subr.bf16.mxu0 %v2533
        %3252 = vmatpush1.bf16.msra.mxu0 %v2532
        %3253 = vmatprep.subr.bf16.mxu0 %v2529
        %3254 = vmatpush1.bf16.msra.mxu0 %v2528
        %3255 = vmatprep.subr.bf16.mxu0 %v2589
        %3256 = vmatpush2.bf16.msra.mxu0 %v2588
        %3257 = vmatprep.subr.bf16.mxu0 %v2585
        %3258 = vmatpush2.bf16.msra.mxu0 %v2584
        %3259 = vmatprep.subr.bf16.mxu0 %v2581
        %3260 = vmatpush2.bf16.msra.mxu0 %v2580
        %3261 = vmatprep.subr.bf16.mxu0 %v2577
        %3262 = vmatpush2.bf16.msra.mxu0 %v2576
        %3263 = vmatprep.subr.bf16.mxu0 %v2573
        %3264 = vmatpush2.bf16.msra.mxu0 %v2572
        %3265 = vmatprep.subr.bf16.mxu0 %v2569
        %3266 = vmatpush2.bf16.msra.mxu0 %v2568
        %3267 = vmatprep.subr.bf16.mxu0 %v2565
        %3268 = vmatpush2.bf16.msra.mxu0 %v2564
        %3269 = vmatprep.subr.bf16.mxu0 %v2561
        %3270 = vmatpush2.bf16.msra.mxu0 %v2560
        %3271 = vmatprep.mubr.bf16.mxu0 %v1660
        %3272 = vmatmul.mubr.bf16.gmra.mxu0 %v1659
        %v3273 = vpop.f32.mrf.mxu0
        %v3274 = vadd.f32 %v3221, %v3273
        %v3275 = vpop.f32.mrf.mxu0
        %v3276 = vadd.f32 %v3223, %v3275
        %v3277 = vpop.f32.mrf.mxu0
        %v3278 = vadd.f32 %v3225, %v3277
        %v3279 = vpop.f32.mrf.mxu0
        %v3280 = vadd.f32 %v3227, %v3279
        %3281 = vmatprep.mubr.bf16.mxu0 %v1668
        %3282 = vmatmul.mubr.bf16.gmra.mxu0 %v1667
        %v3283 = vpop.f32.mrf.mxu0
        %v3284 = vadd.f32 %v3231, %v3283
        %v3285 = vpop.f32.mrf.mxu0
        %v3286 = vadd.f32 %v3233, %v3285
        %v3287 = vpop.f32.mrf.mxu0
        %v3288 = vadd.f32 %v3235, %v3287
        %v3289 = vpop.f32.mrf.mxu0
        %v3290 = vadd.f32 %v3237, %v3289
        %3291 = vdwg.mxu0
        %3292 = vmatprep.subr.bf16.mxu0 %v2621
        %3293 = vmatpush1.bf16.msra.mxu0 %v2620
        %3294 = vmatprep.subr.bf16.mxu0 %v2617
        %3295 = vmatpush1.bf16.msra.mxu0 %v2616
        %3296 = vmatprep.subr.bf16.mxu0 %v2613
        %3297 = vmatpush1.bf16.msra.mxu0 %v2612
        %3298 = vmatprep.subr.bf16.mxu0 %v2609
        %3299 = vmatpush1.bf16.msra.mxu0 %v2608
        %3300 = vmatprep.subr.bf16.mxu0 %v2605
        %3301 = vmatpush1.bf16.msra.mxu0 %v2604
        %3302 = vmatprep.subr.bf16.mxu0 %v2601
        %3303 = vmatpush1.bf16.msra.mxu0 %v2600
        %3304 = vmatprep.subr.bf16.mxu0 %v2597
        %3305 = vmatpush1.bf16.msra.mxu0 %v2596
        %3306 = vmatprep.subr.bf16.mxu0 %v2593
        %3307 = vmatpush1.bf16.msra.mxu0 %v2592
        %3308 = vmatprep.subr.bf16.mxu0 %v2653
        %3309 = vmatpush2.bf16.msra.mxu0 %v2652
        %3310 = vmatprep.subr.bf16.mxu0 %v2649
        %3311 = vmatpush2.bf16.msra.mxu0 %v2648
        %3312 = vmatprep.subr.bf16.mxu0 %v2645
        %3313 = vmatpush2.bf16.msra.mxu0 %v2644
        %3314 = vmatprep.subr.bf16.mxu0 %v2641
        %3315 = vmatpush2.bf16.msra.mxu0 %v2640
        %3316 = vmatprep.subr.bf16.mxu0 %v2637
        %3317 = vmatpush2.bf16.msra.mxu0 %v2636
        %3318 = vmatprep.subr.bf16.mxu0 %v2633
        %3319 = vmatpush2.bf16.msra.mxu0 %v2632
        %3320 = vmatprep.subr.bf16.mxu0 %v2629
        %3321 = vmatpush2.bf16.msra.mxu0 %v2628
        %3322 = vmatprep.subr.bf16.mxu0 %v2625
        %3323 = vmatpush2.bf16.msra.mxu0 %v2624
        %3324 = vmatprep.mubr.bf16.mxu0 %v1662
        %3325 = vmatmul.mubr.bf16.gmra.mxu0 %v1661
        %v3326 = vpop.f32.mrf.mxu0
        %v3327 = vadd.f32 %v3274, %v3326
        %v3328 = vpop.f32.mrf.mxu0
        %v3329 = vadd.f32 %v3276, %v3328
        %v3330 = vpop.f32.mrf.mxu0
        %v3331 = vadd.f32 %v3278, %v3330
        %v3332 = vpop.f32.mrf.mxu0
        %v3333 = vadd.f32 %v3280, %v3332
        %3334 = vmatprep.mubr.bf16.mxu0 %v1670
        %3335 = vmatmul.mubr.bf16.gmra.mxu0 %v1669
        %v3336 = vpop.f32.mrf.mxu0
        %v3337 = vadd.f32 %v3284, %v3336
        %v3338 = vpop.f32.mrf.mxu0
        %v3339 = vadd.f32 %v3286, %v3338
        %v3340 = vpop.f32.mrf.mxu0
        %v3341 = vadd.f32 %v3288, %v3340
        %v3342 = vpop.f32.mrf.mxu0
        %v3343 = vadd.f32 %v3290, %v3342
        %3344 = vdwg.mxu0
        %3345 = vmatprep.subr.bf16.mxu0 %v2685
        %3346 = vmatpush1.bf16.msra.mxu0 %v2684
        %3347 = vmatprep.subr.bf16.mxu0 %v2681
        %3348 = vmatpush1.bf16.msra.mxu0 %v2680
        %3349 = vmatprep.subr.bf16.mxu0 %v2677
        %3350 = vmatpush1.bf16.msra.mxu0 %v2676
        %3351 = vmatprep.subr.bf16.mxu0 %v2673
        %3352 = vmatpush1.bf16.msra.mxu0 %v2672
        %3353 = vmatprep.subr.bf16.mxu0 %v2669
        %3354 = vmatpush1.bf16.msra.mxu0 %v2668
        %3355 = vmatprep.subr.bf16.mxu0 %v2665
        %3356 = vmatpush1.bf16.msra.mxu0 %v2664
        %3357 = vmatprep.subr.bf16.mxu0 %v2661
        %3358 = vmatpush1.bf16.msra.mxu0 %v2660
        %3359 = vmatprep.subr.bf16.mxu0 %v2657
        %3360 = vmatpush1.bf16.msra.mxu0 %v2656
        %3361 = vmatprep.subr.bf16.mxu0 %v2717
        %3362 = vmatpush2.bf16.msra.mxu0 %v2716
        %3363 = vmatprep.subr.bf16.mxu0 %v2713
        %3364 = vmatpush2.bf16.msra.mxu0 %v2712
        %3365 = vmatprep.subr.bf16.mxu0 %v2709
        %3366 = vmatpush2.bf16.msra.mxu0 %v2708
        %3367 = vmatprep.subr.bf16.mxu0 %v2705
        %3368 = vmatpush2.bf16.msra.mxu0 %v2704
        %3369 = vmatprep.subr.bf16.mxu0 %v2701
        %3370 = vmatpush2.bf16.msra.mxu0 %v2700
        %3371 = vmatprep.subr.bf16.mxu0 %v2697
        %3372 = vmatpush2.bf16.msra.mxu0 %v2696
        %3373 = vmatprep.subr.bf16.mxu0 %v2693
        %3374 = vmatpush2.bf16.msra.mxu0 %v2692
        %3375 = vmatprep.subr.bf16.mxu0 %v2689
        %3376 = vmatpush2.bf16.msra.mxu0 %v2688
        %3377 = vmatprep.mubr.bf16.mxu0 %v1664
        %3378 = vmatmul.mubr.bf16.gmra.mxu0 %v1663
        %v3379 = vpop.f32.mrf.mxu0
        %v3380 = vadd.f32 %v3327, %v3379
        %v3381 = vpop.f32.mrf.mxu0
        %v3382 = vadd.f32 %v3329, %v3381
        %v3383 = vpop.f32.mrf.mxu0
        %v3384 = vadd.f32 %v3331, %v3383
        %v3385 = vpop.f32.mrf.mxu0
        %v3386 = vadd.f32 %v3333, %v3385
        %3387 = vmatprep.mubr.bf16.mxu0 %v1672
        %3388 = vmatmul.mubr.bf16.gmra.mxu0 %v1671
        %v3389 = vpop.f32.mrf.mxu0
        %v3390 = vadd.f32 %v3337, %v3389
        %v3391 = vpop.f32.mrf.mxu0
        %v3392 = vadd.f32 %v3339, %v3391
        %v3393 = vpop.f32.mrf.mxu0
        %v3394 = vadd.f32 %v3341, %v3393
        %v3395 = vpop.f32.mrf.mxu0
        %v3396 = vadd.f32 %v3343, %v3395
        %3397 = vdwg.mxu0
        %v3398 = vmax.f32 %v3168, 0.0
        %v3399 = vmax.f32 %v3170, 0.0
        %v3400 = vmax.f32 %v3380, 0.0
        %v3401 = vmax.f32 %v3382, 0.0
        %v3402 = vmax.f32 %v3172, 0.0
        %v3403 = vmax.f32 %v3174, 0.0
        %v3404 = vmax.f32 %v3384, 0.0
        %v3405 = vmax.f32 %v3386, 0.0
        %v3406 = vmax.f32 %v3178, 0.0
        %v3407 = vmax.f32 %v3180, 0.0
        %v3408 = vmax.f32 %v3390, 0.0
        %v3409 = vmax.f32 %v3392, 0.0
        %v3410 = vmax.f32 %v3182, 0.0
        %v3411 = vmax.f32 %v3184, 0.0
        %v3412 = vmax.f32 %v3394, 0.0
        %v3413 = vmax.f32 %v3396, 0.0
        %v3414 = vld [vmem:[#allocation10] sm:$0xff]
        %v3415 = vld [vmem:[#allocation10 + $0x8] sm:$0xff]
        %v3416 = vld [vmem:[#allocation10 + $0x10] sm:$0xff]
        %v3417 = vld [vmem:[#allocation10 + $0x18] sm:$0xff]
        %v3418 = vld [vmem:[#allocation10 + $0x20] sm:$0xff]
        %v3419 = vld [vmem:[#allocation10 + $0x28] sm:$0xff]
        %v3420 = vld [vmem:[#allocation10 + $0x30] sm:$0xff]
        %v3421 = vld [vmem:[#allocation10 + $0x38] sm:$0xff]
        %v3422 = vld [vmem:[#allocation10 + $0x40] sm:$0xff]
        %v3423 = vld [vmem:[#allocation10 + $0x48] sm:$0xff]
        %v3424 = vld [vmem:[#allocation10 + $0x50] sm:$0xff]
        %v3425 = vld [vmem:[#allocation10 + $0x58] sm:$0xff]
        %v3426 = vld [vmem:[#allocation10 + $0x60] sm:$0xff]
        %v3427 = vld [vmem:[#allocation10 + $0x68] sm:$0xff]
        %v3428 = vld [vmem:[#allocation10 + $0x70] sm:$0xff]
        %v3429 = vld [vmem:[#allocation10 + $0x78] sm:$0xff]
        %v3430 = vld [vmem:[#allocation10 + $0x80] sm:$0xff]
        %v3431 = vld [vmem:[#allocation10 + $0x88] sm:$0xff]
        %v3432 = vld [vmem:[#allocation10 + $0x90] sm:$0xff]
        %v3433 = vld [vmem:[#allocation10 + $0x98] sm:$0xff]
        %v3434 = vld [vmem:[#allocation10 + $0xa0] sm:$0xff]
        %v3435 = vld [vmem:[#allocation10 + $0xa8] sm:$0xff]
        %v3436 = vld [vmem:[#allocation10 + $0xb0] sm:$0xff]
        %v3437 = vld [vmem:[#allocation10 + $0xb8] sm:$0xff]
        %v3438 = vld [vmem:[#allocation10 + $0xc0] sm:$0xff]
        %v3439 = vld [vmem:[#allocation10 + $0xc8] sm:$0xff]
        %v3440 = vld [vmem:[#allocation10 + $0xd0] sm:$0xff]
        %v3441 = vld [vmem:[#allocation10 + $0xd8] sm:$0xff]
        %v3442 = vld [vmem:[#allocation10 + $0xe0] sm:$0xff]
        %v3443 = vld [vmem:[#allocation10 + $0xe8] sm:$0xff]
        %v3444 = vld [vmem:[#allocation10 + $0xf0] sm:$0xff]
        %v3445 = vld [vmem:[#allocation10 + $0xf8] sm:$0xff]
        %v3446 = vld [vmem:[#allocation10 + $0x100] sm:$0xff]
        %v3447 = vld [vmem:[#allocation10 + $0x108] sm:$0xff]
        %v3448 = vld [vmem:[#allocation10 + $0x110] sm:$0xff]
        %v3449 = vld [vmem:[#allocation10 + $0x118] sm:$0xff]
        %v3450 = vld [vmem:[#allocation10 + $0x120] sm:$0xff]
        %v3451 = vld [vmem:[#allocation10 + $0x128] sm:$0xff]
        %v3452 = vld [vmem:[#allocation10 + $0x130] sm:$0xff]
        %v3453 = vld [vmem:[#allocation10 + $0x138] sm:$0xff]
        %v3454 = vld [vmem:[#allocation10 + $0x140] sm:$0xff]
        %v3455 = vld [vmem:[#allocation10 + $0x148] sm:$0xff]
        %v3456 = vld [vmem:[#allocation10 + $0x150] sm:$0xff]
        %v3457 = vld [vmem:[#allocation10 + $0x158] sm:$0xff]
        %v3458 = vld [vmem:[#allocation10 + $0x160] sm:$0xff]
        %v3459 = vld [vmem:[#allocation10 + $0x168] sm:$0xff]
        %v3460 = vld [vmem:[#allocation10 + $0x170] sm:$0xff]
        %v3461 = vld [vmem:[#allocation10 + $0x178] sm:$0xff]
        %v3462 = vld [vmem:[#allocation10 + $0x180] sm:$0xff]
        %v3463 = vld [vmem:[#allocation10 + $0x188] sm:$0xff]
        %v3464 = vld [vmem:[#allocation10 + $0x190] sm:$0xff]
        %v3465 = vld [vmem:[#allocation10 + $0x198] sm:$0xff]
        %v3466 = vld [vmem:[#allocation10 + $0x1a0] sm:$0xff]
        %v3467 = vld [vmem:[#allocation10 + $0x1a8] sm:$0xff]
        %v3468 = vld [vmem:[#allocation10 + $0x1b0] sm:$0xff]
        %v3469 = vld [vmem:[#allocation10 + $0x1b8] sm:$0xff]
        %v3470 = vld [vmem:[#allocation10 + $0x1c0] sm:$0xff]
        %v3471 = vld [vmem:[#allocation10 + $0x1c8] sm:$0xff]
        %v3472 = vld [vmem:[#allocation10 + $0x1d0] sm:$0xff]
        %v3473 = vld [vmem:[#allocation10 + $0x1d8] sm:$0xff]
        %v3474 = vld [vmem:[#allocation10 + $0x1e0] sm:$0xff]
        %v3475 = vld [vmem:[#allocation10 + $0x1e8] sm:$0xff]
        %v3476 = vld [vmem:[#allocation10 + $0x1f0] sm:$0xff]
        %v3477 = vld [vmem:[#allocation10 + $0x1f8] sm:$0xff]
        %v3478 = vld [vmem:[#allocation11] sm:$0x3]
        %v3479 = vpack.c.bf16 %v3402, %v3398
        %v3480 = vpack.c.bf16 %v3403, %v3399
        %v3481 = vpack.c.bf16 %v3404, %v3400
        %v3482 = vpack.c.bf16 %v3405, %v3401
        %v3483 = vpack.c.bf16 %v3410, %v3406
        %v3484 = vpack.c.bf16 %v3411, %v3407
        %v3485 = vpack.c.bf16 %v3412, %v3408
        %v3486 = vpack.c.bf16 %v3413, %v3409
        %v3488 = vlaneseq
        %v3489 = vshrl.u32 %v3488, 7
        %v3490 = vsub.s32 0, %v3489
        %v3491 = vrot.slane %v3478, %v3490
        %v3492 = vlaneseq
        %v3493 = vshrl.u32 %v3492, 7
        %v3494 = vsub.s32 1, %v3493
        %v3495 = vrot.slane %v3478, %v3494
        %v3562 = vunpack.c.l.b16 %v3414
        %v3563 = vunpack.c.h.b16 %v3414
        %v3564 = vunpack.c.l.b16 %v3415
        %v3565 = vunpack.c.h.b16 %v3415
        %v3566 = vunpack.c.l.b16 %v3416
        %v3567 = vunpack.c.h.b16 %v3416
        %v3568 = vunpack.c.l.b16 %v3417
        %v3569 = vunpack.c.h.b16 %v3417
        %v3570 = vunpack.c.l.b16 %v3418
        %v3571 = vunpack.c.h.b16 %v3418
        %v3572 = vunpack.c.l.b16 %v3419
        %v3573 = vunpack.c.h.b16 %v3419
        %v3574 = vunpack.c.l.b16 %v3420
        %v3575 = vunpack.c.h.b16 %v3420
        %v3576 = vunpack.c.l.b16 %v3421
        %v3577 = vunpack.c.h.b16 %v3421
        %v3578 = vunpack.c.l.b16 %v3422
        %v3579 = vunpack.c.h.b16 %v3422
        %v3580 = vunpack.c.l.b16 %v3423
        %v3581 = vunpack.c.h.b16 %v3423
        %v3582 = vunpack.c.l.b16 %v3424
        %v3583 = vunpack.c.h.b16 %v3424
        %v3584 = vunpack.c.l.b16 %v3425
        %v3585 = vunpack.c.h.b16 %v3425
        %v3586 = vunpack.c.l.b16 %v3426
        %v3587 = vunpack.c.h.b16 %v3426
        %v3588 = vunpack.c.l.b16 %v3427
        %v3589 = vunpack.c.h.b16 %v3427
        %v3590 = vunpack.c.l.b16 %v3428
        %v3591 = vunpack.c.h.b16 %v3428
        %v3592 = vunpack.c.l.b16 %v3429
        %v3593 = vunpack.c.h.b16 %v3429
        %v3594 = vunpack.c.l.b16 %v3430
        %v3595 = vunpack.c.h.b16 %v3430
        %v3596 = vunpack.c.l.b16 %v3431
        %v3597 = vunpack.c.h.b16 %v3431
        %v3598 = vunpack.c.l.b16 %v3432
        %v3599 = vunpack.c.h.b16 %v3432
        %v3600 = vunpack.c.l.b16 %v3433
        %v3601 = vunpack.c.h.b16 %v3433
        %v3602 = vunpack.c.l.b16 %v3434
        %v3603 = vunpack.c.h.b16 %v3434
        %v3604 = vunpack.c.l.b16 %v3435
        %v3605 = vunpack.c.h.b16 %v3435
        %v3606 = vunpack.c.l.b16 %v3436
        %v3607 = vunpack.c.h.b16 %v3436
        %v3608 = vunpack.c.l.b16 %v3437
        %v3609 = vunpack.c.h.b16 %v3437
        %v3610 = vunpack.c.l.b16 %v3438
        %v3611 = vunpack.c.h.b16 %v3438
        %v3612 = vunpack.c.l.b16 %v3439
        %v3613 = vunpack.c.h.b16 %v3439
        %v3614 = vunpack.c.l.b16 %v3440
        %v3615 = vunpack.c.h.b16 %v3440
        %v3616 = vunpack.c.l.b16 %v3441
        %v3617 = vunpack.c.h.b16 %v3441
        %v3618 = vunpack.c.l.b16 %v3442
        %v3619 = vunpack.c.h.b16 %v3442
        %v3620 = vunpack.c.l.b16 %v3443
        %v3621 = vunpack.c.h.b16 %v3443
        %v3622 = vunpack.c.l.b16 %v3444
        %v3623 = vunpack.c.h.b16 %v3444
        %v3624 = vunpack.c.l.b16 %v3445
        %v3625 = vunpack.c.h.b16 %v3445
        %v3626 = vunpack.c.l.b16 %v3446
        %v3627 = vunpack.c.h.b16 %v3446
        %v3628 = vunpack.c.l.b16 %v3447
        %v3629 = vunpack.c.h.b16 %v3447
        %v3630 = vunpack.c.l.b16 %v3448
        %v3631 = vunpack.c.h.b16 %v3448
        %v3632 = vunpack.c.l.b16 %v3449
        %v3633 = vunpack.c.h.b16 %v3449
        %v3634 = vunpack.c.l.b16 %v3450
        %v3635 = vunpack.c.h.b16 %v3450
        %v3636 = vunpack.c.l.b16 %v3451
        %v3637 = vunpack.c.h.b16 %v3451
        %v3638 = vunpack.c.l.b16 %v3452
        %v3639 = vunpack.c.h.b16 %v3452
        %v3640 = vunpack.c.l.b16 %v3453
        %v3641 = vunpack.c.h.b16 %v3453
        %v3642 = vunpack.c.l.b16 %v3454
        %v3643 = vunpack.c.h.b16 %v3454
        %v3644 = vunpack.c.l.b16 %v3455
        %v3645 = vunpack.c.h.b16 %v3455
        %v3646 = vunpack.c.l.b16 %v3456
        %v3647 = vunpack.c.h.b16 %v3456
        %v3648 = vunpack.c.l.b16 %v3457
        %v3649 = vunpack.c.h.b16 %v3457
        %v3650 = vunpack.c.l.b16 %v3458
        %v3651 = vunpack.c.h.b16 %v3458
        %v3652 = vunpack.c.l.b16 %v3459
        %v3653 = vunpack.c.h.b16 %v3459
        %v3654 = vunpack.c.l.b16 %v3460
        %v3655 = vunpack.c.h.b16 %v3460
        %v3656 = vunpack.c.l.b16 %v3461
        %v3657 = vunpack.c.h.b16 %v3461
        %v3658 = vunpack.c.l.b16 %v3462
        %v3659 = vunpack.c.h.b16 %v3462
        %v3660 = vunpack.c.l.b16 %v3463
        %v3661 = vunpack.c.h.b16 %v3463
        %v3662 = vunpack.c.l.b16 %v3464
        %v3663 = vunpack.c.h.b16 %v3464
        %v3664 = vunpack.c.l.b16 %v3465
        %v3665 = vunpack.c.h.b16 %v3465
        %v3666 = vunpack.c.l.b16 %v3466
        %v3667 = vunpack.c.h.b16 %v3466
        %v3668 = vunpack.c.l.b16 %v3467
        %v3669 = vunpack.c.h.b16 %v3467
        %v3670 = vunpack.c.l.b16 %v3468
        %v3671 = vunpack.c.h.b16 %v3468
        %v3672 = vunpack.c.l.b16 %v3469
        %v3673 = vunpack.c.h.b16 %v3469
        %v3674 = vunpack.c.l.b16 %v3470
        %v3675 = vunpack.c.h.b16 %v3470
        %v3676 = vunpack.c.l.b16 %v3471
        %v3677 = vunpack.c.h.b16 %v3471
        %v3678 = vunpack.c.l.b16 %v3472
        %v3679 = vunpack.c.h.b16 %v3472
        %v3680 = vunpack.c.l.b16 %v3473
        %v3681 = vunpack.c.h.b16 %v3473
        %v3682 = vunpack.c.l.b16 %v3474
        %v3683 = vunpack.c.h.b16 %v3474
        %v3684 = vunpack.c.l.b16 %v3475
        %v3685 = vunpack.c.h.b16 %v3475
        %v3686 = vunpack.c.l.b16 %v3476
        %v3687 = vunpack.c.h.b16 %v3476
        %v3688 = vunpack.c.l.b16 %v3477
        %v3689 = vunpack.c.h.b16 %v3477
        %v3690 = vpack.c.b16 %v3564, %v3562
        %v3691 = vpack.c.b16 %v3565, %v3563
        %v3692 = vpack.c.b16 %v3568, %v3566
        %v3693 = vpack.c.b16 %v3569, %v3567
        %v3694 = vpack.c.b16 %v3572, %v3570
        %v3695 = vpack.c.b16 %v3573, %v3571
        %v3696 = vpack.c.b16 %v3576, %v3574
        %v3697 = vpack.c.b16 %v3577, %v3575
        %v3698 = vpack.c.b16 %v3580, %v3578
        %v3699 = vpack.c.b16 %v3581, %v3579
        %v3700 = vpack.c.b16 %v3584, %v3582
        %v3701 = vpack.c.b16 %v3585, %v3583
        %v3702 = vpack.c.b16 %v3588, %v3586
        %v3703 = vpack.c.b16 %v3589, %v3587
        %v3704 = vpack.c.b16 %v3592, %v3590
        %v3705 = vpack.c.b16 %v3593, %v3591
        %v3706 = vpack.c.b16 %v3596, %v3594
        %v3707 = vpack.c.b16 %v3597, %v3595
        %v3708 = vpack.c.b16 %v3600, %v3598
        %v3709 = vpack.c.b16 %v3601, %v3599
        %v3710 = vpack.c.b16 %v3604, %v3602
        %v3711 = vpack.c.b16 %v3605, %v3603
        %v3712 = vpack.c.b16 %v3608, %v3606
        %v3713 = vpack.c.b16 %v3609, %v3607
        %v3714 = vpack.c.b16 %v3612, %v3610
        %v3715 = vpack.c.b16 %v3613, %v3611
        %v3716 = vpack.c.b16 %v3616, %v3614
        %v3717 = vpack.c.b16 %v3617, %v3615
        %v3718 = vpack.c.b16 %v3620, %v3618
        %v3719 = vpack.c.b16 %v3621, %v3619
        %v3720 = vpack.c.b16 %v3624, %v3622
        %v3721 = vpack.c.b16 %v3625, %v3623
        %v3722 = vpack.c.b16 %v3628, %v3626
        %v3723 = vpack.c.b16 %v3629, %v3627
        %v3724 = vpack.c.b16 %v3632, %v3630
        %v3725 = vpack.c.b16 %v3633, %v3631
        %v3726 = vpack.c.b16 %v3636, %v3634
        %v3727 = vpack.c.b16 %v3637, %v3635
        %v3728 = vpack.c.b16 %v3640, %v3638
        %v3729 = vpack.c.b16 %v3641, %v3639
        %v3730 = vpack.c.b16 %v3644, %v3642
        %v3731 = vpack.c.b16 %v3645, %v3643
        %v3732 = vpack.c.b16 %v3648, %v3646
        %v3733 = vpack.c.b16 %v3649, %v3647
        %v3734 = vpack.c.b16 %v3652, %v3650
        %v3735 = vpack.c.b16 %v3653, %v3651
        %v3736 = vpack.c.b16 %v3656, %v3654
        %v3737 = vpack.c.b16 %v3657, %v3655
        %v3738 = vpack.c.b16 %v3660, %v3658
        %v3739 = vpack.c.b16 %v3661, %v3659
        %v3740 = vpack.c.b16 %v3664, %v3662
        %v3741 = vpack.c.b16 %v3665, %v3663
        %v3742 = vpack.c.b16 %v3668, %v3666
        %v3743 = vpack.c.b16 %v3669, %v3667
        %v3744 = vpack.c.b16 %v3672, %v3670
        %v3745 = vpack.c.b16 %v3673, %v3671
        %v3746 = vpack.c.b16 %v3676, %v3674
        %v3747 = vpack.c.b16 %v3677, %v3675
        %v3748 = vpack.c.b16 %v3680, %v3678
        %v3749 = vpack.c.b16 %v3681, %v3679
        %v3750 = vpack.c.b16 %v3684, %v3682
        %v3751 = vpack.c.b16 %v3685, %v3683
        %v3752 = vpack.c.b16 %v3688, %v3686
        %v3753 = vpack.c.b16 %v3689, %v3687
        %3818 = vmatprep.subr.bf16.mxu0 %v3705
        %3819 = vmatpush1.bf16.msra.mxu0 %v3704
        %3820 = vmatprep.subr.bf16.mxu0 %v3703
        %3821 = vmatpush1.bf16.msra.mxu0 %v3702
        %3822 = vmatprep.subr.bf16.mxu0 %v3701
        %3823 = vmatpush1.bf16.msra.mxu0 %v3700
        %3824 = vmatprep.subr.bf16.mxu0 %v3699
        %3825 = vmatpush1.bf16.msra.mxu0 %v3698
        %3826 = vmatprep.subr.bf16.mxu0 %v3697
        %3827 = vmatpush1.bf16.msra.mxu0 %v3696
        %3828 = vmatprep.subr.bf16.mxu0 %v3695
        %3829 = vmatpush1.bf16.msra.mxu0 %v3694
        %3830 = vmatprep.subr.bf16.mxu0 %v3693
        %3831 = vmatpush1.bf16.msra.mxu0 %v3692
        %3832 = vmatprep.subr.bf16.mxu0 %v3691
        %3833 = vmatpush1.bf16.msra.mxu0 %v3690
        %3834 = vmatprep.subr.bf16.mxu0 %v3721
        %3835 = vmatpush2.bf16.msra.mxu0 %v3720
        %3836 = vmatprep.subr.bf16.mxu0 %v3719
        %3837 = vmatpush2.bf16.msra.mxu0 %v3718
        %3838 = vmatprep.subr.bf16.mxu0 %v3717
        %3839 = vmatpush2.bf16.msra.mxu0 %v3716
        %3840 = vmatprep.subr.bf16.mxu0 %v3715
        %3841 = vmatpush2.bf16.msra.mxu0 %v3714
        %3842 = vmatprep.subr.bf16.mxu0 %v3713
        %3843 = vmatpush2.bf16.msra.mxu0 %v3712
        %3844 = vmatprep.subr.bf16.mxu0 %v3711
        %3845 = vmatpush2.bf16.msra.mxu0 %v3710
        %3846 = vmatprep.subr.bf16.mxu0 %v3709
        %3847 = vmatpush2.bf16.msra.mxu0 %v3708
        %3848 = vmatprep.subr.bf16.mxu0 %v3707
        %3849 = vmatpush2.bf16.msra.mxu0 %v3706
        %3850 = vmatprep.mubr.bf16.mxu0 %v3480
        %3851 = vmatmul.mubr.bf16.gmra.mxu0 %v3479
        %v3852 = vpop.f32.mrf.mxu0
        %v3853 = vadd.f32 %v3491, %v3852
        %v3854 = vpop.f32.mrf.mxu0
        %v3855 = vadd.f32 %v3495, %v3854
        %v3856 = vpop.f32.mrf.mxu0
        %v3857 = vadd.f32 %v3491, %v3856
        %v3858 = vpop.f32.mrf.mxu0
        %v3859 = vadd.f32 %v3495, %v3858
        %3860 = vmatprep.mubr.bf16.mxu0 %v3484
        %3861 = vmatmul.mubr.bf16.gmra.mxu0 %v3483
        %v3862 = vpop.f32.mrf.mxu0
        %v3863 = vadd.f32 %v3491, %v3862
        %v3864 = vpop.f32.mrf.mxu0
        %v3865 = vadd.f32 %v3495, %v3864
        %v3866 = vpop.f32.mrf.mxu0
        %v3867 = vadd.f32 %v3491, %v3866
        %v3868 = vpop.f32.mrf.mxu0
        %v3869 = vadd.f32 %v3495, %v3868
        %3870 = vdwg.mxu0
        %3871 = vmatprep.subr.bf16.mxu0 %v3737
        %3872 = vmatpush1.bf16.msra.mxu0 %v3736
        %3873 = vmatprep.subr.bf16.mxu0 %v3735
        %3874 = vmatpush1.bf16.msra.mxu0 %v3734
        %3875 = vmatprep.subr.bf16.mxu0 %v3733
        %3876 = vmatpush1.bf16.msra.mxu0 %v3732
        %3877 = vmatprep.subr.bf16.mxu0 %v3731
        %3878 = vmatpush1.bf16.msra.mxu0 %v3730
        %3879 = vmatprep.subr.bf16.mxu0 %v3729
        %3880 = vmatpush1.bf16.msra.mxu0 %v3728
        %3881 = vmatprep.subr.bf16.mxu0 %v3727
        %3882 = vmatpush1.bf16.msra.mxu0 %v3726
        %3883 = vmatprep.subr.bf16.mxu0 %v3725
        %3884 = vmatpush1.bf16.msra.mxu0 %v3724
        %3885 = vmatprep.subr.bf16.mxu0 %v3723
        %3886 = vmatpush1.bf16.msra.mxu0 %v3722
        %3887 = vmatprep.subr.bf16.mxu0 %v3753
        %3888 = vmatpush2.bf16.msra.mxu0 %v3752
        %3889 = vmatprep.subr.bf16.mxu0 %v3751
        %3890 = vmatpush2.bf16.msra.mxu0 %v3750
        %3891 = vmatprep.subr.bf16.mxu0 %v3749
        %3892 = vmatpush2.bf16.msra.mxu0 %v3748
        %3893 = vmatprep.subr.bf16.mxu0 %v3747
        %3894 = vmatpush2.bf16.msra.mxu0 %v3746
        %3895 = vmatprep.subr.bf16.mxu0 %v3745
        %3896 = vmatpush2.bf16.msra.mxu0 %v3744
        %3897 = vmatprep.subr.bf16.mxu0 %v3743
        %3898 = vmatpush2.bf16.msra.mxu0 %v3742
        %3899 = vmatprep.subr.bf16.mxu0 %v3741
        %3900 = vmatpush2.bf16.msra.mxu0 %v3740
        %3901 = vmatprep.subr.bf16.mxu0 %v3739
        %3902 = vmatpush2.bf16.msra.mxu0 %v3738
        %3903 = vmatprep.mubr.bf16.mxu0 %v3482
        %3904 = vmatmul.mubr.bf16.gmra.mxu0 %v3481
        %v3905 = vpop.f32.mrf.mxu0
        %v3906 = vadd.f32 %v3853, %v3905
        %v3907 = vpop.f32.mrf.mxu0
        %v3908 = vadd.f32 %v3855, %v3907
        %v3909 = vpop.f32.mrf.mxu0
        %v3910 = vadd.f32 %v3857, %v3909
        %v3911 = vpop.f32.mrf.mxu0
        %v3912 = vadd.f32 %v3859, %v3911
        %3913 = vmatprep.mubr.bf16.mxu0 %v3486
        %3914 = vmatmul.mubr.bf16.gmra.mxu0 %v3485
        %v3915 = vpop.f32.mrf.mxu0
        %v3916 = vadd.f32 %v3863, %v3915
        %v3917 = vpop.f32.mrf.mxu0
        %v3918 = vadd.f32 %v3865, %v3917
        %v3919 = vpop.f32.mrf.mxu0
        %v3920 = vadd.f32 %v3867, %v3919
        %v3921 = vpop.f32.mrf.mxu0
        %v3922 = vadd.f32 %v3869, %v3921
        %3923 = vdwg.mxu0
        %v3924 = vmax.f32 %v3906, 0.0
        %v3925 = vmax.f32 %v3908, 0.0
        %v3926 = vmax.f32 %v3910, 0.0
        %v3927 = vmax.f32 %v3912, 0.0
        %v3928 = vmax.f32 %v3916, 0.0
        %v3929 = vmax.f32 %v3918, 0.0
        %v3930 = vmax.f32 %v3920, 0.0
        %v3931 = vmax.f32 %v3922, 0.0
        %v3932 = vld [vmem:[#allocation13] sm:$0xf]
        %v3933 = vld [vmem:[#allocation13 + $0x4] sm:$0xf]
        %v3934 = vld [vmem:[#allocation13 + $0x8] sm:$0xf]
        %v3935 = vld [vmem:[#allocation13 + $0xc] sm:$0xf]
        %v3936 = vld [vmem:[#allocation13 + $0x10] sm:$0xf]
        %v3937 = vld [vmem:[#allocation13 + $0x14] sm:$0xf]
        %v3938 = vld [vmem:[#allocation13 + $0x18] sm:$0xf]
        %v3939 = vld [vmem:[#allocation13 + $0x1c] sm:$0xf]
        %v3940 = vld [vmem:[#allocation13 + $0x20] sm:$0xf]
        %v3941 = vld [vmem:[#allocation13 + $0x24] sm:$0xf]
        %v3942 = vld [vmem:[#allocation13 + $0x28] sm:$0xf]
        %v3943 = vld [vmem:[#allocation13 + $0x2c] sm:$0xf]
        %v3944 = vld [vmem:[#allocation13 + $0x30] sm:$0xf]
        %v3945 = vld [vmem:[#allocation13 + $0x34] sm:$0xf]
        %v3946 = vld [vmem:[#allocation13 + $0x38] sm:$0xf]
        %v3947 = vld [vmem:[#allocation13 + $0x3c] sm:$0xf]
        %v3948 = vld [vmem:[#allocation13 + $0x40] sm:$0xf]
        %v3949 = vld [vmem:[#allocation13 + $0x44] sm:$0xf]
        %v3950 = vld [vmem:[#allocation13 + $0x48] sm:$0xf]
        %v3951 = vld [vmem:[#allocation13 + $0x4c] sm:$0xf]
        %v3952 = vld [vmem:[#allocation13 + $0x50] sm:$0xf]
        %v3953 = vld [vmem:[#allocation13 + $0x54] sm:$0xf]
        %v3954 = vld [vmem:[#allocation13 + $0x58] sm:$0xf]
        %v3955 = vld [vmem:[#allocation13 + $0x5c] sm:$0xf]
        %v3956 = vld [vmem:[#allocation13 + $0x60] sm:$0xf]
        %v3957 = vld [vmem:[#allocation13 + $0x64] sm:$0xf]
        %v3958 = vld [vmem:[#allocation13 + $0x68] sm:$0xf]
        %v3959 = vld [vmem:[#allocation13 + $0x6c] sm:$0xf]
        %v3960 = vld [vmem:[#allocation13 + $0x70] sm:$0xf]
        %v3961 = vld [vmem:[#allocation13 + $0x74] sm:$0xf]
        %v3962 = vld [vmem:[#allocation13 + $0x78] sm:$0xf]
        %v3963 = vld [vmem:[#allocation13 + $0x7c] sm:$0xf]
        %v3964 = vld [vmem:[#allocation14] sm:$0x1]
        %v3965 = vpack.c.bf16 %v3926, %v3924
        %v3966 = vpack.c.bf16 %v3927, %v3925
        %v3967 = vpack.c.bf16 %v3930, %v3928
        %v3968 = vpack.c.bf16 %v3931, %v3929
        %v3970 = vlaneseq
        %v3971 = vshrl.u32 %v3970, 7
        %v3972 = vsub.s32 0, %v3971
        %v3973 = vrot.slane %v3964, %v3972
        %v4007 = vunpack.c.l.b16 %v3932
        %v4008 = vunpack.c.l.b16 %v3933
        %v4009 = vunpack.c.l.b16 %v3934
        %v4010 = vunpack.c.l.b16 %v3935
        %v4011 = vunpack.c.l.b16 %v3936
        %v4012 = vunpack.c.l.b16 %v3937
        %v4013 = vunpack.c.l.b16 %v3938
        %v4014 = vunpack.c.l.b16 %v3939
        %v4015 = vunpack.c.l.b16 %v3940
        %v4016 = vunpack.c.l.b16 %v3941
        %v4017 = vunpack.c.l.b16 %v3942
        %v4018 = vunpack.c.l.b16 %v3943
        %v4019 = vunpack.c.l.b16 %v3944
        %v4020 = vunpack.c.l.b16 %v3945
        %v4021 = vunpack.c.l.b16 %v3946
        %v4022 = vunpack.c.l.b16 %v3947
        %v4023 = vunpack.c.l.b16 %v3948
        %v4024 = vunpack.c.l.b16 %v3949
        %v4025 = vunpack.c.l.b16 %v3950
        %v4026 = vunpack.c.l.b16 %v3951
        %v4027 = vunpack.c.l.b16 %v3952
        %v4028 = vunpack.c.l.b16 %v3953
        %v4029 = vunpack.c.l.b16 %v3954
        %v4030 = vunpack.c.l.b16 %v3955
        %v4031 = vunpack.c.l.b16 %v3956
        %v4032 = vunpack.c.l.b16 %v3957
        %v4033 = vunpack.c.l.b16 %v3958
        %v4034 = vunpack.c.l.b16 %v3959
        %v4035 = vunpack.c.l.b16 %v3960
        %v4036 = vunpack.c.l.b16 %v3961
        %v4037 = vunpack.c.l.b16 %v3962
        %v4038 = vunpack.c.l.b16 %v3963
        %v4039 = vpack.c.b16 %v4008, %v4007
        %v4040 = vpack.c.b16 %v4010, %v4009
        %v4041 = vpack.c.b16 %v4012, %v4011
        %v4042 = vpack.c.b16 %v4014, %v4013
        %v4043 = vpack.c.b16 %v4016, %v4015
        %v4044 = vpack.c.b16 %v4018, %v4017
        %v4045 = vpack.c.b16 %v4020, %v4019
        %v4046 = vpack.c.b16 %v4022, %v4021
        %v4047 = vpack.c.b16 %v4024, %v4023
        %v4048 = vpack.c.b16 %v4026, %v4025
        %v4049 = vpack.c.b16 %v4028, %v4027
        %v4050 = vpack.c.b16 %v4030, %v4029
        %v4051 = vpack.c.b16 %v4032, %v4031
        %v4052 = vpack.c.b16 %v4034, %v4033
        %v4053 = vpack.c.b16 %v4036, %v4035
        %v4054 = vpack.c.b16 %v4038, %v4037
        %4071 = vmatprep.subr.bf16.mxu0 0
        %4072 = vmatpush1.bf16.msra.mxu0 %v4046
        %4073 = vmatprep.subr.bf16.mxu0 0
        %4074 = vmatpush1.bf16.msra.mxu0 %v4045
        %4075 = vmatprep.subr.bf16.mxu0 0
        %4076 = vmatpush1.bf16.msra.mxu0 %v4044
        %4077 = vmatprep.subr.bf16.mxu0 0
        %4078 = vmatpush1.bf16.msra.mxu0 %v4043
        %4079 = vmatprep.subr.bf16.mxu0 0
        %4080 = vmatpush1.bf16.msra.mxu0 %v4042
        %4081 = vmatprep.subr.bf16.mxu0 0
        %4082 = vmatpush1.bf16.msra.mxu0 %v4041
        %4083 = vmatprep.subr.bf16.mxu0 0
        %4084 = vmatpush1.bf16.msra.mxu0 %v4040
        %4085 = vmatprep.subr.bf16.mxu0 0
        %4086 = vmatpush1.bf16.msra.mxu0 %v4039
        %4087 = vmatprep.subr.bf16.mxu0 0
        %4088 = vmatpush2.bf16.msra.mxu0 %v4054
        %4089 = vmatprep.subr.bf16.mxu0 0
        %4090 = vmatpush2.bf16.msra.mxu0 %v4053
        %4091 = vmatprep.subr.bf16.mxu0 0
        %4092 = vmatpush2.bf16.msra.mxu0 %v4052
        %4093 = vmatprep.subr.bf16.mxu0 0
        %4094 = vmatpush2.bf16.msra.mxu0 %v4051
        %4095 = vmatprep.subr.bf16.mxu0 0
        %4096 = vmatpush2.bf16.msra.mxu0 %v4050
        %4097 = vmatprep.subr.bf16.mxu0 0
        %4098 = vmatpush2.bf16.msra.mxu0 %v4049
        %4099 = vmatprep.subr.bf16.mxu0 0
        %4100 = vmatpush2.bf16.msra.mxu0 %v4048
        %4101 = vmatprep.subr.bf16.mxu0 0
        %4102 = vmatpush2.bf16.msra.mxu0 %v4047
        %4103 = vmatprep.mubr.bf16.mxu0 %v3966
        %4104 = vmatmul.mubr.bf16.gmra.mxu0 %v3965
        %v4105 = vpop.f32.mrf.mxu0
        %v4106 = vadd.f32 %v3973, %v4105
        %v4107 = vpop.f32.mrf.mxu0
        %v4108 = vpop.f32.mrf.mxu0
        %v4109 = vadd.f32 %v3973, %v4108
        %v4110 = vpop.f32.mrf.mxu0
        %4111 = vmatprep.mubr.bf16.mxu0 %v3968
        %4112 = vmatmul.mubr.bf16.gmra.mxu0 %v3967
        %v4113 = vpop.f32.mrf.mxu0
        %v4114 = vadd.f32 %v3973, %v4113
        %v4115 = vpop.f32.mrf.mxu0
        %v4116 = vpop.f32.mrf.mxu0
        %v4117 = vadd.f32 %v3973, %v4116
        %v4118 = vpop.f32.mrf.mxu0
        %4119 = vdwg.mxu0
        %v4120 = vmax.f32 %v4106, 0.0
        %v4121 = vmax.f32 %v4109, 0.0
        %v4122 = vmax.f32 %v4114, 0.0
        %v4123 = vmax.f32 %v4117, 0.0
        %v4124 = vld [vmem:[#allocation16] sm:$0xff]
        %v4125 = vld [vmem:[#allocation16 + $0x8] sm:$0xff]
        %v4126 = vld [vmem:[#allocation16 + $0x10] sm:$0xff]
        %v4127 = vld [vmem:[#allocation16 + $0x18] sm:$0xff]
        %v4128 = vld [vmem:[#allocation16 + $0x20] sm:$0xff]
        %v4129 = vld [vmem:[#allocation16 + $0x28] sm:$0xff]
        %v4130 = vld [vmem:[#allocation16 + $0x30] sm:$0xff]
        %v4131 = vld [vmem:[#allocation16 + $0x38] sm:$0xff]
        %v4132 = vld [vmem:[#allocation16 + $0x40] sm:$0xff]
        %v4133 = vld [vmem:[#allocation16 + $0x48] sm:$0xff]
        %v4134 = vld [vmem:[#allocation16 + $0x50] sm:$0xff]
        %v4135 = vld [vmem:[#allocation16 + $0x58] sm:$0xff]
        %v4136 = vld [vmem:[#allocation16 + $0x60] sm:$0xff]
        %v4137 = vld [vmem:[#allocation16 + $0x68] sm:$0xff]
        %v4138 = vld [vmem:[#allocation16 + $0x70] sm:$0xff]
        %v4139 = vld [vmem:[#allocation16 + $0x78] sm:$0xff]
        %v4140 = vld [vmem:[%s10] sm:$0x3]
        %v4141 = vpack.c.bf16 %v4121, %v4120
        %v4142 = vpack.c.bf16 %v4123, %v4122
        %v4144 = vlaneseq
        %v4145 = vshrl.u32 %v4144, 7
        %v4146 = vsub.s32 0, %v4145
        %v4147 = vrot.slane %v4140, %v4146
        %v4148 = vlaneseq
        %v4149 = vshrl.u32 %v4148, 7
        %v4150 = vsub.s32 1, %v4149
        %v4151 = vrot.slane %v4140, %v4150
        %v4170 = vunpack.c.l.b16 %v4124
        %v4171 = vunpack.c.h.b16 %v4124
        %v4172 = vunpack.c.l.b16 %v4125
        %v4173 = vunpack.c.h.b16 %v4125
        %v4174 = vunpack.c.l.b16 %v4126
        %v4175 = vunpack.c.h.b16 %v4126
        %v4176 = vunpack.c.l.b16 %v4127
        %v4177 = vunpack.c.h.b16 %v4127
        %v4178 = vunpack.c.l.b16 %v4128
        %v4179 = vunpack.c.h.b16 %v4128
        %v4180 = vunpack.c.l.b16 %v4129
        %v4181 = vunpack.c.h.b16 %v4129
        %v4182 = vunpack.c.l.b16 %v4130
        %v4183 = vunpack.c.h.b16 %v4130
        %v4184 = vunpack.c.l.b16 %v4131
        %v4185 = vunpack.c.h.b16 %v4131
        %v4186 = vunpack.c.l.b16 %v4132
        %v4187 = vunpack.c.h.b16 %v4132
        %v4188 = vunpack.c.l.b16 %v4133
        %v4189 = vunpack.c.h.b16 %v4133
        %v4190 = vunpack.c.l.b16 %v4134
        %v4191 = vunpack.c.h.b16 %v4134
        %v4192 = vunpack.c.l.b16 %v4135
        %v4193 = vunpack.c.h.b16 %v4135
        %v4194 = vunpack.c.l.b16 %v4136
        %v4195 = vunpack.c.h.b16 %v4136
        %v4196 = vunpack.c.l.b16 %v4137
        %v4197 = vunpack.c.h.b16 %v4137
        %v4198 = vunpack.c.l.b16 %v4138
        %v4199 = vunpack.c.h.b16 %v4138
        %v4200 = vunpack.c.l.b16 %v4139
        %v4201 = vunpack.c.h.b16 %v4139
        %v4202 = vpack.c.b16 %v4172, %v4170
        %v4203 = vpack.c.b16 %v4173, %v4171
        %v4204 = vpack.c.b16 %v4176, %v4174
        %v4205 = vpack.c.b16 %v4177, %v4175
        %v4206 = vpack.c.b16 %v4180, %v4178
        %v4207 = vpack.c.b16 %v4181, %v4179
        %v4208 = vpack.c.b16 %v4184, %v4182
        %v4209 = vpack.c.b16 %v4185, %v4183
        %v4210 = vpack.c.b16 %v4188, %v4186
        %v4211 = vpack.c.b16 %v4189, %v4187
        %v4212 = vpack.c.b16 %v4192, %v4190
        %v4213 = vpack.c.b16 %v4193, %v4191
        %v4214 = vpack.c.b16 %v4196, %v4194
        %v4215 = vpack.c.b16 %v4197, %v4195
        %v4216 = vpack.c.b16 %v4200, %v4198
        %v4217 = vpack.c.b16 %v4201, %v4199
        %4234 = vmatprep.subr.bf16.mxu0 %v4217
        %4235 = vmatpush1.bf16.msra.mxu0 %v4216
        %4236 = vmatprep.subr.bf16.mxu0 %v4215
        %4237 = vmatpush1.bf16.msra.mxu0 %v4214
        %4238 = vmatprep.subr.bf16.mxu0 %v4213
        %4239 = vmatpush1.bf16.msra.mxu0 %v4212
        %4240 = vmatprep.subr.bf16.mxu0 %v4211
        %4241 = vmatpush1.bf16.msra.mxu0 %v4210
        %4242 = vmatprep.subr.bf16.mxu0 %v4209
        %4243 = vmatpush1.bf16.msra.mxu0 %v4208
        %4244 = vmatprep.subr.bf16.mxu0 %v4207
        %4245 = vmatpush1.bf16.msra.mxu0 %v4206
        %4246 = vmatprep.subr.bf16.mxu0 %v4205
        %4247 = vmatpush1.bf16.msra.mxu0 %v4204
        %4248 = vmatprep.subr.bf16.mxu0 %v4203
        %4249 = vmatpush1.bf16.msra.mxu0 %v4202
        %4250 = vmatprep.subr.bf16.mxu0 0
        %4251 = vmatpush2.bf16.msra.mxu0 0
        %4252 = vmatprep.subr.bf16.mxu0 0
        %4253 = vmatpush2.bf16.msra.mxu0 0
        %4254 = vmatprep.subr.bf16.mxu0 0
        %4255 = vmatpush2.bf16.msra.mxu0 0
        %4256 = vmatprep.subr.bf16.mxu0 0
        %4257 = vmatpush2.bf16.msra.mxu0 0
        %4258 = vmatprep.subr.bf16.mxu0 0
        %4259 = vmatpush2.bf16.msra.mxu0 0
        %4260 = vmatprep.subr.bf16.mxu0 0
        %4261 = vmatpush2.bf16.msra.mxu0 0
        %4262 = vmatprep.subr.bf16.mxu0 0
        %4263 = vmatpush2.bf16.msra.mxu0 0
        %4264 = vmatprep.subr.bf16.mxu0 0
        %4265 = vmatpush2.bf16.msra.mxu0 0
        %4266 = vmatprep.mubr.bf16.mxu0 0
        %4267 = vmatmul.mubr.bf16.gmra.mxu0 %v4141
        %v4268 = vpop.f32.mrf.mxu0
        %v4269 = vadd.f32 %v4147, %v4268
        %v4270 = vpop.f32.mrf.mxu0
        %v4271 = vadd.f32 %v4151, %v4270
        %v4272 = vpop.f32.mrf.mxu0
        %v4273 = vadd.f32 %v4147, %v4272
        %v4274 = vpop.f32.mrf.mxu0
        %v4275 = vadd.f32 %v4151, %v4274
        %4276 = vmatprep.mubr.bf16.mxu0 0
        %4277 = vmatmul.mubr.bf16.gmra.mxu0 %v4142
        %v4278 = vpop.f32.mrf.mxu0
        %v4279 = vadd.f32 %v4147, %v4278
        %v4280 = vpop.f32.mrf.mxu0
        %v4281 = vadd.f32 %v4151, %v4280
        %v4282 = vpop.f32.mrf.mxu0
        %v4283 = vadd.f32 %v4147, %v4282
        %v4284 = vpop.f32.mrf.mxu0
        %v4285 = vadd.f32 %v4151, %v4284
        %4286 = vdwg.mxu0
        %v4287 = vmax.f32 %v4269, 0.0
        %v4288 = vmax.f32 %v4271, 0.0
        %v4289 = vmax.f32 %v4273, 0.0
        %v4290 = vmax.f32 %v4275, 0.0
        %v4291 = vmax.f32 %v4279, 0.0
        %v4292 = vmax.f32 %v4281, 0.0
        %v4293 = vmax.f32 %v4283, 0.0
        %v4294 = vmax.f32 %v4285, 0.0
        %v4295 = vld [vmem:[#allocation17] sm:$0xff]
        %v4296 = vld [vmem:[#allocation17 + $0x8] sm:$0xff]
        %v4297 = vld [vmem:[#allocation17 + $0x10] sm:$0xff]
        %v4298 = vld [vmem:[#allocation17 + $0x18] sm:$0xff]
        %v4299 = vld [vmem:[#allocation17 + $0x20] sm:$0xff]
        %v4300 = vld [vmem:[#allocation17 + $0x28] sm:$0xff]
        %v4301 = vld [vmem:[#allocation17 + $0x30] sm:$0xff]
        %v4302 = vld [vmem:[#allocation17 + $0x38] sm:$0xff]
        %v4303 = vld [vmem:[#allocation17 + $0x40] sm:$0xff]
        %v4304 = vld [vmem:[#allocation17 + $0x48] sm:$0xff]
        %v4305 = vld [vmem:[#allocation17 + $0x50] sm:$0xff]
        %v4306 = vld [vmem:[#allocation17 + $0x58] sm:$0xff]
        %v4307 = vld [vmem:[#allocation17 + $0x60] sm:$0xff]
        %v4308 = vld [vmem:[#allocation17 + $0x68] sm:$0xff]
        %v4309 = vld [vmem:[#allocation17 + $0x70] sm:$0xff]
        %v4310 = vld [vmem:[#allocation17 + $0x78] sm:$0xff]
        %v4311 = vld [vmem:[#allocation17 + $0x80] sm:$0xff]
        %v4312 = vld [vmem:[#allocation17 + $0x88] sm:$0xff]
        %v4313 = vld [vmem:[#allocation17 + $0x90] sm:$0xff]
        %v4314 = vld [vmem:[#allocation17 + $0x98] sm:$0xff]
        %v4315 = vld [vmem:[#allocation17 + $0xa0] sm:$0xff]
        %v4316 = vld [vmem:[#allocation17 + $0xa8] sm:$0xff]
        %v4317 = vld [vmem:[#allocation17 + $0xb0] sm:$0xff]
        %v4318 = vld [vmem:[#allocation17 + $0xb8] sm:$0xff]
        %v4319 = vld [vmem:[#allocation17 + $0xc0] sm:$0xff]
        %v4320 = vld [vmem:[#allocation17 + $0xc8] sm:$0xff]
        %v4321 = vld [vmem:[#allocation17 + $0xd0] sm:$0xff]
        %v4322 = vld [vmem:[#allocation17 + $0xd8] sm:$0xff]
        %v4323 = vld [vmem:[#allocation17 + $0xe0] sm:$0xff]
        %v4324 = vld [vmem:[#allocation17 + $0xe8] sm:$0xff]
        %v4325 = vld [vmem:[#allocation17 + $0xf0] sm:$0xff]
        %v4326 = vld [vmem:[#allocation17 + $0xf8] sm:$0xff]
        %v4327 = vld [vmem:[#allocation17 + $0x100] sm:$0xff]
        %v4328 = vld [vmem:[#allocation17 + $0x108] sm:$0xff]
        %v4329 = vld [vmem:[#allocation17 + $0x110] sm:$0xff]
        %v4330 = vld [vmem:[#allocation17 + $0x118] sm:$0xff]
        %v4331 = vld [vmem:[#allocation17 + $0x120] sm:$0xff]
        %v4332 = vld [vmem:[#allocation17 + $0x128] sm:$0xff]
        %v4333 = vld [vmem:[#allocation17 + $0x130] sm:$0xff]
        %v4334 = vld [vmem:[#allocation17 + $0x138] sm:$0xff]
        %v4335 = vld [vmem:[#allocation17 + $0x140] sm:$0xff]
        %v4336 = vld [vmem:[#allocation17 + $0x148] sm:$0xff]
        %v4337 = vld [vmem:[#allocation17 + $0x150] sm:$0xff]
        %v4338 = vld [vmem:[#allocation17 + $0x158] sm:$0xff]
        %v4339 = vld [vmem:[#allocation17 + $0x160] sm:$0xff]
        %v4340 = vld [vmem:[#allocation17 + $0x168] sm:$0xff]
        %v4341 = vld [vmem:[#allocation17 + $0x170] sm:$0xff]
        %v4342 = vld [vmem:[#allocation17 + $0x178] sm:$0xff]
        %v4343 = vld [vmem:[#allocation17 + $0x180] sm:$0xff]
        %v4344 = vld [vmem:[#allocation17 + $0x188] sm:$0xff]
        %v4345 = vld [vmem:[#allocation17 + $0x190] sm:$0xff]
        %v4346 = vld [vmem:[#allocation17 + $0x198] sm:$0xff]
        %v4347 = vld [vmem:[#allocation17 + $0x1a0] sm:$0xff]
        %v4348 = vld [vmem:[#allocation17 + $0x1a8] sm:$0xff]
        %v4349 = vld [vmem:[#allocation17 + $0x1b0] sm:$0xff]
        %v4350 = vld [vmem:[#allocation17 + $0x1b8] sm:$0xff]
        %v4351 = vld [vmem:[#allocation17 + $0x1c0] sm:$0xff]
        %v4352 = vld [vmem:[#allocation17 + $0x1c8] sm:$0xff]
        %v4353 = vld [vmem:[#allocation17 + $0x1d0] sm:$0xff]
        %v4354 = vld [vmem:[#allocation17 + $0x1d8] sm:$0xff]
        %v4355 = vld [vmem:[#allocation17 + $0x1e0] sm:$0xff]
        %v4356 = vld [vmem:[#allocation17 + $0x1e8] sm:$0xff]
        %v4357 = vld [vmem:[#allocation17 + $0x1f0] sm:$0xff]
        %v4358 = vld [vmem:[#allocation17 + $0x1f8] sm:$0xff]
        %v4359 = vld [vmem:[%s12] sm:$0xf]
        %v4360 = vpack.c.bf16 %v4289, %v4287
        %v4361 = vpack.c.bf16 %v4290, %v4288
        %v4362 = vpack.c.bf16 %v4293, %v4291
        %v4363 = vpack.c.bf16 %v4294, %v4292
        %v4365 = vlaneseq
        %v4366 = vshrl.u32 %v4365, 7
        %v4367 = vsub.s32 0, %v4366
        %v4368 = vrot.slane %v4359, %v4367
        %v4369 = vlaneseq
        %v4370 = vshrl.u32 %v4369, 7
        %v4371 = vsub.s32 1, %v4370
        %v4372 = vrot.slane %v4359, %v4371
        %v4373 = vlaneseq
        %v4374 = vshrl.u32 %v4373, 7
        %v4375 = vsub.s32 2, %v4374
        %v4376 = vrot.slane %v4359, %v4375
        %v4377 = vlaneseq
        %v4378 = vshrl.u32 %v4377, 7
        %v4379 = vsub.s32 3, %v4378
        %v4380 = vrot.slane %v4359, %v4379
        %v4449 = vunpack.c.l.b16 %v4295
        %v4450 = vunpack.c.h.b16 %v4295
        %v4451 = vunpack.c.l.b16 %v4296
        %v4452 = vunpack.c.h.b16 %v4296
        %v4453 = vunpack.c.l.b16 %v4297
        %v4454 = vunpack.c.h.b16 %v4297
        %v4455 = vunpack.c.l.b16 %v4298
        %v4456 = vunpack.c.h.b16 %v4298
        %v4457 = vunpack.c.l.b16 %v4299
        %v4458 = vunpack.c.h.b16 %v4299
        %v4459 = vunpack.c.l.b16 %v4300
        %v4460 = vunpack.c.h.b16 %v4300
        %v4461 = vunpack.c.l.b16 %v4301
        %v4462 = vunpack.c.h.b16 %v4301
        %v4463 = vunpack.c.l.b16 %v4302
        %v4464 = vunpack.c.h.b16 %v4302
        %v4465 = vunpack.c.l.b16 %v4303
        %v4466 = vunpack.c.h.b16 %v4303
        %v4467 = vunpack.c.l.b16 %v4304
        %v4468 = vunpack.c.h.b16 %v4304
        %v4469 = vunpack.c.l.b16 %v4305
        %v4470 = vunpack.c.h.b16 %v4305
        %v4471 = vunpack.c.l.b16 %v4306
        %v4472 = vunpack.c.h.b16 %v4306
        %v4473 = vunpack.c.l.b16 %v4307
        %v4474 = vunpack.c.h.b16 %v4307
        %v4475 = vunpack.c.l.b16 %v4308
        %v4476 = vunpack.c.h.b16 %v4308
        %v4477 = vunpack.c.l.b16 %v4309
        %v4478 = vunpack.c.h.b16 %v4309
        %v4479 = vunpack.c.l.b16 %v4310
        %v4480 = vunpack.c.h.b16 %v4310
        %v4481 = vunpack.c.l.b16 %v4311
        %v4482 = vunpack.c.h.b16 %v4311
        %v4483 = vunpack.c.l.b16 %v4312
        %v4484 = vunpack.c.h.b16 %v4312
        %v4485 = vunpack.c.l.b16 %v4313
        %v4486 = vunpack.c.h.b16 %v4313
        %v4487 = vunpack.c.l.b16 %v4314
        %v4488 = vunpack.c.h.b16 %v4314
        %v4489 = vunpack.c.l.b16 %v4315
        %v4490 = vunpack.c.h.b16 %v4315
        %v4491 = vunpack.c.l.b16 %v4316
        %v4492 = vunpack.c.h.b16 %v4316
        %v4493 = vunpack.c.l.b16 %v4317
        %v4494 = vunpack.c.h.b16 %v4317
        %v4495 = vunpack.c.l.b16 %v4318
        %v4496 = vunpack.c.h.b16 %v4318
        %v4497 = vunpack.c.l.b16 %v4319
        %v4498 = vunpack.c.h.b16 %v4319
        %v4499 = vunpack.c.l.b16 %v4320
        %v4500 = vunpack.c.h.b16 %v4320
        %v4501 = vunpack.c.l.b16 %v4321
        %v4502 = vunpack.c.h.b16 %v4321
        %v4503 = vunpack.c.l.b16 %v4322
        %v4504 = vunpack.c.h.b16 %v4322
        %v4505 = vunpack.c.l.b16 %v4323
        %v4506 = vunpack.c.h.b16 %v4323
        %v4507 = vunpack.c.l.b16 %v4324
        %v4508 = vunpack.c.h.b16 %v4324
        %v4509 = vunpack.c.l.b16 %v4325
        %v4510 = vunpack.c.h.b16 %v4325
        %v4511 = vunpack.c.l.b16 %v4326
        %v4512 = vunpack.c.h.b16 %v4326
        %v4513 = vunpack.c.l.b16 %v4327
        %v4514 = vunpack.c.h.b16 %v4327
        %v4515 = vunpack.c.l.b16 %v4328
        %v4516 = vunpack.c.h.b16 %v4328
        %v4517 = vunpack.c.l.b16 %v4329
        %v4518 = vunpack.c.h.b16 %v4329
        %v4519 = vunpack.c.l.b16 %v4330
        %v4520 = vunpack.c.h.b16 %v4330
        %v4521 = vunpack.c.l.b16 %v4331
        %v4522 = vunpack.c.h.b16 %v4331
        %v4523 = vunpack.c.l.b16 %v4332
        %v4524 = vunpack.c.h.b16 %v4332
        %v4525 = vunpack.c.l.b16 %v4333
        %v4526 = vunpack.c.h.b16 %v4333
        %v4527 = vunpack.c.l.b16 %v4334
        %v4528 = vunpack.c.h.b16 %v4334
        %v4529 = vunpack.c.l.b16 %v4335
        %v4530 = vunpack.c.h.b16 %v4335
        %v4531 = vunpack.c.l.b16 %v4336
        %v4532 = vunpack.c.h.b16 %v4336
        %v4533 = vunpack.c.l.b16 %v4337
        %v4534 = vunpack.c.h.b16 %v4337
        %v4535 = vunpack.c.l.b16 %v4338
        %v4536 = vunpack.c.h.b16 %v4338
        %v4537 = vunpack.c.l.b16 %v4339
        %v4538 = vunpack.c.h.b16 %v4339
        %v4539 = vunpack.c.l.b16 %v4340
        %v4540 = vunpack.c.h.b16 %v4340
        %v4541 = vunpack.c.l.b16 %v4341
        %v4542 = vunpack.c.h.b16 %v4341
        %v4543 = vunpack.c.l.b16 %v4342
        %v4544 = vunpack.c.h.b16 %v4342
        %v4545 = vunpack.c.l.b16 %v4343
        %v4546 = vunpack.c.h.b16 %v4343
        %v4547 = vunpack.c.l.b16 %v4344
        %v4548 = vunpack.c.h.b16 %v4344
        %v4549 = vunpack.c.l.b16 %v4345
        %v4550 = vunpack.c.h.b16 %v4345
        %v4551 = vunpack.c.l.b16 %v4346
        %v4552 = vunpack.c.h.b16 %v4346
        %v4553 = vunpack.c.l.b16 %v4347
        %v4554 = vunpack.c.h.b16 %v4347
        %v4555 = vunpack.c.l.b16 %v4348
        %v4556 = vunpack.c.h.b16 %v4348
        %v4557 = vunpack.c.l.b16 %v4349
        %v4558 = vunpack.c.h.b16 %v4349
        %v4559 = vunpack.c.l.b16 %v4350
        %v4560 = vunpack.c.h.b16 %v4350
        %v4561 = vunpack.c.l.b16 %v4351
        %v4562 = vunpack.c.h.b16 %v4351
        %v4563 = vunpack.c.l.b16 %v4352
        %v4564 = vunpack.c.h.b16 %v4352
        %v4565 = vunpack.c.l.b16 %v4353
        %v4566 = vunpack.c.h.b16 %v4353
        %v4567 = vunpack.c.l.b16 %v4354
        %v4568 = vunpack.c.h.b16 %v4354
        %v4569 = vunpack.c.l.b16 %v4355
        %v4570 = vunpack.c.h.b16 %v4355
        %v4571 = vunpack.c.l.b16 %v4356
        %v4572 = vunpack.c.h.b16 %v4356
        %v4573 = vunpack.c.l.b16 %v4357
        %v4574 = vunpack.c.h.b16 %v4357
        %v4575 = vunpack.c.l.b16 %v4358
        %v4576 = vunpack.c.h.b16 %v4358
        %v4577 = vpack.c.b16 %v4453, %v4449
        %v4578 = vpack.c.b16 %v4454, %v4450
        %v4579 = vpack.c.b16 %v4455, %v4451
        %v4580 = vpack.c.b16 %v4456, %v4452
        %v4581 = vpack.c.b16 %v4461, %v4457
        %v4582 = vpack.c.b16 %v4462, %v4458
        %v4583 = vpack.c.b16 %v4463, %v4459
        %v4584 = vpack.c.b16 %v4464, %v4460
        %v4585 = vpack.c.b16 %v4469, %v4465
        %v4586 = vpack.c.b16 %v4470, %v4466
        %v4587 = vpack.c.b16 %v4471, %v4467
        %v4588 = vpack.c.b16 %v4472, %v4468
        %v4589 = vpack.c.b16 %v4477, %v4473
        %v4590 = vpack.c.b16 %v4478, %v4474
        %v4591 = vpack.c.b16 %v4479, %v4475
        %v4592 = vpack.c.b16 %v4480, %v4476
        %v4593 = vpack.c.b16 %v4485, %v4481
        %v4594 = vpack.c.b16 %v4486, %v4482
        %v4595 = vpack.c.b16 %v4487, %v4483
        %v4596 = vpack.c.b16 %v4488, %v4484
        %v4597 = vpack.c.b16 %v4493, %v4489
        %v4598 = vpack.c.b16 %v4494, %v4490
        %v4599 = vpack.c.b16 %v4495, %v4491
        %v4600 = vpack.c.b16 %v4496, %v4492
        %v4601 = vpack.c.b16 %v4501, %v4497
        %v4602 = vpack.c.b16 %v4502, %v4498
        %v4603 = vpack.c.b16 %v4503, %v4499
        %v4604 = vpack.c.b16 %v4504, %v4500
        %v4605 = vpack.c.b16 %v4509, %v4505
        %v4606 = vpack.c.b16 %v4510, %v4506
        %v4607 = vpack.c.b16 %v4511, %v4507
        %v4608 = vpack.c.b16 %v4512, %v4508
        %v4609 = vpack.c.b16 %v4517, %v4513
        %v4610 = vpack.c.b16 %v4518, %v4514
        %v4611 = vpack.c.b16 %v4519, %v4515
        %v4612 = vpack.c.b16 %v4520, %v4516
        %v4613 = vpack.c.b16 %v4525, %v4521
        %v4614 = vpack.c.b16 %v4526, %v4522
        %v4615 = vpack.c.b16 %v4527, %v4523
        %v4616 = vpack.c.b16 %v4528, %v4524
        %v4617 = vpack.c.b16 %v4533, %v4529
        %v4618 = vpack.c.b16 %v4534, %v4530
        %v4619 = vpack.c.b16 %v4535, %v4531
        %v4620 = vpack.c.b16 %v4536, %v4532
        %v4621 = vpack.c.b16 %v4541, %v4537
        %v4622 = vpack.c.b16 %v4542, %v4538
        %v4623 = vpack.c.b16 %v4543, %v4539
        %v4624 = vpack.c.b16 %v4544, %v4540
        %v4625 = vpack.c.b16 %v4549, %v4545
        %v4626 = vpack.c.b16 %v4550, %v4546
        %v4627 = vpack.c.b16 %v4551, %v4547
        %v4628 = vpack.c.b16 %v4552, %v4548
        %v4629 = vpack.c.b16 %v4557, %v4553
        %v4630 = vpack.c.b16 %v4558, %v4554
        %v4631 = vpack.c.b16 %v4559, %v4555
        %v4632 = vpack.c.b16 %v4560, %v4556
        %v4633 = vpack.c.b16 %v4565, %v4561
        %v4634 = vpack.c.b16 %v4566, %v4562
        %v4635 = vpack.c.b16 %v4567, %v4563
        %v4636 = vpack.c.b16 %v4568, %v4564
        %v4637 = vpack.c.b16 %v4573, %v4569
        %v4638 = vpack.c.b16 %v4574, %v4570
        %v4639 = vpack.c.b16 %v4575, %v4571
        %v4640 = vpack.c.b16 %v4576, %v4572
        %4705 = vmatprep.subr.bf16.mxu0 %v4606
        %4706 = vmatpush1.bf16.msra.mxu0 %v4605
        %4707 = vmatprep.subr.bf16.mxu0 %v4602
        %4708 = vmatpush1.bf16.msra.mxu0 %v4601
        %4709 = vmatprep.subr.bf16.mxu0 %v4598
        %4710 = vmatpush1.bf16.msra.mxu0 %v4597
        %4711 = vmatprep.subr.bf16.mxu0 %v4594
        %4712 = vmatpush1.bf16.msra.mxu0 %v4593
        %4713 = vmatprep.subr.bf16.mxu0 %v4590
        %4714 = vmatpush1.bf16.msra.mxu0 %v4589
        %4715 = vmatprep.subr.bf16.mxu0 %v4586
        %4716 = vmatpush1.bf16.msra.mxu0 %v4585
        %4717 = vmatprep.subr.bf16.mxu0 %v4582
        %4718 = vmatpush1.bf16.msra.mxu0 %v4581
        %4719 = vmatprep.subr.bf16.mxu0 %v4578
        %4720 = vmatpush1.bf16.msra.mxu0 %v4577
        %4721 = vmatprep.subr.bf16.mxu0 %v4638
        %4722 = vmatpush2.bf16.msra.mxu0 %v4637
        %4723 = vmatprep.subr.bf16.mxu0 %v4634
        %4724 = vmatpush2.bf16.msra.mxu0 %v4633
        %4725 = vmatprep.subr.bf16.mxu0 %v4630
        %4726 = vmatpush2.bf16.msra.mxu0 %v4629
        %4727 = vmatprep.subr.bf16.mxu0 %v4626
        %4728 = vmatpush2.bf16.msra.mxu0 %v4625
        %4729 = vmatprep.subr.bf16.mxu0 %v4622
        %4730 = vmatpush2.bf16.msra.mxu0 %v4621
        %4731 = vmatprep.subr.bf16.mxu0 %v4618
        %4732 = vmatpush2.bf16.msra.mxu0 %v4617
        %4733 = vmatprep.subr.bf16.mxu0 %v4614
        %4734 = vmatpush2.bf16.msra.mxu0 %v4613
        %4735 = vmatprep.subr.bf16.mxu0 %v4610
        %4736 = vmatpush2.bf16.msra.mxu0 %v4609
        %4737 = vmatprep.mubr.bf16.mxu0 %v4361
        %4738 = vmatmul.mubr.bf16.gmra.mxu0 %v4360
        %v4739 = vpop.f32.mrf.mxu0
        %v4740 = vadd.f32 %v4368, %v4739
        %v4741 = vpop.f32.mrf.mxu0
        %v4742 = vadd.f32 %v4372, %v4741
        %v4743 = vpop.f32.mrf.mxu0
        %v4744 = vadd.f32 %v4368, %v4743
        %v4745 = vpop.f32.mrf.mxu0
        %v4746 = vadd.f32 %v4372, %v4745
        %4747 = vmatprep.mubr.bf16.mxu0 %v4363
        %4748 = vmatmul.mubr.bf16.gmra.mxu0 %v4362
        %v4749 = vpop.f32.mrf.mxu0
        %v4750 = vadd.f32 %v4368, %v4749
        %v4751 = vpop.f32.mrf.mxu0
        %v4752 = vadd.f32 %v4372, %v4751
        %v4753 = vpop.f32.mrf.mxu0
        %v4754 = vadd.f32 %v4368, %v4753
        %v4755 = vpop.f32.mrf.mxu0
        %v4756 = vadd.f32 %v4372, %v4755
        %4757 = vdwg.mxu0
        %4758 = vmatprep.subr.bf16.mxu0 %v4608
        %4759 = vmatpush1.bf16.msra.mxu0 %v4607
        %4760 = vmatprep.subr.bf16.mxu0 %v4604
        %4761 = vmatpush1.bf16.msra.mxu0 %v4603
        %4762 = vmatprep.subr.bf16.mxu0 %v4600
        %4763 = vmatpush1.bf16.msra.mxu0 %v4599
        %4764 = vmatprep.subr.bf16.mxu0 %v4596
        %4765 = vmatpush1.bf16.msra.mxu0 %v4595
        %4766 = vmatprep.subr.bf16.mxu0 %v4592
        %4767 = vmatpush1.bf16.msra.mxu0 %v4591
        %4768 = vmatprep.subr.bf16.mxu0 %v4588
        %4769 = vmatpush1.bf16.msra.mxu0 %v4587
        %4770 = vmatprep.subr.bf16.mxu0 %v4584
        %4771 = vmatpush1.bf16.msra.mxu0 %v4583
        %4772 = vmatprep.subr.bf16.mxu0 %v4580
        %4773 = vmatpush1.bf16.msra.mxu0 %v4579
        %4774 = vmatprep.subr.bf16.mxu0 %v4640
        %4775 = vmatpush2.bf16.msra.mxu0 %v4639
        %4776 = vmatprep.subr.bf16.mxu0 %v4636
        %4777 = vmatpush2.bf16.msra.mxu0 %v4635
        %4778 = vmatprep.subr.bf16.mxu0 %v4632
        %4779 = vmatpush2.bf16.msra.mxu0 %v4631
        %4780 = vmatprep.subr.bf16.mxu0 %v4628
        %4781 = vmatpush2.bf16.msra.mxu0 %v4627
        %4782 = vmatprep.subr.bf16.mxu0 %v4624
        %4783 = vmatpush2.bf16.msra.mxu0 %v4623
        %4784 = vmatprep.subr.bf16.mxu0 %v4620
        %4785 = vmatpush2.bf16.msra.mxu0 %v4619
        %4786 = vmatprep.subr.bf16.mxu0 %v4616
        %4787 = vmatpush2.bf16.msra.mxu0 %v4615
        %4788 = vmatprep.subr.bf16.mxu0 %v4612
        %4789 = vmatpush2.bf16.msra.mxu0 %v4611
        %4790 = vmatprep.mubr.bf16.mxu0 %v4361
        %4791 = vmatmul.mubr.bf16.gmra.mxu0 %v4360
        %v4792 = vpop.f32.mrf.mxu0
        %v4793 = vadd.f32 %v4376, %v4792
        %v4794 = vpop.f32.mrf.mxu0
        %v4795 = vadd.f32 %v4380, %v4794
        %v4796 = vpop.f32.mrf.mxu0
        %v4797 = vadd.f32 %v4376, %v4796
        %v4798 = vpop.f32.mrf.mxu0
        %v4799 = vadd.f32 %v4380, %v4798
        %4800 = vmatprep.mubr.bf16.mxu0 %v4363
        %4801 = vmatmul.mubr.bf16.gmra.mxu0 %v4362
        %v4802 = vpop.f32.mrf.mxu0
        %v4803 = vadd.f32 %v4376, %v4802
        %v4804 = vpop.f32.mrf.mxu0
        %v4805 = vadd.f32 %v4380, %v4804
        %v4806 = vpop.f32.mrf.mxu0
        %v4807 = vadd.f32 %v4376, %v4806
        %v4808 = vpop.f32.mrf.mxu0
        %v4809 = vadd.f32 %v4380, %v4808
        %4810 = vdwg.mxu0
        %v4811 = vmax.f32 %v4740, 0.0
        %v4812 = vmax.f32 %v4742, 0.0
        %v4813 = vmax.f32 %v4793, 0.0
        %v4814 = vmax.f32 %v4795, 0.0
        %v4815 = vmax.f32 %v4744, 0.0
        %v4816 = vmax.f32 %v4746, 0.0
        %v4817 = vmax.f32 %v4797, 0.0
        %v4818 = vmax.f32 %v4799, 0.0
        %v4819 = vmax.f32 %v4750, 0.0
        %v4820 = vmax.f32 %v4752, 0.0
        %v4821 = vmax.f32 %v4803, 0.0
        %v4822 = vmax.f32 %v4805, 0.0
        %v4823 = vmax.f32 %v4754, 0.0
        %v4824 = vmax.f32 %v4756, 0.0
        %v4825 = vmax.f32 %v4807, 0.0
        %v4826 = vmax.f32 %v4809, 0.0
        %v4827 = vld [vmem:[#allocation19] sm:$0xff]
        %v4828 = vld [vmem:[#allocation19 + $0x8] sm:$0xff]
        %v4829 = vld [vmem:[#allocation19 + $0x10] sm:$0xff]
        %v4830 = vld [vmem:[#allocation19 + $0x18] sm:$0xff]
        %v4831 = vld [vmem:[#allocation19 + $0x20] sm:$0xff]
        %v4832 = vld [vmem:[#allocation19 + $0x28] sm:$0xff]
        %v4833 = vld [vmem:[#allocation19 + $0x30] sm:$0xff]
        %v4834 = vld [vmem:[#allocation19 + $0x38] sm:$0xff]
        %v4835 = vld [vmem:[#allocation19 + $0x40] sm:$0xff]
        %v4836 = vld [vmem:[#allocation19 + $0x48] sm:$0xff]
        %v4837 = vld [vmem:[#allocation19 + $0x50] sm:$0xff]
        %v4838 = vld [vmem:[#allocation19 + $0x58] sm:$0xff]
        %v4839 = vld [vmem:[#allocation19 + $0x60] sm:$0xff]
        %v4840 = vld [vmem:[#allocation19 + $0x68] sm:$0xff]
        %v4841 = vld [vmem:[#allocation19 + $0x70] sm:$0xff]
        %v4842 = vld [vmem:[#allocation19 + $0x78] sm:$0xff]
        %v4843 = vld [vmem:[#allocation19 + $0x80] sm:$0xff]
        %v4844 = vld [vmem:[#allocation19 + $0x88] sm:$0xff]
        %v4845 = vld [vmem:[#allocation19 + $0x90] sm:$0xff]
        %v4846 = vld [vmem:[#allocation19 + $0x98] sm:$0xff]
        %v4847 = vld [vmem:[#allocation19 + $0xa0] sm:$0xff]
        %v4848 = vld [vmem:[#allocation19 + $0xa8] sm:$0xff]
        %v4849 = vld [vmem:[#allocation19 + $0xb0] sm:$0xff]
        %v4850 = vld [vmem:[#allocation19 + $0xb8] sm:$0xff]
        %v4851 = vld [vmem:[#allocation19 + $0xc0] sm:$0xff]
        %v4852 = vld [vmem:[#allocation19 + $0xc8] sm:$0xff]
        %v4853 = vld [vmem:[#allocation19 + $0xd0] sm:$0xff]
        %v4854 = vld [vmem:[#allocation19 + $0xd8] sm:$0xff]
        %v4855 = vld [vmem:[#allocation19 + $0xe0] sm:$0xff]
        %v4856 = vld [vmem:[#allocation19 + $0xe8] sm:$0xff]
        %v4857 = vld [vmem:[#allocation19 + $0xf0] sm:$0xff]
        %v4858 = vld [vmem:[#allocation19 + $0xf8] sm:$0xff]
        %v4859 = vld [vmem:[#allocation19 + $0x100] sm:$0xff]
        %v4860 = vld [vmem:[#allocation19 + $0x108] sm:$0xff]
        %v4861 = vld [vmem:[#allocation19 + $0x110] sm:$0xff]
        %v4862 = vld [vmem:[#allocation19 + $0x118] sm:$0xff]
        %v4863 = vld [vmem:[#allocation19 + $0x120] sm:$0xff]
        %v4864 = vld [vmem:[#allocation19 + $0x128] sm:$0xff]
        %v4865 = vld [vmem:[#allocation19 + $0x130] sm:$0xff]
        %v4866 = vld [vmem:[#allocation19 + $0x138] sm:$0xff]
        %v4867 = vld [vmem:[#allocation19 + $0x140] sm:$0xff]
        %v4868 = vld [vmem:[#allocation19 + $0x148] sm:$0xff]
        %v4869 = vld [vmem:[#allocation19 + $0x150] sm:$0xff]
        %v4870 = vld [vmem:[#allocation19 + $0x158] sm:$0xff]
        %v4871 = vld [vmem:[#allocation19 + $0x160] sm:$0xff]
        %v4872 = vld [vmem:[#allocation19 + $0x168] sm:$0xff]
        %v4873 = vld [vmem:[#allocation19 + $0x170] sm:$0xff]
        %v4874 = vld [vmem:[#allocation19 + $0x178] sm:$0xff]
        %v4875 = vld [vmem:[#allocation19 + $0x180] sm:$0xff]
        %v4876 = vld [vmem:[#allocation19 + $0x188] sm:$0xff]
        %v4877 = vld [vmem:[#allocation19 + $0x190] sm:$0xff]
        %v4878 = vld [vmem:[#allocation19 + $0x198] sm:$0xff]
        %v4879 = vld [vmem:[#allocation19 + $0x1a0] sm:$0xff]
        %v4880 = vld [vmem:[#allocation19 + $0x1a8] sm:$0xff]
        %v4881 = vld [vmem:[#allocation19 + $0x1b0] sm:$0xff]
        %v4882 = vld [vmem:[#allocation19 + $0x1b8] sm:$0xff]
        %v4883 = vld [vmem:[#allocation19 + $0x1c0] sm:$0xff]
        %v4884 = vld [vmem:[#allocation19 + $0x1c8] sm:$0xff]
        %v4885 = vld [vmem:[#allocation19 + $0x1d0] sm:$0xff]
        %v4886 = vld [vmem:[#allocation19 + $0x1d8] sm:$0xff]
        %v4887 = vld [vmem:[#allocation19 + $0x1e0] sm:$0xff]
        %v4888 = vld [vmem:[#allocation19 + $0x1e8] sm:$0xff]
        %v4889 = vld [vmem:[#allocation19 + $0x1f0] sm:$0xff]
        %v4890 = vld [vmem:[#allocation19 + $0x1f8] sm:$0xff]
        %v4891 = vld [vmem:[#allocation19 + $0x200] sm:$0xff]
        %v4892 = vld [vmem:[#allocation19 + $0x208] sm:$0xff]
        %v4893 = vld [vmem:[#allocation19 + $0x210] sm:$0xff]
        %v4894 = vld [vmem:[#allocation19 + $0x218] sm:$0xff]
        %v4895 = vld [vmem:[#allocation19 + $0x220] sm:$0xff]
        %v4896 = vld [vmem:[#allocation19 + $0x228] sm:$0xff]
        %v4897 = vld [vmem:[#allocation19 + $0x230] sm:$0xff]
        %v4898 = vld [vmem:[#allocation19 + $0x238] sm:$0xff]
        %v4899 = vld [vmem:[#allocation19 + $0x240] sm:$0xff]
        %v4900 = vld [vmem:[#allocation19 + $0x248] sm:$0xff]
        %v4901 = vld [vmem:[#allocation19 + $0x250] sm:$0xff]
        %v4902 = vld [vmem:[#allocation19 + $0x258] sm:$0xff]
        %v4903 = vld [vmem:[#allocation19 + $0x260] sm:$0xff]
        %v4904 = vld [vmem:[#allocation19 + $0x268] sm:$0xff]
        %v4905 = vld [vmem:[#allocation19 + $0x270] sm:$0xff]
        %v4906 = vld [vmem:[#allocation19 + $0x278] sm:$0xff]
        %v4907 = vld [vmem:[#allocation19 + $0x280] sm:$0xff]
        %v4908 = vld [vmem:[#allocation19 + $0x288] sm:$0xff]
        %v4909 = vld [vmem:[#allocation19 + $0x290] sm:$0xff]
        %v4910 = vld [vmem:[#allocation19 + $0x298] sm:$0xff]
        %v4911 = vld [vmem:[#allocation19 + $0x2a0] sm:$0xff]
        %v4912 = vld [vmem:[#allocation19 + $0x2a8] sm:$0xff]
        %v4913 = vld [vmem:[#allocation19 + $0x2b0] sm:$0xff]
        %v4914 = vld [vmem:[#allocation19 + $0x2b8] sm:$0xff]
        %v4915 = vld [vmem:[#allocation19 + $0x2c0] sm:$0xff]
        %v4916 = vld [vmem:[#allocation19 + $0x2c8] sm:$0xff]
        %v4917 = vld [vmem:[#allocation19 + $0x2d0] sm:$0xff]
        %v4918 = vld [vmem:[#allocation19 + $0x2d8] sm:$0xff]
        %v4919 = vld [vmem:[#allocation19 + $0x2e0] sm:$0xff]
        %v4920 = vld [vmem:[#allocation19 + $0x2e8] sm:$0xff]
        %v4921 = vld [vmem:[#allocation19 + $0x2f0] sm:$0xff]
        %v4922 = vld [vmem:[#allocation19 + $0x2f8] sm:$0xff]
        %v4923 = vld [vmem:[#allocation19 + $0x300] sm:$0xff]
        %v4924 = vld [vmem:[#allocation19 + $0x308] sm:$0xff]
        %v4925 = vld [vmem:[#allocation19 + $0x310] sm:$0xff]
        %v4926 = vld [vmem:[#allocation19 + $0x318] sm:$0xff]
        %v4927 = vld [vmem:[#allocation19 + $0x320] sm:$0xff]
        %v4928 = vld [vmem:[#allocation19 + $0x328] sm:$0xff]
        %v4929 = vld [vmem:[#allocation19 + $0x330] sm:$0xff]
        %v4930 = vld [vmem:[#allocation19 + $0x338] sm:$0xff]
        %v4931 = vld [vmem:[#allocation19 + $0x340] sm:$0xff]
        %v4932 = vld [vmem:[#allocation19 + $0x348] sm:$0xff]
        %v4933 = vld [vmem:[#allocation19 + $0x350] sm:$0xff]
        %v4934 = vld [vmem:[#allocation19 + $0x358] sm:$0xff]
        %v4935 = vld [vmem:[#allocation19 + $0x360] sm:$0xff]
        %v4936 = vld [vmem:[#allocation19 + $0x368] sm:$0xff]
        %v4937 = vld [vmem:[#allocation19 + $0x370] sm:$0xff]
        %v4938 = vld [vmem:[#allocation19 + $0x378] sm:$0xff]
        %v4939 = vld [vmem:[#allocation19 + $0x380] sm:$0xff]
        %v4940 = vld [vmem:[#allocation19 + $0x388] sm:$0xff]
        %v4941 = vld [vmem:[#allocation19 + $0x390] sm:$0xff]
        %v4942 = vld [vmem:[#allocation19 + $0x398] sm:$0xff]
        %v4943 = vld [vmem:[#allocation19 + $0x3a0] sm:$0xff]
        %v4944 = vld [vmem:[#allocation19 + $0x3a8] sm:$0xff]
        %v4945 = vld [vmem:[#allocation19 + $0x3b0] sm:$0xff]
        %v4946 = vld [vmem:[#allocation19 + $0x3b8] sm:$0xff]
        %v4947 = vld [vmem:[#allocation19 + $0x3c0] sm:$0xff]
        %v4948 = vld [vmem:[#allocation19 + $0x3c8] sm:$0xff]
        %v4949 = vld [vmem:[#allocation19 + $0x3d0] sm:$0xff]
        %v4950 = vld [vmem:[#allocation19 + $0x3d8] sm:$0xff]
        %v4951 = vld [vmem:[#allocation19 + $0x3e0] sm:$0xff]
        %v4952 = vld [vmem:[#allocation19 + $0x3e8] sm:$0xff]
        %v4953 = vld [vmem:[#allocation19 + $0x3f0] sm:$0xff]
        %v4954 = vld [vmem:[#allocation19 + $0x3f8] sm:$0xff]
        %v4955 = vld [vmem:[#allocation19 + $0x400] sm:$0xff]
        %v4956 = vld [vmem:[#allocation19 + $0x408] sm:$0xff]
        %v4957 = vld [vmem:[#allocation19 + $0x410] sm:$0xff]
        %v4958 = vld [vmem:[#allocation19 + $0x418] sm:$0xff]
        %v4959 = vld [vmem:[#allocation19 + $0x420] sm:$0xff]
        %v4960 = vld [vmem:[#allocation19 + $0x428] sm:$0xff]
        %v4961 = vld [vmem:[#allocation19 + $0x430] sm:$0xff]
        %v4962 = vld [vmem:[#allocation19 + $0x438] sm:$0xff]
        %v4963 = vld [vmem:[#allocation19 + $0x440] sm:$0xff]
        %v4964 = vld [vmem:[#allocation19 + $0x448] sm:$0xff]
        %v4965 = vld [vmem:[#allocation19 + $0x450] sm:$0xff]
        %v4966 = vld [vmem:[#allocation19 + $0x458] sm:$0xff]
        %v4967 = vld [vmem:[#allocation19 + $0x460] sm:$0xff]
        %v4968 = vld [vmem:[#allocation19 + $0x468] sm:$0xff]
        %v4969 = vld [vmem:[#allocation19 + $0x470] sm:$0xff]
        %v4970 = vld [vmem:[#allocation19 + $0x478] sm:$0xff]
        %v4971 = vld [vmem:[#allocation19 + $0x480] sm:$0xff]
        %v4972 = vld [vmem:[#allocation19 + $0x488] sm:$0xff]
        %v4973 = vld [vmem:[#allocation19 + $0x490] sm:$0xff]
        %v4974 = vld [vmem:[#allocation19 + $0x498] sm:$0xff]
        %v4975 = vld [vmem:[#allocation19 + $0x4a0] sm:$0xff]
        %v4976 = vld [vmem:[#allocation19 + $0x4a8] sm:$0xff]
        %v4977 = vld [vmem:[#allocation19 + $0x4b0] sm:$0xff]
        %v4978 = vld [vmem:[#allocation19 + $0x4b8] sm:$0xff]
        %v4979 = vld [vmem:[#allocation19 + $0x4c0] sm:$0xff]
        %v4980 = vld [vmem:[#allocation19 + $0x4c8] sm:$0xff]
        %v4981 = vld [vmem:[#allocation19 + $0x4d0] sm:$0xff]
        %v4982 = vld [vmem:[#allocation19 + $0x4d8] sm:$0xff]
        %v4983 = vld [vmem:[#allocation19 + $0x4e0] sm:$0xff]
        %v4984 = vld [vmem:[#allocation19 + $0x4e8] sm:$0xff]
        %v4985 = vld [vmem:[#allocation19 + $0x4f0] sm:$0xff]
        %v4986 = vld [vmem:[#allocation19 + $0x4f8] sm:$0xff]
        %v4987 = vld [vmem:[#allocation19 + $0x500] sm:$0xff]
        %v4988 = vld [vmem:[#allocation19 + $0x508] sm:$0xff]
        %v4989 = vld [vmem:[#allocation19 + $0x510] sm:$0xff]
        %v4990 = vld [vmem:[#allocation19 + $0x518] sm:$0xff]
        %v4991 = vld [vmem:[#allocation19 + $0x520] sm:$0xff]
        %v4992 = vld [vmem:[#allocation19 + $0x528] sm:$0xff]
        %v4993 = vld [vmem:[#allocation19 + $0x530] sm:$0xff]
        %v4994 = vld [vmem:[#allocation19 + $0x538] sm:$0xff]
        %v4995 = vld [vmem:[#allocation19 + $0x540] sm:$0xff]
        %v4996 = vld [vmem:[#allocation19 + $0x548] sm:$0xff]
        %v4997 = vld [vmem:[#allocation19 + $0x550] sm:$0xff]
        %v4998 = vld [vmem:[#allocation19 + $0x558] sm:$0xff]
        %v4999 = vld [vmem:[#allocation19 + $0x560] sm:$0xff]
        %v5000 = vld [vmem:[#allocation19 + $0x568] sm:$0xff]
        %v5001 = vld [vmem:[#allocation19 + $0x570] sm:$0xff]
        %v5002 = vld [vmem:[#allocation19 + $0x578] sm:$0xff]
        %v5003 = vld [vmem:[#allocation19 + $0x580] sm:$0xff]
        %v5004 = vld [vmem:[#allocation19 + $0x588] sm:$0xff]
        %v5005 = vld [vmem:[#allocation19 + $0x590] sm:$0xff]
        %v5006 = vld [vmem:[#allocation19 + $0x598] sm:$0xff]
        %v5007 = vld [vmem:[#allocation19 + $0x5a0] sm:$0xff]
        %v5008 = vld [vmem:[#allocation19 + $0x5a8] sm:$0xff]
        %v5009 = vld [vmem:[#allocation19 + $0x5b0] sm:$0xff]
        %v5010 = vld [vmem:[#allocation19 + $0x5b8] sm:$0xff]
        %v5011 = vld [vmem:[#allocation19 + $0x5c0] sm:$0xff]
        %v5012 = vld [vmem:[#allocation19 + $0x5c8] sm:$0xff]
        %v5013 = vld [vmem:[#allocation19 + $0x5d0] sm:$0xff]
        %v5014 = vld [vmem:[#allocation19 + $0x5d8] sm:$0xff]
        %v5015 = vld [vmem:[#allocation19 + $0x5e0] sm:$0xff]
        %v5016 = vld [vmem:[#allocation19 + $0x5e8] sm:$0xff]
        %v5017 = vld [vmem:[#allocation19 + $0x5f0] sm:$0xff]
        %v5018 = vld [vmem:[#allocation19 + $0x5f8] sm:$0xff]
        %v5019 = vld [vmem:[#allocation19 + $0x600] sm:$0xff]
        %v5020 = vld [vmem:[#allocation19 + $0x608] sm:$0xff]
        %v5021 = vld [vmem:[#allocation19 + $0x610] sm:$0xff]
        %v5022 = vld [vmem:[#allocation19 + $0x618] sm:$0xff]
        %v5023 = vld [vmem:[#allocation19 + $0x620] sm:$0xff]
        %v5024 = vld [vmem:[#allocation19 + $0x628] sm:$0xff]
        %v5025 = vld [vmem:[#allocation19 + $0x630] sm:$0xff]
        %v5026 = vld [vmem:[#allocation19 + $0x638] sm:$0xff]
        %v5027 = vld [vmem:[#allocation19 + $0x640] sm:$0xff]
        %v5028 = vld [vmem:[#allocation19 + $0x648] sm:$0xff]
        %v5029 = vld [vmem:[#allocation19 + $0x650] sm:$0xff]
        %v5030 = vld [vmem:[#allocation19 + $0x658] sm:$0xff]
        %v5031 = vld [vmem:[#allocation19 + $0x660] sm:$0xff]
        %v5032 = vld [vmem:[#allocation19 + $0x668] sm:$0xff]
        %v5033 = vld [vmem:[#allocation19 + $0x670] sm:$0xff]
        %v5034 = vld [vmem:[#allocation19 + $0x678] sm:$0xff]
        %v5035 = vld [vmem:[#allocation19 + $0x680] sm:$0xff]
        %v5036 = vld [vmem:[#allocation19 + $0x688] sm:$0xff]
        %v5037 = vld [vmem:[#allocation19 + $0x690] sm:$0xff]
        %v5038 = vld [vmem:[#allocation19 + $0x698] sm:$0xff]
        %v5039 = vld [vmem:[#allocation19 + $0x6a0] sm:$0xff]
        %v5040 = vld [vmem:[#allocation19 + $0x6a8] sm:$0xff]
        %v5041 = vld [vmem:[#allocation19 + $0x6b0] sm:$0xff]
        %v5042 = vld [vmem:[#allocation19 + $0x6b8] sm:$0xff]
        %v5043 = vld [vmem:[#allocation19 + $0x6c0] sm:$0xff]
        %v5044 = vld [vmem:[#allocation19 + $0x6c8] sm:$0xff]
        %v5045 = vld [vmem:[#allocation19 + $0x6d0] sm:$0xff]
        %v5046 = vld [vmem:[#allocation19 + $0x6d8] sm:$0xff]
        %v5047 = vld [vmem:[#allocation19 + $0x6e0] sm:$0xff]
        %v5048 = vld [vmem:[#allocation19 + $0x6e8] sm:$0xff]
        %v5049 = vld [vmem:[#allocation19 + $0x6f0] sm:$0xff]
        %v5050 = vld [vmem:[#allocation19 + $0x6f8] sm:$0xff]
        %v5051 = vld [vmem:[#allocation19 + $0x700] sm:$0xff]
        %v5052 = vld [vmem:[#allocation19 + $0x708] sm:$0xff]
        %v5053 = vld [vmem:[#allocation19 + $0x710] sm:$0xff]
        %v5054 = vld [vmem:[#allocation19 + $0x718] sm:$0xff]
        %v5055 = vld [vmem:[#allocation19 + $0x720] sm:$0xff]
        %v5056 = vld [vmem:[#allocation19 + $0x728] sm:$0xff]
        %v5057 = vld [vmem:[#allocation19 + $0x730] sm:$0xff]
        %v5058 = vld [vmem:[#allocation19 + $0x738] sm:$0xff]
        %v5059 = vld [vmem:[#allocation19 + $0x740] sm:$0xff]
        %v5060 = vld [vmem:[#allocation19 + $0x748] sm:$0xff]
        %v5061 = vld [vmem:[#allocation19 + $0x750] sm:$0xff]
        %v5062 = vld [vmem:[#allocation19 + $0x758] sm:$0xff]
        %v5063 = vld [vmem:[#allocation19 + $0x760] sm:$0xff]
        %v5064 = vld [vmem:[#allocation19 + $0x768] sm:$0xff]
        %v5065 = vld [vmem:[#allocation19 + $0x770] sm:$0xff]
        %v5066 = vld [vmem:[#allocation19 + $0x778] sm:$0xff]
        %v5067 = vld [vmem:[#allocation19 + $0x780] sm:$0xff]
        %v5068 = vld [vmem:[#allocation19 + $0x788] sm:$0xff]
        %v5069 = vld [vmem:[#allocation19 + $0x790] sm:$0xff]
        %v5070 = vld [vmem:[#allocation19 + $0x798] sm:$0xff]
        %v5071 = vld [vmem:[#allocation19 + $0x7a0] sm:$0xff]
        %v5072 = vld [vmem:[#allocation19 + $0x7a8] sm:$0xff]
        %v5073 = vld [vmem:[#allocation19 + $0x7b0] sm:$0xff]
        %v5074 = vld [vmem:[#allocation19 + $0x7b8] sm:$0xff]
        %v5075 = vld [vmem:[#allocation19 + $0x7c0] sm:$0xff]
        %v5076 = vld [vmem:[#allocation19 + $0x7c8] sm:$0xff]
        %v5077 = vld [vmem:[#allocation19 + $0x7d0] sm:$0xff]
        %v5078 = vld [vmem:[#allocation19 + $0x7d8] sm:$0xff]
        %v5079 = vld [vmem:[#allocation19 + $0x7e0] sm:$0xff]
        %v5080 = vld [vmem:[#allocation19 + $0x7e8] sm:$0xff]
        %v5081 = vld [vmem:[#allocation19 + $0x7f0] sm:$0xff]
        %v5082 = vld [vmem:[#allocation19 + $0x7f8] sm:$0xff]
        %v5083 = vld [vmem:[%s14] sm:$0xff]
        %v5084 = vpack.c.bf16 %v4815, %v4811
        %v5085 = vpack.c.bf16 %v4816, %v4812
        %v5086 = vpack.c.bf16 %v4817, %v4813
        %v5087 = vpack.c.bf16 %v4818, %v4814
        %v5088 = vpack.c.bf16 %v4823, %v4819
        %v5089 = vpack.c.bf16 %v4824, %v4820
        %v5090 = vpack.c.bf16 %v4825, %v4821
        %v5091 = vpack.c.bf16 %v4826, %v4822
        %v5093 = vlaneseq
        %v5094 = vshrl.u32 %v5093, 7
        %v5095 = vsub.s32 0, %v5094
        %v5096 = vrot.slane %v5083, %v5095
        %v5097 = vlaneseq
        %v5098 = vshrl.u32 %v5097, 7
        %v5099 = vsub.s32 1, %v5098
        %v5100 = vrot.slane %v5083, %v5099
        %v5101 = vlaneseq
        %v5102 = vshrl.u32 %v5101, 7
        %v5103 = vsub.s32 2, %v5102
        %v5104 = vrot.slane %v5083, %v5103
        %v5105 = vlaneseq
        %v5106 = vshrl.u32 %v5105, 7
        %v5107 = vsub.s32 3, %v5106
        %v5108 = vrot.slane %v5083, %v5107
        %v5109 = vlaneseq
        %v5110 = vshrl.u32 %v5109, 7
        %v5111 = vsub.s32 4, %v5110
        %v5112 = vrot.slane %v5083, %v5111
        %v5113 = vlaneseq
        %v5114 = vshrl.u32 %v5113, 7
        %v5115 = vsub.s32 5, %v5114
        %v5116 = vrot.slane %v5083, %v5115
        %v5117 = vlaneseq
        %v5118 = vshrl.u32 %v5117, 7
        %v5119 = vsub.s32 6, %v5118
        %v5120 = vrot.slane %v5083, %v5119
        %v5121 = vlaneseq
        %v5122 = vshrl.u32 %v5121, 7
        %v5123 = vsub.s32 7, %v5122
        %v5124 = vrot.slane %v5083, %v5123
        %v5389 = vunpack.c.l.b16 %v4827
        %v5390 = vunpack.c.h.b16 %v4827
        %v5391 = vunpack.c.l.b16 %v4828
        %v5392 = vunpack.c.h.b16 %v4828
        %v5393 = vunpack.c.l.b16 %v4829
        %v5394 = vunpack.c.h.b16 %v4829
        %v5395 = vunpack.c.l.b16 %v4830
        %v5396 = vunpack.c.h.b16 %v4830
        %v5397 = vunpack.c.l.b16 %v4831
        %v5398 = vunpack.c.h.b16 %v4831
        %v5399 = vunpack.c.l.b16 %v4832
        %v5400 = vunpack.c.h.b16 %v4832
        %v5401 = vunpack.c.l.b16 %v4833
        %v5402 = vunpack.c.h.b16 %v4833
        %v5403 = vunpack.c.l.b16 %v4834
        %v5404 = vunpack.c.h.b16 %v4834
        %v5405 = vunpack.c.l.b16 %v4835
        %v5406 = vunpack.c.h.b16 %v4835
        %v5407 = vunpack.c.l.b16 %v4836
        %v5408 = vunpack.c.h.b16 %v4836
        %v5409 = vunpack.c.l.b16 %v4837
        %v5410 = vunpack.c.h.b16 %v4837
        %v5411 = vunpack.c.l.b16 %v4838
        %v5412 = vunpack.c.h.b16 %v4838
        %v5413 = vunpack.c.l.b16 %v4839
        %v5414 = vunpack.c.h.b16 %v4839
        %v5415 = vunpack.c.l.b16 %v4840
        %v5416 = vunpack.c.h.b16 %v4840
        %v5417 = vunpack.c.l.b16 %v4841
        %v5418 = vunpack.c.h.b16 %v4841
        %v5419 = vunpack.c.l.b16 %v4842
        %v5420 = vunpack.c.h.b16 %v4842
        %v5421 = vunpack.c.l.b16 %v4843
        %v5422 = vunpack.c.h.b16 %v4843
        %v5423 = vunpack.c.l.b16 %v4844
        %v5424 = vunpack.c.h.b16 %v4844
        %v5425 = vunpack.c.l.b16 %v4845
        %v5426 = vunpack.c.h.b16 %v4845
        %v5427 = vunpack.c.l.b16 %v4846
        %v5428 = vunpack.c.h.b16 %v4846
        %v5429 = vunpack.c.l.b16 %v4847
        %v5430 = vunpack.c.h.b16 %v4847
        %v5431 = vunpack.c.l.b16 %v4848
        %v5432 = vunpack.c.h.b16 %v4848
        %v5433 = vunpack.c.l.b16 %v4849
        %v5434 = vunpack.c.h.b16 %v4849
        %v5435 = vunpack.c.l.b16 %v4850
        %v5436 = vunpack.c.h.b16 %v4850
        %v5437 = vunpack.c.l.b16 %v4851
        %v5438 = vunpack.c.h.b16 %v4851
        %v5439 = vunpack.c.l.b16 %v4852
        %v5440 = vunpack.c.h.b16 %v4852
        %v5441 = vunpack.c.l.b16 %v4853
        %v5442 = vunpack.c.h.b16 %v4853
        %v5443 = vunpack.c.l.b16 %v4854
        %v5444 = vunpack.c.h.b16 %v4854
        %v5445 = vunpack.c.l.b16 %v4855
        %v5446 = vunpack.c.h.b16 %v4855
        %v5447 = vunpack.c.l.b16 %v4856
        %v5448 = vunpack.c.h.b16 %v4856
        %v5449 = vunpack.c.l.b16 %v4857
        %v5450 = vunpack.c.h.b16 %v4857
        %v5451 = vunpack.c.l.b16 %v4858
        %v5452 = vunpack.c.h.b16 %v4858
        %v5453 = vunpack.c.l.b16 %v4859
        %v5454 = vunpack.c.h.b16 %v4859
        %v5455 = vunpack.c.l.b16 %v4860
        %v5456 = vunpack.c.h.b16 %v4860
        %v5457 = vunpack.c.l.b16 %v4861
        %v5458 = vunpack.c.h.b16 %v4861
        %v5459 = vunpack.c.l.b16 %v4862
        %v5460 = vunpack.c.h.b16 %v4862
        %v5461 = vunpack.c.l.b16 %v4863
        %v5462 = vunpack.c.h.b16 %v4863
        %v5463 = vunpack.c.l.b16 %v4864
        %v5464 = vunpack.c.h.b16 %v4864
        %v5465 = vunpack.c.l.b16 %v4865
        %v5466 = vunpack.c.h.b16 %v4865
        %v5467 = vunpack.c.l.b16 %v4866
        %v5468 = vunpack.c.h.b16 %v4866
        %v5469 = vunpack.c.l.b16 %v4867
        %v5470 = vunpack.c.h.b16 %v4867
        %v5471 = vunpack.c.l.b16 %v4868
        %v5472 = vunpack.c.h.b16 %v4868
        %v5473 = vunpack.c.l.b16 %v4869
        %v5474 = vunpack.c.h.b16 %v4869
        %v5475 = vunpack.c.l.b16 %v4870
        %v5476 = vunpack.c.h.b16 %v4870
        %v5477 = vunpack.c.l.b16 %v4871
        %v5478 = vunpack.c.h.b16 %v4871
        %v5479 = vunpack.c.l.b16 %v4872
        %v5480 = vunpack.c.h.b16 %v4872
        %v5481 = vunpack.c.l.b16 %v4873
        %v5482 = vunpack.c.h.b16 %v4873
        %v5483 = vunpack.c.l.b16 %v4874
        %v5484 = vunpack.c.h.b16 %v4874
        %v5485 = vunpack.c.l.b16 %v4875
        %v5486 = vunpack.c.h.b16 %v4875
        %v5487 = vunpack.c.l.b16 %v4876
        %v5488 = vunpack.c.h.b16 %v4876
        %v5489 = vunpack.c.l.b16 %v4877
        %v5490 = vunpack.c.h.b16 %v4877
        %v5491 = vunpack.c.l.b16 %v4878
        %v5492 = vunpack.c.h.b16 %v4878
        %v5493 = vunpack.c.l.b16 %v4879
        %v5494 = vunpack.c.h.b16 %v4879
        %v5495 = vunpack.c.l.b16 %v4880
        %v5496 = vunpack.c.h.b16 %v4880
        %v5497 = vunpack.c.l.b16 %v4881
        %v5498 = vunpack.c.h.b16 %v4881
        %v5499 = vunpack.c.l.b16 %v4882
        %v5500 = vunpack.c.h.b16 %v4882
        %v5501 = vunpack.c.l.b16 %v4883
        %v5502 = vunpack.c.h.b16 %v4883
        %v5503 = vunpack.c.l.b16 %v4884
        %v5504 = vunpack.c.h.b16 %v4884
        %v5505 = vunpack.c.l.b16 %v4885
        %v5506 = vunpack.c.h.b16 %v4885
        %v5507 = vunpack.c.l.b16 %v4886
        %v5508 = vunpack.c.h.b16 %v4886
        %v5509 = vunpack.c.l.b16 %v4887
        %v5510 = vunpack.c.h.b16 %v4887
        %v5511 = vunpack.c.l.b16 %v4888
        %v5512 = vunpack.c.h.b16 %v4888
        %v5513 = vunpack.c.l.b16 %v4889
        %v5514 = vunpack.c.h.b16 %v4889
        %v5515 = vunpack.c.l.b16 %v4890
        %v5516 = vunpack.c.h.b16 %v4890
        %v5517 = vunpack.c.l.b16 %v4891
        %v5518 = vunpack.c.h.b16 %v4891
        %v5519 = vunpack.c.l.b16 %v4892
        %v5520 = vunpack.c.h.b16 %v4892
        %v5521 = vunpack.c.l.b16 %v4893
        %v5522 = vunpack.c.h.b16 %v4893
        %v5523 = vunpack.c.l.b16 %v4894
        %v5524 = vunpack.c.h.b16 %v4894
        %v5525 = vunpack.c.l.b16 %v4895
        %v5526 = vunpack.c.h.b16 %v4895
        %v5527 = vunpack.c.l.b16 %v4896
        %v5528 = vunpack.c.h.b16 %v4896
        %v5529 = vunpack.c.l.b16 %v4897
        %v5530 = vunpack.c.h.b16 %v4897
        %v5531 = vunpack.c.l.b16 %v4898
        %v5532 = vunpack.c.h.b16 %v4898
        %v5533 = vunpack.c.l.b16 %v4899
        %v5534 = vunpack.c.h.b16 %v4899
        %v5535 = vunpack.c.l.b16 %v4900
        %v5536 = vunpack.c.h.b16 %v4900
        %v5537 = vunpack.c.l.b16 %v4901
        %v5538 = vunpack.c.h.b16 %v4901
        %v5539 = vunpack.c.l.b16 %v4902
        %v5540 = vunpack.c.h.b16 %v4902
        %v5541 = vunpack.c.l.b16 %v4903
        %v5542 = vunpack.c.h.b16 %v4903
        %v5543 = vunpack.c.l.b16 %v4904
        %v5544 = vunpack.c.h.b16 %v4904
        %v5545 = vunpack.c.l.b16 %v4905
        %v5546 = vunpack.c.h.b16 %v4905
        %v5547 = vunpack.c.l.b16 %v4906
        %v5548 = vunpack.c.h.b16 %v4906
        %v5549 = vunpack.c.l.b16 %v4907
        %v5550 = vunpack.c.h.b16 %v4907
        %v5551 = vunpack.c.l.b16 %v4908
        %v5552 = vunpack.c.h.b16 %v4908
        %v5553 = vunpack.c.l.b16 %v4909
        %v5554 = vunpack.c.h.b16 %v4909
        %v5555 = vunpack.c.l.b16 %v4910
        %v5556 = vunpack.c.h.b16 %v4910
        %v5557 = vunpack.c.l.b16 %v4911
        %v5558 = vunpack.c.h.b16 %v4911
        %v5559 = vunpack.c.l.b16 %v4912
        %v5560 = vunpack.c.h.b16 %v4912
        %v5561 = vunpack.c.l.b16 %v4913
        %v5562 = vunpack.c.h.b16 %v4913
        %v5563 = vunpack.c.l.b16 %v4914
        %v5564 = vunpack.c.h.b16 %v4914
        %v5565 = vunpack.c.l.b16 %v4915
        %v5566 = vunpack.c.h.b16 %v4915
        %v5567 = vunpack.c.l.b16 %v4916
        %v5568 = vunpack.c.h.b16 %v4916
        %v5569 = vunpack.c.l.b16 %v4917
        %v5570 = vunpack.c.h.b16 %v4917
        %v5571 = vunpack.c.l.b16 %v4918
        %v5572 = vunpack.c.h.b16 %v4918
        %v5573 = vunpack.c.l.b16 %v4919
        %v5574 = vunpack.c.h.b16 %v4919
        %v5575 = vunpack.c.l.b16 %v4920
        %v5576 = vunpack.c.h.b16 %v4920
        %v5577 = vunpack.c.l.b16 %v4921
        %v5578 = vunpack.c.h.b16 %v4921
        %v5579 = vunpack.c.l.b16 %v4922
        %v5580 = vunpack.c.h.b16 %v4922
        %v5581 = vunpack.c.l.b16 %v4923
        %v5582 = vunpack.c.h.b16 %v4923
        %v5583 = vunpack.c.l.b16 %v4924
        %v5584 = vunpack.c.h.b16 %v4924
        %v5585 = vunpack.c.l.b16 %v4925
        %v5586 = vunpack.c.h.b16 %v4925
        %v5587 = vunpack.c.l.b16 %v4926
        %v5588 = vunpack.c.h.b16 %v4926
        %v5589 = vunpack.c.l.b16 %v4927
        %v5590 = vunpack.c.h.b16 %v4927
        %v5591 = vunpack.c.l.b16 %v4928
        %v5592 = vunpack.c.h.b16 %v4928
        %v5593 = vunpack.c.l.b16 %v4929
        %v5594 = vunpack.c.h.b16 %v4929
        %v5595 = vunpack.c.l.b16 %v4930
        %v5596 = vunpack.c.h.b16 %v4930
        %v5597 = vunpack.c.l.b16 %v4931
        %v5598 = vunpack.c.h.b16 %v4931
        %v5599 = vunpack.c.l.b16 %v4932
        %v5600 = vunpack.c.h.b16 %v4932
        %v5601 = vunpack.c.l.b16 %v4933
        %v5602 = vunpack.c.h.b16 %v4933
        %v5603 = vunpack.c.l.b16 %v4934
        %v5604 = vunpack.c.h.b16 %v4934
        %v5605 = vunpack.c.l.b16 %v4935
        %v5606 = vunpack.c.h.b16 %v4935
        %v5607 = vunpack.c.l.b16 %v4936
        %v5608 = vunpack.c.h.b16 %v4936
        %v5609 = vunpack.c.l.b16 %v4937
        %v5610 = vunpack.c.h.b16 %v4937
        %v5611 = vunpack.c.l.b16 %v4938
        %v5612 = vunpack.c.h.b16 %v4938
        %v5613 = vunpack.c.l.b16 %v4939
        %v5614 = vunpack.c.h.b16 %v4939
        %v5615 = vunpack.c.l.b16 %v4940
        %v5616 = vunpack.c.h.b16 %v4940
        %v5617 = vunpack.c.l.b16 %v4941
        %v5618 = vunpack.c.h.b16 %v4941
        %v5619 = vunpack.c.l.b16 %v4942
        %v5620 = vunpack.c.h.b16 %v4942
        %v5621 = vunpack.c.l.b16 %v4943
        %v5622 = vunpack.c.h.b16 %v4943
        %v5623 = vunpack.c.l.b16 %v4944
        %v5624 = vunpack.c.h.b16 %v4944
        %v5625 = vunpack.c.l.b16 %v4945
        %v5626 = vunpack.c.h.b16 %v4945
        %v5627 = vunpack.c.l.b16 %v4946
        %v5628 = vunpack.c.h.b16 %v4946
        %v5629 = vunpack.c.l.b16 %v4947
        %v5630 = vunpack.c.h.b16 %v4947
        %v5631 = vunpack.c.l.b16 %v4948
        %v5632 = vunpack.c.h.b16 %v4948
        %v5633 = vunpack.c.l.b16 %v4949
        %v5634 = vunpack.c.h.b16 %v4949
        %v5635 = vunpack.c.l.b16 %v4950
        %v5636 = vunpack.c.h.b16 %v4950
        %v5637 = vunpack.c.l.b16 %v4951
        %v5638 = vunpack.c.h.b16 %v4951
        %v5639 = vunpack.c.l.b16 %v4952
        %v5640 = vunpack.c.h.b16 %v4952
        %v5641 = vunpack.c.l.b16 %v4953
        %v5642 = vunpack.c.h.b16 %v4953
        %v5643 = vunpack.c.l.b16 %v4954
        %v5644 = vunpack.c.h.b16 %v4954
        %v5645 = vunpack.c.l.b16 %v4955
        %v5646 = vunpack.c.h.b16 %v4955
        %v5647 = vunpack.c.l.b16 %v4956
        %v5648 = vunpack.c.h.b16 %v4956
        %v5649 = vunpack.c.l.b16 %v4957
        %v5650 = vunpack.c.h.b16 %v4957
        %v5651 = vunpack.c.l.b16 %v4958
        %v5652 = vunpack.c.h.b16 %v4958
        %v5653 = vunpack.c.l.b16 %v4959
        %v5654 = vunpack.c.h.b16 %v4959
        %v5655 = vunpack.c.l.b16 %v4960
        %v5656 = vunpack.c.h.b16 %v4960
        %v5657 = vunpack.c.l.b16 %v4961
        %v5658 = vunpack.c.h.b16 %v4961
        %v5659 = vunpack.c.l.b16 %v4962
        %v5660 = vunpack.c.h.b16 %v4962
        %v5661 = vunpack.c.l.b16 %v4963
        %v5662 = vunpack.c.h.b16 %v4963
        %v5663 = vunpack.c.l.b16 %v4964
        %v5664 = vunpack.c.h.b16 %v4964
        %v5665 = vunpack.c.l.b16 %v4965
        %v5666 = vunpack.c.h.b16 %v4965
        %v5667 = vunpack.c.l.b16 %v4966
        %v5668 = vunpack.c.h.b16 %v4966
        %v5669 = vunpack.c.l.b16 %v4967
        %v5670 = vunpack.c.h.b16 %v4967
        %v5671 = vunpack.c.l.b16 %v4968
        %v5672 = vunpack.c.h.b16 %v4968
        %v5673 = vunpack.c.l.b16 %v4969
        %v5674 = vunpack.c.h.b16 %v4969
        %v5675 = vunpack.c.l.b16 %v4970
        %v5676 = vunpack.c.h.b16 %v4970
        %v5677 = vunpack.c.l.b16 %v4971
        %v5678 = vunpack.c.h.b16 %v4971
        %v5679 = vunpack.c.l.b16 %v4972
        %v5680 = vunpack.c.h.b16 %v4972
        %v5681 = vunpack.c.l.b16 %v4973
        %v5682 = vunpack.c.h.b16 %v4973
        %v5683 = vunpack.c.l.b16 %v4974
        %v5684 = vunpack.c.h.b16 %v4974
        %v5685 = vunpack.c.l.b16 %v4975
        %v5686 = vunpack.c.h.b16 %v4975
        %v5687 = vunpack.c.l.b16 %v4976
        %v5688 = vunpack.c.h.b16 %v4976
        %v5689 = vunpack.c.l.b16 %v4977
        %v5690 = vunpack.c.h.b16 %v4977
        %v5691 = vunpack.c.l.b16 %v4978
        %v5692 = vunpack.c.h.b16 %v4978
        %v5693 = vunpack.c.l.b16 %v4979
        %v5694 = vunpack.c.h.b16 %v4979
        %v5695 = vunpack.c.l.b16 %v4980
        %v5696 = vunpack.c.h.b16 %v4980
        %v5697 = vunpack.c.l.b16 %v4981
        %v5698 = vunpack.c.h.b16 %v4981
        %v5699 = vunpack.c.l.b16 %v4982
        %v5700 = vunpack.c.h.b16 %v4982
        %v5701 = vunpack.c.l.b16 %v4983
        %v5702 = vunpack.c.h.b16 %v4983
        %v5703 = vunpack.c.l.b16 %v4984
        %v5704 = vunpack.c.h.b16 %v4984
        %v5705 = vunpack.c.l.b16 %v4985
        %v5706 = vunpack.c.h.b16 %v4985
        %v5707 = vunpack.c.l.b16 %v4986
        %v5708 = vunpack.c.h.b16 %v4986
        %v5709 = vunpack.c.l.b16 %v4987
        %v5710 = vunpack.c.h.b16 %v4987
        %v5711 = vunpack.c.l.b16 %v4988
        %v5712 = vunpack.c.h.b16 %v4988
        %v5713 = vunpack.c.l.b16 %v4989
        %v5714 = vunpack.c.h.b16 %v4989
        %v5715 = vunpack.c.l.b16 %v4990
        %v5716 = vunpack.c.h.b16 %v4990
        %v5717 = vunpack.c.l.b16 %v4991
        %v5718 = vunpack.c.h.b16 %v4991
        %v5719 = vunpack.c.l.b16 %v4992
        %v5720 = vunpack.c.h.b16 %v4992
        %v5721 = vunpack.c.l.b16 %v4993
        %v5722 = vunpack.c.h.b16 %v4993
        %v5723 = vunpack.c.l.b16 %v4994
        %v5724 = vunpack.c.h.b16 %v4994
        %v5725 = vunpack.c.l.b16 %v4995
        %v5726 = vunpack.c.h.b16 %v4995
        %v5727 = vunpack.c.l.b16 %v4996
        %v5728 = vunpack.c.h.b16 %v4996
        %v5729 = vunpack.c.l.b16 %v4997
        %v5730 = vunpack.c.h.b16 %v4997
        %v5731 = vunpack.c.l.b16 %v4998
        %v5732 = vunpack.c.h.b16 %v4998
        %v5733 = vunpack.c.l.b16 %v4999
        %v5734 = vunpack.c.h.b16 %v4999
        %v5735 = vunpack.c.l.b16 %v5000
        %v5736 = vunpack.c.h.b16 %v5000
        %v5737 = vunpack.c.l.b16 %v5001
        %v5738 = vunpack.c.h.b16 %v5001
        %v5739 = vunpack.c.l.b16 %v5002
        %v5740 = vunpack.c.h.b16 %v5002
        %v5741 = vunpack.c.l.b16 %v5003
        %v5742 = vunpack.c.h.b16 %v5003
        %v5743 = vunpack.c.l.b16 %v5004
        %v5744 = vunpack.c.h.b16 %v5004
        %v5745 = vunpack.c.l.b16 %v5005
        %v5746 = vunpack.c.h.b16 %v5005
        %v5747 = vunpack.c.l.b16 %v5006
        %v5748 = vunpack.c.h.b16 %v5006
        %v5749 = vunpack.c.l.b16 %v5007
        %v5750 = vunpack.c.h.b16 %v5007
        %v5751 = vunpack.c.l.b16 %v5008
        %v5752 = vunpack.c.h.b16 %v5008
        %v5753 = vunpack.c.l.b16 %v5009
        %v5754 = vunpack.c.h.b16 %v5009
        %v5755 = vunpack.c.l.b16 %v5010
        %v5756 = vunpack.c.h.b16 %v5010
        %v5757 = vunpack.c.l.b16 %v5011
        %v5758 = vunpack.c.h.b16 %v5011
        %v5759 = vunpack.c.l.b16 %v5012
        %v5760 = vunpack.c.h.b16 %v5012
        %v5761 = vunpack.c.l.b16 %v5013
        %v5762 = vunpack.c.h.b16 %v5013
        %v5763 = vunpack.c.l.b16 %v5014
        %v5764 = vunpack.c.h.b16 %v5014
        %v5765 = vunpack.c.l.b16 %v5015
        %v5766 = vunpack.c.h.b16 %v5015
        %v5767 = vunpack.c.l.b16 %v5016
        %v5768 = vunpack.c.h.b16 %v5016
        %v5769 = vunpack.c.l.b16 %v5017
        %v5770 = vunpack.c.h.b16 %v5017
        %v5771 = vunpack.c.l.b16 %v5018
        %v5772 = vunpack.c.h.b16 %v5018
        %v5773 = vunpack.c.l.b16 %v5019
        %v5774 = vunpack.c.h.b16 %v5019
        %v5775 = vunpack.c.l.b16 %v5020
        %v5776 = vunpack.c.h.b16 %v5020
        %v5777 = vunpack.c.l.b16 %v5021
        %v5778 = vunpack.c.h.b16 %v5021
        %v5779 = vunpack.c.l.b16 %v5022
        %v5780 = vunpack.c.h.b16 %v5022
        %v5781 = vunpack.c.l.b16 %v5023
        %v5782 = vunpack.c.h.b16 %v5023
        %v5783 = vunpack.c.l.b16 %v5024
        %v5784 = vunpack.c.h.b16 %v5024
        %v5785 = vunpack.c.l.b16 %v5025
        %v5786 = vunpack.c.h.b16 %v5025
        %v5787 = vunpack.c.l.b16 %v5026
        %v5788 = vunpack.c.h.b16 %v5026
        %v5789 = vunpack.c.l.b16 %v5027
        %v5790 = vunpack.c.h.b16 %v5027
        %v5791 = vunpack.c.l.b16 %v5028
        %v5792 = vunpack.c.h.b16 %v5028
        %v5793 = vunpack.c.l.b16 %v5029
        %v5794 = vunpack.c.h.b16 %v5029
        %v5795 = vunpack.c.l.b16 %v5030
        %v5796 = vunpack.c.h.b16 %v5030
        %v5797 = vunpack.c.l.b16 %v5031
        %v5798 = vunpack.c.h.b16 %v5031
        %v5799 = vunpack.c.l.b16 %v5032
        %v5800 = vunpack.c.h.b16 %v5032
        %v5801 = vunpack.c.l.b16 %v5033
        %v5802 = vunpack.c.h.b16 %v5033
        %v5803 = vunpack.c.l.b16 %v5034
        %v5804 = vunpack.c.h.b16 %v5034
        %v5805 = vunpack.c.l.b16 %v5035
        %v5806 = vunpack.c.h.b16 %v5035
        %v5807 = vunpack.c.l.b16 %v5036
        %v5808 = vunpack.c.h.b16 %v5036
        %v5809 = vunpack.c.l.b16 %v5037
        %v5810 = vunpack.c.h.b16 %v5037
        %v5811 = vunpack.c.l.b16 %v5038
        %v5812 = vunpack.c.h.b16 %v5038
        %v5813 = vunpack.c.l.b16 %v5039
        %v5814 = vunpack.c.h.b16 %v5039
        %v5815 = vunpack.c.l.b16 %v5040
        %v5816 = vunpack.c.h.b16 %v5040
        %v5817 = vunpack.c.l.b16 %v5041
        %v5818 = vunpack.c.h.b16 %v5041
        %v5819 = vunpack.c.l.b16 %v5042
        %v5820 = vunpack.c.h.b16 %v5042
        %v5821 = vunpack.c.l.b16 %v5043
        %v5822 = vunpack.c.h.b16 %v5043
        %v5823 = vunpack.c.l.b16 %v5044
        %v5824 = vunpack.c.h.b16 %v5044
        %v5825 = vunpack.c.l.b16 %v5045
        %v5826 = vunpack.c.h.b16 %v5045
        %v5827 = vunpack.c.l.b16 %v5046
        %v5828 = vunpack.c.h.b16 %v5046
        %v5829 = vunpack.c.l.b16 %v5047
        %v5830 = vunpack.c.h.b16 %v5047
        %v5831 = vunpack.c.l.b16 %v5048
        %v5832 = vunpack.c.h.b16 %v5048
        %v5833 = vunpack.c.l.b16 %v5049
        %v5834 = vunpack.c.h.b16 %v5049
        %v5835 = vunpack.c.l.b16 %v5050
        %v5836 = vunpack.c.h.b16 %v5050
        %v5837 = vunpack.c.l.b16 %v5051
        %v5838 = vunpack.c.h.b16 %v5051
        %v5839 = vunpack.c.l.b16 %v5052
        %v5840 = vunpack.c.h.b16 %v5052
        %v5841 = vunpack.c.l.b16 %v5053
        %v5842 = vunpack.c.h.b16 %v5053
        %v5843 = vunpack.c.l.b16 %v5054
        %v5844 = vunpack.c.h.b16 %v5054
        %v5845 = vunpack.c.l.b16 %v5055
        %v5846 = vunpack.c.h.b16 %v5055
        %v5847 = vunpack.c.l.b16 %v5056
        %v5848 = vunpack.c.h.b16 %v5056
        %v5849 = vunpack.c.l.b16 %v5057
        %v5850 = vunpack.c.h.b16 %v5057
        %v5851 = vunpack.c.l.b16 %v5058
        %v5852 = vunpack.c.h.b16 %v5058
        %v5853 = vunpack.c.l.b16 %v5059
        %v5854 = vunpack.c.h.b16 %v5059
        %v5855 = vunpack.c.l.b16 %v5060
        %v5856 = vunpack.c.h.b16 %v5060
        %v5857 = vunpack.c.l.b16 %v5061
        %v5858 = vunpack.c.h.b16 %v5061
        %v5859 = vunpack.c.l.b16 %v5062
        %v5860 = vunpack.c.h.b16 %v5062
        %v5861 = vunpack.c.l.b16 %v5063
        %v5862 = vunpack.c.h.b16 %v5063
        %v5863 = vunpack.c.l.b16 %v5064
        %v5864 = vunpack.c.h.b16 %v5064
        %v5865 = vunpack.c.l.b16 %v5065
        %v5866 = vunpack.c.h.b16 %v5065
        %v5867 = vunpack.c.l.b16 %v5066
        %v5868 = vunpack.c.h.b16 %v5066
        %v5869 = vunpack.c.l.b16 %v5067
        %v5870 = vunpack.c.h.b16 %v5067
        %v5871 = vunpack.c.l.b16 %v5068
        %v5872 = vunpack.c.h.b16 %v5068
        %v5873 = vunpack.c.l.b16 %v5069
        %v5874 = vunpack.c.h.b16 %v5069
        %v5875 = vunpack.c.l.b16 %v5070
        %v5876 = vunpack.c.h.b16 %v5070
        %v5877 = vunpack.c.l.b16 %v5071
        %v5878 = vunpack.c.h.b16 %v5071
        %v5879 = vunpack.c.l.b16 %v5072
        %v5880 = vunpack.c.h.b16 %v5072
        %v5881 = vunpack.c.l.b16 %v5073
        %v5882 = vunpack.c.h.b16 %v5073
        %v5883 = vunpack.c.l.b16 %v5074
        %v5884 = vunpack.c.h.b16 %v5074
        %v5885 = vunpack.c.l.b16 %v5075
        %v5886 = vunpack.c.h.b16 %v5075
        %v5887 = vunpack.c.l.b16 %v5076
        %v5888 = vunpack.c.h.b16 %v5076
        %v5889 = vunpack.c.l.b16 %v5077
        %v5890 = vunpack.c.h.b16 %v5077
        %v5891 = vunpack.c.l.b16 %v5078
        %v5892 = vunpack.c.h.b16 %v5078
        %v5893 = vunpack.c.l.b16 %v5079
        %v5894 = vunpack.c.h.b16 %v5079
        %v5895 = vunpack.c.l.b16 %v5080
        %v5896 = vunpack.c.h.b16 %v5080
        %v5897 = vunpack.c.l.b16 %v5081
        %v5898 = vunpack.c.h.b16 %v5081
        %v5899 = vunpack.c.l.b16 %v5082
        %v5900 = vunpack.c.h.b16 %v5082
        %v5901 = vpack.c.b16 %v5397, %v5389
        %v5902 = vpack.c.b16 %v5398, %v5390
        %v5903 = vpack.c.b16 %v5399, %v5391
        %v5904 = vpack.c.b16 %v5400, %v5392
        %v5905 = vpack.c.b16 %v5401, %v5393
        %v5906 = vpack.c.b16 %v5402, %v5394
        %v5907 = vpack.c.b16 %v5403, %v5395
        %v5908 = vpack.c.b16 %v5404, %v5396
        %v5909 = vpack.c.b16 %v5413, %v5405
        %v5910 = vpack.c.b16 %v5414, %v5406
        %v5911 = vpack.c.b16 %v5415, %v5407
        %v5912 = vpack.c.b16 %v5416, %v5408
        %v5913 = vpack.c.b16 %v5417, %v5409
        %v5914 = vpack.c.b16 %v5418, %v5410
        %v5915 = vpack.c.b16 %v5419, %v5411
        %v5916 = vpack.c.b16 %v5420, %v5412
        %v5917 = vpack.c.b16 %v5429, %v5421
        %v5918 = vpack.c.b16 %v5430, %v5422
        %v5919 = vpack.c.b16 %v5431, %v5423
        %v5920 = vpack.c.b16 %v5432, %v5424
        %v5921 = vpack.c.b16 %v5433, %v5425
        %v5922 = vpack.c.b16 %v5434, %v5426
        %v5923 = vpack.c.b16 %v5435, %v5427
        %v5924 = vpack.c.b16 %v5436, %v5428
        %v5925 = vpack.c.b16 %v5445, %v5437
        %v5926 = vpack.c.b16 %v5446, %v5438
        %v5927 = vpack.c.b16 %v5447, %v5439
        %v5928 = vpack.c.b16 %v5448, %v5440
        %v5929 = vpack.c.b16 %v5449, %v5441
        %v5930 = vpack.c.b16 %v5450, %v5442
        %v5931 = vpack.c.b16 %v5451, %v5443
        %v5932 = vpack.c.b16 %v5452, %v5444
        %v5933 = vpack.c.b16 %v5461, %v5453
        %v5934 = vpack.c.b16 %v5462, %v5454
        %v5935 = vpack.c.b16 %v5463, %v5455
        %v5936 = vpack.c.b16 %v5464, %v5456
        %v5937 = vpack.c.b16 %v5465, %v5457
        %v5938 = vpack.c.b16 %v5466, %v5458
        %v5939 = vpack.c.b16 %v5467, %v5459
        %v5940 = vpack.c.b16 %v5468, %v5460
        %v5941 = vpack.c.b16 %v5477, %v5469
        %v5942 = vpack.c.b16 %v5478, %v5470
        %v5943 = vpack.c.b16 %v5479, %v5471
        %v5944 = vpack.c.b16 %v5480, %v5472
        %v5945 = vpack.c.b16 %v5481, %v5473
        %v5946 = vpack.c.b16 %v5482, %v5474
        %v5947 = vpack.c.b16 %v5483, %v5475
        %v5948 = vpack.c.b16 %v5484, %v5476
        %v5949 = vpack.c.b16 %v5493, %v5485
        %v5950 = vpack.c.b16 %v5494, %v5486
        %v5951 = vpack.c.b16 %v5495, %v5487
        %v5952 = vpack.c.b16 %v5496, %v5488
        %v5953 = vpack.c.b16 %v5497, %v5489
        %v5954 = vpack.c.b16 %v5498, %v5490
        %v5955 = vpack.c.b16 %v5499, %v5491
        %v5956 = vpack.c.b16 %v5500, %v5492
        %v5957 = vpack.c.b16 %v5509, %v5501
        %v5958 = vpack.c.b16 %v5510, %v5502
        %v5959 = vpack.c.b16 %v5511, %v5503
        %v5960 = vpack.c.b16 %v5512, %v5504
        %v5961 = vpack.c.b16 %v5513, %v5505
        %v5962 = vpack.c.b16 %v5514, %v5506
        %v5963 = vpack.c.b16 %v5515, %v5507
        %v5964 = vpack.c.b16 %v5516, %v5508
        %v5965 = vpack.c.b16 %v5525, %v5517
        %v5966 = vpack.c.b16 %v5526, %v5518
        %v5967 = vpack.c.b16 %v5527, %v5519
        %v5968 = vpack.c.b16 %v5528, %v5520
        %v5969 = vpack.c.b16 %v5529, %v5521
        %v5970 = vpack.c.b16 %v5530, %v5522
        %v5971 = vpack.c.b16 %v5531, %v5523
        %v5972 = vpack.c.b16 %v5532, %v5524
        %v5973 = vpack.c.b16 %v5541, %v5533
        %v5974 = vpack.c.b16 %v5542, %v5534
        %v5975 = vpack.c.b16 %v5543, %v5535
        %v5976 = vpack.c.b16 %v5544, %v5536
        %v5977 = vpack.c.b16 %v5545, %v5537
        %v5978 = vpack.c.b16 %v5546, %v5538
        %v5979 = vpack.c.b16 %v5547, %v5539
        %v5980 = vpack.c.b16 %v5548, %v5540
        %v5981 = vpack.c.b16 %v5557, %v5549
        %v5982 = vpack.c.b16 %v5558, %v5550
        %v5983 = vpack.c.b16 %v5559, %v5551
        %v5984 = vpack.c.b16 %v5560, %v5552
        %v5985 = vpack.c.b16 %v5561, %v5553
        %v5986 = vpack.c.b16 %v5562, %v5554
        %v5987 = vpack.c.b16 %v5563, %v5555
        %v5988 = vpack.c.b16 %v5564, %v5556
        %v5989 = vpack.c.b16 %v5573, %v5565
        %v5990 = vpack.c.b16 %v5574, %v5566
        %v5991 = vpack.c.b16 %v5575, %v5567
        %v5992 = vpack.c.b16 %v5576, %v5568
        %v5993 = vpack.c.b16 %v5577, %v5569
        %v5994 = vpack.c.b16 %v5578, %v5570
        %v5995 = vpack.c.b16 %v5579, %v5571
        %v5996 = vpack.c.b16 %v5580, %v5572
        %v5997 = vpack.c.b16 %v5589, %v5581
        %v5998 = vpack.c.b16 %v5590, %v5582
        %v5999 = vpack.c.b16 %v5591, %v5583
        %v6000 = vpack.c.b16 %v5592, %v5584
        %v6001 = vpack.c.b16 %v5593, %v5585
        %v6002 = vpack.c.b16 %v5594, %v5586
        %v6003 = vpack.c.b16 %v5595, %v5587
        %v6004 = vpack.c.b16 %v5596, %v5588
        %v6005 = vpack.c.b16 %v5605, %v5597
        %v6006 = vpack.c.b16 %v5606, %v5598
        %v6007 = vpack.c.b16 %v5607, %v5599
        %v6008 = vpack.c.b16 %v5608, %v5600
        %v6009 = vpack.c.b16 %v5609, %v5601
        %v6010 = vpack.c.b16 %v5610, %v5602
        %v6011 = vpack.c.b16 %v5611, %v5603
        %v6012 = vpack.c.b16 %v5612, %v5604
        %v6013 = vpack.c.b16 %v5621, %v5613
        %v6014 = vpack.c.b16 %v5622, %v5614
        %v6015 = vpack.c.b16 %v5623, %v5615
        %v6016 = vpack.c.b16 %v5624, %v5616
        %v6017 = vpack.c.b16 %v5625, %v5617
        %v6018 = vpack.c.b16 %v5626, %v5618
        %v6019 = vpack.c.b16 %v5627, %v5619
        %v6020 = vpack.c.b16 %v5628, %v5620
        %v6021 = vpack.c.b16 %v5637, %v5629
        %v6022 = vpack.c.b16 %v5638, %v5630
        %v6023 = vpack.c.b16 %v5639, %v5631
        %v6024 = vpack.c.b16 %v5640, %v5632
        %v6025 = vpack.c.b16 %v5641, %v5633
        %v6026 = vpack.c.b16 %v5642, %v5634
        %v6027 = vpack.c.b16 %v5643, %v5635
        %v6028 = vpack.c.b16 %v5644, %v5636
        %v6029 = vpack.c.b16 %v5653, %v5645
        %v6030 = vpack.c.b16 %v5654, %v5646
        %v6031 = vpack.c.b16 %v5655, %v5647
        %v6032 = vpack.c.b16 %v5656, %v5648
        %v6033 = vpack.c.b16 %v5657, %v5649
        %v6034 = vpack.c.b16 %v5658, %v5650
        %v6035 = vpack.c.b16 %v5659, %v5651
        %v6036 = vpack.c.b16 %v5660, %v5652
        %v6037 = vpack.c.b16 %v5669, %v5661
        %v6038 = vpack.c.b16 %v5670, %v5662
        %v6039 = vpack.c.b16 %v5671, %v5663
        %v6040 = vpack.c.b16 %v5672, %v5664
        %v6041 = vpack.c.b16 %v5673, %v5665
        %v6042 = vpack.c.b16 %v5674, %v5666
        %v6043 = vpack.c.b16 %v5675, %v5667
        %v6044 = vpack.c.b16 %v5676, %v5668
        %v6045 = vpack.c.b16 %v5685, %v5677
        %v6046 = vpack.c.b16 %v5686, %v5678
        %v6047 = vpack.c.b16 %v5687, %v5679
        %v6048 = vpack.c.b16 %v5688, %v5680
        %v6049 = vpack.c.b16 %v5689, %v5681
        %v6050 = vpack.c.b16 %v5690, %v5682
        %v6051 = vpack.c.b16 %v5691, %v5683
        %v6052 = vpack.c.b16 %v5692, %v5684
        %v6053 = vpack.c.b16 %v5701, %v5693
        %v6054 = vpack.c.b16 %v5702, %v5694
        %v6055 = vpack.c.b16 %v5703, %v5695
        %v6056 = vpack.c.b16 %v5704, %v5696
        %v6057 = vpack.c.b16 %v5705, %v5697
        %v6058 = vpack.c.b16 %v5706, %v5698
        %v6059 = vpack.c.b16 %v5707, %v5699
        %v6060 = vpack.c.b16 %v5708, %v5700
        %v6061 = vpack.c.b16 %v5717, %v5709
        %v6062 = vpack.c.b16 %v5718, %v5710
        %v6063 = vpack.c.b16 %v5719, %v5711
        %v6064 = vpack.c.b16 %v5720, %v5712
        %v6065 = vpack.c.b16 %v5721, %v5713
        %v6066 = vpack.c.b16 %v5722, %v5714
        %v6067 = vpack.c.b16 %v5723, %v5715
        %v6068 = vpack.c.b16 %v5724, %v5716
        %v6069 = vpack.c.b16 %v5733, %v5725
        %v6070 = vpack.c.b16 %v5734, %v5726
        %v6071 = vpack.c.b16 %v5735, %v5727
        %v6072 = vpack.c.b16 %v5736, %v5728
        %v6073 = vpack.c.b16 %v5737, %v5729
        %v6074 = vpack.c.b16 %v5738, %v5730
        %v6075 = vpack.c.b16 %v5739, %v5731
        %v6076 = vpack.c.b16 %v5740, %v5732
        %v6077 = vpack.c.b16 %v5749, %v5741
        %v6078 = vpack.c.b16 %v5750, %v5742
        %v6079 = vpack.c.b16 %v5751, %v5743
        %v6080 = vpack.c.b16 %v5752, %v5744
        %v6081 = vpack.c.b16 %v5753, %v5745
        %v6082 = vpack.c.b16 %v5754, %v5746
        %v6083 = vpack.c.b16 %v5755, %v5747
        %v6084 = vpack.c.b16 %v5756, %v5748
        %v6085 = vpack.c.b16 %v5765, %v5757
        %v6086 = vpack.c.b16 %v5766, %v5758
        %v6087 = vpack.c.b16 %v5767, %v5759
        %v6088 = vpack.c.b16 %v5768, %v5760
        %v6089 = vpack.c.b16 %v5769, %v5761
        %v6090 = vpack.c.b16 %v5770, %v5762
        %v6091 = vpack.c.b16 %v5771, %v5763
        %v6092 = vpack.c.b16 %v5772, %v5764
        %v6093 = vpack.c.b16 %v5781, %v5773
        %v6094 = vpack.c.b16 %v5782, %v5774
        %v6095 = vpack.c.b16 %v5783, %v5775
        %v6096 = vpack.c.b16 %v5784, %v5776
        %v6097 = vpack.c.b16 %v5785, %v5777
        %v6098 = vpack.c.b16 %v5786, %v5778
        %v6099 = vpack.c.b16 %v5787, %v5779
        %v6100 = vpack.c.b16 %v5788, %v5780
        %v6101 = vpack.c.b16 %v5797, %v5789
        %v6102 = vpack.c.b16 %v5798, %v5790
        %v6103 = vpack.c.b16 %v5799, %v5791
        %v6104 = vpack.c.b16 %v5800, %v5792
        %v6105 = vpack.c.b16 %v5801, %v5793
        %v6106 = vpack.c.b16 %v5802, %v5794
        %v6107 = vpack.c.b16 %v5803, %v5795
        %v6108 = vpack.c.b16 %v5804, %v5796
        %v6109 = vpack.c.b16 %v5813, %v5805
        %v6110 = vpack.c.b16 %v5814, %v5806
        %v6111 = vpack.c.b16 %v5815, %v5807
        %v6112 = vpack.c.b16 %v5816, %v5808
        %v6113 = vpack.c.b16 %v5817, %v5809
        %v6114 = vpack.c.b16 %v5818, %v5810
        %v6115 = vpack.c.b16 %v5819, %v5811
        %v6116 = vpack.c.b16 %v5820, %v5812
        %v6117 = vpack.c.b16 %v5829, %v5821
        %v6118 = vpack.c.b16 %v5830, %v5822
        %v6119 = vpack.c.b16 %v5831, %v5823
        %v6120 = vpack.c.b16 %v5832, %v5824
        %v6121 = vpack.c.b16 %v5833, %v5825
        %v6122 = vpack.c.b16 %v5834, %v5826
        %v6123 = vpack.c.b16 %v5835, %v5827
        %v6124 = vpack.c.b16 %v5836, %v5828
        %v6125 = vpack.c.b16 %v5845, %v5837
        %v6126 = vpack.c.b16 %v5846, %v5838
        %v6127 = vpack.c.b16 %v5847, %v5839
        %v6128 = vpack.c.b16 %v5848, %v5840
        %v6129 = vpack.c.b16 %v5849, %v5841
        %v6130 = vpack.c.b16 %v5850, %v5842
        %v6131 = vpack.c.b16 %v5851, %v5843
        %v6132 = vpack.c.b16 %v5852, %v5844
        %v6133 = vpack.c.b16 %v5861, %v5853
        %v6134 = vpack.c.b16 %v5862, %v5854
        %v6135 = vpack.c.b16 %v5863, %v5855
        %v6136 = vpack.c.b16 %v5864, %v5856
        %v6137 = vpack.c.b16 %v5865, %v5857
        %v6138 = vpack.c.b16 %v5866, %v5858
        %v6139 = vpack.c.b16 %v5867, %v5859
        %v6140 = vpack.c.b16 %v5868, %v5860
        %v6141 = vpack.c.b16 %v5877, %v5869
        %v6142 = vpack.c.b16 %v5878, %v5870
        %v6143 = vpack.c.b16 %v5879, %v5871
        %v6144 = vpack.c.b16 %v5880, %v5872
        %v6145 = vpack.c.b16 %v5881, %v5873
        %v6146 = vpack.c.b16 %v5882, %v5874
        %v6147 = vpack.c.b16 %v5883, %v5875
        %v6148 = vpack.c.b16 %v5884, %v5876
        %v6149 = vpack.c.b16 %v5893, %v5885
        %v6150 = vpack.c.b16 %v5894, %v5886
        %v6151 = vpack.c.b16 %v5895, %v5887
        %v6152 = vpack.c.b16 %v5896, %v5888
        %v6153 = vpack.c.b16 %v5897, %v5889
        %v6154 = vpack.c.b16 %v5898, %v5890
        %v6155 = vpack.c.b16 %v5899, %v5891
        %v6156 = vpack.c.b16 %v5900, %v5892
        %6413 = vmatprep.subr.bf16.mxu0 %v5958
        %6414 = vmatpush1.bf16.msra.mxu0 %v5957
        %6415 = vmatprep.subr.bf16.mxu0 %v5950
        %6416 = vmatpush1.bf16.msra.mxu0 %v5949
        %6417 = vmatprep.subr.bf16.mxu0 %v5942
        %6418 = vmatpush1.bf16.msra.mxu0 %v5941
        %6419 = vmatprep.subr.bf16.mxu0 %v5934
        %6420 = vmatpush1.bf16.msra.mxu0 %v5933
        %6421 = vmatprep.subr.bf16.mxu0 %v5926
        %6422 = vmatpush1.bf16.msra.mxu0 %v5925
        %6423 = vmatprep.subr.bf16.mxu0 %v5918
        %6424 = vmatpush1.bf16.msra.mxu0 %v5917
        %6425 = vmatprep.subr.bf16.mxu0 %v5910
        %6426 = vmatpush1.bf16.msra.mxu0 %v5909
        %6427 = vmatprep.subr.bf16.mxu0 %v5902
        %6428 = vmatpush1.bf16.msra.mxu0 %v5901
        %6429 = vmatprep.subr.bf16.mxu0 %v6022
        %6430 = vmatpush2.bf16.msra.mxu0 %v6021
        %6431 = vmatprep.subr.bf16.mxu0 %v6014
        %6432 = vmatpush2.bf16.msra.mxu0 %v6013
        %6433 = vmatprep.subr.bf16.mxu0 %v6006
        %6434 = vmatpush2.bf16.msra.mxu0 %v6005
        %6435 = vmatprep.subr.bf16.mxu0 %v5998
        %6436 = vmatpush2.bf16.msra.mxu0 %v5997
        %6437 = vmatprep.subr.bf16.mxu0 %v5990
        %6438 = vmatpush2.bf16.msra.mxu0 %v5989
        %6439 = vmatprep.subr.bf16.mxu0 %v5982
        %6440 = vmatpush2.bf16.msra.mxu0 %v5981
        %6441 = vmatprep.subr.bf16.mxu0 %v5974
        %6442 = vmatpush2.bf16.msra.mxu0 %v5973
        %6443 = vmatprep.subr.bf16.mxu0 %v5966
        %6444 = vmatpush2.bf16.msra.mxu0 %v5965
        %6445 = vmatprep.mubr.bf16.mxu0 %v5085
        %6446 = vmatmul.mubr.bf16.gmra.mxu0 %v5084
        %v6447 = vpop.f32.mrf.mxu0
        %v6448 = vadd.f32 %v5096, %v6447
        %v6449 = vpop.f32.mrf.mxu0
        %v6450 = vadd.f32 %v5100, %v6449
        %v6451 = vpop.f32.mrf.mxu0
        %v6452 = vadd.f32 %v5096, %v6451
        %v6453 = vpop.f32.mrf.mxu0
        %v6454 = vadd.f32 %v5100, %v6453
        %6455 = vmatprep.mubr.bf16.mxu0 %v5089
        %6456 = vmatmul.mubr.bf16.gmra.mxu0 %v5088
        %v6457 = vpop.f32.mrf.mxu0
        %v6458 = vadd.f32 %v5096, %v6457
        %v6459 = vpop.f32.mrf.mxu0
        %v6460 = vadd.f32 %v5100, %v6459
        %v6461 = vpop.f32.mrf.mxu0
        %v6462 = vadd.f32 %v5096, %v6461
        %v6463 = vpop.f32.mrf.mxu0
        %v6464 = vadd.f32 %v5100, %v6463
        %6465 = vdwg.mxu0
        %6466 = vmatprep.subr.bf16.mxu0 %v6086
        %6467 = vmatpush1.bf16.msra.mxu0 %v6085
        %6468 = vmatprep.subr.bf16.mxu0 %v6078
        %6469 = vmatpush1.bf16.msra.mxu0 %v6077
        %6470 = vmatprep.subr.bf16.mxu0 %v6070
        %6471 = vmatpush1.bf16.msra.mxu0 %v6069
        %6472 = vmatprep.subr.bf16.mxu0 %v6062
        %6473 = vmatpush1.bf16.msra.mxu0 %v6061
        %6474 = vmatprep.subr.bf16.mxu0 %v6054
        %6475 = vmatpush1.bf16.msra.mxu0 %v6053
        %6476 = vmatprep.subr.bf16.mxu0 %v6046
        %6477 = vmatpush1.bf16.msra.mxu0 %v6045
        %6478 = vmatprep.subr.bf16.mxu0 %v6038
        %6479 = vmatpush1.bf16.msra.mxu0 %v6037
        %6480 = vmatprep.subr.bf16.mxu0 %v6030
        %6481 = vmatpush1.bf16.msra.mxu0 %v6029
        %6482 = vmatprep.subr.bf16.mxu0 %v6150
        %6483 = vmatpush2.bf16.msra.mxu0 %v6149
        %6484 = vmatprep.subr.bf16.mxu0 %v6142
        %6485 = vmatpush2.bf16.msra.mxu0 %v6141
        %6486 = vmatprep.subr.bf16.mxu0 %v6134
        %6487 = vmatpush2.bf16.msra.mxu0 %v6133
        %6488 = vmatprep.subr.bf16.mxu0 %v6126
        %6489 = vmatpush2.bf16.msra.mxu0 %v6125
        %6490 = vmatprep.subr.bf16.mxu0 %v6118
        %6491 = vmatpush2.bf16.msra.mxu0 %v6117
        %6492 = vmatprep.subr.bf16.mxu0 %v6110
        %6493 = vmatpush2.bf16.msra.mxu0 %v6109
        %6494 = vmatprep.subr.bf16.mxu0 %v6102
        %6495 = vmatpush2.bf16.msra.mxu0 %v6101
        %6496 = vmatprep.subr.bf16.mxu0 %v6094
        %6497 = vmatpush2.bf16.msra.mxu0 %v6093
        %6498 = vmatprep.mubr.bf16.mxu0 %v5087
        %6499 = vmatmul.mubr.bf16.gmra.mxu0 %v5086
        %v6500 = vpop.f32.mrf.mxu0
        %v6501 = vadd.f32 %v6448, %v6500
        %v6502 = vpop.f32.mrf.mxu0
        %v6503 = vadd.f32 %v6450, %v6502
        %v6504 = vpop.f32.mrf.mxu0
        %v6505 = vadd.f32 %v6452, %v6504
        %v6506 = vpop.f32.mrf.mxu0
        %v6507 = vadd.f32 %v6454, %v6506
        %6508 = vmatprep.mubr.bf16.mxu0 %v5091
        %6509 = vmatmul.mubr.bf16.gmra.mxu0 %v5090
        %v6510 = vpop.f32.mrf.mxu0
        %v6511 = vadd.f32 %v6458, %v6510
        %v6512 = vpop.f32.mrf.mxu0
        %v6513 = vadd.f32 %v6460, %v6512
        %v6514 = vpop.f32.mrf.mxu0
        %v6515 = vadd.f32 %v6462, %v6514
        %v6516 = vpop.f32.mrf.mxu0
        %v6517 = vadd.f32 %v6464, %v6516
        %6518 = vdwg.mxu0
        %6519 = vmatprep.subr.bf16.mxu0 %v5960
        %6520 = vmatpush1.bf16.msra.mxu0 %v5959
        %6521 = vmatprep.subr.bf16.mxu0 %v5952
        %6522 = vmatpush1.bf16.msra.mxu0 %v5951
        %6523 = vmatprep.subr.bf16.mxu0 %v5944
        %6524 = vmatpush1.bf16.msra.mxu0 %v5943
        %6525 = vmatprep.subr.bf16.mxu0 %v5936
        %6526 = vmatpush1.bf16.msra.mxu0 %v5935
        %6527 = vmatprep.subr.bf16.mxu0 %v5928
        %6528 = vmatpush1.bf16.msra.mxu0 %v5927
        %6529 = vmatprep.subr.bf16.mxu0 %v5920
        %6530 = vmatpush1.bf16.msra.mxu0 %v5919
        %6531 = vmatprep.subr.bf16.mxu0 %v5912
        %6532 = vmatpush1.bf16.msra.mxu0 %v5911
        %6533 = vmatprep.subr.bf16.mxu0 %v5904
        %6534 = vmatpush1.bf16.msra.mxu0 %v5903
        %6535 = vmatprep.subr.bf16.mxu0 %v6024
        %6536 = vmatpush2.bf16.msra.mxu0 %v6023
        %6537 = vmatprep.subr.bf16.mxu0 %v6016
        %6538 = vmatpush2.bf16.msra.mxu0 %v6015
        %6539 = vmatprep.subr.bf16.mxu0 %v6008
        %6540 = vmatpush2.bf16.msra.mxu0 %v6007
        %6541 = vmatprep.subr.bf16.mxu0 %v6000
        %6542 = vmatpush2.bf16.msra.mxu0 %v5999
        %6543 = vmatprep.subr.bf16.mxu0 %v5992
        %6544 = vmatpush2.bf16.msra.mxu0 %v5991
        %6545 = vmatprep.subr.bf16.mxu0 %v5984
        %6546 = vmatpush2.bf16.msra.mxu0 %v5983
        %6547 = vmatprep.subr.bf16.mxu0 %v5976
        %6548 = vmatpush2.bf16.msra.mxu0 %v5975
        %6549 = vmatprep.subr.bf16.mxu0 %v5968
        %6550 = vmatpush2.bf16.msra.mxu0 %v5967
        %6551 = vmatprep.mubr.bf16.mxu0 %v5085
        %6552 = vmatmul.mubr.bf16.gmra.mxu0 %v5084
        %v6553 = vpop.f32.mrf.mxu0
        %v6554 = vadd.f32 %v5104, %v6553
        %v6555 = vpop.f32.mrf.mxu0
        %v6556 = vadd.f32 %v5108, %v6555
        %v6557 = vpop.f32.mrf.mxu0
        %v6558 = vadd.f32 %v5104, %v6557
        %v6559 = vpop.f32.mrf.mxu0
        %v6560 = vadd.f32 %v5108, %v6559
        %6561 = vmatprep.mubr.bf16.mxu0 %v5089
        %6562 = vmatmul.mubr.bf16.gmra.mxu0 %v5088
        %v6563 = vpop.f32.mrf.mxu0
        %v6564 = vadd.f32 %v5104, %v6563
        %v6565 = vpop.f32.mrf.mxu0
        %v6566 = vadd.f32 %v5108, %v6565
        %v6567 = vpop.f32.mrf.mxu0
        %v6568 = vadd.f32 %v5104, %v6567
        %v6569 = vpop.f32.mrf.mxu0
        %v6570 = vadd.f32 %v5108, %v6569
        %6571 = vdwg.mxu0
        %6572 = vmatprep.subr.bf16.mxu0 %v6088
        %6573 = vmatpush1.bf16.msra.mxu0 %v6087
        %6574 = vmatprep.subr.bf16.mxu0 %v6080
        %6575 = vmatpush1.bf16.msra.mxu0 %v6079
        %6576 = vmatprep.subr.bf16.mxu0 %v6072
        %6577 = vmatpush1.bf16.msra.mxu0 %v6071
        %6578 = vmatprep.subr.bf16.mxu0 %v6064
        %6579 = vmatpush1.bf16.msra.mxu0 %v6063
        %6580 = vmatprep.subr.bf16.mxu0 %v6056
        %6581 = vmatpush1.bf16.msra.mxu0 %v6055
        %6582 = vmatprep.subr.bf16.mxu0 %v6048
        %6583 = vmatpush1.bf16.msra.mxu0 %v6047
        %6584 = vmatprep.subr.bf16.mxu0 %v6040
        %6585 = vmatpush1.bf16.msra.mxu0 %v6039
        %6586 = vmatprep.subr.bf16.mxu0 %v6032
        %6587 = vmatpush1.bf16.msra.mxu0 %v6031
        %6588 = vmatprep.subr.bf16.mxu0 %v6152
        %6589 = vmatpush2.bf16.msra.mxu0 %v6151
        %6590 = vmatprep.subr.bf16.mxu0 %v6144
        %6591 = vmatpush2.bf16.msra.mxu0 %v6143
        %6592 = vmatprep.subr.bf16.mxu0 %v6136
        %6593 = vmatpush2.bf16.msra.mxu0 %v6135
        %6594 = vmatprep.subr.bf16.mxu0 %v6128
        %6595 = vmatpush2.bf16.msra.mxu0 %v6127
        %6596 = vmatprep.subr.bf16.mxu0 %v6120
        %6597 = vmatpush2.bf16.msra.mxu0 %v6119
        %6598 = vmatprep.subr.bf16.mxu0 %v6112
        %6599 = vmatpush2.bf16.msra.mxu0 %v6111
        %6600 = vmatprep.subr.bf16.mxu0 %v6104
        %6601 = vmatpush2.bf16.msra.mxu0 %v6103
        %6602 = vmatprep.subr.bf16.mxu0 %v6096
        %6603 = vmatpush2.bf16.msra.mxu0 %v6095
        %6604 = vmatprep.mubr.bf16.mxu0 %v5087
        %6605 = vmatmul.mubr.bf16.gmra.mxu0 %v5086
        %v6606 = vpop.f32.mrf.mxu0
        %v6607 = vadd.f32 %v6554, %v6606
        %v6608 = vpop.f32.mrf.mxu0
        %v6609 = vadd.f32 %v6556, %v6608
        %v6610 = vpop.f32.mrf.mxu0
        %v6611 = vadd.f32 %v6558, %v6610
        %v6612 = vpop.f32.mrf.mxu0
        %v6613 = vadd.f32 %v6560, %v6612
        %6614 = vmatprep.mubr.bf16.mxu0 %v5091
        %6615 = vmatmul.mubr.bf16.gmra.mxu0 %v5090
        %v6616 = vpop.f32.mrf.mxu0
        %v6617 = vadd.f32 %v6564, %v6616
        %v6618 = vpop.f32.mrf.mxu0
        %v6619 = vadd.f32 %v6566, %v6618
        %v6620 = vpop.f32.mrf.mxu0
        %v6621 = vadd.f32 %v6568, %v6620
        %v6622 = vpop.f32.mrf.mxu0
        %v6623 = vadd.f32 %v6570, %v6622
        %6624 = vdwg.mxu0
        %6625 = vmatprep.subr.bf16.mxu0 %v5962
        %6626 = vmatpush1.bf16.msra.mxu0 %v5961
        %6627 = vmatprep.subr.bf16.mxu0 %v5954
        %6628 = vmatpush1.bf16.msra.mxu0 %v5953
        %6629 = vmatprep.subr.bf16.mxu0 %v5946
        %6630 = vmatpush1.bf16.msra.mxu0 %v5945
        %6631 = vmatprep.subr.bf16.mxu0 %v5938
        %6632 = vmatpush1.bf16.msra.mxu0 %v5937
        %6633 = vmatprep.subr.bf16.mxu0 %v5930
        %6634 = vmatpush1.bf16.msra.mxu0 %v5929
        %6635 = vmatprep.subr.bf16.mxu0 %v5922
        %6636 = vmatpush1.bf16.msra.mxu0 %v5921
        %6637 = vmatprep.subr.bf16.mxu0 %v5914
        %6638 = vmatpush1.bf16.msra.mxu0 %v5913
        %6639 = vmatprep.subr.bf16.mxu0 %v5906
        %6640 = vmatpush1.bf16.msra.mxu0 %v5905
        %6641 = vmatprep.subr.bf16.mxu0 %v6026
        %6642 = vmatpush2.bf16.msra.mxu0 %v6025
        %6643 = vmatprep.subr.bf16.mxu0 %v6018
        %6644 = vmatpush2.bf16.msra.mxu0 %v6017
        %6645 = vmatprep.subr.bf16.mxu0 %v6010
        %6646 = vmatpush2.bf16.msra.mxu0 %v6009
        %6647 = vmatprep.subr.bf16.mxu0 %v6002
        %6648 = vmatpush2.bf16.msra.mxu0 %v6001
        %6649 = vmatprep.subr.bf16.mxu0 %v5994
        %6650 = vmatpush2.bf16.msra.mxu0 %v5993
        %6651 = vmatprep.subr.bf16.mxu0 %v5986
        %6652 = vmatpush2.bf16.msra.mxu0 %v5985
        %6653 = vmatprep.subr.bf16.mxu0 %v5978
        %6654 = vmatpush2.bf16.msra.mxu0 %v5977
        %6655 = vmatprep.subr.bf16.mxu0 %v5970
        %6656 = vmatpush2.bf16.msra.mxu0 %v5969
        %6657 = vmatprep.mubr.bf16.mxu0 %v5085
        %6658 = vmatmul.mubr.bf16.gmra.mxu0 %v5084
        %v6659 = vpop.f32.mrf.mxu0
        %v6660 = vadd.f32 %v5112, %v6659
        %v6661 = vpop.f32.mrf.mxu0
        %v6662 = vadd.f32 %v5116, %v6661
        %v6663 = vpop.f32.mrf.mxu0
        %v6664 = vadd.f32 %v5112, %v6663
        %v6665 = vpop.f32.mrf.mxu0
        %v6666 = vadd.f32 %v5116, %v6665
        %6667 = vmatprep.mubr.bf16.mxu0 %v5089
        %6668 = vmatmul.mubr.bf16.gmra.mxu0 %v5088
        %v6669 = vpop.f32.mrf.mxu0
        %v6670 = vadd.f32 %v5112, %v6669
        %v6671 = vpop.f32.mrf.mxu0
        %v6672 = vadd.f32 %v5116, %v6671
        %v6673 = vpop.f32.mrf.mxu0
        %v6674 = vadd.f32 %v5112, %v6673
        %v6675 = vpop.f32.mrf.mxu0
        %v6676 = vadd.f32 %v5116, %v6675
        %6677 = vdwg.mxu0
        %6678 = vmatprep.subr.bf16.mxu0 %v6090
        %6679 = vmatpush1.bf16.msra.mxu0 %v6089
        %6680 = vmatprep.subr.bf16.mxu0 %v6082
        %6681 = vmatpush1.bf16.msra.mxu0 %v6081
        %6682 = vmatprep.subr.bf16.mxu0 %v6074
        %6683 = vmatpush1.bf16.msra.mxu0 %v6073
        %6684 = vmatprep.subr.bf16.mxu0 %v6066
        %6685 = vmatpush1.bf16.msra.mxu0 %v6065
        %6686 = vmatprep.subr.bf16.mxu0 %v6058
        %6687 = vmatpush1.bf16.msra.mxu0 %v6057
        %6688 = vmatprep.subr.bf16.mxu0 %v6050
        %6689 = vmatpush1.bf16.msra.mxu0 %v6049
        %6690 = vmatprep.subr.bf16.mxu0 %v6042
        %6691 = vmatpush1.bf16.msra.mxu0 %v6041
        %6692 = vmatprep.subr.bf16.mxu0 %v6034
        %6693 = vmatpush1.bf16.msra.mxu0 %v6033
        %6694 = vmatprep.subr.bf16.mxu0 %v6154
        %6695 = vmatpush2.bf16.msra.mxu0 %v6153
        %6696 = vmatprep.subr.bf16.mxu0 %v6146
        %6697 = vmatpush2.bf16.msra.mxu0 %v6145
        %6698 = vmatprep.subr.bf16.mxu0 %v6138
        %6699 = vmatpush2.bf16.msra.mxu0 %v6137
        %6700 = vmatprep.subr.bf16.mxu0 %v6130
        %6701 = vmatpush2.bf16.msra.mxu0 %v6129
        %6702 = vmatprep.subr.bf16.mxu0 %v6122
        %6703 = vmatpush2.bf16.msra.mxu0 %v6121
        %6704 = vmatprep.subr.bf16.mxu0 %v6114
        %6705 = vmatpush2.bf16.msra.mxu0 %v6113
        %6706 = vmatprep.subr.bf16.mxu0 %v6106
        %6707 = vmatpush2.bf16.msra.mxu0 %v6105
        %6708 = vmatprep.subr.bf16.mxu0 %v6098
        %6709 = vmatpush2.bf16.msra.mxu0 %v6097
        %6710 = vmatprep.mubr.bf16.mxu0 %v5087
        %6711 = vmatmul.mubr.bf16.gmra.mxu0 %v5086
        %v6712 = vpop.f32.mrf.mxu0
        %v6713 = vadd.f32 %v6660, %v6712
        %v6714 = vpop.f32.mrf.mxu0
        %v6715 = vadd.f32 %v6662, %v6714
        %v6716 = vpop.f32.mrf.mxu0
        %v6717 = vadd.f32 %v6664, %v6716
        %v6718 = vpop.f32.mrf.mxu0
        %v6719 = vadd.f32 %v6666, %v6718
        %6720 = vmatprep.mubr.bf16.mxu0 %v5091
        %6721 = vmatmul.mubr.bf16.gmra.mxu0 %v5090
        %v6722 = vpop.f32.mrf.mxu0
        %v6723 = vadd.f32 %v6670, %v6722
        %v6724 = vpop.f32.mrf.mxu0
        %v6725 = vadd.f32 %v6672, %v6724
        %v6726 = vpop.f32.mrf.mxu0
        %v6727 = vadd.f32 %v6674, %v6726
        %v6728 = vpop.f32.mrf.mxu0
        %v6729 = vadd.f32 %v6676, %v6728
        %6730 = vdwg.mxu0
        %6731 = vmatprep.subr.bf16.mxu0 %v5964
        %6732 = vmatpush1.bf16.msra.mxu0 %v5963
        %6733 = vmatprep.subr.bf16.mxu0 %v5956
        %6734 = vmatpush1.bf16.msra.mxu0 %v5955
        %6735 = vmatprep.subr.bf16.mxu0 %v5948
        %6736 = vmatpush1.bf16.msra.mxu0 %v5947
        %6737 = vmatprep.subr.bf16.mxu0 %v5940
        %6738 = vmatpush1.bf16.msra.mxu0 %v5939
        %6739 = vmatprep.subr.bf16.mxu0 %v5932
        %6740 = vmatpush1.bf16.msra.mxu0 %v5931
        %6741 = vmatprep.subr.bf16.mxu0 %v5924
        %6742 = vmatpush1.bf16.msra.mxu0 %v5923
        %6743 = vmatprep.subr.bf16.mxu0 %v5916
        %6744 = vmatpush1.bf16.msra.mxu0 %v5915
        %6745 = vmatprep.subr.bf16.mxu0 %v5908
        %6746 = vmatpush1.bf16.msra.mxu0 %v5907
        %6747 = vmatprep.subr.bf16.mxu0 %v6028
        %6748 = vmatpush2.bf16.msra.mxu0 %v6027
        %6749 = vmatprep.subr.bf16.mxu0 %v6020
        %6750 = vmatpush2.bf16.msra.mxu0 %v6019
        %6751 = vmatprep.subr.bf16.mxu0 %v6012
        %6752 = vmatpush2.bf16.msra.mxu0 %v6011
        %6753 = vmatprep.subr.bf16.mxu0 %v6004
        %6754 = vmatpush2.bf16.msra.mxu0 %v6003
        %6755 = vmatprep.subr.bf16.mxu0 %v5996
        %6756 = vmatpush2.bf16.msra.mxu0 %v5995
        %6757 = vmatprep.subr.bf16.mxu0 %v5988
        %6758 = vmatpush2.bf16.msra.mxu0 %v5987
        %6759 = vmatprep.subr.bf16.mxu0 %v5980
        %6760 = vmatpush2.bf16.msra.mxu0 %v5979
        %6761 = vmatprep.subr.bf16.mxu0 %v5972
        %6762 = vmatpush2.bf16.msra.mxu0 %v5971
        %6763 = vmatprep.mubr.bf16.mxu0 %v5085
        %6764 = vmatmul.mubr.bf16.gmra.mxu0 %v5084
        %v6765 = vpop.f32.mrf.mxu0
        %v6766 = vadd.f32 %v5120, %v6765
        %v6767 = vpop.f32.mrf.mxu0
        %v6768 = vadd.f32 %v5124, %v6767
        %v6769 = vpop.f32.mrf.mxu0
        %v6770 = vadd.f32 %v5120, %v6769
        %v6771 = vpop.f32.mrf.mxu0
        %v6772 = vadd.f32 %v5124, %v6771
        %6773 = vmatprep.mubr.bf16.mxu0 %v5089
        %6774 = vmatmul.mubr.bf16.gmra.mxu0 %v5088
        %v6775 = vpop.f32.mrf.mxu0
        %v6776 = vadd.f32 %v5120, %v6775
        %v6777 = vpop.f32.mrf.mxu0
        %v6778 = vadd.f32 %v5124, %v6777
        %v6779 = vpop.f32.mrf.mxu0
        %v6780 = vadd.f32 %v5120, %v6779
        %v6781 = vpop.f32.mrf.mxu0
        %v6782 = vadd.f32 %v5124, %v6781
        %6783 = vdwg.mxu0
        %6784 = vmatprep.subr.bf16.mxu0 %v6092
        %6785 = vmatpush1.bf16.msra.mxu0 %v6091
        %6786 = vmatprep.subr.bf16.mxu0 %v6084
        %6787 = vmatpush1.bf16.msra.mxu0 %v6083
        %6788 = vmatprep.subr.bf16.mxu0 %v6076
        %6789 = vmatpush1.bf16.msra.mxu0 %v6075
        %6790 = vmatprep.subr.bf16.mxu0 %v6068
        %6791 = vmatpush1.bf16.msra.mxu0 %v6067
        %6792 = vmatprep.subr.bf16.mxu0 %v6060
        %6793 = vmatpush1.bf16.msra.mxu0 %v6059
        %6794 = vmatprep.subr.bf16.mxu0 %v6052
        %6795 = vmatpush1.bf16.msra.mxu0 %v6051
        %6796 = vmatprep.subr.bf16.mxu0 %v6044
        %6797 = vmatpush1.bf16.msra.mxu0 %v6043
        %6798 = vmatprep.subr.bf16.mxu0 %v6036
        %6799 = vmatpush1.bf16.msra.mxu0 %v6035
        %6800 = vmatprep.subr.bf16.mxu0 %v6156
        %6801 = vmatpush2.bf16.msra.mxu0 %v6155
        %6802 = vmatprep.subr.bf16.mxu0 %v6148
        %6803 = vmatpush2.bf16.msra.mxu0 %v6147
        %6804 = vmatprep.subr.bf16.mxu0 %v6140
        %6805 = vmatpush2.bf16.msra.mxu0 %v6139
        %6806 = vmatprep.subr.bf16.mxu0 %v6132
        %6807 = vmatpush2.bf16.msra.mxu0 %v6131
        %6808 = vmatprep.subr.bf16.mxu0 %v6124
        %6809 = vmatpush2.bf16.msra.mxu0 %v6123
        %6810 = vmatprep.subr.bf16.mxu0 %v6116
        %6811 = vmatpush2.bf16.msra.mxu0 %v6115
        %6812 = vmatprep.subr.bf16.mxu0 %v6108
        %6813 = vmatpush2.bf16.msra.mxu0 %v6107
        %6814 = vmatprep.subr.bf16.mxu0 %v6100
        %6815 = vmatpush2.bf16.msra.mxu0 %v6099
        %6816 = vmatprep.mubr.bf16.mxu0 %v5087
        %6817 = vmatmul.mubr.bf16.gmra.mxu0 %v5086
        %v6818 = vpop.f32.mrf.mxu0
        %v6819 = vadd.f32 %v6766, %v6818
        %v6820 = vpop.f32.mrf.mxu0
        %v6821 = vadd.f32 %v6768, %v6820
        %v6822 = vpop.f32.mrf.mxu0
        %v6823 = vadd.f32 %v6770, %v6822
        %v6824 = vpop.f32.mrf.mxu0
        %v6825 = vadd.f32 %v6772, %v6824
        %6826 = vmatprep.mubr.bf16.mxu0 %v5091
        %6827 = vmatmul.mubr.bf16.gmra.mxu0 %v5090
        %v6828 = vpop.f32.mrf.mxu0
        %v6829 = vadd.f32 %v6776, %v6828
        %v6830 = vpop.f32.mrf.mxu0
        %v6831 = vadd.f32 %v6778, %v6830
        %v6832 = vpop.f32.mrf.mxu0
        %v6833 = vadd.f32 %v6780, %v6832
        %v6834 = vpop.f32.mrf.mxu0
        %v6835 = vadd.f32 %v6782, %v6834
        %6836 = vdwg.mxu0
        %v6837 = vmax.f32 %v6501, 0.0
        %v6838 = vmax.f32 %v6503, 0.0
        %v6839 = vmax.f32 %v6607, 0.0
        %v6840 = vmax.f32 %v6609, 0.0
        %v6841 = vmax.f32 %v6713, 0.0
        %v6842 = vmax.f32 %v6715, 0.0
        %v6843 = vmax.f32 %v6819, 0.0
        %v6844 = vmax.f32 %v6821, 0.0
        %v6845 = vmax.f32 %v6505, 0.0
        %v6846 = vmax.f32 %v6507, 0.0
        %v6847 = vmax.f32 %v6611, 0.0
        %v6848 = vmax.f32 %v6613, 0.0
        %v6849 = vmax.f32 %v6717, 0.0
        %v6850 = vmax.f32 %v6719, 0.0
        %v6851 = vmax.f32 %v6823, 0.0
        %v6852 = vmax.f32 %v6825, 0.0
        %v6853 = vmax.f32 %v6511, 0.0
        %v6854 = vmax.f32 %v6513, 0.0
        %v6855 = vmax.f32 %v6617, 0.0
        %v6856 = vmax.f32 %v6619, 0.0
        %v6857 = vmax.f32 %v6723, 0.0
        %v6858 = vmax.f32 %v6725, 0.0
        %v6859 = vmax.f32 %v6829, 0.0
        %v6860 = vmax.f32 %v6831, 0.0
        %v6861 = vmax.f32 %v6515, 0.0
        %v6862 = vmax.f32 %v6517, 0.0
        %v6863 = vmax.f32 %v6621, 0.0
        %v6864 = vmax.f32 %v6623, 0.0
        %v6865 = vmax.f32 %v6727, 0.0
        %v6866 = vmax.f32 %v6729, 0.0
        %v6867 = vmax.f32 %v6833, 0.0
        %v6868 = vmax.f32 %v6835, 0.0
        %v6869 = vld [vmem:[#allocation20] sm:$0xf]
        %v6870 = vld [vmem:[#allocation20 + $0x4] sm:$0xf]
        %v6871 = vld [vmem:[#allocation20 + $0x8] sm:$0xf]
        %v6872 = vld [vmem:[#allocation20 + $0xc] sm:$0xf]
        %v6873 = vld [vmem:[#allocation20 + $0x10] sm:$0xf]
        %v6874 = vld [vmem:[#allocation20 + $0x14] sm:$0xf]
        %v6875 = vld [vmem:[#allocation20 + $0x18] sm:$0xf]
        %v6876 = vld [vmem:[#allocation20 + $0x1c] sm:$0xf]
        %v6877 = vld [vmem:[#allocation20 + $0x20] sm:$0xf]
        %v6878 = vld [vmem:[#allocation20 + $0x24] sm:$0xf]
        %v6879 = vld [vmem:[#allocation20 + $0x28] sm:$0xf]
        %v6880 = vld [vmem:[#allocation20 + $0x2c] sm:$0xf]
        %v6881 = vld [vmem:[#allocation20 + $0x30] sm:$0xf]
        %v6882 = vld [vmem:[#allocation20 + $0x34] sm:$0xf]
        %v6883 = vld [vmem:[#allocation20 + $0x38] sm:$0xf]
        %v6884 = vld [vmem:[#allocation20 + $0x3c] sm:$0xf]
        %v6885 = vld [vmem:[#allocation20 + $0x40] sm:$0xf]
        %v6886 = vld [vmem:[#allocation20 + $0x44] sm:$0xf]
        %v6887 = vld [vmem:[#allocation20 + $0x48] sm:$0xf]
        %v6888 = vld [vmem:[#allocation20 + $0x4c] sm:$0xf]
        %v6889 = vld [vmem:[#allocation20 + $0x50] sm:$0xf]
        %v6890 = vld [vmem:[#allocation20 + $0x54] sm:$0xf]
        %v6891 = vld [vmem:[#allocation20 + $0x58] sm:$0xf]
        %v6892 = vld [vmem:[#allocation20 + $0x5c] sm:$0xf]
        %v6893 = vld [vmem:[#allocation20 + $0x60] sm:$0xf]
        %v6894 = vld [vmem:[#allocation20 + $0x64] sm:$0xf]
        %v6895 = vld [vmem:[#allocation20 + $0x68] sm:$0xf]
        %v6896 = vld [vmem:[#allocation20 + $0x6c] sm:$0xf]
        %v6897 = vld [vmem:[#allocation20 + $0x70] sm:$0xf]
        %v6898 = vld [vmem:[#allocation20 + $0x74] sm:$0xf]
        %v6899 = vld [vmem:[#allocation20 + $0x78] sm:$0xf]
        %v6900 = vld [vmem:[#allocation20 + $0x7c] sm:$0xf]
        %v6901 = vld [vmem:[#allocation20 + $0x80] sm:$0xf]
        %v6902 = vld [vmem:[#allocation20 + $0x84] sm:$0xf]
        %v6903 = vld [vmem:[#allocation20 + $0x88] sm:$0xf]
        %v6904 = vld [vmem:[#allocation20 + $0x8c] sm:$0xf]
        %v6905 = vld [vmem:[#allocation20 + $0x90] sm:$0xf]
        %v6906 = vld [vmem:[#allocation20 + $0x94] sm:$0xf]
        %v6907 = vld [vmem:[#allocation20 + $0x98] sm:$0xf]
        %v6908 = vld [vmem:[#allocation20 + $0x9c] sm:$0xf]
        %v6909 = vld [vmem:[#allocation20 + $0xa0] sm:$0xf]
        %v6910 = vld [vmem:[#allocation20 + $0xa4] sm:$0xf]
        %v6911 = vld [vmem:[#allocation20 + $0xa8] sm:$0xf]
        %v6912 = vld [vmem:[#allocation20 + $0xac] sm:$0xf]
        %v6913 = vld [vmem:[#allocation20 + $0xb0] sm:$0xf]
        %v6914 = vld [vmem:[#allocation20 + $0xb4] sm:$0xf]
        %v6915 = vld [vmem:[#allocation20 + $0xb8] sm:$0xf]
        %v6916 = vld [vmem:[#allocation20 + $0xbc] sm:$0xf]
        %v6917 = vld [vmem:[#allocation20 + $0xc0] sm:$0xf]
        %v6918 = vld [vmem:[#allocation20 + $0xc4] sm:$0xf]
        %v6919 = vld [vmem:[#allocation20 + $0xc8] sm:$0xf]
        %v6920 = vld [vmem:[#allocation20 + $0xcc] sm:$0xf]
        %v6921 = vld [vmem:[#allocation20 + $0xd0] sm:$0xf]
        %v6922 = vld [vmem:[#allocation20 + $0xd4] sm:$0xf]
        %v6923 = vld [vmem:[#allocation20 + $0xd8] sm:$0xf]
        %v6924 = vld [vmem:[#allocation20 + $0xdc] sm:$0xf]
        %v6925 = vld [vmem:[#allocation20 + $0xe0] sm:$0xf]
        %v6926 = vld [vmem:[#allocation20 + $0xe4] sm:$0xf]
        %v6927 = vld [vmem:[#allocation20 + $0xe8] sm:$0xf]
        %v6928 = vld [vmem:[#allocation20 + $0xec] sm:$0xf]
        %v6929 = vld [vmem:[#allocation20 + $0xf0] sm:$0xf]
        %v6930 = vld [vmem:[#allocation20 + $0xf4] sm:$0xf]
        %v6931 = vld [vmem:[#allocation20 + $0xf8] sm:$0xf]
        %v6932 = vld [vmem:[#allocation20 + $0xfc] sm:$0xf]
        %v6933 = vld [vmem:[#allocation20 + $0x100] sm:$0xf]
        %v6934 = vld [vmem:[#allocation20 + $0x104] sm:$0xf]
        %v6935 = vld [vmem:[#allocation20 + $0x108] sm:$0xf]
        %v6936 = vld [vmem:[#allocation20 + $0x10c] sm:$0xf]
        %v6937 = vld [vmem:[#allocation20 + $0x110] sm:$0xf]
        %v6938 = vld [vmem:[#allocation20 + $0x114] sm:$0xf]
        %v6939 = vld [vmem:[#allocation20 + $0x118] sm:$0xf]
        %v6940 = vld [vmem:[#allocation20 + $0x11c] sm:$0xf]
        %v6941 = vld [vmem:[#allocation20 + $0x120] sm:$0xf]
        %v6942 = vld [vmem:[#allocation20 + $0x124] sm:$0xf]
        %v6943 = vld [vmem:[#allocation20 + $0x128] sm:$0xf]
        %v6944 = vld [vmem:[#allocation20 + $0x12c] sm:$0xf]
        %v6945 = vld [vmem:[#allocation20 + $0x130] sm:$0xf]
        %v6946 = vld [vmem:[#allocation20 + $0x134] sm:$0xf]
        %v6947 = vld [vmem:[#allocation20 + $0x138] sm:$0xf]
        %v6948 = vld [vmem:[#allocation20 + $0x13c] sm:$0xf]
        %v6949 = vld [vmem:[#allocation20 + $0x140] sm:$0xf]
        %v6950 = vld [vmem:[#allocation20 + $0x144] sm:$0xf]
        %v6951 = vld [vmem:[#allocation20 + $0x148] sm:$0xf]
        %v6952 = vld [vmem:[#allocation20 + $0x14c] sm:$0xf]
        %v6953 = vld [vmem:[#allocation20 + $0x150] sm:$0xf]
        %v6954 = vld [vmem:[#allocation20 + $0x154] sm:$0xf]
        %v6955 = vld [vmem:[#allocation20 + $0x158] sm:$0xf]
        %v6956 = vld [vmem:[#allocation20 + $0x15c] sm:$0xf]
        %v6957 = vld [vmem:[#allocation20 + $0x160] sm:$0xf]
        %v6958 = vld [vmem:[#allocation20 + $0x164] sm:$0xf]
        %v6959 = vld [vmem:[#allocation20 + $0x168] sm:$0xf]
        %v6960 = vld [vmem:[#allocation20 + $0x16c] sm:$0xf]
        %v6961 = vld [vmem:[#allocation20 + $0x170] sm:$0xf]
        %v6962 = vld [vmem:[#allocation20 + $0x174] sm:$0xf]
        %v6963 = vld [vmem:[#allocation20 + $0x178] sm:$0xf]
        %v6964 = vld [vmem:[#allocation20 + $0x17c] sm:$0xf]
        %v6965 = vld [vmem:[#allocation20 + $0x180] sm:$0xf]
        %v6966 = vld [vmem:[#allocation20 + $0x184] sm:$0xf]
        %v6967 = vld [vmem:[#allocation20 + $0x188] sm:$0xf]
        %v6968 = vld [vmem:[#allocation20 + $0x18c] sm:$0xf]
        %v6969 = vld [vmem:[#allocation20 + $0x190] sm:$0xf]
        %v6970 = vld [vmem:[#allocation20 + $0x194] sm:$0xf]
        %v6971 = vld [vmem:[#allocation20 + $0x198] sm:$0xf]
        %v6972 = vld [vmem:[#allocation20 + $0x19c] sm:$0xf]
        %v6973 = vld [vmem:[#allocation20 + $0x1a0] sm:$0xf]
        %v6974 = vld [vmem:[#allocation20 + $0x1a4] sm:$0xf]
        %v6975 = vld [vmem:[#allocation20 + $0x1a8] sm:$0xf]
        %v6976 = vld [vmem:[#allocation20 + $0x1ac] sm:$0xf]
        %v6977 = vld [vmem:[#allocation20 + $0x1b0] sm:$0xf]
        %v6978 = vld [vmem:[#allocation20 + $0x1b4] sm:$0xf]
        %v6979 = vld [vmem:[#allocation20 + $0x1b8] sm:$0xf]
        %v6980 = vld [vmem:[#allocation20 + $0x1bc] sm:$0xf]
        %v6981 = vld [vmem:[#allocation20 + $0x1c0] sm:$0xf]
        %v6982 = vld [vmem:[#allocation20 + $0x1c4] sm:$0xf]
        %v6983 = vld [vmem:[#allocation20 + $0x1c8] sm:$0xf]
        %v6984 = vld [vmem:[#allocation20 + $0x1cc] sm:$0xf]
        %v6985 = vld [vmem:[#allocation20 + $0x1d0] sm:$0xf]
        %v6986 = vld [vmem:[#allocation20 + $0x1d4] sm:$0xf]
        %v6987 = vld [vmem:[#allocation20 + $0x1d8] sm:$0xf]
        %v6988 = vld [vmem:[#allocation20 + $0x1dc] sm:$0xf]
        %v6989 = vld [vmem:[#allocation20 + $0x1e0] sm:$0xf]
        %v6990 = vld [vmem:[#allocation20 + $0x1e4] sm:$0xf]
        %v6991 = vld [vmem:[#allocation20 + $0x1e8] sm:$0xf]
        %v6992 = vld [vmem:[#allocation20 + $0x1ec] sm:$0xf]
        %v6993 = vld [vmem:[#allocation20 + $0x1f0] sm:$0xf]
        %v6994 = vld [vmem:[#allocation20 + $0x1f4] sm:$0xf]
        %v6995 = vld [vmem:[#allocation20 + $0x1f8] sm:$0xf]
        %v6996 = vld [vmem:[#allocation20 + $0x1fc] sm:$0xf]
        %v6997 = vld [vmem:[%s16] sm:$0x1]
        %v6998 = vpack.c.bf16 %v6845, %v6837
        %v6999 = vpack.c.bf16 %v6846, %v6838
        %v7000 = vpack.c.bf16 %v6847, %v6839
        %v7001 = vpack.c.bf16 %v6848, %v6840
        %v7002 = vpack.c.bf16 %v6849, %v6841
        %v7003 = vpack.c.bf16 %v6850, %v6842
        %v7004 = vpack.c.bf16 %v6851, %v6843
        %v7005 = vpack.c.bf16 %v6852, %v6844
        %v7006 = vpack.c.bf16 %v6861, %v6853
        %v7007 = vpack.c.bf16 %v6862, %v6854
        %v7008 = vpack.c.bf16 %v6863, %v6855
        %v7009 = vpack.c.bf16 %v6864, %v6856
        %v7010 = vpack.c.bf16 %v6865, %v6857
        %v7011 = vpack.c.bf16 %v6866, %v6858
        %v7012 = vpack.c.bf16 %v6867, %v6859
        %v7013 = vpack.c.bf16 %v6868, %v6860
        %v7015 = vlaneseq
        %v7016 = vshrl.u32 %v7015, 7
        %v7017 = vsub.s32 0, %v7016
        %v7018 = vrot.slane %v6997, %v7017
        %v7148 = vunpack.c.l.b16 %v6869
        %v7149 = vunpack.c.l.b16 %v6870
        %v7150 = vunpack.c.l.b16 %v6871
        %v7151 = vunpack.c.l.b16 %v6872
        %v7152 = vunpack.c.l.b16 %v6873
        %v7153 = vunpack.c.l.b16 %v6874
        %v7154 = vunpack.c.l.b16 %v6875
        %v7155 = vunpack.c.l.b16 %v6876
        %v7156 = vunpack.c.l.b16 %v6877
        %v7157 = vunpack.c.l.b16 %v6878
        %v7158 = vunpack.c.l.b16 %v6879
        %v7159 = vunpack.c.l.b16 %v6880
        %v7160 = vunpack.c.l.b16 %v6881
        %v7161 = vunpack.c.l.b16 %v6882
        %v7162 = vunpack.c.l.b16 %v6883
        %v7163 = vunpack.c.l.b16 %v6884
        %v7164 = vunpack.c.l.b16 %v6885
        %v7165 = vunpack.c.l.b16 %v6886
        %v7166 = vunpack.c.l.b16 %v6887
        %v7167 = vunpack.c.l.b16 %v6888
        %v7168 = vunpack.c.l.b16 %v6889
        %v7169 = vunpack.c.l.b16 %v6890
        %v7170 = vunpack.c.l.b16 %v6891
        %v7171 = vunpack.c.l.b16 %v6892
        %v7172 = vunpack.c.l.b16 %v6893
        %v7173 = vunpack.c.l.b16 %v6894
        %v7174 = vunpack.c.l.b16 %v6895
        %v7175 = vunpack.c.l.b16 %v6896
        %v7176 = vunpack.c.l.b16 %v6897
        %v7177 = vunpack.c.l.b16 %v6898
        %v7178 = vunpack.c.l.b16 %v6899
        %v7179 = vunpack.c.l.b16 %v6900
        %v7180 = vunpack.c.l.b16 %v6901
        %v7181 = vunpack.c.l.b16 %v6902
        %v7182 = vunpack.c.l.b16 %v6903
        %v7183 = vunpack.c.l.b16 %v6904
        %v7184 = vunpack.c.l.b16 %v6905
        %v7185 = vunpack.c.l.b16 %v6906
        %v7186 = vunpack.c.l.b16 %v6907
        %v7187 = vunpack.c.l.b16 %v6908
        %v7188 = vunpack.c.l.b16 %v6909
        %v7189 = vunpack.c.l.b16 %v6910
        %v7190 = vunpack.c.l.b16 %v6911
        %v7191 = vunpack.c.l.b16 %v6912
        %v7192 = vunpack.c.l.b16 %v6913
        %v7193 = vunpack.c.l.b16 %v6914
        %v7194 = vunpack.c.l.b16 %v6915
        %v7195 = vunpack.c.l.b16 %v6916
        %v7196 = vunpack.c.l.b16 %v6917
        %v7197 = vunpack.c.l.b16 %v6918
        %v7198 = vunpack.c.l.b16 %v6919
        %v7199 = vunpack.c.l.b16 %v6920
        %v7200 = vunpack.c.l.b16 %v6921
        %v7201 = vunpack.c.l.b16 %v6922
        %v7202 = vunpack.c.l.b16 %v6923
        %v7203 = vunpack.c.l.b16 %v6924
        %v7204 = vunpack.c.l.b16 %v6925
        %v7205 = vunpack.c.l.b16 %v6926
        %v7206 = vunpack.c.l.b16 %v6927
        %v7207 = vunpack.c.l.b16 %v6928
        %v7208 = vunpack.c.l.b16 %v6929
        %v7209 = vunpack.c.l.b16 %v6930
        %v7210 = vunpack.c.l.b16 %v6931
        %v7211 = vunpack.c.l.b16 %v6932
        %v7212 = vunpack.c.l.b16 %v6933
        %v7213 = vunpack.c.l.b16 %v6934
        %v7214 = vunpack.c.l.b16 %v6935
        %v7215 = vunpack.c.l.b16 %v6936
        %v7216 = vunpack.c.l.b16 %v6937
        %v7217 = vunpack.c.l.b16 %v6938
        %v7218 = vunpack.c.l.b16 %v6939
        %v7219 = vunpack.c.l.b16 %v6940
        %v7220 = vunpack.c.l.b16 %v6941
        %v7221 = vunpack.c.l.b16 %v6942
        %v7222 = vunpack.c.l.b16 %v6943
        %v7223 = vunpack.c.l.b16 %v6944
        %v7224 = vunpack.c.l.b16 %v6945
        %v7225 = vunpack.c.l.b16 %v6946
        %v7226 = vunpack.c.l.b16 %v6947
        %v7227 = vunpack.c.l.b16 %v6948
        %v7228 = vunpack.c.l.b16 %v6949
        %v7229 = vunpack.c.l.b16 %v6950
        %v7230 = vunpack.c.l.b16 %v6951
        %v7231 = vunpack.c.l.b16 %v6952
        %v7232 = vunpack.c.l.b16 %v6953
        %v7233 = vunpack.c.l.b16 %v6954
        %v7234 = vunpack.c.l.b16 %v6955
        %v7235 = vunpack.c.l.b16 %v6956
        %v7236 = vunpack.c.l.b16 %v6957
        %v7237 = vunpack.c.l.b16 %v6958
        %v7238 = vunpack.c.l.b16 %v6959
        %v7239 = vunpack.c.l.b16 %v6960
        %v7240 = vunpack.c.l.b16 %v6961
        %v7241 = vunpack.c.l.b16 %v6962
        %v7242 = vunpack.c.l.b16 %v6963
        %v7243 = vunpack.c.l.b16 %v6964
        %v7244 = vunpack.c.l.b16 %v6965
        %v7245 = vunpack.c.l.b16 %v6966
        %v7246 = vunpack.c.l.b16 %v6967
        %v7247 = vunpack.c.l.b16 %v6968
        %v7248 = vunpack.c.l.b16 %v6969
        %v7249 = vunpack.c.l.b16 %v6970
        %v7250 = vunpack.c.l.b16 %v6971
        %v7251 = vunpack.c.l.b16 %v6972
        %v7252 = vunpack.c.l.b16 %v6973
        %v7253 = vunpack.c.l.b16 %v6974
        %v7254 = vunpack.c.l.b16 %v6975
        %v7255 = vunpack.c.l.b16 %v6976
        %v7256 = vunpack.c.l.b16 %v6977
        %v7257 = vunpack.c.l.b16 %v6978
        %v7258 = vunpack.c.l.b16 %v6979
        %v7259 = vunpack.c.l.b16 %v6980
        %v7260 = vunpack.c.l.b16 %v6981
        %v7261 = vunpack.c.l.b16 %v6982
        %v7262 = vunpack.c.l.b16 %v6983
        %v7263 = vunpack.c.l.b16 %v6984
        %v7264 = vunpack.c.l.b16 %v6985
        %v7265 = vunpack.c.l.b16 %v6986
        %v7266 = vunpack.c.l.b16 %v6987
        %v7267 = vunpack.c.l.b16 %v6988
        %v7268 = vunpack.c.l.b16 %v6989
        %v7269 = vunpack.c.l.b16 %v6990
        %v7270 = vunpack.c.l.b16 %v6991
        %v7271 = vunpack.c.l.b16 %v6992
        %v7272 = vunpack.c.l.b16 %v6993
        %v7273 = vunpack.c.l.b16 %v6994
        %v7274 = vunpack.c.l.b16 %v6995
        %v7275 = vunpack.c.l.b16 %v6996
        %v7276 = vpack.c.b16 %v7149, %v7148
        %v7277 = vpack.c.b16 %v7151, %v7150
        %v7278 = vpack.c.b16 %v7153, %v7152
        %v7279 = vpack.c.b16 %v7155, %v7154
        %v7280 = vpack.c.b16 %v7157, %v7156
        %v7281 = vpack.c.b16 %v7159, %v7158
        %v7282 = vpack.c.b16 %v7161, %v7160
        %v7283 = vpack.c.b16 %v7163, %v7162
        %v7284 = vpack.c.b16 %v7165, %v7164
        %v7285 = vpack.c.b16 %v7167, %v7166
        %v7286 = vpack.c.b16 %v7169, %v7168
        %v7287 = vpack.c.b16 %v7171, %v7170
        %v7288 = vpack.c.b16 %v7173, %v7172
        %v7289 = vpack.c.b16 %v7175, %v7174
        %v7290 = vpack.c.b16 %v7177, %v7176
        %v7291 = vpack.c.b16 %v7179, %v7178
        %v7292 = vpack.c.b16 %v7181, %v7180
        %v7293 = vpack.c.b16 %v7183, %v7182
        %v7294 = vpack.c.b16 %v7185, %v7184
        %v7295 = vpack.c.b16 %v7187, %v7186
        %v7296 = vpack.c.b16 %v7189, %v7188
        %v7297 = vpack.c.b16 %v7191, %v7190
        %v7298 = vpack.c.b16 %v7193, %v7192
        %v7299 = vpack.c.b16 %v7195, %v7194
        %v7300 = vpack.c.b16 %v7197, %v7196
        %v7301 = vpack.c.b16 %v7199, %v7198
        %v7302 = vpack.c.b16 %v7201, %v7200
        %v7303 = vpack.c.b16 %v7203, %v7202
        %v7304 = vpack.c.b16 %v7205, %v7204
        %v7305 = vpack.c.b16 %v7207, %v7206
        %v7306 = vpack.c.b16 %v7209, %v7208
        %v7307 = vpack.c.b16 %v7211, %v7210
        %v7308 = vpack.c.b16 %v7213, %v7212
        %v7309 = vpack.c.b16 %v7215, %v7214
        %v7310 = vpack.c.b16 %v7217, %v7216
        %v7311 = vpack.c.b16 %v7219, %v7218
        %v7312 = vpack.c.b16 %v7221, %v7220
        %v7313 = vpack.c.b16 %v7223, %v7222
        %v7314 = vpack.c.b16 %v7225, %v7224
        %v7315 = vpack.c.b16 %v7227, %v7226
        %v7316 = vpack.c.b16 %v7229, %v7228
        %v7317 = vpack.c.b16 %v7231, %v7230
        %v7318 = vpack.c.b16 %v7233, %v7232
        %v7319 = vpack.c.b16 %v7235, %v7234
        %v7320 = vpack.c.b16 %v7237, %v7236
        %v7321 = vpack.c.b16 %v7239, %v7238
        %v7322 = vpack.c.b16 %v7241, %v7240
        %v7323 = vpack.c.b16 %v7243, %v7242
        %v7324 = vpack.c.b16 %v7245, %v7244
        %v7325 = vpack.c.b16 %v7247, %v7246
        %v7326 = vpack.c.b16 %v7249, %v7248
        %v7327 = vpack.c.b16 %v7251, %v7250
        %v7328 = vpack.c.b16 %v7253, %v7252
        %v7329 = vpack.c.b16 %v7255, %v7254
        %v7330 = vpack.c.b16 %v7257, %v7256
        %v7331 = vpack.c.b16 %v7259, %v7258
        %v7332 = vpack.c.b16 %v7261, %v7260
        %v7333 = vpack.c.b16 %v7263, %v7262
        %v7334 = vpack.c.b16 %v7265, %v7264
        %v7335 = vpack.c.b16 %v7267, %v7266
        %v7336 = vpack.c.b16 %v7269, %v7268
        %v7337 = vpack.c.b16 %v7271, %v7270
        %v7338 = vpack.c.b16 %v7273, %v7272
        %v7339 = vpack.c.b16 %v7275, %v7274
        %7404 = vmatprep.subr.bf16.mxu0 0
        %7405 = vmatpush1.bf16.msra.mxu0 %v7283
        %7406 = vmatprep.subr.bf16.mxu0 0
        %7407 = vmatpush1.bf16.msra.mxu0 %v7282
        %7408 = vmatprep.subr.bf16.mxu0 0
        %7409 = vmatpush1.bf16.msra.mxu0 %v7281
        %7410 = vmatprep.subr.bf16.mxu0 0
        %7411 = vmatpush1.bf16.msra.mxu0 %v7280
        %7412 = vmatprep.subr.bf16.mxu0 0
        %7413 = vmatpush1.bf16.msra.mxu0 %v7279
        %7414 = vmatprep.subr.bf16.mxu0 0
        %7415 = vmatpush1.bf16.msra.mxu0 %v7278
        %7416 = vmatprep.subr.bf16.mxu0 0
        %7417 = vmatpush1.bf16.msra.mxu0 %v7277
        %7418 = vmatprep.subr.bf16.mxu0 0
        %7419 = vmatpush1.bf16.msra.mxu0 %v7276
        %7420 = vmatprep.subr.bf16.mxu0 0
        %7421 = vmatpush2.bf16.msra.mxu0 %v7291
        %7422 = vmatprep.subr.bf16.mxu0 0
        %7423 = vmatpush2.bf16.msra.mxu0 %v7290
        %7424 = vmatprep.subr.bf16.mxu0 0
        %7425 = vmatpush2.bf16.msra.mxu0 %v7289
        %7426 = vmatprep.subr.bf16.mxu0 0
        %7427 = vmatpush2.bf16.msra.mxu0 %v7288
        %7428 = vmatprep.subr.bf16.mxu0 0
        %7429 = vmatpush2.bf16.msra.mxu0 %v7287
        %7430 = vmatprep.subr.bf16.mxu0 0
        %7431 = vmatpush2.bf16.msra.mxu0 %v7286
        %7432 = vmatprep.subr.bf16.mxu0 0
        %7433 = vmatpush2.bf16.msra.mxu0 %v7285
        %7434 = vmatprep.subr.bf16.mxu0 0
        %7435 = vmatpush2.bf16.msra.mxu0 %v7284
        %7436 = vmatprep.mubr.bf16.mxu0 %v6999
        %7437 = vmatmul.mubr.bf16.gmra.mxu0 %v6998
        %v7438 = vpop.f32.mrf.mxu0
        %v7439 = vadd.f32 %v7018, %v7438
        %v7440 = vpop.f32.mrf.mxu0
        %v7441 = vpop.f32.mrf.mxu0
        %v7442 = vadd.f32 %v7018, %v7441
        %v7443 = vpop.f32.mrf.mxu0
        %7444 = vmatprep.mubr.bf16.mxu0 %v7007
        %7445 = vmatmul.mubr.bf16.gmra.mxu0 %v7006
        %v7446 = vpop.f32.mrf.mxu0
        %v7447 = vadd.f32 %v7018, %v7446
        %v7448 = vpop.f32.mrf.mxu0
        %v7449 = vpop.f32.mrf.mxu0
        %v7450 = vadd.f32 %v7018, %v7449
        %v7451 = vpop.f32.mrf.mxu0
        %7452 = vdwg.mxu0
        %7453 = vmatprep.subr.bf16.mxu0 0
        %7454 = vmatpush1.bf16.msra.mxu0 %v7299
        %7455 = vmatprep.subr.bf16.mxu0 0
        %7456 = vmatpush1.bf16.msra.mxu0 %v7298
        %7457 = vmatprep.subr.bf16.mxu0 0
        %7458 = vmatpush1.bf16.msra.mxu0 %v7297
        %7459 = vmatprep.subr.bf16.mxu0 0
        %7460 = vmatpush1.bf16.msra.mxu0 %v7296
        %7461 = vmatprep.subr.bf16.mxu0 0
        %7462 = vmatpush1.bf16.msra.mxu0 %v7295
        %7463 = vmatprep.subr.bf16.mxu0 0
        %7464 = vmatpush1.bf16.msra.mxu0 %v7294
        %7465 = vmatprep.subr.bf16.mxu0 0
        %7466 = vmatpush1.bf16.msra.mxu0 %v7293
        %7467 = vmatprep.subr.bf16.mxu0 0
        %7468 = vmatpush1.bf16.msra.mxu0 %v7292
        %7469 = vmatprep.subr.bf16.mxu0 0
        %7470 = vmatpush2.bf16.msra.mxu0 %v7307
        %7471 = vmatprep.subr.bf16.mxu0 0
        %7472 = vmatpush2.bf16.msra.mxu0 %v7306
        %7473 = vmatprep.subr.bf16.mxu0 0
        %7474 = vmatpush2.bf16.msra.mxu0 %v7305
        %7475 = vmatprep.subr.bf16.mxu0 0
        %7476 = vmatpush2.bf16.msra.mxu0 %v7304
        %7477 = vmatprep.subr.bf16.mxu0 0
        %7478 = vmatpush2.bf16.msra.mxu0 %v7303
        %7479 = vmatprep.subr.bf16.mxu0 0
        %7480 = vmatpush2.bf16.msra.mxu0 %v7302
        %7481 = vmatprep.subr.bf16.mxu0 0
        %7482 = vmatpush2.bf16.msra.mxu0 %v7301
        %7483 = vmatprep.subr.bf16.mxu0 0
        %7484 = vmatpush2.bf16.msra.mxu0 %v7300
        %7485 = vmatprep.mubr.bf16.mxu0 %v7001
        %7486 = vmatmul.mubr.bf16.gmra.mxu0 %v7000
        %v7487 = vpop.f32.mrf.mxu0
        %v7488 = vadd.f32 %v7439, %v7487
        %v7489 = vpop.f32.mrf.mxu0
        %v7490 = vpop.f32.mrf.mxu0
        %v7491 = vadd.f32 %v7442, %v7490
        %v7492 = vpop.f32.mrf.mxu0
        %7493 = vmatprep.mubr.bf16.mxu0 %v7009
        %7494 = vmatmul.mubr.bf16.gmra.mxu0 %v7008
        %v7495 = vpop.f32.mrf.mxu0
        %v7496 = vadd.f32 %v7447, %v7495
        %v7497 = vpop.f32.mrf.mxu0
        %v7498 = vpop.f32.mrf.mxu0
        %v7499 = vadd.f32 %v7450, %v7498
        %v7500 = vpop.f32.mrf.mxu0
        %7501 = vdwg.mxu0
        %7502 = vmatprep.subr.bf16.mxu0 0
        %7503 = vmatpush1.bf16.msra.mxu0 %v7315
        %7504 = vmatprep.subr.bf16.mxu0 0
        %7505 = vmatpush1.bf16.msra.mxu0 %v7314
        %7506 = vmatprep.subr.bf16.mxu0 0
        %7507 = vmatpush1.bf16.msra.mxu0 %v7313
        %7508 = vmatprep.subr.bf16.mxu0 0
        %7509 = vmatpush1.bf16.msra.mxu0 %v7312
        %7510 = vmatprep.subr.bf16.mxu0 0
        %7511 = vmatpush1.bf16.msra.mxu0 %v7311
        %7512 = vmatprep.subr.bf16.mxu0 0
        %7513 = vmatpush1.bf16.msra.mxu0 %v7310
        %7514 = vmatprep.subr.bf16.mxu0 0
        %7515 = vmatpush1.bf16.msra.mxu0 %v7309
        %7516 = vmatprep.subr.bf16.mxu0 0
        %7517 = vmatpush1.bf16.msra.mxu0 %v7308
        %7518 = vmatprep.subr.bf16.mxu0 0
        %7519 = vmatpush2.bf16.msra.mxu0 %v7323
        %7520 = vmatprep.subr.bf16.mxu0 0
        %7521 = vmatpush2.bf16.msra.mxu0 %v7322
        %7522 = vmatprep.subr.bf16.mxu0 0
        %7523 = vmatpush2.bf16.msra.mxu0 %v7321
        %7524 = vmatprep.subr.bf16.mxu0 0
        %7525 = vmatpush2.bf16.msra.mxu0 %v7320
        %7526 = vmatprep.subr.bf16.mxu0 0
        %7527 = vmatpush2.bf16.msra.mxu0 %v7319
        %7528 = vmatprep.subr.bf16.mxu0 0
        %7529 = vmatpush2.bf16.msra.mxu0 %v7318
        %7530 = vmatprep.subr.bf16.mxu0 0
        %7531 = vmatpush2.bf16.msra.mxu0 %v7317
        %7532 = vmatprep.subr.bf16.mxu0 0
        %7533 = vmatpush2.bf16.msra.mxu0 %v7316
        %7534 = vmatprep.mubr.bf16.mxu0 %v7003
        %7535 = vmatmul.mubr.bf16.gmra.mxu0 %v7002
        %v7536 = vpop.f32.mrf.mxu0
        %v7537 = vadd.f32 %v7488, %v7536
        %v7538 = vpop.f32.mrf.mxu0
        %v7539 = vpop.f32.mrf.mxu0
        %v7540 = vadd.f32 %v7491, %v7539
        %v7541 = vpop.f32.mrf.mxu0
        %7542 = vmatprep.mubr.bf16.mxu0 %v7011
        %7543 = vmatmul.mubr.bf16.gmra.mxu0 %v7010
        %v7544 = vpop.f32.mrf.mxu0
        %v7545 = vadd.f32 %v7496, %v7544
        %v7546 = vpop.f32.mrf.mxu0
        %v7547 = vpop.f32.mrf.mxu0
        %v7548 = vadd.f32 %v7499, %v7547
        %v7549 = vpop.f32.mrf.mxu0
        %7550 = vdwg.mxu0
        %7551 = vmatprep.subr.bf16.mxu0 0
        %7552 = vmatpush1.bf16.msra.mxu0 %v7331
        %7553 = vmatprep.subr.bf16.mxu0 0
        %7554 = vmatpush1.bf16.msra.mxu0 %v7330
        %7555 = vmatprep.subr.bf16.mxu0 0
        %7556 = vmatpush1.bf16.msra.mxu0 %v7329
        %7557 = vmatprep.subr.bf16.mxu0 0
        %7558 = vmatpush1.bf16.msra.mxu0 %v7328
        %7559 = vmatprep.subr.bf16.mxu0 0
        %7560 = vmatpush1.bf16.msra.mxu0 %v7327
        %7561 = vmatprep.subr.bf16.mxu0 0
        %7562 = vmatpush1.bf16.msra.mxu0 %v7326
        %7563 = vmatprep.subr.bf16.mxu0 0
        %7564 = vmatpush1.bf16.msra.mxu0 %v7325
        %7565 = vmatprep.subr.bf16.mxu0 0
        %7566 = vmatpush1.bf16.msra.mxu0 %v7324
        %7567 = vmatprep.subr.bf16.mxu0 0
        %7568 = vmatpush2.bf16.msra.mxu0 %v7339
        %7569 = vmatprep.subr.bf16.mxu0 0
        %7570 = vmatpush2.bf16.msra.mxu0 %v7338
        %7571 = vmatprep.subr.bf16.mxu0 0
        %7572 = vmatpush2.bf16.msra.mxu0 %v7337
        %7573 = vmatprep.subr.bf16.mxu0 0
        %7574 = vmatpush2.bf16.msra.mxu0 %v7336
        %7575 = vmatprep.subr.bf16.mxu0 0
        %7576 = vmatpush2.bf16.msra.mxu0 %v7335
        %7577 = vmatprep.subr.bf16.mxu0 0
        %7578 = vmatpush2.bf16.msra.mxu0 %v7334
        %7579 = vmatprep.subr.bf16.mxu0 0
        %7580 = vmatpush2.bf16.msra.mxu0 %v7333
        %7581 = vmatprep.subr.bf16.mxu0 0
        %7582 = vmatpush2.bf16.msra.mxu0 %v7332
        %7583 = vmatprep.mubr.bf16.mxu0 %v7005
        %7584 = vmatmul.mubr.bf16.gmra.mxu0 %v7004
        %v7585 = vpop.f32.mrf.mxu0
        %v7586 = vadd.f32 %v7537, %v7585
        %v7587 = vpop.f32.mrf.mxu0
        %v7588 = vpop.f32.mrf.mxu0
        %v7589 = vadd.f32 %v7540, %v7588
        %v7590 = vpop.f32.mrf.mxu0
        %7591 = vmatprep.mubr.bf16.mxu0 %v7013
        %7592 = vmatmul.mubr.bf16.gmra.mxu0 %v7012
        %v7593 = vpop.f32.mrf.mxu0
        %v7594 = vadd.f32 %v7545, %v7593
        %v7595 = vpop.f32.mrf.mxu0
        %v7596 = vpop.f32.mrf.mxu0
        %v7597 = vadd.f32 %v7548, %v7596
        %v7598 = vpop.f32.mrf.mxu0
        %7599 = vdwg.mxu0
        %7600 = vst [vmem:[%s720] sm:$0xff] %v7586
        %7601 = vst [vmem:[%s720 + $0x8] sm:$0xff] %v7589
        %7602 = vst [vmem:[%s720 + $0x10] sm:$0xff] %v7594
        %7603 = vst [vmem:[%s720 + $0x18] sm:$0xff] %v7597
        %s7604 = sand.u32 %s410, 1
        %s7605 = scalar_lea.sflag [#allocation4], %s7604
        %s7606 = sand.u32 %s410, 1
        %s7607 = smul.addr %s7606, 32
        %s7608 = scalar_lea.vmem [#allocation22], %s7607
        // Predicated region
        $region137: #{tpu_custom_call.1} parent=87 // pred_check
          %p7609 = pneg %p420
        $region138: #{tpu_custom_call.1} parent=87 // pred_check_branch
          %7611 = sbr.rel (%p7609) target = $region140
        $region139: #{tpu_custom_call.1} parent=87 // pred_region
          %s7612 = smul.u32 4, %s40
          %s7614 = ssub.s32 512, 512
          %7615 = vsyncadd %s7605, %s7614
          %s7616 = smul.addr %s7612, 128
          %s7617 = scalar_lea.hbm %s17, %s7616
          %s7618 = sshll.u32 %s7608, 4
          %s7619 = int_to_ptr.vmem [resolvable:$true] %s7618
          %7624 = dma.vmem_to_hbm [thread:$0]  %s7619, 512, %s7617, %s7605, 128, 128, 8
        $region140: #{tpu_custom_call.1} parent=87 // pred_fallthru
          _
      $region88: #{tpu_custom_call.1} parent=5 // pred_fallthru
        _
      %p7625 = scmp.le.s32.totalorder 2, %s35
      // Predicated region
      $region141: #{tpu_custom_call.1} parent=5 // pred_check
        %p7626 = pneg %p7625
      $region142: #{tpu_custom_call.1} parent=5 // pred_check_branch
        %7628 = sbr.rel (%p7626) target = $region144
      $region143: #{tpu_custom_call.1} parent=5 // pred_region
        %s7629 = ssub.s32 %s35, 2
        // Predicated region
        $region145: #{tpu_custom_call.1} parent=143 // pred_check
          %p7630 = pneg %p426
        $region146: #{tpu_custom_call.1} parent=143 // pred_check_branch
          %7632 = sbr.rel (%p7630) target = $region148
        $region147: #{tpu_custom_call.1} parent=143 // pred_region
          %s7633 = sand.u32 %s411, 1
          %s7634 = scalar_lea.sflag [#allocation4], %s7633
          %s7635 = sand.u32 %s411, 1
          %s7636 = smul.addr %s7635, 32
          %s7637 = scalar_lea.vmem [#allocation22], %s7636
          %7638 = dma.done %s7634, 512
        $region148: #{tpu_custom_call.1} parent=143 // pred_fallthru
          _
      $region144: #{tpu_custom_call.1} parent=5 // pred_fallthru
        _
    $region6: #{tpu_custom_call.1} parent=1 // loop_footer
      %s39 = sadd.s32 1, %s35
    $region7: #{tpu_custom_call.1} parent=1 // loop_footer_branch
      %34 = sbr.rel target = $region3
    $region8: #{tpu_custom_call.1} parent=1 // loop_exit
      _
    %7639 = vsyncpa [#allocation3], 1
    %s7640 = scalar_lea.sflag [#allocation3], 1
    %7641 = vsyncpa %s7640, 1
    %7642 = vsyncpa [#allocation6], 1
    %7643 = vsyncpa [#allocation9], 1
    %7644 = vsyncpa [#allocation12], 1
    %7645 = vsyncpa [#allocation15], 1
    %7646 = vsyncpa [#allocation18], 1
    %7647 = vsyncpa [#allocation21], 1
    %7648 = vsyncpa [#allocation4], 1
    %s7649 = scalar_lea.sflag [#allocation4], 1
    %7650 = vsyncpa %s7649, 1

</llo_original>
